<compile_context>
chip_gen: v7x
topology: tpu7x:2x2x1
jax: 0.10.0
libtpu: 0.0.40
codegen_flags: <defaults>
</compile_context>

<pallas_src>
import functools

import numpy as np
import jax
import jax.numpy as jnp
from jax.experimental import pallas as pl
from jax.experimental.pallas import tpu as pltpu

VMEM = pl.BlockSpec(memory_space=pltpu.MemorySpace.VMEM)
LEAKY_SLOPE = 0.01        # nn.LeakyReLU default
BN_EPS = 1e-5             # nn.BatchNorm1d default
ENC_FILTERS = [32, 64, 128, 256]
BF16 = jnp.bfloat16

# BatchNorm gamma/beta pack layout (2, 736): row 0 = gammas, row 1 = betas.
_GB_LAYOUT = (('e1', 32), ('e2', 64), ('e3', 128), ('e4', 256),
              ('d1', 128), ('d2', 64), ('d3', 32), ('f', 32))
_GB_OFF = {}
_o = 0
for _n, _c in _GB_LAYOUT:
    _GB_OFF[_n] = (_o, _c)
    _o += _c
_GB_TOTAL = _o            # 736


# --------------------------- in-kernel helpers -------------------------------

def _sel(cond):
    """bool -> {0,1} bf16 matrix (exact; used as MXU selection/permutation)."""
    return jnp.where(cond, 1.0, 0.0).astype(BF16)


def _gather_rows_mat(n_out, n_in, factor, offset):
    """M[r_out, r_in] = 1  iff  r_in == factor*r_out + offset  (row gather)."""
    io = jax.lax.broadcasted_iota(jnp.int32, (n_out, n_in), 0)
    ii = jax.lax.broadcasted_iota(jnp.int32, (n_out, n_in), 1)
    return _sel(ii == factor * io + offset)


def _scatter_rows_mat(n_out, n_in, factor, offset):
    """M[r_out, r_in] = 1  iff  r_out == factor*r_in + offset  (row scatter)."""
    io = jax.lax.broadcasted_iota(jnp.int32, (n_out, n_in), 0)
    ii = jax.lax.broadcasted_iota(jnp.int32, (n_out, n_in), 1)
    return _sel(io == factor * ii + offset)


def _shift_rows_mat(n, delta, period):
    """M[r_out, r_in] = 1 iff r_in == r_out + delta AND the shift stays inside
    the same `period`-row block (no crossing batch boundaries).  Rows with no
    valid source are all-zero -> result row is 0 (the conv zero-padding)."""
    io = jax.lax.broadcasted_iota(jnp.int32, (n, n), 0)
    ii = jax.lax.broadcasted_iota(jnp.int32, (n, n), 1)
    ok = ii == io + delta
    pos = io & (period - 1)                       # period is a power of two
    if delta < 0:
        ok = ok & (pos >= -delta)
    else:
        ok = ok & (pos < period - delta)
    return _sel(ok)


def _mm(a, b):
    """bf16 MXU matmul with f32 accumulation."""
    return jnp.dot(a.astype(BF16), b.astype(BF16),
                   preferred_element_type=jnp.float32)


def _fold_groups(row, groups, c):
    s = row[:, 0:c]
    for g in range(1, groups):
        s = s + row[:, g * c:(g + 1) * c]
    return s


def _tile_groups(row, groups):
    return row if groups == 1 else jnp.concatenate([row] * groups, axis=1)


def _bn_lrelu(y, gamma, beta, groups, n_extra_zero=0):
    """Training-mode BatchNorm1d (biased var, two-pass/centered) + LeakyReLU.

    y:(M, groups*C) grouped pre-activation, gamma/beta:(1, C).
    `n_extra_zero` implicit zero-valued samples per channel (the ConvTranspose
    output_padding positions) are folded into the statistics.
    Conv bias is omitted on purpose: a per-channel constant is cancelled by the
    batch-mean subtraction, so the post-BN result is identical to PyTorch.
    """
    m = y.shape[0]
    c = gamma.shape[1]
    n = float(m * groups + n_extra_zero)
    mean = _fold_groups(jnp.sum(y, axis=0, keepdims=True), groups, c) / n
    diff = y - _tile_groups(mean, groups)
    var = _fold_groups(jnp.sum(diff * diff, axis=0, keepdims=True), groups, c)
    if n_extra_zero:
        var = var + n_extra_zero * (mean * mean)   # (0 - mean)^2 pad samples
    var = var / n
    scale = jax.lax.rsqrt(var + BN_EPS) * gamma
    shift = beta - mean * scale
    yn = y * _tile_groups(scale, groups) + _tile_groups(shift, groups)
    act = jnp.where(yn > 0, yn, LEAKY_SLOPE * yn)
    return act, shift                              # shift == BN value of a 0 input


# --------------------------- the fused kernel ---------------------------------

def _betavae_kernel(x_ref, eps_ref,
                    w1_ref, w2_ref, w3_ref, w4_ref,
                    wmv_ref, bmv_ref, wdec_ref, bdec_ref,
                    wd1_ref, wd2_ref, wd3_ref, wct_ref,
                    wfin_ref, bfin_ref, gb_ref,
                    mu_ref, lv_ref, out_ref):
    B = x_ref.shape[0] // 8
    latent = eps_ref.shape[1]

    def gamma_beta(name):
        off, c = _GB_OFF[name]
        return gb_ref[0:1, off:off + c], gb_ref[1:2, off:off + c]

    # ---------------- encoder: 4 x [Conv1d(k=4,s=4) + BN(train) + LeakyReLU] --
    # x rows: (b, t) t=0..7, each row = 64 input samples = 16 conv-1 windows.
    g, bt = gamma_beta('e1')
    a1, _ = _bn_lrelu(_mm(x_ref[...], w1_ref[...]), g, bt, groups=16)   # (8B,512)
    g, bt = gamma_beta('e2')
    a2, _ = _bn_lrelu(_mm(a1, w2_ref[...]), g, bt, groups=4)            # (8B,256)
    g, bt = gamma_beta('e3')
    a3, _ = _bn_lrelu(_mm(a2, w3_ref[...]), g, bt, groups=1)            # (8B,128)

    # regroup 4 consecutive rows of a3 into the layer-4 patch layout (2B, 512)
    a3b = a3.astype(BF16)
    patch = jnp.concatenate(
        [_mm(_gather_rows_mat(2 * B, 8 * B, 4, q), a3b) for q in range(4)],
        axis=1)
    g, bt = gamma_beta('e4')
    a4, _ = _bn_lrelu(_mm(patch, w4_ref[...]), g, bt, groups=1)         # (2B,256)

    # torch.flatten (channel-major) handled by row gather + pre-permuted weights
    a4b = a4.astype(BF16)
    flat = jnp.concatenate(
        [_mm(_gather_rows_mat(B, 2 * B, 2, l), a4b) for l in range(2)],
        axis=1)                                                         # (B,512)

    # ---------------- fc_mu + fc_var (one matmul) + reparameterize + dec_input
    mv = _mm(flat, wmv_ref[...]) + bmv_ref[...]
    mu = mv[:, :latent]
    log_var = mv[:, latent:]
    mu_ref[...] = mu
    lv_ref[...] = log_var
    z = eps_ref[...] * jnp.exp(0.5 * log_var) + mu
    d = _mm(z, wdec_ref[...]) + bdec_ref[...]                           # (B,512)

    # unflatten -> (2B, 256): scatter the two column halves into interleaved rows
    h = (_mm(_scatter_rows_mat(2 * B, B, 2, 0), d[:, 0:256].astype(BF16)) +
         _mm(_scatter_rows_mat(2 * B, B, 2, 1), d[:, 256:512].astype(BF16)))

    # ---------------- decoder: 3 x [ConvTranspose1d(k=4,s=4) + BN + LeakyReLU]
    for name, w_ref, cout in (('d1', wd1_ref, 128),
                              ('d2', wd2_ref, 64),
                              ('d3', wd3_ref, 32)):
        g, bt = gamma_beta(name)
        act, _ = _bn_lrelu(_mm(h, w_ref[...]), g, bt, groups=4)
        rows = act.shape[0]
        actb = act.astype(BF16)
        # un-group the 4 per-row output positions back into 4x more rows
        h = sum(_mm(_scatter_rows_mat(4 * rows, rows, 4, q),
                    actb[:, q * cout:(q + 1) * cout])
                for q in range(4))

    # ---------------- final ConvTranspose1d(32,32,4,4,output_padding=1)+BN+LReLU
    g, bt = gamma_beta('f')
    af, shift_f = _bn_lrelu(_mm(h, wct_ref[...]), g, bt, groups=4,
                            n_extra_zero=B)                             # (128B,128)
    pad_row = jnp.where(shift_f > 0, shift_f, LEAKY_SLOPE * shift_f)    # pos 512

    # ---------------- final Conv1d(32 -> 1, k=4, padding=1), grouped layout ----
    R = af.shape[0]                                                     # B*128
    afb = af.astype(BF16)
    prev3 = _mm(_shift_rows_mat(R, -1, 128), afb[:, 96:128])   # pos 4p-1 (0 at p=0)
    next0 = _mm(_shift_rows_mat(R, +1, 128), afb[:, 0:32])     # pos 4p+4
    next1 = _mm(_shift_rows_mat(R, +1, 128), afb[:, 32:64])    # pos 4p+5 (0 at p=127)
    last_mask = jnp.where(
        (jax.lax.broadcasted_iota(jnp.int32, (R, 32), 0) & 127) == 127, 1.0, 0.0)
    next0 = next0 + last_mask * pad_row        # output_padding position (pos 512)
    x_taps = jnp.concatenate([prev3, af, next0, next1], axis=1)         # (128B,224)
    out_ref[...] = _mm(x_taps, wfin_ref[...]) + bfin_ref[...]           # (128B,4)


# --------------------------- parameters ---------------------------------------

def init_params(key, latent_dim):
    """Random params in PyTorch layouts (Conv1d: (Cout,Cin,K), Linear: (out,in))."""
    def nrm(k, shape, scale=0.05):
        return scale * jax.random.normal(k, shape, dtype=jnp.float32)

    keys = iter(jax.random.split(key, 64))
    params = {}

    enc = []
    cin = 1
    for cout in ENC_FILTERS:
        enc.append(dict(
            w=nrm(next(keys), (cout, cin, 4)),
            b=nrm(next(keys), (cout,), 0.01),
            gamma=jnp.ones((cout,), jnp.float32),
            beta=jnp.zeros((cout,), jnp.float32)))
        cin = cout
    params['enc'] = enc

    params['fc_mu_w'] = nrm(next(keys), (latent_dim, 512))
    params['fc_mu_b'] = nrm(next(keys), (latent_dim,), 0.01)
    params['fc_var_w'] = nrm(next(keys), (latent_dim, 512))
    params['fc_var_b'] = nrm(next(keys), (latent_dim,), 0.01)
    params['dec_in_w'] = nrm(next(keys), (512, latent_dim))
    params['dec_in_b'] = nrm(next(keys), (512,), 0.01)

    dec_filters = list(reversed(ENC_FILTERS))      # [256, 128, 64, 32]
    dec = []
    for i in range(len(dec_filters) - 1):
        cin_d, cout_d = dec_filters[i], dec_filters[i + 1]
        dec.append(dict(
            w=nrm(next(keys), (cin_d, cout_d, 4)),
            b=nrm(next(keys), (cout_d,), 0.01),
            gamma=jnp.ones((cout_d,), jnp.float32),
            beta=jnp.zeros((cout_d,), jnp.float32)))
    params['dec'] = dec

    c = dec_filters[-1]                            # 32
    params['final_ct_w'] = nrm(next(keys), (c, c, 4))
    params['final_ct_b'] = nrm(next(keys), (c,), 0.01)
    params['final_gamma'] = jnp.ones((c,), jnp.float32)
    params['final_beta'] = jnp.zeros((c,), jnp.float32)
    params['final_conv_w'] = nrm(next(keys), (1, c, 4))
    params['final_conv_b'] = nrm(next(keys), (1,), 0.01)
    return params


def prepare_params(p):
    """One-time conversion of torch-layout weights into fused-kernel layouts.

    Conv1d / ConvTranspose1d biases are intentionally unused: training-mode
    BatchNorm subtracts the batch mean, so a constant per-channel shift has
    exactly zero effect on the output (including the output_padding position).
    """
    f32 = jnp.float32

    def conv_mat(w):                   # torch Conv1d (cout, cin, k) -> (k*cin, cout)
        cout, cin, k = w.shape
        return jnp.transpose(w, (2, 1, 0)).reshape(k * cin, cout)

    def convT_mat(w):                  # torch ConvT1d (cin, cout, k) -> (cin, k*cout)
        cin, cout, k = w.shape
        return jnp.transpose(w, (0, 2, 1)).reshape(cin, k * cout)

    def block_diag(blk, g):
        kk, nn = blk.shape
        out = jnp.zeros((g * kk, g * nn), blk.dtype)
        for i in range(g):
            out = out.at[i * kk:(i + 1) * kk, i * nn:(i + 1) * nn].set(blk)
        return out

    q = {}
    # encoder conv weights (lane-dense, matmul-ready, bf16)
    q['w1'] = block_diag(conv_mat(p['enc'][0]['w']), 16).astype(BF16)   # (64, 512)
    q['w2'] = block_diag(conv_mat(p['enc'][1]['w']), 4).astype(BF16)    # (512, 256)
    q['w3'] = conv_mat(p['enc'][2]['w']).astype(BF16)                   # (256, 128)
    q['w4'] = conv_mat(p['enc'][3]['w']).astype(BF16)                   # (512, 256)

    # torch.flatten of (B,256,2) is channel-major; our rows are position-major,
    # so permute the fc / decoder_input weights once instead of transposing data.
    perm = np.array([(i % 256) * 2 + (i // 256) for i in range(512)])
    wmv = jnp.concatenate([p['fc_mu_w'].T, p['fc_var_w'].T], axis=1)[perm, :]
    q['wmv'] = wmv.astype(BF16)                                         # (512, 2L)
    q['bmv'] = jnp.concatenate([p['fc_mu_b'], p['fc_var_b']])[None, :].astype(f32)
    q['wdec'] = p['dec_in_w'].T[:, perm].astype(BF16)                   # (L, 512)
    q['bdec'] = p['dec_in_b'][perm][None, :].astype(f32)                # (1, 512)

    # decoder / final ConvTranspose weights
    q['wd1'] = convT_mat(p['dec'][0]['w']).astype(BF16)                 # (256, 512)
    q['wd2'] = convT_mat(p['dec'][1]['w']).astype(BF16)                 # (128, 256)
    q['wd3'] = convT_mat(p['dec'][2]['w']).astype(BF16)                 # (64, 128)
    q['wct'] = convT_mat(p['final_ct_w']).astype(BF16)                  # (32, 128)

    # final Conv1d(32->1, k=4, padding=1) folded into one (7*32, 4) matmul weight
    wf = np.asarray(p['final_conv_w'][0])                               # (32, 4)
    wfin = np.zeros((7 * 32, 4), np.float32)
    for qq in range(4):
        for mb in range(7):
            k = mb - qq
            if 0 <= k <= 3:
                wfin[mb * 32:(mb + 1) * 32, qq] = wf[:, k]
    q['wfin'] = jnp.asarray(wfin, dtype=BF16)
    q['bfin'] = p['final_conv_b'].reshape(1, 1).astype(f32)

    # all BatchNorm gamma/beta packed into one (2, 736) tile (order = _GB_LAYOUT)
    gammas = [p['enc'][i]['gamma'] for i in range(4)] + \
             [p['dec'][i]['gamma'] for i in range(3)] + [p['final_gamma']]
    betas = [p['enc'][i]['beta'] for i in range(4)] + \
            [p['dec'][i]['beta'] for i in range(3)] + [p['final_beta']]
    gb = jnp.stack([jnp.concatenate(gammas), jnp.concatenate(betas)]).astype(f32)
    assert gb.shape == (2, _GB_TOTAL)
    q['gb'] = gb
    return q


# --------------------------- forward pass -------------------------------------

def beta_vae1d_forward(params, x_ncl, eps):
    """x_ncl: [B, 1, 512] (PyTorch NCL).  Returns (recons, input, mu, log_var)."""
    B = x_ncl.shape[0]
    assert x_ncl.shape[1:] == (1, 512), "architecture is fixed to 512 features"
    latent = eps.shape[1]

    x_rows = x_ncl.reshape(B * 8, 64)      # free, contiguous metadata reshape

    out_shapes = (jax.ShapeDtypeStruct((B, latent), jnp.float32),
                  jax.ShapeDtypeStruct((B, latent), jnp.float32),
                  jax.ShapeDtypeStruct((B * 128, 4), jnp.float32))

    mu, log_var, out_g = pl.pallas_call(
        _betavae_kernel,
        out_shape=out_shapes,
        in_specs=[VMEM] * 17,
        out_specs=(VMEM, VMEM, VMEM),
    )(x_rows, eps,
      params['w1'], params['w2'], params['w3'], params['w4'],
      params['wmv'], params['bmv'], params['wdec'], params['bdec'],
      params['wd1'], params['wd2'], params['wd3'], params['wct'],
      params['wfin'], params['bfin'], params['gb'])

    recons = out_g.reshape(B, 1, 512)      # free, contiguous metadata reshape
    return recons, x_ncl, mu, log_var


# --------------------------- driver --------------------------------------------

if __name__ == "__main__":
    key = jax.random.PRNGKey(0)
    kx, keps, kp = jax.random.split(key, 3)

    # features=512 is fixed by the architecture (fc_mu = Linear(512, latent)).
    B, latent_dim, features = 2, 32, 512
    x = jax.random.normal(kx, (B, 1, features), dtype=jnp.float32)
    eps = jax.random.normal(keps, (B, latent_dim), dtype=jnp.float32)
    params = prepare_params(init_params(kp, latent_dim))

    fwd = jax.jit(beta_vae1d_forward)
    recons, inp, mu, log_var = fwd(params, x, eps)
    jax.block_until_ready((recons, inp, mu, log_var))

    assert recons.shape == (B, 1, features)
    assert inp.shape == (B, 1, features)
    assert mu.shape == (B, latent_dim)
    assert log_var.shape == (B, latent_dim)
    assert bool(jnp.all(jnp.isfinite(recons)))
    assert bool(jnp.all(jnp.isfinite(mu))) and bool(jnp.all(jnp.isfinite(log_var)))
    print("KERNEL_OK")
</pallas_src>

<mosaic_0001>
module attributes {stable_mosaic.version = 11 : i64} {
  func.func @_betavae_kernel(%arg0: memref<16x64xf32, #tpu.memory_space<vmem>>, %arg1: memref<2x32xf32, #tpu.memory_space<vmem>>, %arg2: memref<64x512xbf16, #tpu.memory_space<vmem>>, %arg3: memref<512x256xbf16, #tpu.memory_space<vmem>>, %arg4: memref<256x128xbf16, #tpu.memory_space<vmem>>, %arg5: memref<512x256xbf16, #tpu.memory_space<vmem>>, %arg6: memref<512x64xbf16, #tpu.memory_space<vmem>>, %arg7: memref<1x64xf32, #tpu.memory_space<vmem>>, %arg8: memref<32x512xbf16, #tpu.memory_space<vmem>>, %arg9: memref<1x512xf32, #tpu.memory_space<vmem>>, %arg10: memref<256x512xbf16, #tpu.memory_space<vmem>>, %arg11: memref<128x256xbf16, #tpu.memory_space<vmem>>, %arg12: memref<64x128xbf16, #tpu.memory_space<vmem>>, %arg13: memref<32x128xbf16, #tpu.memory_space<vmem>>, %arg14: memref<224x4xbf16, #tpu.memory_space<vmem>>, %arg15: memref<1x1xf32, #tpu.memory_space<vmem>>, %arg16: memref<2x736xf32, #tpu.memory_space<vmem>>, %arg17: memref<2x32xf32, #tpu.memory_space<vmem>>, %arg18: memref<2x32xf32, #tpu.memory_space<vmem>>, %arg19: memref<256x4xf32, #tpu.memory_space<vmem>>) attributes {dimension_semantics = [], scalar_prefetch = 0 : i64, scratch_operands = 0 : i64, tpu.core_type = #tpu.core_type<tc>} {
    %c0 = arith.constant 0 : index
    %c0_0 = arith.constant 0 : index
    %0 = vector.load %arg16[%c0, %c0_0] : memref<2x736xf32, #tpu.memory_space<vmem>>, vector<1x32xf32>
    %c1 = arith.constant 1 : index
    %c0_1 = arith.constant 0 : index
    %1 = vector.load %arg16[%c1, %c0_1] : memref<2x736xf32, #tpu.memory_space<vmem>>, vector<1x32xf32>
    %c0_2 = arith.constant 0 : index
    %c0_3 = arith.constant 0 : index
    %2 = vector.load %arg0[%c0_2, %c0_3] : memref<16x64xf32, #tpu.memory_space<vmem>>, vector<16x64xf32>
    %c0_4 = arith.constant 0 : index
    %c0_5 = arith.constant 0 : index
    %3 = vector.load %arg2[%c0_4, %c0_5] : memref<64x512xbf16, #tpu.memory_space<vmem>>, vector<64x512xbf16>
    %4 = arith.truncf %2 : vector<16x64xf32> to vector<16x64xbf16>
    %cst = arith.constant dense<0.000000e+00> : vector<16x512xf32>
    %5 = tpu.matmul %4, %3, %cst {dimension_numbers = #tpu.dot_dimension_numbers<[1], [0], [0], [1], [0, 0, 1, 1], [], []>} : vector<16x64xbf16>, vector<64x512xbf16>, vector<16x512xf32> -> vector<16x512xf32>
    %cst_6 = arith.constant dense<0.000000e+00> : vector<512xf32>
    %6 = vector.multi_reduction <add>, %5, %cst_6 [0] : vector<16x512xf32> to vector<512xf32>
    %7 = vector.shape_cast %6 : vector<512xf32> to vector<1x512xf32>
    %8 = vector.extract_strided_slice %7 {offsets = [0, 0], sizes = [1, 32], strides = [1, 1]} : vector<1x512xf32> to vector<1x32xf32>
    %9 = vector.extract_strided_slice %7 {offsets = [0, 32], sizes = [1, 32], strides = [1, 1]} : vector<1x512xf32> to vector<1x32xf32>
    %10 = arith.addf %8, %9 : vector<1x32xf32>
    %11 = vector.extract_strided_slice %7 {offsets = [0, 64], sizes = [1, 32], strides = [1, 1]} : vector<1x512xf32> to vector<1x32xf32>
    %12 = arith.addf %10, %11 : vector<1x32xf32>
    %13 = vector.extract_strided_slice %7 {offsets = [0, 96], sizes = [1, 32], strides = [1, 1]} : vector<1x512xf32> to vector<1x32xf32>
    %14 = arith.addf %12, %13 : vector<1x32xf32>
    %15 = vector.extract_strided_slice %7 {offsets = [0, 128], sizes = [1, 32], strides = [1, 1]} : vector<1x512xf32> to vector<1x32xf32>
    %16 = arith.addf %14, %15 : vector<1x32xf32>
    %17 = vector.extract_strided_slice %7 {offsets = [0, 160], sizes = [1, 32], strides = [1, 1]} : vector<1x512xf32> to vector<1x32xf32>
    %18 = arith.addf %16, %17 : vector<1x32xf32>
    %19 = vector.extract_strided_slice %7 {offsets = [0, 192], sizes = [1, 32], strides = [1, 1]} : vector<1x512xf32> to vector<1x32xf32>
    %20 = arith.addf %18, %19 : vector<1x32xf32>
    %21 = vector.extract_strided_slice %7 {offsets = [0, 224], sizes = [1, 32], strides = [1, 1]} : vector<1x512xf32> to vector<1x32xf32>
    %22 = arith.addf %20, %21 : vector<1x32xf32>
    %23 = vector.extract_strided_slice %7 {offsets = [0, 256], sizes = [1, 32], strides = [1, 1]} : vector<1x512xf32> to vector<1x32xf32>
    %24 = arith.addf %22, %23 : vector<1x32xf32>
    %25 = vector.extract_strided_slice %7 {offsets = [0, 288], sizes = [1, 32], strides = [1, 1]} : vector<1x512xf32> to vector<1x32xf32>
    %26 = arith.addf %24, %25 : vector<1x32xf32>
    %27 = vector.extract_strided_slice %7 {offsets = [0, 320], sizes = [1, 32], strides = [1, 1]} : vector<1x512xf32> to vector<1x32xf32>
    %28 = arith.addf %26, %27 : vector<1x32xf32>
    %29 = vector.extract_strided_slice %7 {offsets = [0, 352], sizes = [1, 32], strides = [1, 1]} : vector<1x512xf32> to vector<1x32xf32>
    %30 = arith.addf %28, %29 : vector<1x32xf32>
    %31 = vector.extract_strided_slice %7 {offsets = [0, 384], sizes = [1, 32], strides = [1, 1]} : vector<1x512xf32> to vector<1x32xf32>
    %32 = arith.addf %30, %31 : vector<1x32xf32>
    %33 = vector.extract_strided_slice %7 {offsets = [0, 416], sizes = [1, 32], strides = [1, 1]} : vector<1x512xf32> to vector<1x32xf32>
    %34 = arith.addf %32, %33 : vector<1x32xf32>
    %35 = vector.extract_strided_slice %7 {offsets = [0, 448], sizes = [1, 32], strides = [1, 1]} : vector<1x512xf32> to vector<1x32xf32>
    %36 = arith.addf %34, %35 : vector<1x32xf32>
    %37 = vector.extract_strided_slice %7 {offsets = [0, 480], sizes = [1, 32], strides = [1, 1]} : vector<1x512xf32> to vector<1x32xf32>
    %38 = arith.addf %36, %37 : vector<1x32xf32>
    %cst_7 = arith.constant 2.560000e+02 : f32
    %39 = vector.broadcast %cst_7 : f32 to vector<1x32xf32>
    %40 = arith.divf %38, %39 : vector<1x32xf32>
    %41 = tpu.concatenate %40, %40, %40, %40, %40, %40, %40, %40, %40, %40, %40, %40, %40, %40, %40, %40 in 1 : vector<1x32xf32>, vector<1x32xf32>, vector<1x32xf32>, vector<1x32xf32>, vector<1x32xf32>, vector<1x32xf32>, vector<1x32xf32>, vector<1x32xf32>, vector<1x32xf32>, vector<1x32xf32>, vector<1x32xf32>, vector<1x32xf32>, vector<1x32xf32>, vector<1x32xf32>, vector<1x32xf32>, vector<1x32xf32> -> vector<1x512xf32>
    %42 = vector.broadcast %41 : vector<1x512xf32> to vector<16x512xf32>
    %43 = arith.subf %5, %42 : vector<16x512xf32>
    %44 = arith.mulf %43, %43 : vector<16x512xf32>
    %cst_8 = arith.constant dense<0.000000e+00> : vector<512xf32>
    %45 = vector.multi_reduction <add>, %44, %cst_8 [0] : vector<16x512xf32> to vector<512xf32>
    %46 = vector.shape_cast %45 : vector<512xf32> to vector<1x512xf32>
    %47 = vector.extract_strided_slice %46 {offsets = [0, 0], sizes = [1, 32], strides = [1, 1]} : vector<1x512xf32> to vector<1x32xf32>
    %48 = vector.extract_strided_slice %46 {offsets = [0, 32], sizes = [1, 32], strides = [1, 1]} : vector<1x512xf32> to vector<1x32xf32>
    %49 = arith.addf %47, %48 : vector<1x32xf32>
    %50 = vector.extract_strided_slice %46 {offsets = [0, 64], sizes = [1, 32], strides = [1, 1]} : vector<1x512xf32> to vector<1x32xf32>
    %51 = arith.addf %49, %50 : vector<1x32xf32>
    %52 = vector.extract_strided_slice %46 {offsets = [0, 96], sizes = [1, 32], strides = [1, 1]} : vector<1x512xf32> to vector<1x32xf32>
    %53 = arith.addf %51, %52 : vector<1x32xf32>
    %54 = vector.extract_strided_slice %46 {offsets = [0, 128], sizes = [1, 32], strides = [1, 1]} : vector<1x512xf32> to vector<1x32xf32>
    %55 = arith.addf %53, %54 : vector<1x32xf32>
    %56 = vector.extract_strided_slice %46 {offsets = [0, 160], sizes = [1, 32], strides = [1, 1]} : vector<1x512xf32> to vector<1x32xf32>
    %57 = arith.addf %55, %56 : vector<1x32xf32>
    %58 = vector.extract_strided_slice %46 {offsets = [0, 192], sizes = [1, 32], strides = [1, 1]} : vector<1x512xf32> to vector<1x32xf32>
    %59 = arith.addf %57, %58 : vector<1x32xf32>
    %60 = vector.extract_strided_slice %46 {offsets = [0, 224], sizes = [1, 32], strides = [1, 1]} : vector<1x512xf32> to vector<1x32xf32>
    %61 = arith.addf %59, %60 : vector<1x32xf32>
    %62 = vector.extract_strided_slice %46 {offsets = [0, 256], sizes = [1, 32], strides = [1, 1]} : vector<1x512xf32> to vector<1x32xf32>
    %63 = arith.addf %61, %62 : vector<1x32xf32>
    %64 = vector.extract_strided_slice %46 {offsets = [0, 288], sizes = [1, 32], strides = [1, 1]} : vector<1x512xf32> to vector<1x32xf32>
    %65 = arith.addf %63, %64 : vector<1x32xf32>
    %66 = vector.extract_strided_slice %46 {offsets = [0, 320], sizes = [1, 32], strides = [1, 1]} : vector<1x512xf32> to vector<1x32xf32>
    %67 = arith.addf %65, %66 : vector<1x32xf32>
    %68 = vector.extract_strided_slice %46 {offsets = [0, 352], sizes = [1, 32], strides = [1, 1]} : vector<1x512xf32> to vector<1x32xf32>
    %69 = arith.addf %67, %68 : vector<1x32xf32>
    %70 = vector.extract_strided_slice %46 {offsets = [0, 384], sizes = [1, 32], strides = [1, 1]} : vector<1x512xf32> to vector<1x32xf32>
    %71 = arith.addf %69, %70 : vector<1x32xf32>
    %72 = vector.extract_strided_slice %46 {offsets = [0, 416], sizes = [1, 32], strides = [1, 1]} : vector<1x512xf32> to vector<1x32xf32>
    %73 = arith.addf %71, %72 : vector<1x32xf32>
    %74 = vector.extract_strided_slice %46 {offsets = [0, 448], sizes = [1, 32], strides = [1, 1]} : vector<1x512xf32> to vector<1x32xf32>
    %75 = arith.addf %73, %74 : vector<1x32xf32>
    %76 = vector.extract_strided_slice %46 {offsets = [0, 480], sizes = [1, 32], strides = [1, 1]} : vector<1x512xf32> to vector<1x32xf32>
    %77 = arith.addf %75, %76 : vector<1x32xf32>
    %cst_9 = arith.constant 2.560000e+02 : f32
    %78 = vector.broadcast %cst_9 : f32 to vector<1x32xf32>
    %79 = arith.divf %77, %78 : vector<1x32xf32>
    %cst_10 = arith.constant 9.99999974E-6 : f32
    %80 = vector.broadcast %cst_10 : f32 to vector<1x32xf32>
    %81 = arith.addf %79, %80 : vector<1x32xf32>
    %82 = math.rsqrt %81 : vector<1x32xf32>
    %83 = arith.mulf %82, %0 : vector<1x32xf32>
    %84 = arith.mulf %40, %83 : vector<1x32xf32>
    %85 = arith.subf %1, %84 : vector<1x32xf32>
    %86 = tpu.concatenate %83, %83, %83, %83, %83, %83, %83, %83, %83, %83, %83, %83, %83, %83, %83, %83 in 1 : vector<1x32xf32>, vector<1x32xf32>, vector<1x32xf32>, vector<1x32xf32>, vector<1x32xf32>, vector<1x32xf32>, vector<1x32xf32>, vector<1x32xf32>, vector<1x32xf32>, vector<1x32xf32>, vector<1x32xf32>, vector<1x32xf32>, vector<1x32xf32>, vector<1x32xf32>, vector<1x32xf32>, vector<1x32xf32> -> vector<1x512xf32>
    %87 = vector.broadcast %86 : vector<1x512xf32> to vector<16x512xf32>
    %88 = arith.mulf %5, %87 : vector<16x512xf32>
    %89 = tpu.concatenate %85, %85, %85, %85, %85, %85, %85, %85, %85, %85, %85, %85, %85, %85, %85, %85 in 1 : vector<1x32xf32>, vector<1x32xf32>, vector<1x32xf32>, vector<1x32xf32>, vector<1x32xf32>, vector<1x32xf32>, vector<1x32xf32>, vector<1x32xf32>, vector<1x32xf32>, vector<1x32xf32>, vector<1x32xf32>, vector<1x32xf32>, vector<1x32xf32>, vector<1x32xf32>, vector<1x32xf32>, vector<1x32xf32> -> vector<1x512xf32>
    %90 = vector.broadcast %89 : vector<1x512xf32> to vector<16x512xf32>
    %91 = arith.addf %88, %90 : vector<16x512xf32>
    %cst_11 = arith.constant 0.000000e+00 : f32
    %92 = vector.broadcast %cst_11 : f32 to vector<16x512xf32>
    %93 = arith.cmpf ogt, %91, %92 : vector<16x512xf32>
    %cst_12 = arith.constant 0.00999999977 : f32
    %94 = vector.broadcast %cst_12 : f32 to vector<16x512xf32>
    %95 = arith.mulf %94, %91 : vector<16x512xf32>
    %96 = arith.select %93, %91, %95 : vector<16x512xi1>, vector<16x512xf32>
    %c0_13 = arith.constant 0 : index
    %c32 = arith.constant 32 : index
    %97 = vector.load %arg16[%c0_13, %c32] : memref<2x736xf32, #tpu.memory_space<vmem>>, vector<1x64xf32>
    %c1_14 = arith.constant 1 : index
    %c32_15 = arith.constant 32 : index
    %98 = vector.load %arg16[%c1_14, %c32_15] : memref<2x736xf32, #tpu.memory_space<vmem>>, vector<1x64xf32>
    %c0_16 = arith.constant 0 : index
    %c0_17 = arith.constant 0 : index
    %99 = vector.load %arg3[%c0_16, %c0_17] : memref<512x256xbf16, #tpu.memory_space<vmem>>, vector<512x256xbf16>
    %100 = arith.truncf %96 : vector<16x512xf32> to vector<16x512xbf16>
    %cst_18 = arith.constant dense<0.000000e+00> : vector<16x256xf32>
    %101 = tpu.matmul %100, %99, %cst_18 {dimension_numbers = #tpu.dot_dimension_numbers<[1], [0], [0], [1], [0, 0, 1, 1], [], []>} : vector<16x512xbf16>, vector<512x256xbf16>, vector<16x256xf32> -> vector<16x256xf32>
    %cst_19 = arith.constant dense<0.000000e+00> : vector<256xf32>
    %102 = vector.multi_reduction <add>, %101, %cst_19 [0] : vector<16x256xf32> to vector<256xf32>
    %103 = vector.shape_cast %102 : vector<256xf32> to vector<1x256xf32>
    %104 = vector.extract_strided_slice %103 {offsets = [0, 0], sizes = [1, 64], strides = [1, 1]} : vector<1x256xf32> to vector<1x64xf32>
    %105 = vector.extract_strided_slice %103 {offsets = [0, 64], sizes = [1, 64], strides = [1, 1]} : vector<1x256xf32> to vector<1x64xf32>
    %106 = arith.addf %104, %105 : vector<1x64xf32>
    %107 = vector.extract_strided_slice %103 {offsets = [0, 128], sizes = [1, 64], strides = [1, 1]} : vector<1x256xf32> to vector<1x64xf32>
    %108 = arith.addf %106, %107 : vector<1x64xf32>
    %109 = vector.extract_strided_slice %103 {offsets = [0, 192], sizes = [1, 64], strides = [1, 1]} : vector<1x256xf32> to vector<1x64xf32>
    %110 = arith.addf %108, %109 : vector<1x64xf32>
    %cst_20 = arith.constant 6.400000e+01 : f32
    %111 = vector.broadcast %cst_20 : f32 to vector<1x64xf32>
    %112 = arith.divf %110, %111 : vector<1x64xf32>
    %113 = tpu.concatenate %112, %112, %112, %112 in 1 : vector<1x64xf32>, vector<1x64xf32>, vector<1x64xf32>, vector<1x64xf32> -> vector<1x256xf32>
    %114 = vector.broadcast %113 : vector<1x256xf32> to vector<16x256xf32>
    %115 = arith.subf %101, %114 : vector<16x256xf32>
    %116 = arith.mulf %115, %115 : vector<16x256xf32>
    %cst_21 = arith.constant dense<0.000000e+00> : vector<256xf32>
    %117 = vector.multi_reduction <add>, %116, %cst_21 [0] : vector<16x256xf32> to vector<256xf32>
    %118 = vector.shape_cast %117 : vector<256xf32> to vector<1x256xf32>
    %119 = vector.extract_strided_slice %118 {offsets = [0, 0], sizes = [1, 64], strides = [1, 1]} : vector<1x256xf32> to vector<1x64xf32>
    %120 = vector.extract_strided_slice %118 {offsets = [0, 64], sizes = [1, 64], strides = [1, 1]} : vector<1x256xf32> to vector<1x64xf32>
    %121 = arith.addf %119, %120 : vector<1x64xf32>
    %122 = vector.extract_strided_slice %118 {offsets = [0, 128], sizes = [1, 64], strides = [1, 1]} : vector<1x256xf32> to vector<1x64xf32>
    %123 = arith.addf %121, %122 : vector<1x64xf32>
    %124 = vector.extract_strided_slice %118 {offsets = [0, 192], sizes = [1, 64], strides = [1, 1]} : vector<1x256xf32> to vector<1x64xf32>
    %125 = arith.addf %123, %124 : vector<1x64xf32>
    %cst_22 = arith.constant 6.400000e+01 : f32
    %126 = vector.broadcast %cst_22 : f32 to vector<1x64xf32>
    %127 = arith.divf %125, %126 : vector<1x64xf32>
    %cst_23 = arith.constant 9.99999974E-6 : f32
    %128 = vector.broadcast %cst_23 : f32 to vector<1x64xf32>
    %129 = arith.addf %127, %128 : vector<1x64xf32>
    %130 = math.rsqrt %129 : vector<1x64xf32>
    %131 = arith.mulf %130, %97 : vector<1x64xf32>
    %132 = arith.mulf %112, %131 : vector<1x64xf32>
    %133 = arith.subf %98, %132 : vector<1x64xf32>
    %134 = tpu.concatenate %131, %131, %131, %131 in 1 : vector<1x64xf32>, vector<1x64xf32>, vector<1x64xf32>, vector<1x64xf32> -> vector<1x256xf32>
    %135 = vector.broadcast %134 : vector<1x256xf32> to vector<16x256xf32>
    %136 = arith.mulf %101, %135 : vector<16x256xf32>
    %137 = tpu.concatenate %133, %133, %133, %133 in 1 : vector<1x64xf32>, vector<1x64xf32>, vector<1x64xf32>, vector<1x64xf32> -> vector<1x256xf32>
    %138 = vector.broadcast %137 : vector<1x256xf32> to vector<16x256xf32>
    %139 = arith.addf %136, %138 : vector<16x256xf32>
    %cst_24 = arith.constant 0.000000e+00 : f32
    %140 = vector.broadcast %cst_24 : f32 to vector<16x256xf32>
    %141 = arith.cmpf ogt, %139, %140 : vector<16x256xf32>
    %cst_25 = arith.constant 0.00999999977 : f32
    %142 = vector.broadcast %cst_25 : f32 to vector<16x256xf32>
    %143 = arith.mulf %142, %139 : vector<16x256xf32>
    %144 = arith.select %141, %139, %143 : vector<16x256xi1>, vector<16x256xf32>
    %c0_26 = arith.constant 0 : index
    %c96 = arith.constant 96 : index
    %145 = vector.load %arg16[%c0_26, %c96] : memref<2x736xf32, #tpu.memory_space<vmem>>, vector<1x128xf32>
    %c1_27 = arith.constant 1 : index
    %c96_28 = arith.constant 96 : index
    %146 = vector.load %arg16[%c1_27, %c96_28] : memref<2x736xf32, #tpu.memory_space<vmem>>, vector<1x128xf32>
    %c0_29 = arith.constant 0 : index
    %c0_30 = arith.constant 0 : index
    %147 = vector.load %arg4[%c0_29, %c0_30] : memref<256x128xbf16, #tpu.memory_space<vmem>>, vector<256x128xbf16>
    %148 = arith.truncf %144 : vector<16x256xf32> to vector<16x256xbf16>
    %cst_31 = arith.constant dense<0.000000e+00> : vector<16x128xf32>
    %149 = tpu.matmul %148, %147, %cst_31 {dimension_numbers = #tpu.dot_dimension_numbers<[1], [0], [0], [1], [0, 0, 1, 1], [], []>} : vector<16x256xbf16>, vector<256x128xbf16>, vector<16x128xf32> -> vector<16x128xf32>
    %cst_32 = arith.constant dense<0.000000e+00> : vector<128xf32>
    %150 = vector.multi_reduction <add>, %149, %cst_32 [0] : vector<16x128xf32> to vector<128xf32>
    %151 = vector.shape_cast %150 : vector<128xf32> to vector<1x128xf32>
    %cst_33 = arith.constant 1.600000e+01 : f32
    %152 = vector.broadcast %cst_33 : f32 to vector<1x128xf32>
    %153 = arith.divf %151, %152 : vector<1x128xf32>
    %154 = vector.broadcast %153 : vector<1x128xf32> to vector<16x128xf32>
    %155 = arith.subf %149, %154 : vector<16x128xf32>
    %156 = arith.mulf %155, %155 : vector<16x128xf32>
    %cst_34 = arith.constant dense<0.000000e+00> : vector<128xf32>
    %157 = vector.multi_reduction <add>, %156, %cst_34 [0] : vector<16x128xf32> to vector<128xf32>
    %158 = vector.shape_cast %157 : vector<128xf32> to vector<1x128xf32>
    %cst_35 = arith.constant 1.600000e+01 : f32
    %159 = vector.broadcast %cst_35 : f32 to vector<1x128xf32>
    %160 = arith.divf %158, %159 : vector<1x128xf32>
    %cst_36 = arith.constant 9.99999974E-6 : f32
    %161 = vector.broadcast %cst_36 : f32 to vector<1x128xf32>
    %162 = arith.addf %160, %161 : vector<1x128xf32>
    %163 = math.rsqrt %162 : vector<1x128xf32>
    %164 = arith.mulf %163, %145 : vector<1x128xf32>
    %165 = arith.mulf %153, %164 : vector<1x128xf32>
    %166 = arith.subf %146, %165 : vector<1x128xf32>
    %167 = vector.broadcast %164 : vector<1x128xf32> to vector<16x128xf32>
    %168 = arith.mulf %149, %167 : vector<16x128xf32>
    %169 = vector.broadcast %166 : vector<1x128xf32> to vector<16x128xf32>
    %170 = arith.addf %168, %169 : vector<16x128xf32>
    %cst_37 = arith.constant 0.000000e+00 : f32
    %171 = vector.broadcast %cst_37 : f32 to vector<16x128xf32>
    %172 = arith.cmpf ogt, %170, %171 : vector<16x128xf32>
    %cst_38 = arith.constant 0.00999999977 : f32
    %173 = vector.broadcast %cst_38 : f32 to vector<16x128xf32>
    %174 = arith.mulf %173, %170 : vector<16x128xf32>
    %175 = arith.select %172, %170, %174 : vector<16x128xi1>, vector<16x128xf32>
    %176 = arith.truncf %175 : vector<16x128xf32> to vector<16x128xbf16>
    %177 = tpu.iota {dimensions = array<i32: 0>} : vector<4x16xi32>
    %178 = tpu.iota {dimensions = array<i32: 1>} : vector<4x16xi32>
    %c4_i32 = arith.constant 4 : i32
    %179 = vector.broadcast %c4_i32 : i32 to vector<4x16xi32>
    %180 = arith.muli %179, %177 : vector<4x16xi32>
    %c0_i32 = arith.constant 0 : i32
    %181 = vector.broadcast %c0_i32 : i32 to vector<4x16xi32>
    %182 = arith.addi %180, %181 : vector<4x16xi32>
    %183 = arith.cmpi eq, %178, %182 : vector<4x16xi32>
    %cst_39 = arith.constant 1.000000e+00 : f32
    %cst_40 = arith.constant 0.000000e+00 : f32
    %184 = vector.broadcast %cst_39 : f32 to vector<4x16xf32>
    %185 = vector.broadcast %cst_40 : f32 to vector<4x16xf32>
    %186 = arith.select %183, %184, %185 : vector<4x16xi1>, vector<4x16xf32>
    %187 = arith.truncf %186 : vector<4x16xf32> to vector<4x16xbf16>
    %cst_41 = arith.constant dense<0.000000e+00> : vector<4x128xf32>
    %188 = tpu.matmul %187, %176, %cst_41 {dimension_numbers = #tpu.dot_dimension_numbers<[1], [0], [0], [1], [0, 0, 1, 1], [], []>} : vector<4x16xbf16>, vector<16x128xbf16>, vector<4x128xf32> -> vector<4x128xf32>
    %189 = tpu.iota {dimensions = array<i32: 0>} : vector<4x16xi32>
    %190 = tpu.iota {dimensions = array<i32: 1>} : vector<4x16xi32>
    %c4_i32_42 = arith.constant 4 : i32
    %191 = vector.broadcast %c4_i32_42 : i32 to vector<4x16xi32>
    %192 = arith.muli %191, %189 : vector<4x16xi32>
    %c1_i32 = arith.constant 1 : i32
    %193 = vector.broadcast %c1_i32 : i32 to vector<4x16xi32>
    %194 = arith.addi %192, %193 : vector<4x16xi32>
    %195 = arith.cmpi eq, %190, %194 : vector<4x16xi32>
    %cst_43 = arith.constant 1.000000e+00 : f32
    %cst_44 = arith.constant 0.000000e+00 : f32
    %196 = vector.broadcast %cst_43 : f32 to vector<4x16xf32>
    %197 = vector.broadcast %cst_44 : f32 to vector<4x16xf32>
    %198 = arith.select %195, %196, %197 : vector<4x16xi1>, vector<4x16xf32>
    %199 = arith.truncf %198 : vector<4x16xf32> to vector<4x16xbf16>
    %cst_45 = arith.constant dense<0.000000e+00> : vector<4x128xf32>
    %200 = tpu.matmul %199, %176, %cst_45 {dimension_numbers = #tpu.dot_dimension_numbers<[1], [0], [0], [1], [0, 0, 1, 1], [], []>} : vector<4x16xbf16>, vector<16x128xbf16>, vector<4x128xf32> -> vector<4x128xf32>
    %201 = tpu.iota {dimensions = array<i32: 0>} : vector<4x16xi32>
    %202 = tpu.iota {dimensions = array<i32: 1>} : vector<4x16xi32>
    %c4_i32_46 = arith.constant 4 : i32
    %203 = vector.broadcast %c4_i32_46 : i32 to vector<4x16xi32>
    %204 = arith.muli %203, %201 : vector<4x16xi32>
    %c2_i32 = arith.constant 2 : i32
    %205 = vector.broadcast %c2_i32 : i32 to vector<4x16xi32>
    %206 = arith.addi %204, %205 : vector<4x16xi32>
    %207 = arith.cmpi eq, %202, %206 : vector<4x16xi32>
    %cst_47 = arith.constant 1.000000e+00 : f32
    %cst_48 = arith.constant 0.000000e+00 : f32
    %208 = vector.broadcast %cst_47 : f32 to vector<4x16xf32>
    %209 = vector.broadcast %cst_48 : f32 to vector<4x16xf32>
    %210 = arith.select %207, %208, %209 : vector<4x16xi1>, vector<4x16xf32>
    %211 = arith.truncf %210 : vector<4x16xf32> to vector<4x16xbf16>
    %cst_49 = arith.constant dense<0.000000e+00> : vector<4x128xf32>
    %212 = tpu.matmul %211, %176, %cst_49 {dimension_numbers = #tpu.dot_dimension_numbers<[1], [0], [0], [1], [0, 0, 1, 1], [], []>} : vector<4x16xbf16>, vector<16x128xbf16>, vector<4x128xf32> -> vector<4x128xf32>
    %213 = tpu.iota {dimensions = array<i32: 0>} : vector<4x16xi32>
    %214 = tpu.iota {dimensions = array<i32: 1>} : vector<4x16xi32>
    %c4_i32_50 = arith.constant 4 : i32
    %215 = vector.broadcast %c4_i32_50 : i32 to vector<4x16xi32>
    %216 = arith.muli %215, %213 : vector<4x16xi32>
    %c3_i32 = arith.constant 3 : i32
    %217 = vector.broadcast %c3_i32 : i32 to vector<4x16xi32>
    %218 = arith.addi %216, %217 : vector<4x16xi32>
    %219 = arith.cmpi eq, %214, %218 : vector<4x16xi32>
    %cst_51 = arith.constant 1.000000e+00 : f32
    %cst_52 = arith.constant 0.000000e+00 : f32
    %220 = vector.broadcast %cst_51 : f32 to vector<4x16xf32>
    %221 = vector.broadcast %cst_52 : f32 to vector<4x16xf32>
    %222 = arith.select %219, %220, %221 : vector<4x16xi1>, vector<4x16xf32>
    %223 = arith.truncf %222 : vector<4x16xf32> to vector<4x16xbf16>
    %cst_53 = arith.constant dense<0.000000e+00> : vector<4x128xf32>
    %224 = tpu.matmul %223, %176, %cst_53 {dimension_numbers = #tpu.dot_dimension_numbers<[1], [0], [0], [1], [0, 0, 1, 1], [], []>} : vector<4x16xbf16>, vector<16x128xbf16>, vector<4x128xf32> -> vector<4x128xf32>
    %225 = tpu.concatenate %188, %200, %212, %224 in 1 : vector<4x128xf32>, vector<4x128xf32>, vector<4x128xf32>, vector<4x128xf32> -> vector<4x512xf32>
    %c0_54 = arith.constant 0 : index
    %c224 = arith.constant 224 : index
    %226 = vector.load %arg16[%c0_54, %c224] : memref<2x736xf32, #tpu.memory_space<vmem>>, vector<1x256xf32>
    %c1_55 = arith.constant 1 : index
    %c224_56 = arith.constant 224 : index
    %227 = vector.load %arg16[%c1_55, %c224_56] : memref<2x736xf32, #tpu.memory_space<vmem>>, vector<1x256xf32>
    %c0_57 = arith.constant 0 : index
    %c0_58 = arith.constant 0 : index
    %228 = vector.load %arg5[%c0_57, %c0_58] : memref<512x256xbf16, #tpu.memory_space<vmem>>, vector<512x256xbf16>
    %229 = arith.truncf %225 : vector<4x512xf32> to vector<4x512xbf16>
    %cst_59 = arith.constant dense<0.000000e+00> : vector<4x256xf32>
    %230 = tpu.matmul %229, %228, %cst_59 {dimension_numbers = #tpu.dot_dimension_numbers<[1], [0], [0], [1], [0, 0, 1, 1], [], []>} : vector<4x512xbf16>, vector<512x256xbf16>, vector<4x256xf32> -> vector<4x256xf32>
    %cst_60 = arith.constant dense<0.000000e+00> : vector<256xf32>
    %231 = vector.multi_reduction <add>, %230, %cst_60 [0] : vector<4x256xf32> to vector<256xf32>
    %232 = vector.shape_cast %231 : vector<256xf32> to vector<1x256xf32>
    %cst_61 = arith.constant 4.000000e+00 : f32
    %233 = vector.broadcast %cst_61 : f32 to vector<1x256xf32>
    %234 = arith.divf %232, %233 : vector<1x256xf32>
    %235 = vector.broadcast %234 : vector<1x256xf32> to vector<4x256xf32>
    %236 = arith.subf %230, %235 : vector<4x256xf32>
    %237 = arith.mulf %236, %236 : vector<4x256xf32>
    %cst_62 = arith.constant dense<0.000000e+00> : vector<256xf32>
    %238 = vector.multi_reduction <add>, %237, %cst_62 [0] : vector<4x256xf32> to vector<256xf32>
    %239 = vector.shape_cast %238 : vector<256xf32> to vector<1x256xf32>
    %cst_63 = arith.constant 4.000000e+00 : f32
    %240 = vector.broadcast %cst_63 : f32 to vector<1x256xf32>
    %241 = arith.divf %239, %240 : vector<1x256xf32>
    %cst_64 = arith.constant 9.99999974E-6 : f32
    %242 = vector.broadcast %cst_64 : f32 to vector<1x256xf32>
    %243 = arith.addf %241, %242 : vector<1x256xf32>
    %244 = math.rsqrt %243 : vector<1x256xf32>
    %245 = arith.mulf %244, %226 : vector<1x256xf32>
    %246 = arith.mulf %234, %245 : vector<1x256xf32>
    %247 = arith.subf %227, %246 : vector<1x256xf32>
    %248 = vector.broadcast %245 : vector<1x256xf32> to vector<4x256xf32>
    %249 = arith.mulf %230, %248 : vector<4x256xf32>
    %250 = vector.broadcast %247 : vector<1x256xf32> to vector<4x256xf32>
    %251 = arith.addf %249, %250 : vector<4x256xf32>
    %cst_65 = arith.constant 0.000000e+00 : f32
    %252 = vector.broadcast %cst_65 : f32 to vector<4x256xf32>
    %253 = arith.cmpf ogt, %251, %252 : vector<4x256xf32>
    %cst_66 = arith.constant 0.00999999977 : f32
    %254 = vector.broadcast %cst_66 : f32 to vector<4x256xf32>
    %255 = arith.mulf %254, %251 : vector<4x256xf32>
    %256 = arith.select %253, %251, %255 : vector<4x256xi1>, vector<4x256xf32>
    %257 = arith.truncf %256 : vector<4x256xf32> to vector<4x256xbf16>
    %258 = tpu.iota {dimensions = array<i32: 0>} : vector<2x4xi32>
    %259 = tpu.iota {dimensions = array<i32: 1>} : vector<2x4xi32>
    %c2_i32_67 = arith.constant 2 : i32
    %260 = vector.broadcast %c2_i32_67 : i32 to vector<2x4xi32>
    %261 = arith.muli %260, %258 : vector<2x4xi32>
    %c0_i32_68 = arith.constant 0 : i32
    %262 = vector.broadcast %c0_i32_68 : i32 to vector<2x4xi32>
    %263 = arith.addi %261, %262 : vector<2x4xi32>
    %264 = arith.cmpi eq, %259, %263 : vector<2x4xi32>
    %cst_69 = arith.constant 1.000000e+00 : f32
    %cst_70 = arith.constant 0.000000e+00 : f32
    %265 = vector.broadcast %cst_69 : f32 to vector<2x4xf32>
    %266 = vector.broadcast %cst_70 : f32 to vector<2x4xf32>
    %267 = arith.select %264, %265, %266 : vector<2x4xi1>, vector<2x4xf32>
    %268 = arith.truncf %267 : vector<2x4xf32> to vector<2x4xbf16>
    %cst_71 = arith.constant dense<0.000000e+00> : vector<2x256xf32>
    %269 = tpu.matmul %268, %257, %cst_71 {dimension_numbers = #tpu.dot_dimension_numbers<[1], [0], [0], [1], [0, 0, 1, 1], [], []>} : vector<2x4xbf16>, vector<4x256xbf16>, vector<2x256xf32> -> vector<2x256xf32>
    %270 = tpu.iota {dimensions = array<i32: 0>} : vector<2x4xi32>
    %271 = tpu.iota {dimensions = array<i32: 1>} : vector<2x4xi32>
    %c2_i32_72 = arith.constant 2 : i32
    %272 = vector.broadcast %c2_i32_72 : i32 to vector<2x4xi32>
    %273 = arith.muli %272, %270 : vector<2x4xi32>
    %c1_i32_73 = arith.constant 1 : i32
    %274 = vector.broadcast %c1_i32_73 : i32 to vector<2x4xi32>
    %275 = arith.addi %273, %274 : vector<2x4xi32>
    %276 = arith.cmpi eq, %271, %275 : vector<2x4xi32>
    %cst_74 = arith.constant 1.000000e+00 : f32
    %cst_75 = arith.constant 0.000000e+00 : f32
    %277 = vector.broadcast %cst_74 : f32 to vector<2x4xf32>
    %278 = vector.broadcast %cst_75 : f32 to vector<2x4xf32>
    %279 = arith.select %276, %277, %278 : vector<2x4xi1>, vector<2x4xf32>
    %280 = arith.truncf %279 : vector<2x4xf32> to vector<2x4xbf16>
    %cst_76 = arith.constant dense<0.000000e+00> : vector<2x256xf32>
    %281 = tpu.matmul %280, %257, %cst_76 {dimension_numbers = #tpu.dot_dimension_numbers<[1], [0], [0], [1], [0, 0, 1, 1], [], []>} : vector<2x4xbf16>, vector<4x256xbf16>, vector<2x256xf32> -> vector<2x256xf32>
    %282 = tpu.concatenate %269, %281 in 1 : vector<2x256xf32>, vector<2x256xf32> -> vector<2x512xf32>
    %c0_77 = arith.constant 0 : index
    %c0_78 = arith.constant 0 : index
    %283 = vector.load %arg6[%c0_77, %c0_78] : memref<512x64xbf16, #tpu.memory_space<vmem>>, vector<512x64xbf16>
    %284 = arith.truncf %282 : vector<2x512xf32> to vector<2x512xbf16>
    %cst_79 = arith.constant dense<0.000000e+00> : vector<2x64xf32>
    %285 = tpu.matmul %284, %283, %cst_79 {dimension_numbers = #tpu.dot_dimension_numbers<[1], [0], [0], [1], [0, 0, 1, 1], [], []>} : vector<2x512xbf16>, vector<512x64xbf16>, vector<2x64xf32> -> vector<2x64xf32>
    %c0_80 = arith.constant 0 : index
    %c0_81 = arith.constant 0 : index
    %286 = vector.load %arg7[%c0_80, %c0_81] : memref<1x64xf32, #tpu.memory_space<vmem>>, vector<1x64xf32>
    %287 = vector.broadcast %286 : vector<1x64xf32> to vector<2x64xf32>
    %288 = arith.addf %285, %287 : vector<2x64xf32>
    %289 = vector.extract_strided_slice %288 {offsets = [0, 0], sizes = [2, 32], strides = [1, 1]} : vector<2x64xf32> to vector<2x32xf32>
    %290 = vector.extract_strided_slice %288 {offsets = [0, 32], sizes = [2, 32], strides = [1, 1]} : vector<2x64xf32> to vector<2x32xf32>
    %c0_82 = arith.constant 0 : index
    %c0_83 = arith.constant 0 : index
    %291 = vector.load %arg17[%c0_82, %c0_83] : memref<2x32xf32, #tpu.memory_space<vmem>>, vector<2x32xf32>
    tpu.vector_store %arg17[%c0_82, %c0_83], %289 {strides = array<i32>} : memref<2x32xf32, #tpu.memory_space<vmem>>, vector<2x32xf32>,
    %c0_84 = arith.constant 0 : index
    %c0_85 = arith.constant 0 : index
    %292 = vector.load %arg18[%c0_84, %c0_85] : memref<2x32xf32, #tpu.memory_space<vmem>>, vector<2x32xf32>
    tpu.vector_store %arg18[%c0_84, %c0_85], %290 {strides = array<i32>} : memref<2x32xf32, #tpu.memory_space<vmem>>, vector<2x32xf32>,
    %c0_86 = arith.constant 0 : index
    %c0_87 = arith.constant 0 : index
    %293 = vector.load %arg1[%c0_86, %c0_87] : memref<2x32xf32, #tpu.memory_space<vmem>>, vector<2x32xf32>
    %cst_88 = arith.constant 5.000000e-01 : f32
    %294 = vector.broadcast %cst_88 : f32 to vector<2x32xf32>
    %295 = arith.mulf %294, %290 : vector<2x32xf32>
    %296 = math.exp %295 : vector<2x32xf32>
    %297 = arith.mulf %293, %296 : vector<2x32xf32>
    %298 = arith.addf %297, %289 : vector<2x32xf32>
    %c0_89 = arith.constant 0 : index
    %c0_90 = arith.constant 0 : index
    %299 = vector.load %arg8[%c0_89, %c0_90] : memref<32x512xbf16, #tpu.memory_space<vmem>>, vector<32x512xbf16>
    %300 = arith.truncf %298 : vector<2x32xf32> to vector<2x32xbf16>
    %cst_91 = arith.constant dense<0.000000e+00> : vector<2x512xf32>
    %301 = tpu.matmul %300, %299, %cst_91 {dimension_numbers = #tpu.dot_dimension_numbers<[1], [0], [0], [1], [0, 0, 1, 1], [], []>} : vector<2x32xbf16>, vector<32x512xbf16>, vector<2x512xf32> -> vector<2x512xf32>
    %c0_92 = arith.constant 0 : index
    %c0_93 = arith.constant 0 : index
    %302 = vector.load %arg9[%c0_92, %c0_93] : memref<1x512xf32, #tpu.memory_space<vmem>>, vector<1x512xf32>
    %303 = vector.broadcast %302 : vector<1x512xf32> to vector<2x512xf32>
    %304 = arith.addf %301, %303 : vector<2x512xf32>
    %305 = tpu.iota {dimensions = array<i32: 0>} : vector<4x2xi32>
    %306 = tpu.iota {dimensions = array<i32: 1>} : vector<4x2xi32>
    %c2_i32_94 = arith.constant 2 : i32
    %307 = vector.broadcast %c2_i32_94 : i32 to vector<4x2xi32>
    %308 = arith.muli %307, %306 : vector<4x2xi32>
    %c0_i32_95 = arith.constant 0 : i32
    %309 = vector.broadcast %c0_i32_95 : i32 to vector<4x2xi32>
    %310 = arith.addi %308, %309 : vector<4x2xi32>
    %311 = arith.cmpi eq, %305, %310 : vector<4x2xi32>
    %cst_96 = arith.constant 1.000000e+00 : f32
    %cst_97 = arith.constant 0.000000e+00 : f32
    %312 = vector.broadcast %cst_96 : f32 to vector<4x2xf32>
    %313 = vector.broadcast %cst_97 : f32 to vector<4x2xf32>
    %314 = arith.select %311, %312, %313 : vector<4x2xi1>, vector<4x2xf32>
    %315 = arith.truncf %314 : vector<4x2xf32> to vector<4x2xbf16>
    %316 = vector.extract_strided_slice %304 {offsets = [0, 0], sizes = [2, 256], strides = [1, 1]} : vector<2x512xf32> to vector<2x256xf32>
    %317 = arith.truncf %316 : vector<2x256xf32> to vector<2x256xbf16>
    %cst_98 = arith.constant dense<0.000000e+00> : vector<4x256xf32>
    %318 = tpu.matmul %315, %317, %cst_98 {dimension_numbers = #tpu.dot_dimension_numbers<[1], [0], [0], [1], [0, 0, 1, 1], [], []>} : vector<4x2xbf16>, vector<2x256xbf16>, vector<4x256xf32> -> vector<4x256xf32>
    %319 = tpu.iota {dimensions = array<i32: 0>} : vector<4x2xi32>
    %320 = tpu.iota {dimensions = array<i32: 1>} : vector<4x2xi32>
    %c2_i32_99 = arith.constant 2 : i32
    %321 = vector.broadcast %c2_i32_99 : i32 to vector<4x2xi32>
    %322 = arith.muli %321, %320 : vector<4x2xi32>
    %c1_i32_100 = arith.constant 1 : i32
    %323 = vector.broadcast %c1_i32_100 : i32 to vector<4x2xi32>
    %324 = arith.addi %322, %323 : vector<4x2xi32>
    %325 = arith.cmpi eq, %319, %324 : vector<4x2xi32>
    %cst_101 = arith.constant 1.000000e+00 : f32
    %cst_102 = arith.constant 0.000000e+00 : f32
    %326 = vector.broadcast %cst_101 : f32 to vector<4x2xf32>
    %327 = vector.broadcast %cst_102 : f32 to vector<4x2xf32>
    %328 = arith.select %325, %326, %327 : vector<4x2xi1>, vector<4x2xf32>
    %329 = arith.truncf %328 : vector<4x2xf32> to vector<4x2xbf16>
    %330 = vector.extract_strided_slice %304 {offsets = [0, 256], sizes = [2, 256], strides = [1, 1]} : vector<2x512xf32> to vector<2x256xf32>
    %331 = arith.truncf %330 : vector<2x256xf32> to vector<2x256xbf16>
    %cst_103 = arith.constant dense<0.000000e+00> : vector<4x256xf32>
    %332 = tpu.matmul %329, %331, %cst_103 {dimension_numbers = #tpu.dot_dimension_numbers<[1], [0], [0], [1], [0, 0, 1, 1], [], []>} : vector<4x2xbf16>, vector<2x256xbf16>, vector<4x256xf32> -> vector<4x256xf32>
    %333 = arith.addf %318, %332 : vector<4x256xf32>
    %c0_104 = arith.constant 0 : index
    %c480 = arith.constant 480 : index
    %334 = vector.load %arg16[%c0_104, %c480] : memref<2x736xf32, #tpu.memory_space<vmem>>, vector<1x128xf32>
    %c1_105 = arith.constant 1 : index
    %c480_106 = arith.constant 480 : index
    %335 = vector.load %arg16[%c1_105, %c480_106] : memref<2x736xf32, #tpu.memory_space<vmem>>, vector<1x128xf32>
    %c0_107 = arith.constant 0 : index
    %c0_108 = arith.constant 0 : index
    %336 = vector.load %arg10[%c0_107, %c0_108] : memref<256x512xbf16, #tpu.memory_space<vmem>>, vector<256x512xbf16>
    %337 = arith.truncf %333 : vector<4x256xf32> to vector<4x256xbf16>
    %cst_109 = arith.constant dense<0.000000e+00> : vector<4x512xf32>
    %338 = tpu.matmul %337, %336, %cst_109 {dimension_numbers = #tpu.dot_dimension_numbers<[1], [0], [0], [1], [0, 0, 1, 1], [], []>} : vector<4x256xbf16>, vector<256x512xbf16>, vector<4x512xf32> -> vector<4x512xf32>
    %cst_110 = arith.constant dense<0.000000e+00> : vector<512xf32>
    %339 = vector.multi_reduction <add>, %338, %cst_110 [0] : vector<4x512xf32> to vector<512xf32>
    %340 = vector.shape_cast %339 : vector<512xf32> to vector<1x512xf32>
    %341 = vector.extract_strided_slice %340 {offsets = [0, 0], sizes = [1, 128], strides = [1, 1]} : vector<1x512xf32> to vector<1x128xf32>
    %342 = vector.extract_strided_slice %340 {offsets = [0, 128], sizes = [1, 128], strides = [1, 1]} : vector<1x512xf32> to vector<1x128xf32>
    %343 = arith.addf %341, %342 : vector<1x128xf32>
    %344 = vector.extract_strided_slice %340 {offsets = [0, 256], sizes = [1, 128], strides = [1, 1]} : vector<1x512xf32> to vector<1x128xf32>
    %345 = arith.addf %343, %344 : vector<1x128xf32>
    %346 = vector.extract_strided_slice %340 {offsets = [0, 384], sizes = [1, 128], strides = [1, 1]} : vector<1x512xf32> to vector<1x128xf32>
    %347 = arith.addf %345, %346 : vector<1x128xf32>
    %cst_111 = arith.constant 1.600000e+01 : f32
    %348 = vector.broadcast %cst_111 : f32 to vector<1x128xf32>
    %349 = arith.divf %347, %348 : vector<1x128xf32>
    %350 = tpu.concatenate %349, %349, %349, %349 in 1 : vector<1x128xf32>, vector<1x128xf32>, vector<1x128xf32>, vector<1x128xf32> -> vector<1x512xf32>
    %351 = vector.broadcast %350 : vector<1x512xf32> to vector<4x512xf32>
    %352 = arith.subf %338, %351 : vector<4x512xf32>
    %353 = arith.mulf %352, %352 : vector<4x512xf32>
    %cst_112 = arith.constant dense<0.000000e+00> : vector<512xf32>
    %354 = vector.multi_reduction <add>, %353, %cst_112 [0] : vector<4x512xf32> to vector<512xf32>
    %355 = vector.shape_cast %354 : vector<512xf32> to vector<1x512xf32>
    %356 = vector.extract_strided_slice %355 {offsets = [0, 0], sizes = [1, 128], strides = [1, 1]} : vector<1x512xf32> to vector<1x128xf32>
    %357 = vector.extract_strided_slice %355 {offsets = [0, 128], sizes = [1, 128], strides = [1, 1]} : vector<1x512xf32> to vector<1x128xf32>
    %358 = arith.addf %356, %357 : vector<1x128xf32>
    %359 = vector.extract_strided_slice %355 {offsets = [0, 256], sizes = [1, 128], strides = [1, 1]} : vector<1x512xf32> to vector<1x128xf32>
    %360 = arith.addf %358, %359 : vector<1x128xf32>
    %361 = vector.extract_strided_slice %355 {offsets = [0, 384], sizes = [1, 128], strides = [1, 1]} : vector<1x512xf32> to vector<1x128xf32>
    %362 = arith.addf %360, %361 : vector<1x128xf32>
    %cst_113 = arith.constant 1.600000e+01 : f32
    %363 = vector.broadcast %cst_113 : f32 to vector<1x128xf32>
    %364 = arith.divf %362, %363 : vector<1x128xf32>
    %cst_114 = arith.constant 9.99999974E-6 : f32
    %365 = vector.broadcast %cst_114 : f32 to vector<1x128xf32>
    %366 = arith.addf %364, %365 : vector<1x128xf32>
    %367 = math.rsqrt %366 : vector<1x128xf32>
    %368 = arith.mulf %367, %334 : vector<1x128xf32>
    %369 = arith.mulf %349, %368 : vector<1x128xf32>
    %370 = arith.subf %335, %369 : vector<1x128xf32>
    %371 = tpu.concatenate %368, %368, %368, %368 in 1 : vector<1x128xf32>, vector<1x128xf32>, vector<1x128xf32>, vector<1x128xf32> -> vector<1x512xf32>
    %372 = vector.broadcast %371 : vector<1x512xf32> to vector<4x512xf32>
    %373 = arith.mulf %338, %372 : vector<4x512xf32>
    %374 = tpu.concatenate %370, %370, %370, %370 in 1 : vector<1x128xf32>, vector<1x128xf32>, vector<1x128xf32>, vector<1x128xf32> -> vector<1x512xf32>
    %375 = vector.broadcast %374 : vector<1x512xf32> to vector<4x512xf32>
    %376 = arith.addf %373, %375 : vector<4x512xf32>
    %cst_115 = arith.constant 0.000000e+00 : f32
    %377 = vector.broadcast %cst_115 : f32 to vector<4x512xf32>
    %378 = arith.cmpf ogt, %376, %377 : vector<4x512xf32>
    %cst_116 = arith.constant 0.00999999977 : f32
    %379 = vector.broadcast %cst_116 : f32 to vector<4x512xf32>
    %380 = arith.mulf %379, %376 : vector<4x512xf32>
    %381 = arith.select %378, %376, %380 : vector<4x512xi1>, vector<4x512xf32>
    %382 = arith.truncf %381 : vector<4x512xf32> to vector<4x512xbf16>
    %383 = tpu.iota {dimensions = array<i32: 0>} : vector<16x4xi32>
    %384 = tpu.iota {dimensions = array<i32: 1>} : vector<16x4xi32>
    %c4_i32_117 = arith.constant 4 : i32
    %385 = vector.broadcast %c4_i32_117 : i32 to vector<16x4xi32>
    %386 = arith.muli %385, %384 : vector<16x4xi32>
    %c0_i32_118 = arith.constant 0 : i32
    %387 = vector.broadcast %c0_i32_118 : i32 to vector<16x4xi32>
    %388 = arith.addi %386, %387 : vector<16x4xi32>
    %389 = arith.cmpi eq, %383, %388 : vector<16x4xi32>
    %cst_119 = arith.constant 1.000000e+00 : f32
    %cst_120 = arith.constant 0.000000e+00 : f32
    %390 = vector.broadcast %cst_119 : f32 to vector<16x4xf32>
    %391 = vector.broadcast %cst_120 : f32 to vector<16x4xf32>
    %392 = arith.select %389, %390, %391 : vector<16x4xi1>, vector<16x4xf32>
    %393 = arith.truncf %392 : vector<16x4xf32> to vector<16x4xbf16>
    %394 = vector.extract_strided_slice %382 {offsets = [0, 0], sizes = [4, 128], strides = [1, 1]} : vector<4x512xbf16> to vector<4x128xbf16>
    %cst_121 = arith.constant dense<0.000000e+00> : vector<16x128xf32>
    %395 = tpu.matmul %393, %394, %cst_121 {dimension_numbers = #tpu.dot_dimension_numbers<[1], [0], [0], [1], [0, 0, 1, 1], [], []>} : vector<16x4xbf16>, vector<4x128xbf16>, vector<16x128xf32> -> vector<16x128xf32>
    %cst_122 = arith.constant 0.000000e+00 : f32
    %396 = vector.broadcast %cst_122 : f32 to vector<16x128xf32>
    %397 = arith.addf %396, %395 : vector<16x128xf32>
    %398 = tpu.iota {dimensions = array<i32: 0>} : vector<16x4xi32>
    %399 = tpu.iota {dimensions = array<i32: 1>} : vector<16x4xi32>
    %c4_i32_123 = arith.constant 4 : i32
    %400 = vector.broadcast %c4_i32_123 : i32 to vector<16x4xi32>
    %401 = arith.muli %400, %399 : vector<16x4xi32>
    %c1_i32_124 = arith.constant 1 : i32
    %402 = vector.broadcast %c1_i32_124 : i32 to vector<16x4xi32>
    %403 = arith.addi %401, %402 : vector<16x4xi32>
    %404 = arith.cmpi eq, %398, %403 : vector<16x4xi32>
    %cst_125 = arith.constant 1.000000e+00 : f32
    %cst_126 = arith.constant 0.000000e+00 : f32
    %405 = vector.broadcast %cst_125 : f32 to vector<16x4xf32>
    %406 = vector.broadcast %cst_126 : f32 to vector<16x4xf32>
    %407 = arith.select %404, %405, %406 : vector<16x4xi1>, vector<16x4xf32>
    %408 = arith.truncf %407 : vector<16x4xf32> to vector<16x4xbf16>
    %409 = vector.extract_strided_slice %382 {offsets = [0, 128], sizes = [4, 128], strides = [1, 1]} : vector<4x512xbf16> to vector<4x128xbf16>
    %cst_127 = arith.constant dense<0.000000e+00> : vector<16x128xf32>
    %410 = tpu.matmul %408, %409, %cst_127 {dimension_numbers = #tpu.dot_dimension_numbers<[1], [0], [0], [1], [0, 0, 1, 1], [], []>} : vector<16x4xbf16>, vector<4x128xbf16>, vector<16x128xf32> -> vector<16x128xf32>
    %411 = arith.addf %397, %410 : vector<16x128xf32>
    %412 = tpu.iota {dimensions = array<i32: 0>} : vector<16x4xi32>
    %413 = tpu.iota {dimensions = array<i32: 1>} : vector<16x4xi32>
    %c4_i32_128 = arith.constant 4 : i32
    %414 = vector.broadcast %c4_i32_128 : i32 to vector<16x4xi32>
    %415 = arith.muli %414, %413 : vector<16x4xi32>
    %c2_i32_129 = arith.constant 2 : i32
    %416 = vector.broadcast %c2_i32_129 : i32 to vector<16x4xi32>
    %417 = arith.addi %415, %416 : vector<16x4xi32>
    %418 = arith.cmpi eq, %412, %417 : vector<16x4xi32>
    %cst_130 = arith.constant 1.000000e+00 : f32
    %cst_131 = arith.constant 0.000000e+00 : f32
    %419 = vector.broadcast %cst_130 : f32 to vector<16x4xf32>
    %420 = vector.broadcast %cst_131 : f32 to vector<16x4xf32>
    %421 = arith.select %418, %419, %420 : vector<16x4xi1>, vector<16x4xf32>
    %422 = arith.truncf %421 : vector<16x4xf32> to vector<16x4xbf16>
    %423 = vector.extract_strided_slice %382 {offsets = [0, 256], sizes = [4, 128], strides = [1, 1]} : vector<4x512xbf16> to vector<4x128xbf16>
    %cst_132 = arith.constant dense<0.000000e+00> : vector<16x128xf32>
    %424 = tpu.matmul %422, %423, %cst_132 {dimension_numbers = #tpu.dot_dimension_numbers<[1], [0], [0], [1], [0, 0, 1, 1], [], []>} : vector<16x4xbf16>, vector<4x128xbf16>, vector<16x128xf32> -> vector<16x128xf32>
    %425 = arith.addf %411, %424 : vector<16x128xf32>
    %426 = tpu.iota {dimensions = array<i32: 0>} : vector<16x4xi32>
    %427 = tpu.iota {dimensions = array<i32: 1>} : vector<16x4xi32>
    %c4_i32_133 = arith.constant 4 : i32
    %428 = vector.broadcast %c4_i32_133 : i32 to vector<16x4xi32>
    %429 = arith.muli %428, %427 : vector<16x4xi32>
    %c3_i32_134 = arith.constant 3 : i32
    %430 = vector.broadcast %c3_i32_134 : i32 to vector<16x4xi32>
    %431 = arith.addi %429, %430 : vector<16x4xi32>
    %432 = arith.cmpi eq, %426, %431 : vector<16x4xi32>
    %cst_135 = arith.constant 1.000000e+00 : f32
    %cst_136 = arith.constant 0.000000e+00 : f32
    %433 = vector.broadcast %cst_135 : f32 to vector<16x4xf32>
    %434 = vector.broadcast %cst_136 : f32 to vector<16x4xf32>
    %435 = arith.select %432, %433, %434 : vector<16x4xi1>, vector<16x4xf32>
    %436 = arith.truncf %435 : vector<16x4xf32> to vector<16x4xbf16>
    %437 = vector.extract_strided_slice %382 {offsets = [0, 384], sizes = [4, 128], strides = [1, 1]} : vector<4x512xbf16> to vector<4x128xbf16>
    %cst_137 = arith.constant dense<0.000000e+00> : vector<16x128xf32>
    %438 = tpu.matmul %436, %437, %cst_137 {dimension_numbers = #tpu.dot_dimension_numbers<[1], [0], [0], [1], [0, 0, 1, 1], [], []>} : vector<16x4xbf16>, vector<4x128xbf16>, vector<16x128xf32> -> vector<16x128xf32>
    %439 = arith.addf %425, %438 : vector<16x128xf32>
    %c0_138 = arith.constant 0 : index
    %c608 = arith.constant 608 : index
    %440 = vector.load %arg16[%c0_138, %c608] : memref<2x736xf32, #tpu.memory_space<vmem>>, vector<1x64xf32>
    %c1_139 = arith.constant 1 : index
    %c608_140 = arith.constant 608 : index
    %441 = vector.load %arg16[%c1_139, %c608_140] : memref<2x736xf32, #tpu.memory_space<vmem>>, vector<1x64xf32>
    %c0_141 = arith.constant 0 : index
    %c0_142 = arith.constant 0 : index
    %442 = vector.load %arg11[%c0_141, %c0_142] : memref<128x256xbf16, #tpu.memory_space<vmem>>, vector<128x256xbf16>
    %443 = arith.truncf %439 : vector<16x128xf32> to vector<16x128xbf16>
    %cst_143 = arith.constant dense<0.000000e+00> : vector<16x256xf32>
    %444 = tpu.matmul %443, %442, %cst_143 {dimension_numbers = #tpu.dot_dimension_numbers<[1], [0], [0], [1], [0, 0, 1, 1], [], []>} : vector<16x128xbf16>, vector<128x256xbf16>, vector<16x256xf32> -> vector<16x256xf32>
    %cst_144 = arith.constant dense<0.000000e+00> : vector<256xf32>
    %445 = vector.multi_reduction <add>, %444, %cst_144 [0] : vector<16x256xf32> to vector<256xf32>
    %446 = vector.shape_cast %445 : vector<256xf32> to vector<1x256xf32>
    %447 = vector.extract_strided_slice %446 {offsets = [0, 0], sizes = [1, 64], strides = [1, 1]} : vector<1x256xf32> to vector<1x64xf32>
    %448 = vector.extract_strided_slice %446 {offsets = [0, 64], sizes = [1, 64], strides = [1, 1]} : vector<1x256xf32> to vector<1x64xf32>
    %449 = arith.addf %447, %448 : vector<1x64xf32>
    %450 = vector.extract_strided_slice %446 {offsets = [0, 128], sizes = [1, 64], strides = [1, 1]} : vector<1x256xf32> to vector<1x64xf32>
    %451 = arith.addf %449, %450 : vector<1x64xf32>
    %452 = vector.extract_strided_slice %446 {offsets = [0, 192], sizes = [1, 64], strides = [1, 1]} : vector<1x256xf32> to vector<1x64xf32>
    %453 = arith.addf %451, %452 : vector<1x64xf32>
    %cst_145 = arith.constant 6.400000e+01 : f32
    %454 = vector.broadcast %cst_145 : f32 to vector<1x64xf32>
    %455 = arith.divf %453, %454 : vector<1x64xf32>
    %456 = tpu.concatenate %455, %455, %455, %455 in 1 : vector<1x64xf32>, vector<1x64xf32>, vector<1x64xf32>, vector<1x64xf32> -> vector<1x256xf32>
    %457 = vector.broadcast %456 : vector<1x256xf32> to vector<16x256xf32>
    %458 = arith.subf %444, %457 : vector<16x256xf32>
    %459 = arith.mulf %458, %458 : vector<16x256xf32>
    %cst_146 = arith.constant dense<0.000000e+00> : vector<256xf32>
    %460 = vector.multi_reduction <add>, %459, %cst_146 [0] : vector<16x256xf32> to vector<256xf32>
    %461 = vector.shape_cast %460 : vector<256xf32> to vector<1x256xf32>
    %462 = vector.extract_strided_slice %461 {offsets = [0, 0], sizes = [1, 64], strides = [1, 1]} : vector<1x256xf32> to vector<1x64xf32>
    %463 = vector.extract_strided_slice %461 {offsets = [0, 64], sizes = [1, 64], strides = [1, 1]} : vector<1x256xf32> to vector<1x64xf32>
    %464 = arith.addf %462, %463 : vector<1x64xf32>
    %465 = vector.extract_strided_slice %461 {offsets = [0, 128], sizes = [1, 64], strides = [1, 1]} : vector<1x256xf32> to vector<1x64xf32>
    %466 = arith.addf %464, %465 : vector<1x64xf32>
    %467 = vector.extract_strided_slice %461 {offsets = [0, 192], sizes = [1, 64], strides = [1, 1]} : vector<1x256xf32> to vector<1x64xf32>
    %468 = arith.addf %466, %467 : vector<1x64xf32>
    %cst_147 = arith.constant 6.400000e+01 : f32
    %469 = vector.broadcast %cst_147 : f32 to vector<1x64xf32>
    %470 = arith.divf %468, %469 : vector<1x64xf32>
    %cst_148 = arith.constant 9.99999974E-6 : f32
    %471 = vector.broadcast %cst_148 : f32 to vector<1x64xf32>
    %472 = arith.addf %470, %471 : vector<1x64xf32>
    %473 = math.rsqrt %472 : vector<1x64xf32>
    %474 = arith.mulf %473, %440 : vector<1x64xf32>
    %475 = arith.mulf %455, %474 : vector<1x64xf32>
    %476 = arith.subf %441, %475 : vector<1x64xf32>
    %477 = tpu.concatenate %474, %474, %474, %474 in 1 : vector<1x64xf32>, vector<1x64xf32>, vector<1x64xf32>, vector<1x64xf32> -> vector<1x256xf32>
    %478 = vector.broadcast %477 : vector<1x256xf32> to vector<16x256xf32>
    %479 = arith.mulf %444, %478 : vector<16x256xf32>
    %480 = tpu.concatenate %476, %476, %476, %476 in 1 : vector<1x64xf32>, vector<1x64xf32>, vector<1x64xf32>, vector<1x64xf32> -> vector<1x256xf32>
    %481 = vector.broadcast %480 : vector<1x256xf32> to vector<16x256xf32>
    %482 = arith.addf %479, %481 : vector<16x256xf32>
    %cst_149 = arith.constant 0.000000e+00 : f32
    %483 = vector.broadcast %cst_149 : f32 to vector<16x256xf32>
    %484 = arith.cmpf ogt, %482, %483 : vector<16x256xf32>
    %cst_150 = arith.constant 0.00999999977 : f32
    %485 = vector.broadcast %cst_150 : f32 to vector<16x256xf32>
    %486 = arith.mulf %485, %482 : vector<16x256xf32>
    %487 = arith.select %484, %482, %486 : vector<16x256xi1>, vector<16x256xf32>
    %488 = arith.truncf %487 : vector<16x256xf32> to vector<16x256xbf16>
    %489 = tpu.iota {dimensions = array<i32: 0>} : vector<64x16xi32>
    %490 = tpu.iota {dimensions = array<i32: 1>} : vector<64x16xi32>
    %c4_i32_151 = arith.constant 4 : i32
    %491 = vector.broadcast %c4_i32_151 : i32 to vector<64x16xi32>
    %492 = arith.muli %491, %490 : vector<64x16xi32>
    %c0_i32_152 = arith.constant 0 : i32
    %493 = vector.broadcast %c0_i32_152 : i32 to vector<64x16xi32>
    %494 = arith.addi %492, %493 : vector<64x16xi32>
    %495 = arith.cmpi eq, %489, %494 : vector<64x16xi32>
    %cst_153 = arith.constant 1.000000e+00 : f32
    %cst_154 = arith.constant 0.000000e+00 : f32
    %496 = vector.broadcast %cst_153 : f32 to vector<64x16xf32>
    %497 = vector.broadcast %cst_154 : f32 to vector<64x16xf32>
    %498 = arith.select %495, %496, %497 : vector<64x16xi1>, vector<64x16xf32>
    %499 = arith.truncf %498 : vector<64x16xf32> to vector<64x16xbf16>
    %500 = vector.extract_strided_slice %488 {offsets = [0, 0], sizes = [16, 64], strides = [1, 1]} : vector<16x256xbf16> to vector<16x64xbf16>
    %cst_155 = arith.constant dense<0.000000e+00> : vector<64x64xf32>
    %501 = tpu.matmul %499, %500, %cst_155 {dimension_numbers = #tpu.dot_dimension_numbers<[1], [0], [0], [1], [0, 0, 1, 1], [], []>} : vector<64x16xbf16>, vector<16x64xbf16>, vector<64x64xf32> -> vector<64x64xf32>
    %cst_156 = arith.constant 0.000000e+00 : f32
    %502 = vector.broadcast %cst_156 : f32 to vector<64x64xf32>
    %503 = arith.addf %502, %501 : vector<64x64xf32>
    %504 = tpu.iota {dimensions = array<i32: 0>} : vector<64x16xi32>
    %505 = tpu.iota {dimensions = array<i32: 1>} : vector<64x16xi32>
    %c4_i32_157 = arith.constant 4 : i32
    %506 = vector.broadcast %c4_i32_157 : i32 to vector<64x16xi32>
    %507 = arith.muli %506, %505 : vector<64x16xi32>
    %c1_i32_158 = arith.constant 1 : i32
    %508 = vector.broadcast %c1_i32_158 : i32 to vector<64x16xi32>
    %509 = arith.addi %507, %508 : vector<64x16xi32>
    %510 = arith.cmpi eq, %504, %509 : vector<64x16xi32>
    %cst_159 = arith.constant 1.000000e+00 : f32
    %cst_160 = arith.constant 0.000000e+00 : f32
    %511 = vector.broadcast %cst_159 : f32 to vector<64x16xf32>
    %512 = vector.broadcast %cst_160 : f32 to vector<64x16xf32>
    %513 = arith.select %510, %511, %512 : vector<64x16xi1>, vector<64x16xf32>
    %514 = arith.truncf %513 : vector<64x16xf32> to vector<64x16xbf16>
    %515 = vector.extract_strided_slice %488 {offsets = [0, 64], sizes = [16, 64], strides = [1, 1]} : vector<16x256xbf16> to vector<16x64xbf16>
    %cst_161 = arith.constant dense<0.000000e+00> : vector<64x64xf32>
    %516 = tpu.matmul %514, %515, %cst_161 {dimension_numbers = #tpu.dot_dimension_numbers<[1], [0], [0], [1], [0, 0, 1, 1], [], []>} : vector<64x16xbf16>, vector<16x64xbf16>, vector<64x64xf32> -> vector<64x64xf32>
    %517 = arith.addf %503, %516 : vector<64x64xf32>
    %518 = tpu.iota {dimensions = array<i32: 0>} : vector<64x16xi32>
    %519 = tpu.iota {dimensions = array<i32: 1>} : vector<64x16xi32>
    %c4_i32_162 = arith.constant 4 : i32
    %520 = vector.broadcast %c4_i32_162 : i32 to vector<64x16xi32>
    %521 = arith.muli %520, %519 : vector<64x16xi32>
    %c2_i32_163 = arith.constant 2 : i32
    %522 = vector.broadcast %c2_i32_163 : i32 to vector<64x16xi32>
    %523 = arith.addi %521, %522 : vector<64x16xi32>
    %524 = arith.cmpi eq, %518, %523 : vector<64x16xi32>
    %cst_164 = arith.constant 1.000000e+00 : f32
    %cst_165 = arith.constant 0.000000e+00 : f32
    %525 = vector.broadcast %cst_164 : f32 to vector<64x16xf32>
    %526 = vector.broadcast %cst_165 : f32 to vector<64x16xf32>
    %527 = arith.select %524, %525, %526 : vector<64x16xi1>, vector<64x16xf32>
    %528 = arith.truncf %527 : vector<64x16xf32> to vector<64x16xbf16>
    %529 = vector.extract_strided_slice %488 {offsets = [0, 128], sizes = [16, 64], strides = [1, 1]} : vector<16x256xbf16> to vector<16x64xbf16>
    %cst_166 = arith.constant dense<0.000000e+00> : vector<64x64xf32>
    %530 = tpu.matmul %528, %529, %cst_166 {dimension_numbers = #tpu.dot_dimension_numbers<[1], [0], [0], [1], [0, 0, 1, 1], [], []>} : vector<64x16xbf16>, vector<16x64xbf16>, vector<64x64xf32> -> vector<64x64xf32>
    %531 = arith.addf %517, %530 : vector<64x64xf32>
    %532 = tpu.iota {dimensions = array<i32: 0>} : vector<64x16xi32>
    %533 = tpu.iota {dimensions = array<i32: 1>} : vector<64x16xi32>
    %c4_i32_167 = arith.constant 4 : i32
    %534 = vector.broadcast %c4_i32_167 : i32 to vector<64x16xi32>
    %535 = arith.muli %534, %533 : vector<64x16xi32>
    %c3_i32_168 = arith.constant 3 : i32
    %536 = vector.broadcast %c3_i32_168 : i32 to vector<64x16xi32>
    %537 = arith.addi %535, %536 : vector<64x16xi32>
    %538 = arith.cmpi eq, %532, %537 : vector<64x16xi32>
    %cst_169 = arith.constant 1.000000e+00 : f32
    %cst_170 = arith.constant 0.000000e+00 : f32
    %539 = vector.broadcast %cst_169 : f32 to vector<64x16xf32>
    %540 = vector.broadcast %cst_170 : f32 to vector<64x16xf32>
    %541 = arith.select %538, %539, %540 : vector<64x16xi1>, vector<64x16xf32>
    %542 = arith.truncf %541 : vector<64x16xf32> to vector<64x16xbf16>
    %543 = vector.extract_strided_slice %488 {offsets = [0, 192], sizes = [16, 64], strides = [1, 1]} : vector<16x256xbf16> to vector<16x64xbf16>
    %cst_171 = arith.constant dense<0.000000e+00> : vector<64x64xf32>
    %544 = tpu.matmul %542, %543, %cst_171 {dimension_numbers = #tpu.dot_dimension_numbers<[1], [0], [0], [1], [0, 0, 1, 1], [], []>} : vector<64x16xbf16>, vector<16x64xbf16>, vector<64x64xf32> -> vector<64x64xf32>
    %545 = arith.addf %531, %544 : vector<64x64xf32>
    %c0_172 = arith.constant 0 : index
    %c672 = arith.constant 672 : index
    %546 = vector.load %arg16[%c0_172, %c672] : memref<2x736xf32, #tpu.memory_space<vmem>>, vector<1x32xf32>
    %c1_173 = arith.constant 1 : index
    %c672_174 = arith.constant 672 : index
    %547 = vector.load %arg16[%c1_173, %c672_174] : memref<2x736xf32, #tpu.memory_space<vmem>>, vector<1x32xf32>
    %c0_175 = arith.constant 0 : index
    %c0_176 = arith.constant 0 : index
    %548 = vector.load %arg12[%c0_175, %c0_176] : memref<64x128xbf16, #tpu.memory_space<vmem>>, vector<64x128xbf16>
    %549 = arith.truncf %545 : vector<64x64xf32> to vector<64x64xbf16>
    %cst_177 = arith.constant dense<0.000000e+00> : vector<64x128xf32>
    %550 = tpu.matmul %549, %548, %cst_177 {dimension_numbers = #tpu.dot_dimension_numbers<[1], [0], [0], [1], [0, 0, 1, 1], [], []>} : vector<64x64xbf16>, vector<64x128xbf16>, vector<64x128xf32> -> vector<64x128xf32>
    %cst_178 = arith.constant dense<0.000000e+00> : vector<128xf32>
    %551 = vector.multi_reduction <add>, %550, %cst_178 [0] : vector<64x128xf32> to vector<128xf32>
    %552 = vector.shape_cast %551 : vector<128xf32> to vector<1x128xf32>
    %553 = vector.extract_strided_slice %552 {offsets = [0, 0], sizes = [1, 32], strides = [1, 1]} : vector<1x128xf32> to vector<1x32xf32>
    %554 = vector.extract_strided_slice %552 {offsets = [0, 32], sizes = [1, 32], strides = [1, 1]} : vector<1x128xf32> to vector<1x32xf32>
    %555 = arith.addf %553, %554 : vector<1x32xf32>
    %556 = vector.extract_strided_slice %552 {offsets = [0, 64], sizes = [1, 32], strides = [1, 1]} : vector<1x128xf32> to vector<1x32xf32>
    %557 = arith.addf %555, %556 : vector<1x32xf32>
    %558 = vector.extract_strided_slice %552 {offsets = [0, 96], sizes = [1, 32], strides = [1, 1]} : vector<1x128xf32> to vector<1x32xf32>
    %559 = arith.addf %557, %558 : vector<1x32xf32>
    %cst_179 = arith.constant 2.560000e+02 : f32
    %560 = vector.broadcast %cst_179 : f32 to vector<1x32xf32>
    %561 = arith.divf %559, %560 : vector<1x32xf32>
    %562 = tpu.concatenate %561, %561, %561, %561 in 1 : vector<1x32xf32>, vector<1x32xf32>, vector<1x32xf32>, vector<1x32xf32> -> vector<1x128xf32>
    %563 = vector.broadcast %562 : vector<1x128xf32> to vector<64x128xf32>
    %564 = arith.subf %550, %563 : vector<64x128xf32>
    %565 = arith.mulf %564, %564 : vector<64x128xf32>
    %cst_180 = arith.constant dense<0.000000e+00> : vector<128xf32>
    %566 = vector.multi_reduction <add>, %565, %cst_180 [0] : vector<64x128xf32> to vector<128xf32>
    %567 = vector.shape_cast %566 : vector<128xf32> to vector<1x128xf32>
    %568 = vector.extract_strided_slice %567 {offsets = [0, 0], sizes = [1, 32], strides = [1, 1]} : vector<1x128xf32> to vector<1x32xf32>
    %569 = vector.extract_strided_slice %567 {offsets = [0, 32], sizes = [1, 32], strides = [1, 1]} : vector<1x128xf32> to vector<1x32xf32>
    %570 = arith.addf %568, %569 : vector<1x32xf32>
    %571 = vector.extract_strided_slice %567 {offsets = [0, 64], sizes = [1, 32], strides = [1, 1]} : vector<1x128xf32> to vector<1x32xf32>
    %572 = arith.addf %570, %571 : vector<1x32xf32>
    %573 = vector.extract_strided_slice %567 {offsets = [0, 96], sizes = [1, 32], strides = [1, 1]} : vector<1x128xf32> to vector<1x32xf32>
    %574 = arith.addf %572, %573 : vector<1x32xf32>
    %cst_181 = arith.constant 2.560000e+02 : f32
    %575 = vector.broadcast %cst_181 : f32 to vector<1x32xf32>
    %576 = arith.divf %574, %575 : vector<1x32xf32>
    %cst_182 = arith.constant 9.99999974E-6 : f32
    %577 = vector.broadcast %cst_182 : f32 to vector<1x32xf32>
    %578 = arith.addf %576, %577 : vector<1x32xf32>
    %579 = math.rsqrt %578 : vector<1x32xf32>
    %580 = arith.mulf %579, %546 : vector<1x32xf32>
    %581 = arith.mulf %561, %580 : vector<1x32xf32>
    %582 = arith.subf %547, %581 : vector<1x32xf32>
    %583 = tpu.concatenate %580, %580, %580, %580 in 1 : vector<1x32xf32>, vector<1x32xf32>, vector<1x32xf32>, vector<1x32xf32> -> vector<1x128xf32>
    %584 = vector.broadcast %583 : vector<1x128xf32> to vector<64x128xf32>
    %585 = arith.mulf %550, %584 : vector<64x128xf32>
    %586 = tpu.concatenate %582, %582, %582, %582 in 1 : vector<1x32xf32>, vector<1x32xf32>, vector<1x32xf32>, vector<1x32xf32> -> vector<1x128xf32>
    %587 = vector.broadcast %586 : vector<1x128xf32> to vector<64x128xf32>
    %588 = arith.addf %585, %587 : vector<64x128xf32>
    %cst_183 = arith.constant 0.000000e+00 : f32
    %589 = vector.broadcast %cst_183 : f32 to vector<64x128xf32>
    %590 = arith.cmpf ogt, %588, %589 : vector<64x128xf32>
    %cst_184 = arith.constant 0.00999999977 : f32
    %591 = vector.broadcast %cst_184 : f32 to vector<64x128xf32>
    %592 = arith.mulf %591, %588 : vector<64x128xf32>
    %593 = arith.select %590, %588, %592 : vector<64x128xi1>, vector<64x128xf32>
    %594 = arith.truncf %593 : vector<64x128xf32> to vector<64x128xbf16>
    %595 = tpu.iota {dimensions = array<i32: 0>} : vector<256x64xi32>
    %596 = tpu.iota {dimensions = array<i32: 1>} : vector<256x64xi32>
    %c4_i32_185 = arith.constant 4 : i32
    %597 = vector.broadcast %c4_i32_185 : i32 to vector<256x64xi32>
    %598 = arith.muli %597, %596 : vector<256x64xi32>
    %c0_i32_186 = arith.constant 0 : i32
    %599 = vector.broadcast %c0_i32_186 : i32 to vector<256x64xi32>
    %600 = arith.addi %598, %599 : vector<256x64xi32>
    %601 = arith.cmpi eq, %595, %600 : vector<256x64xi32>
    %cst_187 = arith.constant 1.000000e+00 : f32
    %cst_188 = arith.constant 0.000000e+00 : f32
    %602 = vector.broadcast %cst_187 : f32 to vector<256x64xf32>
    %603 = vector.broadcast %cst_188 : f32 to vector<256x64xf32>
    %604 = arith.select %601, %602, %603 : vector<256x64xi1>, vector<256x64xf32>
    %605 = arith.truncf %604 : vector<256x64xf32> to vector<256x64xbf16>
    %606 = vector.extract_strided_slice %594 {offsets = [0, 0], sizes = [64, 32], strides = [1, 1]} : vector<64x128xbf16> to vector<64x32xbf16>
    %cst_189 = arith.constant dense<0.000000e+00> : vector<256x32xf32>
    %607 = tpu.matmul %605, %606, %cst_189 {dimension_numbers = #tpu.dot_dimension_numbers<[1], [0], [0], [1], [0, 0, 1, 1], [], []>} : vector<256x64xbf16>, vector<64x32xbf16>, vector<256x32xf32> -> vector<256x32xf32>
    %cst_190 = arith.constant 0.000000e+00 : f32
    %608 = vector.broadcast %cst_190 : f32 to vector<256x32xf32>
    %609 = arith.addf %608, %607 : vector<256x32xf32>
    %610 = tpu.iota {dimensions = array<i32: 0>} : vector<256x64xi32>
    %611 = tpu.iota {dimensions = array<i32: 1>} : vector<256x64xi32>
    %c4_i32_191 = arith.constant 4 : i32
    %612 = vector.broadcast %c4_i32_191 : i32 to vector<256x64xi32>
    %613 = arith.muli %612, %611 : vector<256x64xi32>
    %c1_i32_192 = arith.constant 1 : i32
    %614 = vector.broadcast %c1_i32_192 : i32 to vector<256x64xi32>
    %615 = arith.addi %613, %614 : vector<256x64xi32>
    %616 = arith.cmpi eq, %610, %615 : vector<256x64xi32>
    %cst_193 = arith.constant 1.000000e+00 : f32
    %cst_194 = arith.constant 0.000000e+00 : f32
    %617 = vector.broadcast %cst_193 : f32 to vector<256x64xf32>
    %618 = vector.broadcast %cst_194 : f32 to vector<256x64xf32>
    %619 = arith.select %616, %617, %618 : vector<256x64xi1>, vector<256x64xf32>
    %620 = arith.truncf %619 : vector<256x64xf32> to vector<256x64xbf16>
    %621 = vector.extract_strided_slice %594 {offsets = [0, 32], sizes = [64, 32], strides = [1, 1]} : vector<64x128xbf16> to vector<64x32xbf16>
    %cst_195 = arith.constant dense<0.000000e+00> : vector<256x32xf32>
    %622 = tpu.matmul %620, %621, %cst_195 {dimension_numbers = #tpu.dot_dimension_numbers<[1], [0], [0], [1], [0, 0, 1, 1], [], []>} : vector<256x64xbf16>, vector<64x32xbf16>, vector<256x32xf32> -> vector<256x32xf32>
    %623 = arith.addf %609, %622 : vector<256x32xf32>
    %624 = tpu.iota {dimensions = array<i32: 0>} : vector<256x64xi32>
    %625 = tpu.iota {dimensions = array<i32: 1>} : vector<256x64xi32>
    %c4_i32_196 = arith.constant 4 : i32
    %626 = vector.broadcast %c4_i32_196 : i32 to vector<256x64xi32>
    %627 = arith.muli %626, %625 : vector<256x64xi32>
    %c2_i32_197 = arith.constant 2 : i32
    %628 = vector.broadcast %c2_i32_197 : i32 to vector<256x64xi32>
    %629 = arith.addi %627, %628 : vector<256x64xi32>
    %630 = arith.cmpi eq, %624, %629 : vector<256x64xi32>
    %cst_198 = arith.constant 1.000000e+00 : f32
    %cst_199 = arith.constant 0.000000e+00 : f32
    %631 = vector.broadcast %cst_198 : f32 to vector<256x64xf32>
    %632 = vector.broadcast %cst_199 : f32 to vector<256x64xf32>
    %633 = arith.select %630, %631, %632 : vector<256x64xi1>, vector<256x64xf32>
    %634 = arith.truncf %633 : vector<256x64xf32> to vector<256x64xbf16>
    %635 = vector.extract_strided_slice %594 {offsets = [0, 64], sizes = [64, 32], strides = [1, 1]} : vector<64x128xbf16> to vector<64x32xbf16>
    %cst_200 = arith.constant dense<0.000000e+00> : vector<256x32xf32>
    %636 = tpu.matmul %634, %635, %cst_200 {dimension_numbers = #tpu.dot_dimension_numbers<[1], [0], [0], [1], [0, 0, 1, 1], [], []>} : vector<256x64xbf16>, vector<64x32xbf16>, vector<256x32xf32> -> vector<256x32xf32>
    %637 = arith.addf %623, %636 : vector<256x32xf32>
    %638 = tpu.iota {dimensions = array<i32: 0>} : vector<256x64xi32>
    %639 = tpu.iota {dimensions = array<i32: 1>} : vector<256x64xi32>
    %c4_i32_201 = arith.constant 4 : i32
    %640 = vector.broadcast %c4_i32_201 : i32 to vector<256x64xi32>
    %641 = arith.muli %640, %639 : vector<256x64xi32>
    %c3_i32_202 = arith.constant 3 : i32
    %642 = vector.broadcast %c3_i32_202 : i32 to vector<256x64xi32>
    %643 = arith.addi %641, %642 : vector<256x64xi32>
    %644 = arith.cmpi eq, %638, %643 : vector<256x64xi32>
    %cst_203 = arith.constant 1.000000e+00 : f32
    %cst_204 = arith.constant 0.000000e+00 : f32
    %645 = vector.broadcast %cst_203 : f32 to vector<256x64xf32>
    %646 = vector.broadcast %cst_204 : f32 to vector<256x64xf32>
    %647 = arith.select %644, %645, %646 : vector<256x64xi1>, vector<256x64xf32>
    %648 = arith.truncf %647 : vector<256x64xf32> to vector<256x64xbf16>
    %649 = vector.extract_strided_slice %594 {offsets = [0, 96], sizes = [64, 32], strides = [1, 1]} : vector<64x128xbf16> to vector<64x32xbf16>
    %cst_205 = arith.constant dense<0.000000e+00> : vector<256x32xf32>
    %650 = tpu.matmul %648, %649, %cst_205 {dimension_numbers = #tpu.dot_dimension_numbers<[1], [0], [0], [1], [0, 0, 1, 1], [], []>} : vector<256x64xbf16>, vector<64x32xbf16>, vector<256x32xf32> -> vector<256x32xf32>
    %651 = arith.addf %637, %650 : vector<256x32xf32>
    %c0_206 = arith.constant 0 : index
    %c704 = arith.constant 704 : index
    %652 = vector.load %arg16[%c0_206, %c704] : memref<2x736xf32, #tpu.memory_space<vmem>>, vector<1x32xf32>
    %c1_207 = arith.constant 1 : index
    %c704_208 = arith.constant 704 : index
    %653 = vector.load %arg16[%c1_207, %c704_208] : memref<2x736xf32, #tpu.memory_space<vmem>>, vector<1x32xf32>
    %c0_209 = arith.constant 0 : index
    %c0_210 = arith.constant 0 : index
    %654 = vector.load %arg13[%c0_209, %c0_210] : memref<32x128xbf16, #tpu.memory_space<vmem>>, vector<32x128xbf16>
    %655 = arith.truncf %651 : vector<256x32xf32> to vector<256x32xbf16>
    %cst_211 = arith.constant dense<0.000000e+00> : vector<256x128xf32>
    %656 = tpu.matmul %655, %654, %cst_211 {dimension_numbers = #tpu.dot_dimension_numbers<[1], [0], [0], [1], [0, 0, 1, 1], [], []>} : vector<256x32xbf16>, vector<32x128xbf16>, vector<256x128xf32> -> vector<256x128xf32>
    %cst_212 = arith.constant dense<0.000000e+00> : vector<128xf32>
    %657 = vector.multi_reduction <add>, %656, %cst_212 [0] : vector<256x128xf32> to vector<128xf32>
    %658 = vector.shape_cast %657 : vector<128xf32> to vector<1x128xf32>
    %659 = vector.extract_strided_slice %658 {offsets = [0, 0], sizes = [1, 32], strides = [1, 1]} : vector<1x128xf32> to vector<1x32xf32>
    %660 = vector.extract_strided_slice %658 {offsets = [0, 32], sizes = [1, 32], strides = [1, 1]} : vector<1x128xf32> to vector<1x32xf32>
    %661 = arith.addf %659, %660 : vector<1x32xf32>
    %662 = vector.extract_strided_slice %658 {offsets = [0, 64], sizes = [1, 32], strides = [1, 1]} : vector<1x128xf32> to vector<1x32xf32>
    %663 = arith.addf %661, %662 : vector<1x32xf32>
    %664 = vector.extract_strided_slice %658 {offsets = [0, 96], sizes = [1, 32], strides = [1, 1]} : vector<1x128xf32> to vector<1x32xf32>
    %665 = arith.addf %663, %664 : vector<1x32xf32>
    %cst_213 = arith.constant 1.026000e+03 : f32
    %666 = vector.broadcast %cst_213 : f32 to vector<1x32xf32>
    %667 = arith.divf %665, %666 : vector<1x32xf32>
    %668 = tpu.concatenate %667, %667, %667, %667 in 1 : vector<1x32xf32>, vector<1x32xf32>, vector<1x32xf32>, vector<1x32xf32> -> vector<1x128xf32>
    %669 = vector.broadcast %668 : vector<1x128xf32> to vector<256x128xf32>
    %670 = arith.subf %656, %669 : vector<256x128xf32>
    %671 = arith.mulf %670, %670 : vector<256x128xf32>
    %cst_214 = arith.constant dense<0.000000e+00> : vector<128xf32>
    %672 = vector.multi_reduction <add>, %671, %cst_214 [0] : vector<256x128xf32> to vector<128xf32>
    %673 = vector.shape_cast %672 : vector<128xf32> to vector<1x128xf32>
    %674 = vector.extract_strided_slice %673 {offsets = [0, 0], sizes = [1, 32], strides = [1, 1]} : vector<1x128xf32> to vector<1x32xf32>
    %675 = vector.extract_strided_slice %673 {offsets = [0, 32], sizes = [1, 32], strides = [1, 1]} : vector<1x128xf32> to vector<1x32xf32>
    %676 = arith.addf %674, %675 : vector<1x32xf32>
    %677 = vector.extract_strided_slice %673 {offsets = [0, 64], sizes = [1, 32], strides = [1, 1]} : vector<1x128xf32> to vector<1x32xf32>
    %678 = arith.addf %676, %677 : vector<1x32xf32>
    %679 = vector.extract_strided_slice %673 {offsets = [0, 96], sizes = [1, 32], strides = [1, 1]} : vector<1x128xf32> to vector<1x32xf32>
    %680 = arith.addf %678, %679 : vector<1x32xf32>
    %681 = arith.mulf %667, %667 : vector<1x32xf32>
    %cst_215 = arith.constant 2.000000e+00 : f32
    %682 = vector.broadcast %cst_215 : f32 to vector<1x32xf32>
    %683 = arith.mulf %682, %681 : vector<1x32xf32>
    %684 = arith.addf %680, %683 : vector<1x32xf32>
    %cst_216 = arith.constant 1.026000e+03 : f32
    %685 = vector.broadcast %cst_216 : f32 to vector<1x32xf32>
    %686 = arith.divf %684, %685 : vector<1x32xf32>
    %cst_217 = arith.constant 9.99999974E-6 : f32
    %687 = vector.broadcast %cst_217 : f32 to vector<1x32xf32>
    %688 = arith.addf %686, %687 : vector<1x32xf32>
    %689 = math.rsqrt %688 : vector<1x32xf32>
    %690 = arith.mulf %689, %652 : vector<1x32xf32>
    %691 = arith.mulf %667, %690 : vector<1x32xf32>
    %692 = arith.subf %653, %691 : vector<1x32xf32>
    %693 = tpu.concatenate %690, %690, %690, %690 in 1 : vector<1x32xf32>, vector<1x32xf32>, vector<1x32xf32>, vector<1x32xf32> -> vector<1x128xf32>
    %694 = vector.broadcast %693 : vector<1x128xf32> to vector<256x128xf32>
    %695 = arith.mulf %656, %694 : vector<256x128xf32>
    %696 = tpu.concatenate %692, %692, %692, %692 in 1 : vector<1x32xf32>, vector<1x32xf32>, vector<1x32xf32>, vector<1x32xf32> -> vector<1x128xf32>
    %697 = vector.broadcast %696 : vector<1x128xf32> to vector<256x128xf32>
    %698 = arith.addf %695, %697 : vector<256x128xf32>
    %cst_218 = arith.constant 0.000000e+00 : f32
    %699 = vector.broadcast %cst_218 : f32 to vector<256x128xf32>
    %700 = arith.cmpf ogt, %698, %699 : vector<256x128xf32>
    %cst_219 = arith.constant 0.00999999977 : f32
    %701 = vector.broadcast %cst_219 : f32 to vector<256x128xf32>
    %702 = arith.mulf %701, %698 : vector<256x128xf32>
    %703 = arith.select %700, %698, %702 : vector<256x128xi1>, vector<256x128xf32>
    %cst_220 = arith.constant 0.000000e+00 : f32
    %704 = vector.broadcast %cst_220 : f32 to vector<1x32xf32>
    %705 = arith.cmpf ogt, %692, %704 : vector<1x32xf32>
    %cst_221 = arith.constant 0.00999999977 : f32
    %706 = vector.broadcast %cst_221 : f32 to vector<1x32xf32>
    %707 = arith.mulf %706, %692 : vector<1x32xf32>
    %708 = arith.select %705, %692, %707 : vector<1x32xi1>, vector<1x32xf32>
    %709 = arith.truncf %703 : vector<256x128xf32> to vector<256x128xbf16>
    %710 = tpu.iota {dimensions = array<i32: 0>} : vector<256x256xi32>
    %711 = tpu.iota {dimensions = array<i32: 1>} : vector<256x256xi32>
    %c-1_i32 = arith.constant -1 : i32
    %712 = vector.broadcast %c-1_i32 : i32 to vector<256x256xi32>
    %713 = arith.addi %710, %712 : vector<256x256xi32>
    %714 = arith.cmpi eq, %711, %713 : vector<256x256xi32>
    %c127_i32 = arith.constant 127 : i32
    %715 = vector.broadcast %c127_i32 : i32 to vector<256x256xi32>
    %716 = arith.andi %710, %715 : vector<256x256xi32>
    %c1_i32_222 = arith.constant 1 : i32
    %717 = vector.broadcast %c1_i32_222 : i32 to vector<256x256xi32>
    %718 = arith.cmpi sge, %716, %717 : vector<256x256xi32>
    %719 = arith.andi %714, %718 : vector<256x256xi1>
    %cst_223 = arith.constant 1.000000e+00 : f32
    %cst_224 = arith.constant 0.000000e+00 : f32
    %720 = vector.broadcast %cst_223 : f32 to vector<256x256xf32>
    %721 = vector.broadcast %cst_224 : f32 to vector<256x256xf32>
    %722 = arith.select %719, %720, %721 : vector<256x256xi1>, vector<256x256xf32>
    %723 = arith.truncf %722 : vector<256x256xf32> to vector<256x256xbf16>
    %724 = vector.extract_strided_slice %709 {offsets = [0, 96], sizes = [256, 32], strides = [1, 1]} : vector<256x128xbf16> to vector<256x32xbf16>
    %cst_225 = arith.constant dense<0.000000e+00> : vector<256x32xf32>
    %725 = tpu.matmul %723, %724, %cst_225 {dimension_numbers = #tpu.dot_dimension_numbers<[1], [0], [0], [1], [0, 0, 1, 1], [], []>} : vector<256x256xbf16>, vector<256x32xbf16>, vector<256x32xf32> -> vector<256x32xf32>
    %726 = tpu.iota {dimensions = array<i32: 0>} : vector<256x256xi32>
    %727 = tpu.iota {dimensions = array<i32: 1>} : vector<256x256xi32>
    %c1_i32_226 = arith.constant 1 : i32
    %728 = vector.broadcast %c1_i32_226 : i32 to vector<256x256xi32>
    %729 = arith.addi %726, %728 : vector<256x256xi32>
    %730 = arith.cmpi eq, %727, %729 : vector<256x256xi32>
    %c127_i32_227 = arith.constant 127 : i32
    %731 = vector.broadcast %c127_i32_227 : i32 to vector<256x256xi32>
    %732 = arith.andi %726, %731 : vector<256x256xi32>
    %c127_i32_228 = arith.constant 127 : i32
    %733 = vector.broadcast %c127_i32_228 : i32 to vector<256x256xi32>
    %734 = arith.cmpi slt, %732, %733 : vector<256x256xi32>
    %735 = arith.andi %730, %734 : vector<256x256xi1>
    %cst_229 = arith.constant 1.000000e+00 : f32
    %cst_230 = arith.constant 0.000000e+00 : f32
    %736 = vector.broadcast %cst_229 : f32 to vector<256x256xf32>
    %737 = vector.broadcast %cst_230 : f32 to vector<256x256xf32>
    %738 = arith.select %735, %736, %737 : vector<256x256xi1>, vector<256x256xf32>
    %739 = arith.truncf %738 : vector<256x256xf32> to vector<256x256xbf16>
    %740 = vector.extract_strided_slice %709 {offsets = [0, 0], sizes = [256, 32], strides = [1, 1]} : vector<256x128xbf16> to vector<256x32xbf16>
    %cst_231 = arith.constant dense<0.000000e+00> : vector<256x32xf32>
    %741 = tpu.matmul %739, %740, %cst_231 {dimension_numbers = #tpu.dot_dimension_numbers<[1], [0], [0], [1], [0, 0, 1, 1], [], []>} : vector<256x256xbf16>, vector<256x32xbf16>, vector<256x32xf32> -> vector<256x32xf32>
    %742 = tpu.iota {dimensions = array<i32: 0>} : vector<256x256xi32>
    %743 = tpu.iota {dimensions = array<i32: 1>} : vector<256x256xi32>
    %c1_i32_232 = arith.constant 1 : i32
    %744 = vector.broadcast %c1_i32_232 : i32 to vector<256x256xi32>
    %745 = arith.addi %742, %744 : vector<256x256xi32>
    %746 = arith.cmpi eq, %743, %745 : vector<256x256xi32>
    %c127_i32_233 = arith.constant 127 : i32
    %747 = vector.broadcast %c127_i32_233 : i32 to vector<256x256xi32>
    %748 = arith.andi %742, %747 : vector<256x256xi32>
    %c127_i32_234 = arith.constant 127 : i32
    %749 = vector.broadcast %c127_i32_234 : i32 to vector<256x256xi32>
    %750 = arith.cmpi slt, %748, %749 : vector<256x256xi32>
    %751 = arith.andi %746, %750 : vector<256x256xi1>
    %cst_235 = arith.constant 1.000000e+00 : f32
    %cst_236 = arith.constant 0.000000e+00 : f32
    %752 = vector.broadcast %cst_235 : f32 to vector<256x256xf32>
    %753 = vector.broadcast %cst_236 : f32 to vector<256x256xf32>
    %754 = arith.select %751, %752, %753 : vector<256x256xi1>, vector<256x256xf32>
    %755 = arith.truncf %754 : vector<256x256xf32> to vector<256x256xbf16>
    %756 = vector.extract_strided_slice %709 {offsets = [0, 32], sizes = [256, 32], strides = [1, 1]} : vector<256x128xbf16> to vector<256x32xbf16>
    %cst_237 = arith.constant dense<0.000000e+00> : vector<256x32xf32>
    %757 = tpu.matmul %755, %756, %cst_237 {dimension_numbers = #tpu.dot_dimension_numbers<[1], [0], [0], [1], [0, 0, 1, 1], [], []>} : vector<256x256xbf16>, vector<256x32xbf16>, vector<256x32xf32> -> vector<256x32xf32>
    %758 = tpu.iota {dimensions = array<i32: 0>} : vector<256x32xi32>
    %c127_i32_238 = arith.constant 127 : i32
    %759 = vector.broadcast %c127_i32_238 : i32 to vector<256x32xi32>
    %760 = arith.andi %758, %759 : vector<256x32xi32>
    %c127_i32_239 = arith.constant 127 : i32
    %761 = vector.broadcast %c127_i32_239 : i32 to vector<256x32xi32>
    %762 = arith.cmpi eq, %760, %761 : vector<256x32xi32>
    %cst_240 = arith.constant 1.000000e+00 : f32
    %cst_241 = arith.constant 0.000000e+00 : f32
    %763 = vector.broadcast %cst_240 : f32 to vector<256x32xf32>
    %764 = vector.broadcast %cst_241 : f32 to vector<256x32xf32>
    %765 = arith.select %762, %763, %764 : vector<256x32xi1>, vector<256x32xf32>
    %766 = vector.broadcast %708 : vector<1x32xf32> to vector<256x32xf32>
    %767 = arith.mulf %765, %766 : vector<256x32xf32>
    %768 = arith.addf %741, %767 : vector<256x32xf32>
    %769 = tpu.concatenate %725, %703, %768, %757 in 1 : vector<256x32xf32>, vector<256x128xf32>, vector<256x32xf32>, vector<256x32xf32> -> vector<256x224xf32>
    %c0_242 = arith.constant 0 : index
    %c0_243 = arith.constant 0 : index
    %770 = vector.load %arg14[%c0_242, %c0_243] : memref<224x4xbf16, #tpu.memory_space<vmem>>, vector<224x4xbf16>
    %771 = arith.truncf %769 : vector<256x224xf32> to vector<256x224xbf16>
    %cst_244 = arith.constant dense<0.000000e+00> : vector<256x4xf32>
    %772 = tpu.matmul %771, %770, %cst_244 {dimension_numbers = #tpu.dot_dimension_numbers<[1], [0], [0], [1], [0, 0, 1, 1], [], []>} : vector<256x224xbf16>, vector<224x4xbf16>, vector<256x4xf32> -> vector<256x4xf32>
    %c0_245 = arith.constant 0 : index
    %c0_246 = arith.constant 0 : index
    %773 = vector.load %arg15[%c0_245, %c0_246] : memref<1x1xf32, #tpu.memory_space<vmem>>, vector<1x1xf32>
    %774 = vector.broadcast %773 : vector<1x1xf32> to vector<256x4xf32>
    %775 = arith.addf %772, %774 : vector<256x4xf32>
    %c0_247 = arith.constant 0 : index
    %c0_248 = arith.constant 0 : index
    %776 = vector.load %arg19[%c0_247, %c0_248] : memref<256x4xf32, #tpu.memory_space<vmem>>, vector<256x4xf32>
    tpu.vector_store %arg19[%c0_247, %c0_248], %775 {strides = array<i32>} : memref<256x4xf32, #tpu.memory_space<vmem>>, vector<256x4xf32>,
    return
  }
}

</mosaic_0001>

<llo_original>
// kernel: beta_vae1d_forward.1
$region0: #{beta_vae1d_forward.1}
  #allocation0 [shape = 'u32[]', space=smem, size = 0x4, offset = 0x4, fixed_abs, tag = 'smem constant byte address 0x4 - core index']
  #allocation1 [shape = 'u32[144,128]{1,0:T(1,128)}', space=vmem, size = 0x12000, scoped, tag = 'internal scratch']
  #allocation2 [shape = 'f32[1,1]{1,0:T(1,128)S(1)}', space=vmem, size = 0x200, scoped, tag = 'scoped memory for beta_vae1d_forward.1']
  %s0 = inlined_call_operand.vmem [shape: f32[16,64], index: 0, kind: input, shape index: {}]
  %s1 = inlined_call_operand.vmem [shape: f32[2,32], index: 1, kind: input, shape index: {}]
  %s2 = inlined_call_operand.hbm [shape: bf16[64,512], index: 2, kind: input, shape index: {}]
  %s3 = inlined_call_operand.vmem [shape: bf16[512,256], index: 3, kind: input, shape index: {}]
  %s4 = inlined_call_operand.hbm [shape: bf16[256,128], index: 4, kind: input, shape index: {}]
  %s5 = inlined_call_operand.hbm [shape: bf16[512,256], index: 5, kind: input, shape index: {}]
  %s6 = inlined_call_operand.vmem [shape: bf16[512,64], index: 6, kind: input, shape index: {}]
  %s7 = inlined_call_operand.vmem [shape: f32[1,64], index: 7, kind: input, shape index: {}]
  %s8 = inlined_call_operand.hbm [shape: bf16[32,512], index: 8, kind: input, shape index: {}]
  %s9 = inlined_call_operand.vmem [shape: f32[1,512], index: 9, kind: input, shape index: {}]
  %s10 = inlined_call_operand.hbm [shape: bf16[256,512], index: 10, kind: input, shape index: {}]
  %s11 = inlined_call_operand.hbm [shape: bf16[128,256], index: 11, kind: input, shape index: {}]
  %s12 = inlined_call_operand.vmem [shape: bf16[64,128], index: 12, kind: input, shape index: {}]
  %s13 = inlined_call_operand.vmem [shape: bf16[32,128], index: 13, kind: input, shape index: {}]
  %s14 = inlined_call_operand.vmem [shape: bf16[224,4], index: 14, kind: input, shape index: {}]
  %s15 = inlined_call_operand.<no memory space> [shape: f32[1,1], index: 15, kind: input, shape index: {}]
  %s16 = inlined_call_operand.hbm [shape: f32[2,736], index: 16, kind: input, shape index: {}]
  %s17 = inlined_call_operand.hbm [shape: f32[2,32], index: 17, kind: output, shape index: {0}]
  %s18 = inlined_call_operand.hbm [shape: f32[2,32], index: 18, kind: output, shape index: {1}]
  %s19 = inlined_call_operand.vmem [shape: f32[256,4], index: 19, kind: output, shape index: {2}]
  %20 = xla_tuple %s17, %s18, %s19
  %s21 = sld [smem:[#allocation0]]
  $region122: #{beta_vae1d_forward.1} parent=0
    _
  %s23 = ssub.s32 1, %s21
  %s24 = scalar_select 0, %s23, %s21
  %v25 = vstv %s15
  %26 = vst [vmem:[#allocation2] sm:$0x1] %v25
  $region1: #{beta_vae1d_forward.1} parent=0
    #allocation3 [shape = 'u8[65536]{0}', space=vmem, size = 0x10000, scoped, tag = 'input window, operand 2, single buffered']
    #allocation4 [shape = 's32[1]{0}', space=sflag, size = 0x4, scoped, tag = 'scoped memory for beta_vae1d_forward.1']
    #allocation5 [shape = 's32[1]{0}', space=sflag, size = 0x4, scoped, tag = 'scoped memory for beta_vae1d_forward.1']
    #allocation6 [shape = 'u8[65536]{0}', space=vmem, size = 0x10000, scoped, tag = 'input window, operand 4, single buffered']
    #allocation7 [shape = 's32[1]{0}', space=sflag, size = 0x4, scoped, tag = 'scoped memory for beta_vae1d_forward.1']
    #allocation8 [shape = 'u8[262144]{0}', space=vmem, size = 0x40000, scoped, tag = 'input window, operand 5, single buffered']
    #allocation9 [shape = 'u8[32768]{0}', space=vmem, size = 0x8000, scoped, tag = 'input window, operand 8, single buffered']
    #allocation10 [shape = 's32[1]{0}', space=sflag, size = 0x4, scoped, tag = 'scoped memory for beta_vae1d_forward.1']
    #allocation11 [shape = 'u8[262144]{0}', space=vmem, size = 0x40000, scoped, tag = 'input window, operand 10, single buffered']
    #allocation12 [shape = 'u8[65536]{0}', space=vmem, size = 0x10000, scoped, tag = 'input window, operand 11, single buffered']
    #allocation13 [shape = 's32[1]{0}', space=sflag, size = 0x4, scoped, tag = 'scoped memory for beta_vae1d_forward.1']
    #allocation14 [shape = 'u8[6144]{0}', space=vmem, size = 0x1800, scoped, tag = 'input window, operand 16, single buffered']
    #allocation15 [shape = 'u8[1024]{0}', space=vmem, size = 0x400, scoped, tag = 'output window, operand 0, single buffered']
    #allocation16 [shape = 'u8[1024]{0}', space=vmem, size = 0x400, scoped, tag = 'output window, operand 1, single buffered']
    #allocation17 [shape = 's32[1]{0}', space=sflag, size = 0x4, scoped, tag = 'scoped memory for beta_vae1d_forward.1']
    %27 = vsyncpa [#allocation4], 0
    %28 = vsyncpa [#allocation7], 0
    %29 = vsyncpa [#allocation10], 0
    %30 = vsyncpa [#allocation13], 0
    %31 = vsyncpa [#allocation5], 0
    %32 = vsyncpa [#allocation17], 0
    // Predicated region
    $region2: #{beta_vae1d_forward.1} parent=1 // pred_check
      _
    $region3: #{beta_vae1d_forward.1} parent=1 // pred_check_branch
      %34 = sbr.rel (0) target = $region5
    $region4: #{beta_vae1d_forward.1} parent=1 // pred_region
      _
    $region5: #{beta_vae1d_forward.1} parent=1 // pred_fallthru
      _
    // Predicated region
    $region6: #{beta_vae1d_forward.1} parent=1 // pred_check
      _
    $region7: #{beta_vae1d_forward.1} parent=1 // pred_check_branch
      %36 = sbr.rel (0) target = $region9
    $region8: #{beta_vae1d_forward.1} parent=1 // pred_region
      _
    $region9: #{beta_vae1d_forward.1} parent=1 // pred_fallthru
      _
    // Predicated region
    $region10: #{beta_vae1d_forward.1} parent=1 // pred_check
      _
    $region11: #{beta_vae1d_forward.1} parent=1 // pred_check_branch
      %38 = sbr.rel (0) target = $region13
    $region12: #{beta_vae1d_forward.1} parent=1 // pred_region
      %s40 = ssub.s32 2048, 2048
      %41 = vsyncadd [#allocation4], %s40
      %s42 = sshll.u32 [#allocation3], 4
      %s43 = int_to_ptr.vmem [resolvable:$true] %s42
      %48 = dma.hbm_to_vmem [thread:$0]  %s2, 2048, %s43, [#allocation4], 256, 256, 16
    $region13: #{beta_vae1d_forward.1} parent=1 // pred_fallthru
      _
    // Predicated region
    $region14: #{beta_vae1d_forward.1} parent=1 // pred_check
      _
    $region15: #{beta_vae1d_forward.1} parent=1 // pred_check_branch
      %50 = sbr.rel (0) target = $region17
    $region16: #{beta_vae1d_forward.1} parent=1 // pred_region
      _
    $region17: #{beta_vae1d_forward.1} parent=1 // pred_fallthru
      _
    // Predicated region
    $region18: #{beta_vae1d_forward.1} parent=1 // pred_check
      _
    $region19: #{beta_vae1d_forward.1} parent=1 // pred_check_branch
      %52 = sbr.rel (0) target = $region21
    $region20: #{beta_vae1d_forward.1} parent=1 // pred_region
      %s54 = ssub.s32 2048, 2048
      %55 = vsyncadd [#allocation7], %s54
      %s56 = sshll.u32 [#allocation6], 4
      %s57 = int_to_ptr.vmem [resolvable:$true] %s56
      %62 = dma.hbm_to_vmem [thread:$0]  %s4, 2048, %s57, [#allocation7], 64, 64, 4
    $region21: #{beta_vae1d_forward.1} parent=1 // pred_fallthru
      _
    // Predicated region
    $region22: #{beta_vae1d_forward.1} parent=1 // pred_check
      _
    $region23: #{beta_vae1d_forward.1} parent=1 // pred_check_branch
      %64 = sbr.rel (0) target = $region25
    $region24: #{beta_vae1d_forward.1} parent=1 // pred_region
      %s66 = ssub.s32 8192, 8192
      %67 = vsyncadd [#allocation7], %s66
      %s68 = sshll.u32 [#allocation8], 4
      %s69 = int_to_ptr.vmem [resolvable:$true] %s68
      %74 = dma.hbm_to_vmem [thread:$0]  %s5, 8192, %s69, [#allocation7], 128, 128, 8
    $region25: #{beta_vae1d_forward.1} parent=1 // pred_fallthru
      _
    // Predicated region
    $region26: #{beta_vae1d_forward.1} parent=1 // pred_check
      _
    $region27: #{beta_vae1d_forward.1} parent=1 // pred_check_branch
      %76 = sbr.rel (0) target = $region29
    $region28: #{beta_vae1d_forward.1} parent=1 // pred_region
      _
    $region29: #{beta_vae1d_forward.1} parent=1 // pred_fallthru
      _
    // Predicated region
    $region30: #{beta_vae1d_forward.1} parent=1 // pred_check
      _
    $region31: #{beta_vae1d_forward.1} parent=1 // pred_check_branch
      %78 = sbr.rel (0) target = $region33
    $region32: #{beta_vae1d_forward.1} parent=1 // pred_region
      _
    $region33: #{beta_vae1d_forward.1} parent=1 // pred_fallthru
      _
    // Predicated region
    $region34: #{beta_vae1d_forward.1} parent=1 // pred_check
      _
    $region35: #{beta_vae1d_forward.1} parent=1 // pred_check_branch
      %80 = sbr.rel (0) target = $region37
    $region36: #{beta_vae1d_forward.1} parent=1 // pred_region
      %s82 = ssub.s32 1024, 1024
      %83 = vsyncadd [#allocation10], %s82
      %s84 = sshll.u32 [#allocation9], 4
      %s85 = int_to_ptr.vmem [resolvable:$true] %s84
      %90 = dma.hbm_to_vmem [thread:$0]  %s8, 1024, %s85, [#allocation10], 256, 256, 16
    $region37: #{beta_vae1d_forward.1} parent=1 // pred_fallthru
      _
    // Predicated region
    $region38: #{beta_vae1d_forward.1} parent=1 // pred_check
      _
    $region39: #{beta_vae1d_forward.1} parent=1 // pred_check_branch
      %92 = sbr.rel (0) target = $region41
    $region40: #{beta_vae1d_forward.1} parent=1 // pred_region
      _
    $region41: #{beta_vae1d_forward.1} parent=1 // pred_fallthru
      _
    // Predicated region
    $region42: #{beta_vae1d_forward.1} parent=1 // pred_check
      _
    $region43: #{beta_vae1d_forward.1} parent=1 // pred_check_branch
      %94 = sbr.rel (0) target = $region45
    $region44: #{beta_vae1d_forward.1} parent=1 // pred_region
      %s96 = ssub.s32 8192, 8192
      %97 = vsyncadd [#allocation10], %s96
      %s98 = sshll.u32 [#allocation11], 4
      %s99 = int_to_ptr.vmem [resolvable:$true] %s98
      %104 = dma.hbm_to_vmem [thread:$0]  %s10, 8192, %s99, [#allocation10], 256, 256, 16
    $region45: #{beta_vae1d_forward.1} parent=1 // pred_fallthru
      _
    // Predicated region
    $region46: #{beta_vae1d_forward.1} parent=1 // pred_check
      _
    $region47: #{beta_vae1d_forward.1} parent=1 // pred_check_branch
      %106 = sbr.rel (0) target = $region49
    $region48: #{beta_vae1d_forward.1} parent=1 // pred_region
      %s108 = ssub.s32 2048, 2048
      %109 = vsyncadd [#allocation13], %s108
      %s110 = sshll.u32 [#allocation12], 4
      %s111 = int_to_ptr.vmem [resolvable:$true] %s110
      %116 = dma.hbm_to_vmem [thread:$0]  %s11, 2048, %s111, [#allocation13], 128, 128, 8
    $region49: #{beta_vae1d_forward.1} parent=1 // pred_fallthru
      _
    // Predicated region
    $region50: #{beta_vae1d_forward.1} parent=1 // pred_check
      _
    $region51: #{beta_vae1d_forward.1} parent=1 // pred_check_branch
      %118 = sbr.rel (0) target = $region53
    $region52: #{beta_vae1d_forward.1} parent=1 // pred_region
      _
    $region53: #{beta_vae1d_forward.1} parent=1 // pred_fallthru
      _
    // Predicated region
    $region54: #{beta_vae1d_forward.1} parent=1 // pred_check
      _
    $region55: #{beta_vae1d_forward.1} parent=1 // pred_check_branch
      %120 = sbr.rel (0) target = $region57
    $region56: #{beta_vae1d_forward.1} parent=1 // pred_region
      _
    $region57: #{beta_vae1d_forward.1} parent=1 // pred_fallthru
      _
    // Predicated region
    $region58: #{beta_vae1d_forward.1} parent=1 // pred_check
      _
    $region59: #{beta_vae1d_forward.1} parent=1 // pred_check_branch
      %122 = sbr.rel (0) target = $region61
    $region60: #{beta_vae1d_forward.1} parent=1 // pred_region
      _
    $region61: #{beta_vae1d_forward.1} parent=1 // pred_fallthru
      _
    // Predicated region
    $region62: #{beta_vae1d_forward.1} parent=1 // pred_check
      _
    $region63: #{beta_vae1d_forward.1} parent=1 // pred_check_branch
      %124 = sbr.rel (0) target = $region65
    $region64: #{beta_vae1d_forward.1} parent=1 // pred_region
      _
    $region65: #{beta_vae1d_forward.1} parent=1 // pred_fallthru
      _
    // Predicated region
    $region66: #{beta_vae1d_forward.1} parent=1 // pred_check
      _
    $region67: #{beta_vae1d_forward.1} parent=1 // pred_check_branch
      %126 = sbr.rel (0) target = $region69
    $region68: #{beta_vae1d_forward.1} parent=1 // pred_region
      %s128 = ssub.s32 192, 192
      %129 = vsyncadd [#allocation13], %s128
      %s131 = sshll.u32 [#allocation14], 4
      %s132 = int_to_ptr.vmem [resolvable:$true] %s131
      %134 = dma.hbm_to_vmem [thread:$0]  %s16, 192, %s132, [#allocation13]
    $region69: #{beta_vae1d_forward.1} parent=1 // pred_fallthru
      _
    // Predicated region
    $region70: #{beta_vae1d_forward.1} parent=1 // pred_check
      _
    $region71: #{beta_vae1d_forward.1} parent=1 // pred_check_branch
      %136 = sbr.rel (0) target = $region73
    $region72: #{beta_vae1d_forward.1} parent=1 // pred_region
      %137 = dma.done [#allocation4], 2048
    $region73: #{beta_vae1d_forward.1} parent=1 // pred_fallthru
      _
    // Predicated region
    $region74: #{beta_vae1d_forward.1} parent=1 // pred_check
      _
    $region75: #{beta_vae1d_forward.1} parent=1 // pred_check_branch
      %139 = sbr.rel (0) target = $region77
    $region76: #{beta_vae1d_forward.1} parent=1 // pred_region
      %140 = dma.done [#allocation7], 2048
    $region77: #{beta_vae1d_forward.1} parent=1 // pred_fallthru
      _
    // Predicated region
    $region78: #{beta_vae1d_forward.1} parent=1 // pred_check
      _
    $region79: #{beta_vae1d_forward.1} parent=1 // pred_check_branch
      %142 = sbr.rel (0) target = $region81
    $region80: #{beta_vae1d_forward.1} parent=1 // pred_region
      %143 = dma.done [#allocation7], 8192
    $region81: #{beta_vae1d_forward.1} parent=1 // pred_fallthru
      _
    // Predicated region
    $region82: #{beta_vae1d_forward.1} parent=1 // pred_check
      _
    $region83: #{beta_vae1d_forward.1} parent=1 // pred_check_branch
      %145 = sbr.rel (0) target = $region85
    $region84: #{beta_vae1d_forward.1} parent=1 // pred_region
      %146 = dma.done [#allocation10], 1024
    $region85: #{beta_vae1d_forward.1} parent=1 // pred_fallthru
      _
    // Predicated region
    $region86: #{beta_vae1d_forward.1} parent=1 // pred_check
      _
    $region87: #{beta_vae1d_forward.1} parent=1 // pred_check_branch
      %148 = sbr.rel (0) target = $region89
    $region88: #{beta_vae1d_forward.1} parent=1 // pred_region
      %149 = dma.done [#allocation10], 8192
    $region89: #{beta_vae1d_forward.1} parent=1 // pred_fallthru
      _
    // Predicated region
    $region90: #{beta_vae1d_forward.1} parent=1 // pred_check
      _
    $region91: #{beta_vae1d_forward.1} parent=1 // pred_check_branch
      %151 = sbr.rel (0) target = $region93
    $region92: #{beta_vae1d_forward.1} parent=1 // pred_region
      %152 = dma.done [#allocation13], 2048
    $region93: #{beta_vae1d_forward.1} parent=1 // pred_fallthru
      _
    // Predicated region
    $region94: #{beta_vae1d_forward.1} parent=1 // pred_check
      _
    $region95: #{beta_vae1d_forward.1} parent=1 // pred_check_branch
      %154 = sbr.rel (0) target = $region97
    $region96: #{beta_vae1d_forward.1} parent=1 // pred_region
      %155 = dma.done [#allocation13], 192
    $region97: #{beta_vae1d_forward.1} parent=1 // pred_fallthru
      _
    %v157 = vld [vmem:[#allocation14] sm:$0x1]
    %v158 = vld [vmem:[#allocation14 + $0x1] sm:$0x1]
    %v159 = vld [vmem:[%s0] sm:$0xff]
    %v160 = vld [vmem:[%s0 + $0x8] sm:$0xff]
    %v161 = vld [vmem:[#allocation3] sm:$0xff]
    %v162 = vld [vmem:[#allocation3 + $0x8] sm:$0xff]
    %v163 = vld [vmem:[#allocation3 + $0x10] sm:$0xff]
    %v164 = vld [vmem:[#allocation3 + $0x18] sm:$0xff]
    %v165 = vld [vmem:[#allocation3 + $0x20] sm:$0xff]
    %v166 = vld [vmem:[#allocation3 + $0x28] sm:$0xff]
    %v167 = vld [vmem:[#allocation3 + $0x30] sm:$0xff]
    %v168 = vld [vmem:[#allocation3 + $0x38] sm:$0xff]
    %v169 = vld [vmem:[#allocation3 + $0x40] sm:$0xff]
    %v170 = vld [vmem:[#allocation3 + $0x48] sm:$0xff]
    %v171 = vld [vmem:[#allocation3 + $0x50] sm:$0xff]
    %v172 = vld [vmem:[#allocation3 + $0x58] sm:$0xff]
    %v173 = vld [vmem:[#allocation3 + $0x60] sm:$0xff]
    %v174 = vld [vmem:[#allocation3 + $0x68] sm:$0xff]
    %v175 = vld [vmem:[#allocation3 + $0x70] sm:$0xff]
    %v176 = vld [vmem:[#allocation3 + $0x78] sm:$0xff]
    %v177 = vpack.c.bf16 %v160, %v159
    %v194 = vunpack.c.l.b16 %v161
    %v195 = vunpack.c.h.b16 %v161
    %v196 = vunpack.c.l.b16 %v162
    %v197 = vunpack.c.h.b16 %v162
    %v198 = vunpack.c.l.b16 %v163
    %v199 = vunpack.c.h.b16 %v163
    %v200 = vunpack.c.l.b16 %v164
    %v201 = vunpack.c.h.b16 %v164
    %v202 = vunpack.c.l.b16 %v165
    %v203 = vunpack.c.h.b16 %v165
    %v204 = vunpack.c.l.b16 %v166
    %v205 = vunpack.c.h.b16 %v166
    %v206 = vunpack.c.l.b16 %v167
    %v207 = vunpack.c.h.b16 %v167
    %v208 = vunpack.c.l.b16 %v168
    %v209 = vunpack.c.h.b16 %v168
    %v210 = vunpack.c.l.b16 %v169
    %v211 = vunpack.c.h.b16 %v169
    %v212 = vunpack.c.l.b16 %v170
    %v213 = vunpack.c.h.b16 %v170
    %v214 = vunpack.c.l.b16 %v171
    %v215 = vunpack.c.h.b16 %v171
    %v216 = vunpack.c.l.b16 %v172
    %v217 = vunpack.c.h.b16 %v172
    %v218 = vunpack.c.l.b16 %v173
    %v219 = vunpack.c.h.b16 %v173
    %v220 = vunpack.c.l.b16 %v174
    %v221 = vunpack.c.h.b16 %v174
    %v222 = vunpack.c.l.b16 %v175
    %v223 = vunpack.c.h.b16 %v175
    %v224 = vunpack.c.l.b16 %v176
    %v225 = vunpack.c.h.b16 %v176
    %v226 = vpack.c.b16 %v198, %v194
    %v227 = vpack.c.b16 %v199, %v195
    %v228 = vpack.c.b16 %v200, %v196
    %v229 = vpack.c.b16 %v201, %v197
    %v230 = vpack.c.b16 %v206, %v202
    %v231 = vpack.c.b16 %v207, %v203
    %v232 = vpack.c.b16 %v208, %v204
    %v233 = vpack.c.b16 %v209, %v205
    %v234 = vpack.c.b16 %v214, %v210
    %v235 = vpack.c.b16 %v215, %v211
    %v236 = vpack.c.b16 %v216, %v212
    %v237 = vpack.c.b16 %v217, %v213
    %v238 = vpack.c.b16 %v222, %v218
    %v239 = vpack.c.b16 %v223, %v219
    %v240 = vpack.c.b16 %v224, %v220
    %v241 = vpack.c.b16 %v225, %v221
    %vm258 = vcmask 523264
    %v260 = vsel %vm258, %v177, 0
    %262 = vmatprep.subr.bf16.mxu0 %v227
    %263 = vmatpush1.bf16.msra.mxu0 %v226
    %264 = vmatprep.subr.bf16.mxu0 %v231
    %265 = vmatpush1.bf16.msra.mxu0 %v230
    %266 = vmatprep.subr.bf16.mxu0 %v235
    %267 = vmatpush1.bf16.msra.mxu0 %v234
    %268 = vmatprep.subr.bf16.mxu0 %v239
    %269 = vmatpush1.bf16.msra.mxu0 %v238
    %270 = vmatprep.subr.bf16.mxu0 0
    %271 = vmatpush1.bf16.msra.mxu0 0
    %272 = vmatprep.subr.bf16.mxu0 0
    %273 = vmatpush1.bf16.msra.mxu0 0
    %274 = vmatprep.subr.bf16.mxu0 0
    %275 = vmatpush1.bf16.msra.mxu0 0
    %276 = vmatprep.subr.bf16.mxu0 0
    %277 = vmatpush1.bf16.msra.mxu0 0
    %278 = vmatprep.subr.bf16.mxu0 0
    %279 = vmatpush1.bf16.msra.mxu0 0
    %280 = vmatprep.subr.bf16.mxu0 0
    %281 = vmatpush1.bf16.msra.mxu0 0
    %282 = vmatprep.subr.bf16.mxu0 0
    %283 = vmatpush1.bf16.msra.mxu0 0
    %284 = vmatprep.subr.bf16.mxu0 0
    %285 = vmatpush1.bf16.msra.mxu0 0
    %286 = vmatprep.subr.bf16.mxu0 0
    %287 = vmatpush1.bf16.msra.mxu0 0
    %288 = vmatprep.subr.bf16.mxu0 0
    %289 = vmatpush1.bf16.msra.mxu0 0
    %290 = vmatprep.subr.bf16.mxu0 0
    %291 = vmatpush1.bf16.msra.mxu0 0
    %292 = vmatprep.subr.bf16.mxu0 0
    %293 = vmatpush1.bf16.msra.mxu0 0
    %294 = vmatprep.mubr.bf16.mxu0 0
    %295 = vmatmul.mubr.bf16.gmra.mrb[0].mxu0 %v260
    %v296 = vpop.f32.mrb[0].mxu0
    %v297 = vadd.f32 0.0, %v296
    %v298 = vpop.f32.mrb[0].mxu0
    %v299 = vadd.f32 0.0, %v298
    %v300 = vpop.f32.mrb[0].mxu0
    %v301 = vadd.f32 0.0, %v300
    %v302 = vpop.f32.mrb[0].mxu0
    %v303 = vadd.f32 0.0, %v302
    %304 = vdwg.mxu0
    %305 = vmatprep.subr.bf16.mxu0 %v229
    %306 = vmatpush1.bf16.msra.mxu0 %v228
    %307 = vmatprep.subr.bf16.mxu0 %v233
    %308 = vmatpush1.bf16.msra.mxu0 %v232
    %309 = vmatprep.subr.bf16.mxu0 %v237
    %310 = vmatpush1.bf16.msra.mxu0 %v236
    %311 = vmatprep.subr.bf16.mxu0 %v241
    %312 = vmatpush1.bf16.msra.mxu0 %v240
    %313 = vmatprep.subr.bf16.mxu0 0
    %314 = vmatpush1.bf16.msra.mxu0 0
    %315 = vmatprep.subr.bf16.mxu0 0
    %316 = vmatpush1.bf16.msra.mxu0 0
    %317 = vmatprep.subr.bf16.mxu0 0
    %318 = vmatpush1.bf16.msra.mxu0 0
    %319 = vmatprep.subr.bf16.mxu0 0
    %320 = vmatpush1.bf16.msra.mxu0 0
    %321 = vmatprep.subr.bf16.mxu0 0
    %322 = vmatpush1.bf16.msra.mxu0 0
    %323 = vmatprep.subr.bf16.mxu0 0
    %324 = vmatpush1.bf16.msra.mxu0 0
    %325 = vmatprep.subr.bf16.mxu0 0
    %326 = vmatpush1.bf16.msra.mxu0 0
    %327 = vmatprep.subr.bf16.mxu0 0
    %328 = vmatpush1.bf16.msra.mxu0 0
    %329 = vmatprep.subr.bf16.mxu0 0
    %330 = vmatpush1.bf16.msra.mxu0 0
    %331 = vmatprep.subr.bf16.mxu0 0
    %332 = vmatpush1.bf16.msra.mxu0 0
    %333 = vmatprep.subr.bf16.mxu0 0
    %334 = vmatpush1.bf16.msra.mxu0 0
    %335 = vmatprep.subr.bf16.mxu0 0
    %336 = vmatpush1.bf16.msra.mxu0 0
    %337 = vmatprep.mubr.bf16.mxu0 0
    %338 = vmatmul.mubr.bf16.gmra.mrb[0].mxu0 %v260
    %v339 = vpop.f32.mrb[0].mxu0
    %v340 = vadd.f32 0.0, %v339
    %v341 = vpop.f32.mrb[0].mxu0
    %v342 = vadd.f32 0.0, %v341
    %v343 = vpop.f32.mrb[0].mxu0
    %v344 = vadd.f32 0.0, %v343
    %v345 = vpop.f32.mrb[0].mxu0
    %v346 = vadd.f32 0.0, %v345
    %347 = vdwg.mxu0
    %v348 = vadd.f32 %v297, %v301
    %v349 = vrot.slane %v348, 4
    %v350 = vadd.f32 %v348, %v349
    %v351 = vrot.slane %v350, 2
    %v352 = vadd.f32 %v350, %v351
    %v353 = vrot.slane %v352, 1
    %v354 = vadd.f32 %v352, %v353
    %v355 = vadd.f32 %v299, %v303
    %v356 = vrot.slane %v355, 4
    %v357 = vadd.f32 %v355, %v356
    %v358 = vrot.slane %v357, 2
    %v359 = vadd.f32 %v357, %v358
    %v360 = vrot.slane %v359, 1
    %v361 = vadd.f32 %v359, %v360
    %v362 = vadd.f32 %v340, %v344
    %v363 = vrot.slane %v362, 4
    %v364 = vadd.f32 %v362, %v363
    %v365 = vrot.slane %v364, 2
    %v366 = vadd.f32 %v364, %v365
    %v367 = vrot.slane %v366, 1
    %v368 = vadd.f32 %v366, %v367
    %v369 = vadd.f32 %v342, %v346
    %v370 = vrot.slane %v369, 4
    %v371 = vadd.f32 %v369, %v370
    %v372 = vrot.slane %v371, 2
    %v373 = vadd.f32 %v371, %v372
    %v374 = vrot.slane %v373, 1
    %v375 = vadd.f32 %v373, %v374
    %377 = vrot.lane.b32.xlu0 %v354, 96
    %v378 = vpop.permute.xlu0 %377
    %v380 = vadd.f32 %v354, %v378
    %381 = vrot.lane.b32.xlu0 %v354, 64
    %v382 = vpop.permute.xlu0 %381
    %v384 = vadd.f32 %v380, %v382
    %385 = vrot.lane.b32.xlu0 %v354, 32
    %v386 = vpop.permute.xlu0 %385
    %v388 = vadd.f32 %v384, %v386
    %v389 = vadd.f32 %v388, %v361
    %391 = vrot.lane.b32.xlu0 %v361, 96
    %v392 = vpop.permute.xlu0 %391
    %v394 = vadd.f32 %v389, %v392
    %395 = vrot.lane.b32.xlu0 %v361, 64
    %v396 = vpop.permute.xlu0 %395
    %v398 = vadd.f32 %v394, %v396
    %399 = vrot.lane.b32.xlu0 %v361, 32
    %v400 = vpop.permute.xlu0 %399
    %v402 = vadd.f32 %v398, %v400
    %v403 = vadd.f32 %v402, %v368
    %405 = vrot.lane.b32.xlu0 %v368, 96
    %v406 = vpop.permute.xlu0 %405
    %v408 = vadd.f32 %v403, %v406
    %409 = vrot.lane.b32.xlu0 %v368, 64
    %v410 = vpop.permute.xlu0 %409
    %v412 = vadd.f32 %v408, %v410
    %413 = vrot.lane.b32.xlu0 %v368, 32
    %v414 = vpop.permute.xlu0 %413
    %v416 = vadd.f32 %v412, %v414
    %v417 = vadd.f32 %v416, %v375
    %419 = vrot.lane.b32.xlu0 %v375, 96
    %v420 = vpop.permute.xlu0 %419
    %v422 = vadd.f32 %v417, %v420
    %423 = vrot.lane.b32.xlu0 %v375, 64
    %v424 = vpop.permute.xlu0 %423
    %v426 = vadd.f32 %v422, %v424
    %427 = vrot.lane.b32.xlu0 %v375, 32
    %v428 = vpop.permute.xlu0 %427
    %v430 = vadd.f32 %v426, %v428
    %v431 = vrcp.pop 256.0
    %v432 = vmul.f32 %v430, %v431
    %434 = vrot.lane.b32.xlu0 %v432, 32
    %v435 = vpop.permute.xlu0 %434
    %437 = vrot.lane.b32.xlu0 %v432, 64
    %v438 = vpop.permute.xlu0 %437
    %440 = vrot.lane.b32.xlu0 %v432, 96
    %v441 = vpop.permute.xlu0 %440
    %vm443 = vcmask 261120
    %v444 = vsel %vm443, %v432, %v435
    %v445 = vsel %vm258, %v444, %v438
    %vm446 = vcmask 785408
    %v447 = vsel %vm446, %v445, %v441
    %v448 = vlaneseq
    %v449 = vshrl.u32 %v448, 7
    %v450 = vsub.s32 0, %v449
    %v451 = vrot.slane %v447, %v450
    %v452 = vsub.f32 %v297, %v451
    %v453 = vsub.f32 %v299, %v451
    %v454 = vsub.f32 %v340, %v451
    %v455 = vsub.f32 %v342, %v451
    %v456 = vsub.f32 %v301, %v451
    %v457 = vsub.f32 %v303, %v451
    %v458 = vsub.f32 %v344, %v451
    %v459 = vsub.f32 %v346, %v451
    %v460 = vmul.f32 %v452, %v452
    %v461 = vmul.f32 %v453, %v453
    %v462 = vmul.f32 %v454, %v454
    %v463 = vmul.f32 %v455, %v455
    %v464 = vmul.f32 %v456, %v456
    %v465 = vmul.f32 %v457, %v457
    %v466 = vmul.f32 %v458, %v458
    %v467 = vmul.f32 %v459, %v459
    %v468 = vadd.f32 %v460, %v464
    %v469 = vrot.slane %v468, 4
    %v470 = vadd.f32 %v468, %v469
    %v471 = vrot.slane %v470, 2
    %v472 = vadd.f32 %v470, %v471
    %v473 = vrot.slane %v472, 1
    %v474 = vadd.f32 %v472, %v473
    %v475 = vadd.f32 %v461, %v465
    %v476 = vrot.slane %v475, 4
    %v477 = vadd.f32 %v475, %v476
    %v478 = vrot.slane %v477, 2
    %v479 = vadd.f32 %v477, %v478
    %v480 = vrot.slane %v479, 1
    %v481 = vadd.f32 %v479, %v480
    %v482 = vadd.f32 %v462, %v466
    %v483 = vrot.slane %v482, 4
    %v484 = vadd.f32 %v482, %v483
    %v485 = vrot.slane %v484, 2
    %v486 = vadd.f32 %v484, %v485
    %v487 = vrot.slane %v486, 1
    %v488 = vadd.f32 %v486, %v487
    %v489 = vadd.f32 %v463, %v467
    %v490 = vrot.slane %v489, 4
    %v491 = vadd.f32 %v489, %v490
    %v492 = vrot.slane %v491, 2
    %v493 = vadd.f32 %v491, %v492
    %v494 = vrot.slane %v493, 1
    %v495 = vadd.f32 %v493, %v494
    %497 = vrot.lane.b32.xlu0 %v474, 96
    %v498 = vpop.permute.xlu0 %497
    %v500 = vadd.f32 %v474, %v498
    %501 = vrot.lane.b32.xlu0 %v474, 64
    %v502 = vpop.permute.xlu0 %501
    %v504 = vadd.f32 %v500, %v502
    %505 = vrot.lane.b32.xlu0 %v474, 32
    %v506 = vpop.permute.xlu0 %505
    %v508 = vadd.f32 %v504, %v506
    %v509 = vadd.f32 %v508, %v481
    %511 = vrot.lane.b32.xlu0 %v481, 96
    %v512 = vpop.permute.xlu0 %511
    %v514 = vadd.f32 %v509, %v512
    %515 = vrot.lane.b32.xlu0 %v481, 64
    %v516 = vpop.permute.xlu0 %515
    %v518 = vadd.f32 %v514, %v516
    %519 = vrot.lane.b32.xlu0 %v481, 32
    %v520 = vpop.permute.xlu0 %519
    %v522 = vadd.f32 %v518, %v520
    %v523 = vadd.f32 %v522, %v488
    %525 = vrot.lane.b32.xlu0 %v488, 96
    %v526 = vpop.permute.xlu0 %525
    %v528 = vadd.f32 %v523, %v526
    %529 = vrot.lane.b32.xlu0 %v488, 64
    %v530 = vpop.permute.xlu0 %529
    %v532 = vadd.f32 %v528, %v530
    %533 = vrot.lane.b32.xlu0 %v488, 32
    %v534 = vpop.permute.xlu0 %533
    %v536 = vadd.f32 %v532, %v534
    %v537 = vadd.f32 %v536, %v495
    %539 = vrot.lane.b32.xlu0 %v495, 96
    %v540 = vpop.permute.xlu0 %539
    %v542 = vadd.f32 %v537, %v540
    %543 = vrot.lane.b32.xlu0 %v495, 64
    %v544 = vpop.permute.xlu0 %543
    %v546 = vadd.f32 %v542, %v544
    %547 = vrot.lane.b32.xlu0 %v495, 32
    %v548 = vpop.permute.xlu0 %547
    %v550 = vadd.f32 %v546, %v548
    %v551 = vmul.f32 %v550, %v431
    %v552 = vadd.f32 %v551, 1e-05
    %v553 = vrsqrt.pop %v552
    %v554 = vmul.f32 %v553, %v157
    %v555 = vmul.f32 %v432, %v554
    %v556 = vsub.f32 %v158, %v555
    %558 = vrot.lane.b32.xlu0 %v554, 32
    %v559 = vpop.permute.xlu0 %558
    %561 = vrot.lane.b32.xlu0 %v554, 64
    %v562 = vpop.permute.xlu0 %561
    %564 = vrot.lane.b32.xlu0 %v554, 96
    %v565 = vpop.permute.xlu0 %564
    %v567 = vsel %vm443, %v554, %v559
    %v568 = vsel %vm258, %v567, %v562
    %v569 = vsel %vm446, %v568, %v565
    %v570 = vlaneseq
    %v571 = vshrl.u32 %v570, 7
    %v572 = vsub.s32 0, %v571
    %v573 = vrot.slane %v569, %v572
    %v574 = vmul.f32 %v297, %v573
    %v575 = vmul.f32 %v299, %v573
    %v576 = vmul.f32 %v340, %v573
    %v577 = vmul.f32 %v342, %v573
    %v578 = vmul.f32 %v301, %v573
    %v579 = vmul.f32 %v303, %v573
    %v580 = vmul.f32 %v344, %v573
    %v581 = vmul.f32 %v346, %v573
    %v583 = vlaneseq
    %v584 = vshrl.u32 %v583, 7
    %v585 = vsub.s32 0, %v584
    %v586 = vrot.slane %v556, %v585
    %587 = vrot.lane.b32.xlu0 %v586, 32
    %v588 = vpop.permute.xlu0 %587
    %590 = vrot.lane.b32.xlu0 %v586, 64
    %v591 = vpop.permute.xlu0 %590
    %593 = vrot.lane.b32.xlu0 %v586, 96
    %v594 = vpop.permute.xlu0 %593
    %v596 = vsel %vm443, %v556, %v588
    %v597 = vsel %vm258, %v596, %v591
    %v598 = vsel %vm446, %v597, %v594
    %v599 = vlaneseq
    %v600 = vshrl.u32 %v599, 7
    %v601 = vsub.s32 0, %v600
    %v602 = vrot.slane %v598, %v601
    %v603 = vadd.f32 %v574, %v602
    %v604 = vadd.f32 %v575, %v602
    %v605 = vadd.f32 %v576, %v602
    %v606 = vadd.f32 %v577, %v602
    %v607 = vadd.f32 %v578, %v602
    %v608 = vadd.f32 %v579, %v602
    %v609 = vadd.f32 %v580, %v602
    %v610 = vadd.f32 %v581, %v602
    %vm611 = vcmp.gt.f32.partialorder %v603, 0.0
    %vm612 = vcmp.gt.f32.partialorder %v604, 0.0
    %vm613 = vcmp.gt.f32.partialorder %v605, 0.0
    %vm614 = vcmp.gt.f32.partialorder %v606, 0.0
    %vm615 = vcmp.gt.f32.partialorder %v607, 0.0
    %vm616 = vcmp.gt.f32.partialorder %v608, 0.0
    %vm617 = vcmp.gt.f32.partialorder %v609, 0.0
    %vm618 = vcmp.gt.f32.partialorder %v610, 0.0
    %v619 = vmul.f32 %v603, 0.01
    %v620 = vmul.f32 %v604, 0.01
    %v621 = vmul.f32 %v605, 0.01
    %v622 = vmul.f32 %v606, 0.01
    %v623 = vmul.f32 %v607, 0.01
    %v624 = vmul.f32 %v608, 0.01
    %v625 = vmul.f32 %v609, 0.01
    %v626 = vmul.f32 %v610, 0.01
    %v627 = vsel %vm611, %v603, %v619
    %v628 = vsel %vm612, %v604, %v620
    %v629 = vsel %vm613, %v605, %v621
    %v630 = vsel %vm614, %v606, %v622
    %v631 = vsel %vm615, %v607, %v623
    %v632 = vsel %vm616, %v608, %v624
    %v633 = vsel %vm617, %v609, %v625
    %v634 = vsel %vm618, %v610, %v626
    %v635 = vld [vmem:[%s3] sm:$0xff]
    %v636 = vld [vmem:[%s3 + $0x8] sm:$0xff]
    %v637 = vld [vmem:[%s3 + $0x10] sm:$0xff]
    %v638 = vld [vmem:[%s3 + $0x18] sm:$0xff]
    %v639 = vld [vmem:[%s3 + $0x20] sm:$0xff]
    %v640 = vld [vmem:[%s3 + $0x28] sm:$0xff]
    %v641 = vld [vmem:[%s3 + $0x30] sm:$0xff]
    %v642 = vld [vmem:[%s3 + $0x38] sm:$0xff]
    %v643 = vld [vmem:[%s3 + $0x40] sm:$0xff]
    %v644 = vld [vmem:[%s3 + $0x48] sm:$0xff]
    %v645 = vld [vmem:[%s3 + $0x50] sm:$0xff]
    %v646 = vld [vmem:[%s3 + $0x58] sm:$0xff]
    %v647 = vld [vmem:[%s3 + $0x60] sm:$0xff]
    %v648 = vld [vmem:[%s3 + $0x68] sm:$0xff]
    %v649 = vld [vmem:[%s3 + $0x70] sm:$0xff]
    %v650 = vld [vmem:[%s3 + $0x78] sm:$0xff]
    %v651 = vld [vmem:[%s3 + $0x80] sm:$0xff]
    %v652 = vld [vmem:[%s3 + $0x88] sm:$0xff]
    %v653 = vld [vmem:[%s3 + $0x90] sm:$0xff]
    %v654 = vld [vmem:[%s3 + $0x98] sm:$0xff]
    %v655 = vld [vmem:[%s3 + $0xa0] sm:$0xff]
    %v656 = vld [vmem:[%s3 + $0xa8] sm:$0xff]
    %v657 = vld [vmem:[%s3 + $0xb0] sm:$0xff]
    %v658 = vld [vmem:[%s3 + $0xb8] sm:$0xff]
    %v659 = vld [vmem:[%s3 + $0xc0] sm:$0xff]
    %v660 = vld [vmem:[%s3 + $0xc8] sm:$0xff]
    %v661 = vld [vmem:[%s3 + $0xd0] sm:$0xff]
    %v662 = vld [vmem:[%s3 + $0xd8] sm:$0xff]
    %v663 = vld [vmem:[%s3 + $0xe0] sm:$0xff]
    %v664 = vld [vmem:[%s3 + $0xe8] sm:$0xff]
    %v665 = vld [vmem:[%s3 + $0xf0] sm:$0xff]
    %v666 = vld [vmem:[%s3 + $0xf8] sm:$0xff]
    %v667 = vld [vmem:[%s3 + $0x100] sm:$0xff]
    %v668 = vld [vmem:[%s3 + $0x108] sm:$0xff]
    %v669 = vld [vmem:[%s3 + $0x110] sm:$0xff]
    %v670 = vld [vmem:[%s3 + $0x118] sm:$0xff]
    %v671 = vld [vmem:[%s3 + $0x120] sm:$0xff]
    %v672 = vld [vmem:[%s3 + $0x128] sm:$0xff]
    %v673 = vld [vmem:[%s3 + $0x130] sm:$0xff]
    %v674 = vld [vmem:[%s3 + $0x138] sm:$0xff]
    %v675 = vld [vmem:[%s3 + $0x140] sm:$0xff]
    %v676 = vld [vmem:[%s3 + $0x148] sm:$0xff]
    %v677 = vld [vmem:[%s3 + $0x150] sm:$0xff]
    %v678 = vld [vmem:[%s3 + $0x158] sm:$0xff]
    %v679 = vld [vmem:[%s3 + $0x160] sm:$0xff]
    %v680 = vld [vmem:[%s3 + $0x168] sm:$0xff]
    %v681 = vld [vmem:[%s3 + $0x170] sm:$0xff]
    %v682 = vld [vmem:[%s3 + $0x178] sm:$0xff]
    %v683 = vld [vmem:[%s3 + $0x180] sm:$0xff]
    %v684 = vld [vmem:[%s3 + $0x188] sm:$0xff]
    %v685 = vld [vmem:[%s3 + $0x190] sm:$0xff]
    %v686 = vld [vmem:[%s3 + $0x198] sm:$0xff]
    %v687 = vld [vmem:[%s3 + $0x1a0] sm:$0xff]
    %v688 = vld [vmem:[%s3 + $0x1a8] sm:$0xff]
    %v689 = vld [vmem:[%s3 + $0x1b0] sm:$0xff]
    %v690 = vld [vmem:[%s3 + $0x1b8] sm:$0xff]
    %v691 = vld [vmem:[%s3 + $0x1c0] sm:$0xff]
    %v692 = vld [vmem:[%s3 + $0x1c8] sm:$0xff]
    %v693 = vld [vmem:[%s3 + $0x1d0] sm:$0xff]
    %v694 = vld [vmem:[%s3 + $0x1d8] sm:$0xff]
    %v695 = vld [vmem:[%s3 + $0x1e0] sm:$0xff]
    %v696 = vld [vmem:[%s3 + $0x1e8] sm:$0xff]
    %v697 = vld [vmem:[%s3 + $0x1f0] sm:$0xff]
    %v698 = vld [vmem:[%s3 + $0x1f8] sm:$0xff]
    %v699 = vpack.c.bf16 %v631, %v627
    %v700 = vpack.c.bf16 %v632, %v628
    %v701 = vpack.c.bf16 %v633, %v629
    %v702 = vpack.c.bf16 %v634, %v630
    %v767 = vunpack.c.l.b16 %v635
    %v768 = vunpack.c.h.b16 %v635
    %v769 = vunpack.c.l.b16 %v636
    %v770 = vunpack.c.h.b16 %v636
    %v771 = vunpack.c.l.b16 %v637
    %v772 = vunpack.c.h.b16 %v637
    %v773 = vunpack.c.l.b16 %v638
    %v774 = vunpack.c.h.b16 %v638
    %v775 = vunpack.c.l.b16 %v639
    %v776 = vunpack.c.h.b16 %v639
    %v777 = vunpack.c.l.b16 %v640
    %v778 = vunpack.c.h.b16 %v640
    %v779 = vunpack.c.l.b16 %v641
    %v780 = vunpack.c.h.b16 %v641
    %v781 = vunpack.c.l.b16 %v642
    %v782 = vunpack.c.h.b16 %v642
    %v783 = vunpack.c.l.b16 %v643
    %v784 = vunpack.c.h.b16 %v643
    %v785 = vunpack.c.l.b16 %v644
    %v786 = vunpack.c.h.b16 %v644
    %v787 = vunpack.c.l.b16 %v645
    %v788 = vunpack.c.h.b16 %v645
    %v789 = vunpack.c.l.b16 %v646
    %v790 = vunpack.c.h.b16 %v646
    %v791 = vunpack.c.l.b16 %v647
    %v792 = vunpack.c.h.b16 %v647
    %v793 = vunpack.c.l.b16 %v648
    %v794 = vunpack.c.h.b16 %v648
    %v795 = vunpack.c.l.b16 %v649
    %v796 = vunpack.c.h.b16 %v649
    %v797 = vunpack.c.l.b16 %v650
    %v798 = vunpack.c.h.b16 %v650
    %v799 = vunpack.c.l.b16 %v651
    %v800 = vunpack.c.h.b16 %v651
    %v801 = vunpack.c.l.b16 %v652
    %v802 = vunpack.c.h.b16 %v652
    %v803 = vunpack.c.l.b16 %v653
    %v804 = vunpack.c.h.b16 %v653
    %v805 = vunpack.c.l.b16 %v654
    %v806 = vunpack.c.h.b16 %v654
    %v807 = vunpack.c.l.b16 %v655
    %v808 = vunpack.c.h.b16 %v655
    %v809 = vunpack.c.l.b16 %v656
    %v810 = vunpack.c.h.b16 %v656
    %v811 = vunpack.c.l.b16 %v657
    %v812 = vunpack.c.h.b16 %v657
    %v813 = vunpack.c.l.b16 %v658
    %v814 = vunpack.c.h.b16 %v658
    %v815 = vunpack.c.l.b16 %v659
    %v816 = vunpack.c.h.b16 %v659
    %v817 = vunpack.c.l.b16 %v660
    %v818 = vunpack.c.h.b16 %v660
    %v819 = vunpack.c.l.b16 %v661
    %v820 = vunpack.c.h.b16 %v661
    %v821 = vunpack.c.l.b16 %v662
    %v822 = vunpack.c.h.b16 %v662
    %v823 = vunpack.c.l.b16 %v663
    %v824 = vunpack.c.h.b16 %v663
    %v825 = vunpack.c.l.b16 %v664
    %v826 = vunpack.c.h.b16 %v664
    %v827 = vunpack.c.l.b16 %v665
    %v828 = vunpack.c.h.b16 %v665
    %v829 = vunpack.c.l.b16 %v666
    %v830 = vunpack.c.h.b16 %v666
    %v831 = vunpack.c.l.b16 %v667
    %v832 = vunpack.c.h.b16 %v667
    %v833 = vunpack.c.l.b16 %v668
    %v834 = vunpack.c.h.b16 %v668
    %v835 = vunpack.c.l.b16 %v669
    %v836 = vunpack.c.h.b16 %v669
    %v837 = vunpack.c.l.b16 %v670
    %v838 = vunpack.c.h.b16 %v670
    %v839 = vunpack.c.l.b16 %v671
    %v840 = vunpack.c.h.b16 %v671
    %v841 = vunpack.c.l.b16 %v672
    %v842 = vunpack.c.h.b16 %v672
    %v843 = vunpack.c.l.b16 %v673
    %v844 = vunpack.c.h.b16 %v673
    %v845 = vunpack.c.l.b16 %v674
    %v846 = vunpack.c.h.b16 %v674
    %v847 = vunpack.c.l.b16 %v675
    %v848 = vunpack.c.h.b16 %v675
    %v849 = vunpack.c.l.b16 %v676
    %v850 = vunpack.c.h.b16 %v676
    %v851 = vunpack.c.l.b16 %v677
    %v852 = vunpack.c.h.b16 %v677
    %v853 = vunpack.c.l.b16 %v678
    %v854 = vunpack.c.h.b16 %v678
    %v855 = vunpack.c.l.b16 %v679
    %v856 = vunpack.c.h.b16 %v679
    %v857 = vunpack.c.l.b16 %v680
    %v858 = vunpack.c.h.b16 %v680
    %v859 = vunpack.c.l.b16 %v681
    %v860 = vunpack.c.h.b16 %v681
    %v861 = vunpack.c.l.b16 %v682
    %v862 = vunpack.c.h.b16 %v682
    %v863 = vunpack.c.l.b16 %v683
    %v864 = vunpack.c.h.b16 %v683
    %v865 = vunpack.c.l.b16 %v684
    %v866 = vunpack.c.h.b16 %v684
    %v867 = vunpack.c.l.b16 %v685
    %v868 = vunpack.c.h.b16 %v685
    %v869 = vunpack.c.l.b16 %v686
    %v870 = vunpack.c.h.b16 %v686
    %v871 = vunpack.c.l.b16 %v687
    %v872 = vunpack.c.h.b16 %v687
    %v873 = vunpack.c.l.b16 %v688
    %v874 = vunpack.c.h.b16 %v688
    %v875 = vunpack.c.l.b16 %v689
    %v876 = vunpack.c.h.b16 %v689
    %v877 = vunpack.c.l.b16 %v690
    %v878 = vunpack.c.h.b16 %v690
    %v879 = vunpack.c.l.b16 %v691
    %v880 = vunpack.c.h.b16 %v691
    %v881 = vunpack.c.l.b16 %v692
    %v882 = vunpack.c.h.b16 %v692
    %v883 = vunpack.c.l.b16 %v693
    %v884 = vunpack.c.h.b16 %v693
    %v885 = vunpack.c.l.b16 %v694
    %v886 = vunpack.c.h.b16 %v694
    %v887 = vunpack.c.l.b16 %v695
    %v888 = vunpack.c.h.b16 %v695
    %v889 = vunpack.c.l.b16 %v696
    %v890 = vunpack.c.h.b16 %v696
    %v891 = vunpack.c.l.b16 %v697
    %v892 = vunpack.c.h.b16 %v697
    %v893 = vunpack.c.l.b16 %v698
    %v894 = vunpack.c.h.b16 %v698
    %v895 = vpack.c.b16 %v769, %v767
    %v896 = vpack.c.b16 %v770, %v768
    %v897 = vpack.c.b16 %v773, %v771
    %v898 = vpack.c.b16 %v774, %v772
    %v899 = vpack.c.b16 %v777, %v775
    %v900 = vpack.c.b16 %v778, %v776
    %v901 = vpack.c.b16 %v781, %v779
    %v902 = vpack.c.b16 %v782, %v780
    %v903 = vpack.c.b16 %v785, %v783
    %v904 = vpack.c.b16 %v786, %v784
    %v905 = vpack.c.b16 %v789, %v787
    %v906 = vpack.c.b16 %v790, %v788
    %v907 = vpack.c.b16 %v793, %v791
    %v908 = vpack.c.b16 %v794, %v792
    %v909 = vpack.c.b16 %v797, %v795
    %v910 = vpack.c.b16 %v798, %v796
    %v911 = vpack.c.b16 %v801, %v799
    %v912 = vpack.c.b16 %v802, %v800
    %v913 = vpack.c.b16 %v805, %v803
    %v914 = vpack.c.b16 %v806, %v804
    %v915 = vpack.c.b16 %v809, %v807
    %v916 = vpack.c.b16 %v810, %v808
    %v917 = vpack.c.b16 %v813, %v811
    %v918 = vpack.c.b16 %v814, %v812
    %v919 = vpack.c.b16 %v817, %v815
    %v920 = vpack.c.b16 %v818, %v816
    %v921 = vpack.c.b16 %v821, %v819
    %v922 = vpack.c.b16 %v822, %v820
    %v923 = vpack.c.b16 %v825, %v823
    %v924 = vpack.c.b16 %v826, %v824
    %v925 = vpack.c.b16 %v829, %v827
    %v926 = vpack.c.b16 %v830, %v828
    %v927 = vpack.c.b16 %v833, %v831
    %v928 = vpack.c.b16 %v834, %v832
    %v929 = vpack.c.b16 %v837, %v835
    %v930 = vpack.c.b16 %v838, %v836
    %v931 = vpack.c.b16 %v841, %v839
    %v932 = vpack.c.b16 %v842, %v840
    %v933 = vpack.c.b16 %v845, %v843
    %v934 = vpack.c.b16 %v846, %v844
    %v935 = vpack.c.b16 %v849, %v847
    %v936 = vpack.c.b16 %v850, %v848
    %v937 = vpack.c.b16 %v853, %v851
    %v938 = vpack.c.b16 %v854, %v852
    %v939 = vpack.c.b16 %v857, %v855
    %v940 = vpack.c.b16 %v858, %v856
    %v941 = vpack.c.b16 %v861, %v859
    %v942 = vpack.c.b16 %v862, %v860
    %v943 = vpack.c.b16 %v865, %v863
    %v944 = vpack.c.b16 %v866, %v864
    %v945 = vpack.c.b16 %v869, %v867
    %v946 = vpack.c.b16 %v870, %v868
    %v947 = vpack.c.b16 %v873, %v871
    %v948 = vpack.c.b16 %v874, %v872
    %v949 = vpack.c.b16 %v877, %v875
    %v950 = vpack.c.b16 %v878, %v876
    %v951 = vpack.c.b16 %v881, %v879
    %v952 = vpack.c.b16 %v882, %v880
    %v953 = vpack.c.b16 %v885, %v883
    %v954 = vpack.c.b16 %v886, %v884
    %v955 = vpack.c.b16 %v889, %v887
    %v956 = vpack.c.b16 %v890, %v888
    %v957 = vpack.c.b16 %v893, %v891
    %v958 = vpack.c.b16 %v894, %v892
    %1023 = vmatprep.subr.bf16.mxu0 %v896
    %1024 = vmatpush1.bf16.msra.mxu0 %v895
    %1025 = vmatprep.subr.bf16.mxu0 %v898
    %1026 = vmatpush1.bf16.msra.mxu0 %v897
    %1027 = vmatprep.subr.bf16.mxu0 %v900
    %1028 = vmatpush1.bf16.msra.mxu0 %v899
    %1029 = vmatprep.subr.bf16.mxu0 %v902
    %1030 = vmatpush1.bf16.msra.mxu0 %v901
    %1031 = vmatprep.subr.bf16.mxu0 %v904
    %1032 = vmatpush1.bf16.msra.mxu0 %v903
    %1033 = vmatprep.subr.bf16.mxu0 %v906
    %1034 = vmatpush1.bf16.msra.mxu0 %v905
    %1035 = vmatprep.subr.bf16.mxu0 %v908
    %1036 = vmatpush1.bf16.msra.mxu0 %v907
    %1037 = vmatprep.subr.bf16.mxu0 %v910
    %1038 = vmatpush1.bf16.msra.mxu0 %v909
    %1039 = vmatprep.subr.bf16.mxu0 %v912
    %1040 = vmatpush1.bf16.msra.mxu0 %v911
    %1041 = vmatprep.subr.bf16.mxu0 %v914
    %1042 = vmatpush1.bf16.msra.mxu0 %v913
    %1043 = vmatprep.subr.bf16.mxu0 %v916
    %1044 = vmatpush1.bf16.msra.mxu0 %v915
    %1045 = vmatprep.subr.bf16.mxu0 %v918
    %1046 = vmatpush1.bf16.msra.mxu0 %v917
    %1047 = vmatprep.subr.bf16.mxu0 %v920
    %1048 = vmatpush1.bf16.msra.mxu0 %v919
    %1049 = vmatprep.subr.bf16.mxu0 %v922
    %1050 = vmatpush1.bf16.msra.mxu0 %v921
    %1051 = vmatprep.subr.bf16.mxu0 %v924
    %1052 = vmatpush1.bf16.msra.mxu0 %v923
    %1053 = vmatprep.subr.bf16.mxu0 %v926
    %1054 = vmatpush1.bf16.msra.mxu0 %v925
    %1055 = vmatprep.mubr.bf16.mxu0 %v700
    %1056 = vmatmul.mubr.bf16.gmra.mrb[0].mxu0 %v699
    %v1057 = vpop.f32.mrb[0].mxu0
    %v1058 = vadd.f32 0.0, %v1057
    %v1059 = vpop.f32.mrb[0].mxu0
    %v1060 = vadd.f32 0.0, %v1059
    %v1061 = vpop.f32.mrb[0].mxu0
    %v1062 = vadd.f32 0.0, %v1061
    %v1063 = vpop.f32.mrb[0].mxu0
    %v1064 = vadd.f32 0.0, %v1063
    %1065 = vdwg.mxu0
    %1066 = vmatprep.subr.bf16.mxu0 %v928
    %1067 = vmatpush1.bf16.msra.mxu0 %v927
    %1068 = vmatprep.subr.bf16.mxu0 %v930
    %1069 = vmatpush1.bf16.msra.mxu0 %v929
    %1070 = vmatprep.subr.bf16.mxu0 %v932
    %1071 = vmatpush1.bf16.msra.mxu0 %v931
    %1072 = vmatprep.subr.bf16.mxu0 %v934
    %1073 = vmatpush1.bf16.msra.mxu0 %v933
    %1074 = vmatprep.subr.bf16.mxu0 %v936
    %1075 = vmatpush1.bf16.msra.mxu0 %v935
    %1076 = vmatprep.subr.bf16.mxu0 %v938
    %1077 = vmatpush1.bf16.msra.mxu0 %v937
    %1078 = vmatprep.subr.bf16.mxu0 %v940
    %1079 = vmatpush1.bf16.msra.mxu0 %v939
    %1080 = vmatprep.subr.bf16.mxu0 %v942
    %1081 = vmatpush1.bf16.msra.mxu0 %v941
    %1082 = vmatprep.subr.bf16.mxu0 %v944
    %1083 = vmatpush1.bf16.msra.mxu0 %v943
    %1084 = vmatprep.subr.bf16.mxu0 %v946
    %1085 = vmatpush1.bf16.msra.mxu0 %v945
    %1086 = vmatprep.subr.bf16.mxu0 %v948
    %1087 = vmatpush1.bf16.msra.mxu0 %v947
    %1088 = vmatprep.subr.bf16.mxu0 %v950
    %1089 = vmatpush1.bf16.msra.mxu0 %v949
    %1090 = vmatprep.subr.bf16.mxu0 %v952
    %1091 = vmatpush1.bf16.msra.mxu0 %v951
    %1092 = vmatprep.subr.bf16.mxu0 %v954
    %1093 = vmatpush1.bf16.msra.mxu0 %v953
    %1094 = vmatprep.subr.bf16.mxu0 %v956
    %1095 = vmatpush1.bf16.msra.mxu0 %v955
    %1096 = vmatprep.subr.bf16.mxu0 %v958
    %1097 = vmatpush1.bf16.msra.mxu0 %v957
    %1098 = vmatprep.mubr.bf16.mxu0 %v702
    %1099 = vmatmul.mubr.bf16.gmra.mrb[0].mxu0 %v701
    %v1100 = vpop.f32.mrb[0].mxu0
    %v1101 = vadd.f32 %v1058, %v1100
    %v1102 = vpop.f32.mrb[0].mxu0
    %v1103 = vadd.f32 %v1060, %v1102
    %v1104 = vpop.f32.mrb[0].mxu0
    %v1105 = vadd.f32 %v1062, %v1104
    %v1106 = vpop.f32.mrb[0].mxu0
    %v1107 = vadd.f32 %v1064, %v1106
    %1108 = vdwg.mxu0
    %v1109 = vadd.f32 %v1101, %v1105
    %v1110 = vrot.slane %v1109, 4
    %v1111 = vadd.f32 %v1109, %v1110
    %v1112 = vrot.slane %v1111, 2
    %v1113 = vadd.f32 %v1111, %v1112
    %v1114 = vrot.slane %v1113, 1
    %v1115 = vadd.f32 %v1113, %v1114
    %v1116 = vadd.f32 %v1103, %v1107
    %v1117 = vrot.slane %v1116, 4
    %v1118 = vadd.f32 %v1116, %v1117
    %v1119 = vrot.slane %v1118, 2
    %v1120 = vadd.f32 %v1118, %v1119
    %v1121 = vrot.slane %v1120, 1
    %v1122 = vadd.f32 %v1120, %v1121
    %1124 = vrot.lane.b32.xlu0 %v1115, 64
    %v1125 = vpop.permute.xlu0 %1124
    %v1127 = vadd.f32 %v1115, %v1125
    %v1128 = vadd.f32 %v1127, %v1122
    %1130 = vrot.lane.b32.xlu0 %v1122, 64
    %v1131 = vpop.permute.xlu0 %1130
    %v1133 = vadd.f32 %v1128, %v1131
    %v1134 = vrcp.pop 64.0
    %v1135 = vmul.f32 %v1133, %v1134
    %1137 = vrot.lane.b32.xlu0 %v1135, 64
    %v1138 = vpop.permute.xlu0 %1137
    %v1140 = vsel %vm258, %v1135, %v1138
    %v1141 = vlaneseq
    %v1142 = vshrl.u32 %v1141, 7
    %v1143 = vsub.s32 0, %v1142
    %v1144 = vrot.slane %v1140, %v1143
    %v1145 = vsub.f32 %v1101, %v1144
    %v1146 = vsub.f32 %v1103, %v1144
    %v1147 = vsub.f32 %v1105, %v1144
    %v1148 = vsub.f32 %v1107, %v1144
    %v1149 = vmul.f32 %v1145, %v1145
    %v1150 = vmul.f32 %v1146, %v1146
    %v1151 = vmul.f32 %v1147, %v1147
    %v1152 = vmul.f32 %v1148, %v1148
    %v1153 = vadd.f32 %v1149, %v1151
    %v1154 = vrot.slane %v1153, 4
    %v1155 = vadd.f32 %v1153, %v1154
    %v1156 = vrot.slane %v1155, 2
    %v1157 = vadd.f32 %v1155, %v1156
    %v1158 = vrot.slane %v1157, 1
    %v1159 = vadd.f32 %v1157, %v1158
    %v1160 = vadd.f32 %v1150, %v1152
    %v1161 = vrot.slane %v1160, 4
    %v1162 = vadd.f32 %v1160, %v1161
    %v1163 = vrot.slane %v1162, 2
    %v1164 = vadd.f32 %v1162, %v1163
    %v1165 = vrot.slane %v1164, 1
    %v1166 = vadd.f32 %v1164, %v1165
    %1168 = vrot.lane.b32.xlu0 %v1159, 64
    %v1169 = vpop.permute.xlu0 %1168
    %v1171 = vadd.f32 %v1159, %v1169
    %v1172 = vadd.f32 %v1171, %v1166
    %1174 = vrot.lane.b32.xlu0 %v1166, 64
    %v1175 = vpop.permute.xlu0 %1174
    %v1177 = vadd.f32 %v1172, %v1175
    %v1178 = vmul.f32 %v1177, %v1134
    %v1179 = vadd.f32 %v1178, 1e-05
    %v1180 = vrsqrt.pop %v1179
    %v1182 = vlaneseq
    %v1183 = vshrl.u32 %v1182, 7
    %v1184 = vsub.s32 0, %v1183
    %v1185 = vrot.slane %v157, %v1184
    %1186 = vrot.lane.b32.xlu0 %v1185, 96
    %v1187 = vpop.permute.xlu0 %1186
    %v1189 = vmul.f32 %v1180, %v1187
    %v1190 = vmul.f32 %v1135, %v1189
    %v1193 = vunpack.c.l.s4 1983009808
    %v1194 = vunpack.c.0.s8 %v1193
    %v1195 = vlaneseq
    %v1196 = vshrl.u32 %v1195, 7
    %v1197 = vsub.s32 %v1194, %v1196
    %v1198 = vrot.slane %v1190, %v1197
    %1199 = vrot.lane.b32.xlu0 %v1198, 32
    %v1200 = vpop.permute.xlu0 %1199
    %v1202 = vsub.f32 %v158, %v1200
    %1204 = vrot.lane.b32.xlu0 %v1189, 64
    %v1205 = vpop.permute.xlu0 %1204
    %v1207 = vsel %vm258, %v1189, %v1205
    %v1208 = vlaneseq
    %v1209 = vshrl.u32 %v1208, 7
    %v1210 = vsub.s32 0, %v1209
    %v1211 = vrot.slane %v1207, %v1210
    %v1212 = vmul.f32 %v1101, %v1211
    %v1213 = vmul.f32 %v1103, %v1211
    %v1214 = vmul.f32 %v1105, %v1211
    %v1215 = vmul.f32 %v1107, %v1211
    %v1217 = vlaneseq
    %v1218 = vshrl.u32 %v1217, 7
    %v1219 = vsub.s32 0, %v1218
    %v1220 = vrot.slane %v1202, %v1219
    %1221 = vrot.lane.b32.xlu0 %v1220, 96
    %v1222 = vpop.permute.xlu0 %1221
    %1224 = vrot.lane.b32.xlu0 %v1220, 32
    %v1225 = vpop.permute.xlu0 %1224
    %v1227 = vsel %vm258, %v1222, %v1225
    %v1228 = vlaneseq
    %v1229 = vshrl.u32 %v1228, 7
    %v1230 = vsub.s32 0, %v1229
    %v1231 = vrot.slane %v1227, %v1230
    %v1232 = vadd.f32 %v1212, %v1231
    %v1233 = vadd.f32 %v1213, %v1231
    %v1234 = vadd.f32 %v1214, %v1231
    %v1235 = vadd.f32 %v1215, %v1231
    %vm1236 = vcmp.gt.f32.partialorder %v1232, 0.0
    %vm1237 = vcmp.gt.f32.partialorder %v1233, 0.0
    %vm1238 = vcmp.gt.f32.partialorder %v1234, 0.0
    %vm1239 = vcmp.gt.f32.partialorder %v1235, 0.0
    %v1240 = vmul.f32 %v1232, 0.01
    %v1241 = vmul.f32 %v1233, 0.01
    %v1242 = vmul.f32 %v1234, 0.01
    %v1243 = vmul.f32 %v1235, 0.01
    %v1244 = vsel %vm1236, %v1232, %v1240
    %v1245 = vsel %vm1237, %v1233, %v1241
    %v1246 = vsel %vm1238, %v1234, %v1242
    %v1247 = vsel %vm1239, %v1235, %v1243
    %v1248 = vld [vmem:[#allocation14] sm:$0x5]
    %v1249 = vld [vmem:[#allocation14 + $0x1] sm:$0x5]
    %v1250 = vld [vmem:[#allocation6] sm:$0xf]
    %v1251 = vld [vmem:[#allocation6 + $0x4] sm:$0xf]
    %v1252 = vld [vmem:[#allocation6 + $0x8] sm:$0xf]
    %v1253 = vld [vmem:[#allocation6 + $0xc] sm:$0xf]
    %v1254 = vld [vmem:[#allocation6 + $0x10] sm:$0xf]
    %v1255 = vld [vmem:[#allocation6 + $0x14] sm:$0xf]
    %v1256 = vld [vmem:[#allocation6 + $0x18] sm:$0xf]
    %v1257 = vld [vmem:[#allocation6 + $0x1c] sm:$0xf]
    %v1258 = vld [vmem:[#allocation6 + $0x20] sm:$0xf]
    %v1259 = vld [vmem:[#allocation6 + $0x24] sm:$0xf]
    %v1260 = vld [vmem:[#allocation6 + $0x28] sm:$0xf]
    %v1261 = vld [vmem:[#allocation6 + $0x2c] sm:$0xf]
    %v1262 = vld [vmem:[#allocation6 + $0x30] sm:$0xf]
    %v1263 = vld [vmem:[#allocation6 + $0x34] sm:$0xf]
    %v1264 = vld [vmem:[#allocation6 + $0x38] sm:$0xf]
    %v1265 = vld [vmem:[#allocation6 + $0x3c] sm:$0xf]
    %v1266 = vld [vmem:[#allocation6 + $0x40] sm:$0xf]
    %v1267 = vld [vmem:[#allocation6 + $0x44] sm:$0xf]
    %v1268 = vld [vmem:[#allocation6 + $0x48] sm:$0xf]
    %v1269 = vld [vmem:[#allocation6 + $0x4c] sm:$0xf]
    %v1270 = vld [vmem:[#allocation6 + $0x50] sm:$0xf]
    %v1271 = vld [vmem:[#allocation6 + $0x54] sm:$0xf]
    %v1272 = vld [vmem:[#allocation6 + $0x58] sm:$0xf]
    %v1273 = vld [vmem:[#allocation6 + $0x5c] sm:$0xf]
    %v1274 = vld [vmem:[#allocation6 + $0x60] sm:$0xf]
    %v1275 = vld [vmem:[#allocation6 + $0x64] sm:$0xf]
    %v1276 = vld [vmem:[#allocation6 + $0x68] sm:$0xf]
    %v1277 = vld [vmem:[#allocation6 + $0x6c] sm:$0xf]
    %v1278 = vld [vmem:[#allocation6 + $0x70] sm:$0xf]
    %v1279 = vld [vmem:[#allocation6 + $0x74] sm:$0xf]
    %v1280 = vld [vmem:[#allocation6 + $0x78] sm:$0xf]
    %v1281 = vld [vmem:[#allocation6 + $0x7c] sm:$0xf]
    %v1282 = vpack.c.bf16 %v1246, %v1244
    %v1283 = vpack.c.bf16 %v1247, %v1245
    %v1316 = vunpack.c.l.b16 %v1250
    %v1317 = vunpack.c.l.b16 %v1251
    %v1318 = vunpack.c.l.b16 %v1252
    %v1319 = vunpack.c.l.b16 %v1253
    %v1320 = vunpack.c.l.b16 %v1254
    %v1321 = vunpack.c.l.b16 %v1255
    %v1322 = vunpack.c.l.b16 %v1256
    %v1323 = vunpack.c.l.b16 %v1257
    %v1324 = vunpack.c.l.b16 %v1258
    %v1325 = vunpack.c.l.b16 %v1259
    %v1326 = vunpack.c.l.b16 %v1260
    %v1327 = vunpack.c.l.b16 %v1261
    %v1328 = vunpack.c.l.b16 %v1262
    %v1329 = vunpack.c.l.b16 %v1263
    %v1330 = vunpack.c.l.b16 %v1264
    %v1331 = vunpack.c.l.b16 %v1265
    %v1332 = vunpack.c.l.b16 %v1266
    %v1333 = vunpack.c.l.b16 %v1267
    %v1334 = vunpack.c.l.b16 %v1268
    %v1335 = vunpack.c.l.b16 %v1269
    %v1336 = vunpack.c.l.b16 %v1270
    %v1337 = vunpack.c.l.b16 %v1271
    %v1338 = vunpack.c.l.b16 %v1272
    %v1339 = vunpack.c.l.b16 %v1273
    %v1340 = vunpack.c.l.b16 %v1274
    %v1341 = vunpack.c.l.b16 %v1275
    %v1342 = vunpack.c.l.b16 %v1276
    %v1343 = vunpack.c.l.b16 %v1277
    %v1344 = vunpack.c.l.b16 %v1278
    %v1345 = vunpack.c.l.b16 %v1279
    %v1346 = vunpack.c.l.b16 %v1280
    %v1347 = vunpack.c.l.b16 %v1281
    %v1348 = vpack.c.b16 %v1317, %v1316
    %v1349 = vpack.c.b16 %v1319, %v1318
    %v1350 = vpack.c.b16 %v1321, %v1320
    %v1351 = vpack.c.b16 %v1323, %v1322
    %v1352 = vpack.c.b16 %v1325, %v1324
    %v1353 = vpack.c.b16 %v1327, %v1326
    %v1354 = vpack.c.b16 %v1329, %v1328
    %v1355 = vpack.c.b16 %v1331, %v1330
    %v1356 = vpack.c.b16 %v1333, %v1332
    %v1357 = vpack.c.b16 %v1335, %v1334
    %v1358 = vpack.c.b16 %v1337, %v1336
    %v1359 = vpack.c.b16 %v1339, %v1338
    %v1360 = vpack.c.b16 %v1341, %v1340
    %v1361 = vpack.c.b16 %v1343, %v1342
    %v1362 = vpack.c.b16 %v1345, %v1344
    %v1363 = vpack.c.b16 %v1347, %v1346
    %1380 = vmatprep.subr.bf16.mxu0 0
    %1381 = vmatpush1.bf16.msra.mxu0 %v1348
    %1382 = vmatprep.subr.bf16.mxu0 0
    %1383 = vmatpush1.bf16.msra.mxu0 %v1349
    %1384 = vmatprep.subr.bf16.mxu0 0
    %1385 = vmatpush1.bf16.msra.mxu0 %v1350
    %1386 = vmatprep.subr.bf16.mxu0 0
    %1387 = vmatpush1.bf16.msra.mxu0 %v1351
    %1388 = vmatprep.subr.bf16.mxu0 0
    %1389 = vmatpush1.bf16.msra.mxu0 %v1352
    %1390 = vmatprep.subr.bf16.mxu0 0
    %1391 = vmatpush1.bf16.msra.mxu0 %v1353
    %1392 = vmatprep.subr.bf16.mxu0 0
    %1393 = vmatpush1.bf16.msra.mxu0 %v1354
    %1394 = vmatprep.subr.bf16.mxu0 0
    %1395 = vmatpush1.bf16.msra.mxu0 %v1355
    %1396 = vmatprep.subr.bf16.mxu0 0
    %1397 = vmatpush1.bf16.msra.mxu0 %v1356
    %1398 = vmatprep.subr.bf16.mxu0 0
    %1399 = vmatpush1.bf16.msra.mxu0 %v1357
    %1400 = vmatprep.subr.bf16.mxu0 0
    %1401 = vmatpush1.bf16.msra.mxu0 %v1358
    %1402 = vmatprep.subr.bf16.mxu0 0
    %1403 = vmatpush1.bf16.msra.mxu0 %v1359
    %1404 = vmatprep.subr.bf16.mxu0 0
    %1405 = vmatpush1.bf16.msra.mxu0 %v1360
    %1406 = vmatprep.subr.bf16.mxu0 0
    %1407 = vmatpush1.bf16.msra.mxu0 %v1361
    %1408 = vmatprep.subr.bf16.mxu0 0
    %1409 = vmatpush1.bf16.msra.mxu0 %v1362
    %1410 = vmatprep.subr.bf16.mxu0 0
    %1411 = vmatpush1.bf16.msra.mxu0 %v1363
    %1412 = vmatprep.mubr.bf16.mxu0 %v1283
    %1413 = vmatmul.mubr.bf16.gmra.mrb[0].mxu0 %v1282
    %v1414 = vpop.f32.mrb[0].mxu0
    %v1415 = vadd.f32 0.0, %v1414
    %v1416 = vpop.f32.mrb[0].mxu0
    %v1417 = vpop.f32.mrb[0].mxu0
    %v1418 = vadd.f32 0.0, %v1417
    %v1419 = vpop.f32.mrb[0].mxu0
    %1420 = vdwg.mxu0
    %v1421 = vadd.f32 %v1415, %v1418
    %v1422 = vrot.slane %v1421, 4
    %v1423 = vadd.f32 %v1421, %v1422
    %v1424 = vrot.slane %v1423, 2
    %v1425 = vadd.f32 %v1423, %v1424
    %v1426 = vrot.slane %v1425, 1
    %v1427 = vadd.f32 %v1425, %v1426
    %v1428 = vrcp.pop 16.0
    %v1429 = vmul.f32 %v1427, %v1428
    %v1430 = vsub.f32 %v1415, %v1429
    %v1431 = vsub.f32 %v1418, %v1429
    %v1432 = vmul.f32 %v1430, %v1430
    %v1433 = vmul.f32 %v1431, %v1431
    %v1434 = vadd.f32 %v1432, %v1433
    %v1435 = vrot.slane %v1434, 4
    %v1436 = vadd.f32 %v1434, %v1435
    %v1437 = vrot.slane %v1436, 2
    %v1438 = vadd.f32 %v1436, %v1437
    %v1439 = vrot.slane %v1438, 1
    %v1440 = vadd.f32 %v1438, %v1439
    %v1441 = vmul.f32 %v1440, %v1428
    %v1442 = vadd.f32 %v1441, 1e-05
    %v1443 = vrsqrt.pop %v1442
    %v1445 = vlaneseq
    %v1446 = vshrl.u32 %v1445, 7
    %v1447 = vsub.s32 0, %v1446
    %v1448 = vrot.slane %v1248, %v1447
    %v1449 = vlaneseq
    %v1450 = vshrl.u32 %v1449, 7
    %v1451 = vsub.s32 2, %v1450
    %v1452 = vrot.slane %v1248, %v1451
    %1453 = vrot.lane.b32.xlu0 %v1448, 32
    %v1454 = vpop.permute.xlu0 %1453
    %1455 = vrot.lane.b32.xlu0 %v1452, 32
    %v1456 = vpop.permute.xlu0 %1455
    %v1457 = vsel %vm443, %v1454, %v1456
    %v1459 = vmul.f32 %v1443, %v1457
    %v1460 = vmul.f32 %v1429, %v1459
    %v1463 = vunpack.c.l.s4 1983009808
    %v1464 = vunpack.c.0.s8 %v1463
    %v1465 = vlaneseq
    %v1466 = vshrl.u32 %v1465, 7
    %v1467 = vsub.s32 %v1464, %v1466
    %v1468 = vrot.slane %v1460, %v1467
    %1469 = vrot.lane.b32.xlu0 %v1468, 96
    %v1470 = vpop.permute.xlu0 %1469
    %v1471 = vrot.slane %v1470, 6
    %v1472 = vsel %vm446, %v1471, %v1470
    %v1474 = vsub.f32 %v1249, %v1472
    %v1475 = vlaneseq
    %v1476 = vshrl.u32 %v1475, 7
    %v1477 = vsub.s32 0, %v1476
    %v1478 = vrot.slane %v1459, %v1477
    %v1479 = vmul.f32 %v1415, %v1478
    %v1480 = vmul.f32 %v1418, %v1478
    %v1482 = vlaneseq
    %v1483 = vshrl.u32 %v1482, 7
    %v1484 = vsub.s32 0, %v1483
    %v1485 = vrot.slane %v1474, %v1484
    %v1486 = vlaneseq
    %v1487 = vshrl.u32 %v1486, 7
    %v1488 = vsub.s32 2, %v1487
    %v1489 = vrot.slane %v1474, %v1488
    %v1492 = vlaneseq
    %v1493 = vshrl.u32 %v1492, 7
    %v1494 = vsub.s32 0, %v1493
    %v1495 = vrot.slane %v1485, %v1494
    %v1496 = vlaneseq
    %v1497 = vshrl.u32 %v1496, 7
    %v1498 = vsub.s32 0, %v1497
    %v1499 = vrot.slane %v1489, %v1498
    %1502 = vrot.lane.b32.xlu0 %v1495, 32
    %v1503 = vpop.permute.xlu0 %1502
    %1504 = vrot.lane.b32.xlu0 %v1499, 32
    %v1505 = vpop.permute.xlu0 %1504
    %v1506 = vsel %vm443, %v1503, %v1505
    %v1508 = vadd.f32 %v1479, %v1506
    %v1509 = vadd.f32 %v1480, %v1506
    %vm1510 = vcmp.gt.f32.partialorder %v1508, 0.0
    %vm1511 = vcmp.gt.f32.partialorder %v1509, 0.0
    %v1512 = vmul.f32 %v1508, 0.01
    %v1513 = vmul.f32 %v1509, 0.01
    %v1514 = vsel %vm1510, %v1508, %v1512
    %v1515 = vsel %vm1511, %v1509, %v1513
    %v1516 = vpack.c.bf16 %v1515, %v1514
    %v1517 = vlaneseq
    %v1518 = vshrl.u32 %v1517, 7
    %v1519 = vlaneseq
    %v1520 = vand.u32 %v1519, 127
    %v1521 = vmul.u32 %v1518, 4
    %vm1522 = vcmp.eq.s32.totalorder %v1520, %v1521
    %v1523 = vsel %vm1522, 1.0, 0.0
    %v1524 = vpack.c.bf16 %v1523, %v1523
    %vm1525 = vcmask 130048
    %v1527 = vsel %vm1525, %v1524, 0
    %1529 = vmatprep.subr.bf16.mxu0 0
    %1530 = vmatpush1.bf16.msra.mxu0 %v1516
    %1531 = vmatprep.subr.bf16.mxu0 0
    %1532 = vmatpush1.bf16.msra.mxu0 0
    %1533 = vmatprep.subr.bf16.mxu0 0
    %1534 = vmatpush1.bf16.msra.mxu0 0
    %1535 = vmatprep.subr.bf16.mxu0 0
    %1536 = vmatpush1.bf16.msra.mxu0 0
    %1537 = vmatprep.subr.bf16.mxu0 0
    %1538 = vmatpush1.bf16.msra.mxu0 0
    %1539 = vmatprep.subr.bf16.mxu0 0
    %1540 = vmatpush1.bf16.msra.mxu0 0
    %1541 = vmatprep.subr.bf16.mxu0 0
    %1542 = vmatpush1.bf16.msra.mxu0 0
    %1543 = vmatprep.subr.bf16.mxu0 0
    %1544 = vmatpush1.bf16.msra.mxu0 0
    %1545 = vmatprep.subr.bf16.mxu0 0
    %1546 = vmatpush1.bf16.msra.mxu0 0
    %1547 = vmatprep.subr.bf16.mxu0 0
    %1548 = vmatpush1.bf16.msra.mxu0 0
    %1549 = vmatprep.subr.bf16.mxu0 0
    %1550 = vmatpush1.bf16.msra.mxu0 0
    %1551 = vmatprep.subr.bf16.mxu0 0
    %1552 = vmatpush1.bf16.msra.mxu0 0
    %1553 = vmatprep.subr.bf16.mxu0 0
    %1554 = vmatpush1.bf16.msra.mxu0 0
    %1555 = vmatprep.subr.bf16.mxu0 0
    %1556 = vmatpush1.bf16.msra.mxu0 0
    %1557 = vmatprep.subr.bf16.mxu0 0
    %1558 = vmatpush1.bf16.msra.mxu0 0
    %1559 = vmatprep.subr.bf16.mxu0 0
    %1560 = vmatpush1.bf16.msra.mxu0 0
    %1561 = vmatprep.mubr.bf16.mxu0 0
    %1562 = vmatmul.mubr.bf16.gmra.mrb[0].mxu0 %v1527
    %v1563 = vpop.f32.mrb[0].mxu0
    %v1564 = vadd.f32 0.0, %v1563
    %v1565 = vpop.f32.mrb[0].mxu0
    %v1566 = vpop.f32.mrb[0].mxu0
    %v1567 = vpop.f32.mrb[0].mxu0
    %1568 = vdwg.mxu0
    %v1569 = vadd.s32 %v1521, 1
    %vm1570 = vcmp.eq.s32.totalorder %v1520, %v1569
    %v1571 = vsel %vm1570, 1.0, 0.0
    %v1572 = vpack.c.bf16 %v1571, %v1571
    %v1574 = vsel %vm1525, %v1572, 0
    %1576 = vmatprep.subr.bf16.mxu0 0
    %1577 = vmatpush1.bf16.msra.mxu0 %v1516
    %1578 = vmatprep.subr.bf16.mxu0 0
    %1579 = vmatpush1.bf16.msra.mxu0 0
    %1580 = vmatprep.subr.bf16.mxu0 0
    %1581 = vmatpush1.bf16.msra.mxu0 0
    %1582 = vmatprep.subr.bf16.mxu0 0
    %1583 = vmatpush1.bf16.msra.mxu0 0
    %1584 = vmatprep.subr.bf16.mxu0 0
    %1585 = vmatpush1.bf16.msra.mxu0 0
    %1586 = vmatprep.subr.bf16.mxu0 0
    %1587 = vmatpush1.bf16.msra.mxu0 0
    %1588 = vmatprep.subr.bf16.mxu0 0
    %1589 = vmatpush1.bf16.msra.mxu0 0
    %1590 = vmatprep.subr.bf16.mxu0 0
    %1591 = vmatpush1.bf16.msra.mxu0 0
    %1592 = vmatprep.subr.bf16.mxu0 0
    %1593 = vmatpush1.bf16.msra.mxu0 0
    %1594 = vmatprep.subr.bf16.mxu0 0
    %1595 = vmatpush1.bf16.msra.mxu0 0
    %1596 = vmatprep.subr.bf16.mxu0 0
    %1597 = vmatpush1.bf16.msra.mxu0 0
    %1598 = vmatprep.subr.bf16.mxu0 0
    %1599 = vmatpush1.bf16.msra.mxu0 0
    %1600 = vmatprep.subr.bf16.mxu0 0
    %1601 = vmatpush1.bf16.msra.mxu0 0
    %1602 = vmatprep.subr.bf16.mxu0 0
    %1603 = vmatpush1.bf16.msra.mxu0 0
    %1604 = vmatprep.subr.bf16.mxu0 0
    %1605 = vmatpush1.bf16.msra.mxu0 0
    %1606 = vmatprep.subr.bf16.mxu0 0
    %1607 = vmatpush1.bf16.msra.mxu0 0
    %1608 = vmatprep.mubr.bf16.mxu0 0
    %1609 = vmatmul.mubr.bf16.gmra.mrb[0].mxu0 %v1574
    %v1610 = vpop.f32.mrb[0].mxu0
    %v1611 = vadd.f32 0.0, %v1610
    %v1612 = vpop.f32.mrb[0].mxu0
    %v1613 = vpop.f32.mrb[0].mxu0
    %v1614 = vpop.f32.mrb[0].mxu0
    %1615 = vdwg.mxu0
    %v1616 = vadd.s32 %v1521, 2
    %vm1617 = vcmp.eq.s32.totalorder %v1520, %v1616
    %v1618 = vsel %vm1617, 1.0, 0.0
    %v1619 = vpack.c.bf16 %v1618, %v1618
    %v1621 = vsel %vm1525, %v1619, 0
    %1623 = vmatprep.subr.bf16.mxu0 0
    %1624 = vmatpush1.bf16.msra.mxu0 %v1516
    %1625 = vmatprep.subr.bf16.mxu0 0
    %1626 = vmatpush1.bf16.msra.mxu0 0
    %1627 = vmatprep.subr.bf16.mxu0 0
    %1628 = vmatpush1.bf16.msra.mxu0 0
    %1629 = vmatprep.subr.bf16.mxu0 0
    %1630 = vmatpush1.bf16.msra.mxu0 0
    %1631 = vmatprep.subr.bf16.mxu0 0
    %1632 = vmatpush1.bf16.msra.mxu0 0
    %1633 = vmatprep.subr.bf16.mxu0 0
    %1634 = vmatpush1.bf16.msra.mxu0 0
    %1635 = vmatprep.subr.bf16.mxu0 0
    %1636 = vmatpush1.bf16.msra.mxu0 0
    %1637 = vmatprep.subr.bf16.mxu0 0
    %1638 = vmatpush1.bf16.msra.mxu0 0
    %1639 = vmatprep.subr.bf16.mxu0 0
    %1640 = vmatpush1.bf16.msra.mxu0 0
    %1641 = vmatprep.subr.bf16.mxu0 0
    %1642 = vmatpush1.bf16.msra.mxu0 0
    %1643 = vmatprep.subr.bf16.mxu0 0
    %1644 = vmatpush1.bf16.msra.mxu0 0
    %1645 = vmatprep.subr.bf16.mxu0 0
    %1646 = vmatpush1.bf16.msra.mxu0 0
    %1647 = vmatprep.subr.bf16.mxu0 0
    %1648 = vmatpush1.bf16.msra.mxu0 0
    %1649 = vmatprep.subr.bf16.mxu0 0
    %1650 = vmatpush1.bf16.msra.mxu0 0
    %1651 = vmatprep.subr.bf16.mxu0 0
    %1652 = vmatpush1.bf16.msra.mxu0 0
    %1653 = vmatprep.subr.bf16.mxu0 0
    %1654 = vmatpush1.bf16.msra.mxu0 0
    %1655 = vmatprep.mubr.bf16.mxu0 0
    %1656 = vmatmul.mubr.bf16.gmra.mrb[0].mxu0 %v1621
    %v1657 = vpop.f32.mrb[0].mxu0
    %v1658 = vadd.f32 0.0, %v1657
    %v1659 = vpop.f32.mrb[0].mxu0
    %v1660 = vpop.f32.mrb[0].mxu0
    %v1661 = vpop.f32.mrb[0].mxu0
    %1662 = vdwg.mxu0
    %v1663 = vadd.s32 %v1521, 3
    %vm1664 = vcmp.eq.s32.totalorder %v1520, %v1663
    %v1665 = vsel %vm1664, 1.0, 0.0
    %v1666 = vpack.c.bf16 %v1665, %v1665
    %v1668 = vsel %vm1525, %v1666, 0
    %1670 = vmatprep.subr.bf16.mxu0 0
    %1671 = vmatpush1.bf16.msra.mxu0 %v1516
    %1672 = vmatprep.subr.bf16.mxu0 0
    %1673 = vmatpush1.bf16.msra.mxu0 0
    %1674 = vmatprep.subr.bf16.mxu0 0
    %1675 = vmatpush1.bf16.msra.mxu0 0
    %1676 = vmatprep.subr.bf16.mxu0 0
    %1677 = vmatpush1.bf16.msra.mxu0 0
    %1678 = vmatprep.subr.bf16.mxu0 0
    %1679 = vmatpush1.bf16.msra.mxu0 0
    %1680 = vmatprep.subr.bf16.mxu0 0
    %1681 = vmatpush1.bf16.msra.mxu0 0
    %1682 = vmatprep.subr.bf16.mxu0 0
    %1683 = vmatpush1.bf16.msra.mxu0 0
    %1684 = vmatprep.subr.bf16.mxu0 0
    %1685 = vmatpush1.bf16.msra.mxu0 0
    %1686 = vmatprep.subr.bf16.mxu0 0
    %1687 = vmatpush1.bf16.msra.mxu0 0
    %1688 = vmatprep.subr.bf16.mxu0 0
    %1689 = vmatpush1.bf16.msra.mxu0 0
    %1690 = vmatprep.subr.bf16.mxu0 0
    %1691 = vmatpush1.bf16.msra.mxu0 0
    %1692 = vmatprep.subr.bf16.mxu0 0
    %1693 = vmatpush1.bf16.msra.mxu0 0
    %1694 = vmatprep.subr.bf16.mxu0 0
    %1695 = vmatpush1.bf16.msra.mxu0 0
    %1696 = vmatprep.subr.bf16.mxu0 0
    %1697 = vmatpush1.bf16.msra.mxu0 0
    %1698 = vmatprep.subr.bf16.mxu0 0
    %1699 = vmatpush1.bf16.msra.mxu0 0
    %1700 = vmatprep.subr.bf16.mxu0 0
    %1701 = vmatpush1.bf16.msra.mxu0 0
    %1702 = vmatprep.mubr.bf16.mxu0 0
    %1703 = vmatmul.mubr.bf16.gmra.mrb[0].mxu0 %v1668
    %v1704 = vpop.f32.mrb[0].mxu0
    %v1705 = vadd.f32 0.0, %v1704
    %v1706 = vpop.f32.mrb[0].mxu0
    %v1707 = vpop.f32.mrb[0].mxu0
    %v1708 = vpop.f32.mrb[0].mxu0
    %1709 = vdwg.mxu0
    %s1710 = scalar_lea.vmem [#allocation14], 2
    %v1711 = vld [vmem:[%s1710] ss:$2 sm:$0x7]
    %s1712 = scalar_lea.vmem [#allocation14], 3
    %v1713 = vld [vmem:[%s1712] ss:$2 sm:$0x7]
    %v1714 = vld [vmem:[#allocation8] sm:$0xff]
    %v1715 = vld [vmem:[#allocation8 + $0x8] sm:$0xff]
    %v1716 = vld [vmem:[#allocation8 + $0x10] sm:$0xff]
    %v1717 = vld [vmem:[#allocation8 + $0x18] sm:$0xff]
    %v1718 = vld [vmem:[#allocation8 + $0x20] sm:$0xff]
    %v1719 = vld [vmem:[#allocation8 + $0x28] sm:$0xff]
    %v1720 = vld [vmem:[#allocation8 + $0x30] sm:$0xff]
    %v1721 = vld [vmem:[#allocation8 + $0x38] sm:$0xff]
    %v1722 = vld [vmem:[#allocation8 + $0x40] sm:$0xff]
    %v1723 = vld [vmem:[#allocation8 + $0x48] sm:$0xff]
    %v1724 = vld [vmem:[#allocation8 + $0x50] sm:$0xff]
    %v1725 = vld [vmem:[#allocation8 + $0x58] sm:$0xff]
    %v1726 = vld [vmem:[#allocation8 + $0x60] sm:$0xff]
    %v1727 = vld [vmem:[#allocation8 + $0x68] sm:$0xff]
    %v1728 = vld [vmem:[#allocation8 + $0x70] sm:$0xff]
    %v1729 = vld [vmem:[#allocation8 + $0x78] sm:$0xff]
    %v1730 = vld [vmem:[#allocation8 + $0x80] sm:$0xff]
    %v1731 = vld [vmem:[#allocation8 + $0x88] sm:$0xff]
    %v1732 = vld [vmem:[#allocation8 + $0x90] sm:$0xff]
    %v1733 = vld [vmem:[#allocation8 + $0x98] sm:$0xff]
    %v1734 = vld [vmem:[#allocation8 + $0xa0] sm:$0xff]
    %v1735 = vld [vmem:[#allocation8 + $0xa8] sm:$0xff]
    %v1736 = vld [vmem:[#allocation8 + $0xb0] sm:$0xff]
    %v1737 = vld [vmem:[#allocation8 + $0xb8] sm:$0xff]
    %v1738 = vld [vmem:[#allocation8 + $0xc0] sm:$0xff]
    %v1739 = vld [vmem:[#allocation8 + $0xc8] sm:$0xff]
    %v1740 = vld [vmem:[#allocation8 + $0xd0] sm:$0xff]
    %v1741 = vld [vmem:[#allocation8 + $0xd8] sm:$0xff]
    %v1742 = vld [vmem:[#allocation8 + $0xe0] sm:$0xff]
    %v1743 = vld [vmem:[#allocation8 + $0xe8] sm:$0xff]
    %v1744 = vld [vmem:[#allocation8 + $0xf0] sm:$0xff]
    %v1745 = vld [vmem:[#allocation8 + $0xf8] sm:$0xff]
    %v1746 = vld [vmem:[#allocation8 + $0x100] sm:$0xff]
    %v1747 = vld [vmem:[#allocation8 + $0x108] sm:$0xff]
    %v1748 = vld [vmem:[#allocation8 + $0x110] sm:$0xff]
    %v1749 = vld [vmem:[#allocation8 + $0x118] sm:$0xff]
    %v1750 = vld [vmem:[#allocation8 + $0x120] sm:$0xff]
    %v1751 = vld [vmem:[#allocation8 + $0x128] sm:$0xff]
    %v1752 = vld [vmem:[#allocation8 + $0x130] sm:$0xff]
    %v1753 = vld [vmem:[#allocation8 + $0x138] sm:$0xff]
    %v1754 = vld [vmem:[#allocation8 + $0x140] sm:$0xff]
    %v1755 = vld [vmem:[#allocation8 + $0x148] sm:$0xff]
    %v1756 = vld [vmem:[#allocation8 + $0x150] sm:$0xff]
    %v1757 = vld [vmem:[#allocation8 + $0x158] sm:$0xff]
    %v1758 = vld [vmem:[#allocation8 + $0x160] sm:$0xff]
    %v1759 = vld [vmem:[#allocation8 + $0x168] sm:$0xff]
    %v1760 = vld [vmem:[#allocation8 + $0x170] sm:$0xff]
    %v1761 = vld [vmem:[#allocation8 + $0x178] sm:$0xff]
    %v1762 = vld [vmem:[#allocation8 + $0x180] sm:$0xff]
    %v1763 = vld [vmem:[#allocation8 + $0x188] sm:$0xff]
    %v1764 = vld [vmem:[#allocation8 + $0x190] sm:$0xff]
    %v1765 = vld [vmem:[#allocation8 + $0x198] sm:$0xff]
    %v1766 = vld [vmem:[#allocation8 + $0x1a0] sm:$0xff]
    %v1767 = vld [vmem:[#allocation8 + $0x1a8] sm:$0xff]
    %v1768 = vld [vmem:[#allocation8 + $0x1b0] sm:$0xff]
    %v1769 = vld [vmem:[#allocation8 + $0x1b8] sm:$0xff]
    %v1770 = vld [vmem:[#allocation8 + $0x1c0] sm:$0xff]
    %v1771 = vld [vmem:[#allocation8 + $0x1c8] sm:$0xff]
    %v1772 = vld [vmem:[#allocation8 + $0x1d0] sm:$0xff]
    %v1773 = vld [vmem:[#allocation8 + $0x1d8] sm:$0xff]
    %v1774 = vld [vmem:[#allocation8 + $0x1e0] sm:$0xff]
    %v1775 = vld [vmem:[#allocation8 + $0x1e8] sm:$0xff]
    %v1776 = vld [vmem:[#allocation8 + $0x1f0] sm:$0xff]
    %v1777 = vld [vmem:[#allocation8 + $0x1f8] sm:$0xff]
    %v1778 = vpack.c.bf16 %v1564, %v1564
    %v1779 = vpack.c.bf16 %v1611, %v1611
    %v1780 = vpack.c.bf16 %v1658, %v1658
    %v1781 = vpack.c.bf16 %v1705, %v1705
    %v1846 = vunpack.c.l.b16 %v1714
    %v1847 = vunpack.c.h.b16 %v1714
    %v1848 = vunpack.c.l.b16 %v1715
    %v1849 = vunpack.c.h.b16 %v1715
    %v1850 = vunpack.c.l.b16 %v1716
    %v1851 = vunpack.c.h.b16 %v1716
    %v1852 = vunpack.c.l.b16 %v1717
    %v1853 = vunpack.c.h.b16 %v1717
    %v1854 = vunpack.c.l.b16 %v1718
    %v1855 = vunpack.c.h.b16 %v1718
    %v1856 = vunpack.c.l.b16 %v1719
    %v1857 = vunpack.c.h.b16 %v1719
    %v1858 = vunpack.c.l.b16 %v1720
    %v1859 = vunpack.c.h.b16 %v1720
    %v1860 = vunpack.c.l.b16 %v1721
    %v1861 = vunpack.c.h.b16 %v1721
    %v1862 = vunpack.c.l.b16 %v1722
    %v1863 = vunpack.c.h.b16 %v1722
    %v1864 = vunpack.c.l.b16 %v1723
    %v1865 = vunpack.c.h.b16 %v1723
    %v1866 = vunpack.c.l.b16 %v1724
    %v1867 = vunpack.c.h.b16 %v1724
    %v1868 = vunpack.c.l.b16 %v1725
    %v1869 = vunpack.c.h.b16 %v1725
    %v1870 = vunpack.c.l.b16 %v1726
    %v1871 = vunpack.c.h.b16 %v1726
    %v1872 = vunpack.c.l.b16 %v1727
    %v1873 = vunpack.c.h.b16 %v1727
    %v1874 = vunpack.c.l.b16 %v1728
    %v1875 = vunpack.c.h.b16 %v1728
    %v1876 = vunpack.c.l.b16 %v1729
    %v1877 = vunpack.c.h.b16 %v1729
    %v1878 = vunpack.c.l.b16 %v1730
    %v1879 = vunpack.c.h.b16 %v1730
    %v1880 = vunpack.c.l.b16 %v1731
    %v1881 = vunpack.c.h.b16 %v1731
    %v1882 = vunpack.c.l.b16 %v1732
    %v1883 = vunpack.c.h.b16 %v1732
    %v1884 = vunpack.c.l.b16 %v1733
    %v1885 = vunpack.c.h.b16 %v1733
    %v1886 = vunpack.c.l.b16 %v1734
    %v1887 = vunpack.c.h.b16 %v1734
    %v1888 = vunpack.c.l.b16 %v1735
    %v1889 = vunpack.c.h.b16 %v1735
    %v1890 = vunpack.c.l.b16 %v1736
    %v1891 = vunpack.c.h.b16 %v1736
    %v1892 = vunpack.c.l.b16 %v1737
    %v1893 = vunpack.c.h.b16 %v1737
    %v1894 = vunpack.c.l.b16 %v1738
    %v1895 = vunpack.c.h.b16 %v1738
    %v1896 = vunpack.c.l.b16 %v1739
    %v1897 = vunpack.c.h.b16 %v1739
    %v1898 = vunpack.c.l.b16 %v1740
    %v1899 = vunpack.c.h.b16 %v1740
    %v1900 = vunpack.c.l.b16 %v1741
    %v1901 = vunpack.c.h.b16 %v1741
    %v1902 = vunpack.c.l.b16 %v1742
    %v1903 = vunpack.c.h.b16 %v1742
    %v1904 = vunpack.c.l.b16 %v1743
    %v1905 = vunpack.c.h.b16 %v1743
    %v1906 = vunpack.c.l.b16 %v1744
    %v1907 = vunpack.c.h.b16 %v1744
    %v1908 = vunpack.c.l.b16 %v1745
    %v1909 = vunpack.c.h.b16 %v1745
    %v1910 = vunpack.c.l.b16 %v1746
    %v1911 = vunpack.c.h.b16 %v1746
    %v1912 = vunpack.c.l.b16 %v1747
    %v1913 = vunpack.c.h.b16 %v1747
    %v1914 = vunpack.c.l.b16 %v1748
    %v1915 = vunpack.c.h.b16 %v1748
    %v1916 = vunpack.c.l.b16 %v1749
    %v1917 = vunpack.c.h.b16 %v1749
    %v1918 = vunpack.c.l.b16 %v1750
    %v1919 = vunpack.c.h.b16 %v1750
    %v1920 = vunpack.c.l.b16 %v1751
    %v1921 = vunpack.c.h.b16 %v1751
    %v1922 = vunpack.c.l.b16 %v1752
    %v1923 = vunpack.c.h.b16 %v1752
    %v1924 = vunpack.c.l.b16 %v1753
    %v1925 = vunpack.c.h.b16 %v1753
    %v1926 = vunpack.c.l.b16 %v1754
    %v1927 = vunpack.c.h.b16 %v1754
    %v1928 = vunpack.c.l.b16 %v1755
    %v1929 = vunpack.c.h.b16 %v1755
    %v1930 = vunpack.c.l.b16 %v1756
    %v1931 = vunpack.c.h.b16 %v1756
    %v1932 = vunpack.c.l.b16 %v1757
    %v1933 = vunpack.c.h.b16 %v1757
    %v1934 = vunpack.c.l.b16 %v1758
    %v1935 = vunpack.c.h.b16 %v1758
    %v1936 = vunpack.c.l.b16 %v1759
    %v1937 = vunpack.c.h.b16 %v1759
    %v1938 = vunpack.c.l.b16 %v1760
    %v1939 = vunpack.c.h.b16 %v1760
    %v1940 = vunpack.c.l.b16 %v1761
    %v1941 = vunpack.c.h.b16 %v1761
    %v1942 = vunpack.c.l.b16 %v1762
    %v1943 = vunpack.c.h.b16 %v1762
    %v1944 = vunpack.c.l.b16 %v1763
    %v1945 = vunpack.c.h.b16 %v1763
    %v1946 = vunpack.c.l.b16 %v1764
    %v1947 = vunpack.c.h.b16 %v1764
    %v1948 = vunpack.c.l.b16 %v1765
    %v1949 = vunpack.c.h.b16 %v1765
    %v1950 = vunpack.c.l.b16 %v1766
    %v1951 = vunpack.c.h.b16 %v1766
    %v1952 = vunpack.c.l.b16 %v1767
    %v1953 = vunpack.c.h.b16 %v1767
    %v1954 = vunpack.c.l.b16 %v1768
    %v1955 = vunpack.c.h.b16 %v1768
    %v1956 = vunpack.c.l.b16 %v1769
    %v1957 = vunpack.c.h.b16 %v1769
    %v1958 = vunpack.c.l.b16 %v1770
    %v1959 = vunpack.c.h.b16 %v1770
    %v1960 = vunpack.c.l.b16 %v1771
    %v1961 = vunpack.c.h.b16 %v1771
    %v1962 = vunpack.c.l.b16 %v1772
    %v1963 = vunpack.c.h.b16 %v1772
    %v1964 = vunpack.c.l.b16 %v1773
    %v1965 = vunpack.c.h.b16 %v1773
    %v1966 = vunpack.c.l.b16 %v1774
    %v1967 = vunpack.c.h.b16 %v1774
    %v1968 = vunpack.c.l.b16 %v1775
    %v1969 = vunpack.c.h.b16 %v1775
    %v1970 = vunpack.c.l.b16 %v1776
    %v1971 = vunpack.c.h.b16 %v1776
    %v1972 = vunpack.c.l.b16 %v1777
    %v1973 = vunpack.c.h.b16 %v1777
    %v1974 = vpack.c.b16 %v1848, %v1846
    %v1975 = vpack.c.b16 %v1849, %v1847
    %v1976 = vpack.c.b16 %v1852, %v1850
    %v1977 = vpack.c.b16 %v1853, %v1851
    %v1978 = vpack.c.b16 %v1856, %v1854
    %v1979 = vpack.c.b16 %v1857, %v1855
    %v1980 = vpack.c.b16 %v1860, %v1858
    %v1981 = vpack.c.b16 %v1861, %v1859
    %v1982 = vpack.c.b16 %v1864, %v1862
    %v1983 = vpack.c.b16 %v1865, %v1863
    %v1984 = vpack.c.b16 %v1868, %v1866
    %v1985 = vpack.c.b16 %v1869, %v1867
    %v1986 = vpack.c.b16 %v1872, %v1870
    %v1987 = vpack.c.b16 %v1873, %v1871
    %v1988 = vpack.c.b16 %v1876, %v1874
    %v1989 = vpack.c.b16 %v1877, %v1875
    %v1990 = vpack.c.b16 %v1880, %v1878
    %v1991 = vpack.c.b16 %v1881, %v1879
    %v1992 = vpack.c.b16 %v1884, %v1882
    %v1993 = vpack.c.b16 %v1885, %v1883
    %v1994 = vpack.c.b16 %v1888, %v1886
    %v1995 = vpack.c.b16 %v1889, %v1887
    %v1996 = vpack.c.b16 %v1892, %v1890
    %v1997 = vpack.c.b16 %v1893, %v1891
    %v1998 = vpack.c.b16 %v1896, %v1894
    %v1999 = vpack.c.b16 %v1897, %v1895
    %v2000 = vpack.c.b16 %v1900, %v1898
    %v2001 = vpack.c.b16 %v1901, %v1899
    %v2002 = vpack.c.b16 %v1904, %v1902
    %v2003 = vpack.c.b16 %v1905, %v1903
    %v2004 = vpack.c.b16 %v1908, %v1906
    %v2005 = vpack.c.b16 %v1909, %v1907
    %v2006 = vpack.c.b16 %v1912, %v1910
    %v2007 = vpack.c.b16 %v1913, %v1911
    %v2008 = vpack.c.b16 %v1916, %v1914
    %v2009 = vpack.c.b16 %v1917, %v1915
    %v2010 = vpack.c.b16 %v1920, %v1918
    %v2011 = vpack.c.b16 %v1921, %v1919
    %v2012 = vpack.c.b16 %v1924, %v1922
    %v2013 = vpack.c.b16 %v1925, %v1923
    %v2014 = vpack.c.b16 %v1928, %v1926
    %v2015 = vpack.c.b16 %v1929, %v1927
    %v2016 = vpack.c.b16 %v1932, %v1930
    %v2017 = vpack.c.b16 %v1933, %v1931
    %v2018 = vpack.c.b16 %v1936, %v1934
    %v2019 = vpack.c.b16 %v1937, %v1935
    %v2020 = vpack.c.b16 %v1940, %v1938
    %v2021 = vpack.c.b16 %v1941, %v1939
    %v2022 = vpack.c.b16 %v1944, %v1942
    %v2023 = vpack.c.b16 %v1945, %v1943
    %v2024 = vpack.c.b16 %v1948, %v1946
    %v2025 = vpack.c.b16 %v1949, %v1947
    %v2026 = vpack.c.b16 %v1952, %v1950
    %v2027 = vpack.c.b16 %v1953, %v1951
    %v2028 = vpack.c.b16 %v1956, %v1954
    %v2029 = vpack.c.b16 %v1957, %v1955
    %v2030 = vpack.c.b16 %v1960, %v1958
    %v2031 = vpack.c.b16 %v1961, %v1959
    %v2032 = vpack.c.b16 %v1964, %v1962
    %v2033 = vpack.c.b16 %v1965, %v1963
    %v2034 = vpack.c.b16 %v1968, %v1966
    %v2035 = vpack.c.b16 %v1969, %v1967
    %v2036 = vpack.c.b16 %v1972, %v1970
    %v2037 = vpack.c.b16 %v1973, %v1971
    %2102 = vmatprep.subr.bf16.mxu0 %v1975
    %2103 = vmatpush1.bf16.msra.mxu0 %v1974
    %2104 = vmatprep.subr.bf16.mxu0 %v1977
    %2105 = vmatpush1.bf16.msra.mxu0 %v1976
    %2106 = vmatprep.subr.bf16.mxu0 %v1979
    %2107 = vmatpush1.bf16.msra.mxu0 %v1978
    %2108 = vmatprep.subr.bf16.mxu0 %v1981
    %2109 = vmatpush1.bf16.msra.mxu0 %v1980
    %2110 = vmatprep.subr.bf16.mxu0 %v1983
    %2111 = vmatpush1.bf16.msra.mxu0 %v1982
    %2112 = vmatprep.subr.bf16.mxu0 %v1985
    %2113 = vmatpush1.bf16.msra.mxu0 %v1984
    %2114 = vmatprep.subr.bf16.mxu0 %v1987
    %2115 = vmatpush1.bf16.msra.mxu0 %v1986
    %2116 = vmatprep.subr.bf16.mxu0 %v1989
    %2117 = vmatpush1.bf16.msra.mxu0 %v1988
    %2118 = vmatprep.subr.bf16.mxu0 %v1991
    %2119 = vmatpush1.bf16.msra.mxu0 %v1990
    %2120 = vmatprep.subr.bf16.mxu0 %v1993
    %2121 = vmatpush1.bf16.msra.mxu0 %v1992
    %2122 = vmatprep.subr.bf16.mxu0 %v1995
    %2123 = vmatpush1.bf16.msra.mxu0 %v1994
    %2124 = vmatprep.subr.bf16.mxu0 %v1997
    %2125 = vmatpush1.bf16.msra.mxu0 %v1996
    %2126 = vmatprep.subr.bf16.mxu0 %v1999
    %2127 = vmatpush1.bf16.msra.mxu0 %v1998
    %2128 = vmatprep.subr.bf16.mxu0 %v2001
    %2129 = vmatpush1.bf16.msra.mxu0 %v2000
    %2130 = vmatprep.subr.bf16.mxu0 %v2003
    %2131 = vmatpush1.bf16.msra.mxu0 %v2002
    %2132 = vmatprep.subr.bf16.mxu0 %v2005
    %2133 = vmatpush1.bf16.msra.mxu0 %v2004
    %2134 = vmatprep.mubr.bf16.mxu0 %v1779
    %2135 = vmatmul.mubr.bf16.gmra.mrb[0].mxu0 %v1778
    %v2136 = vpop.f32.mrb[0].mxu0
    %v2137 = vadd.f32 0.0, %v2136
    %v2138 = vpop.f32.mrb[0].mxu0
    %v2139 = vadd.f32 0.0, %v2138
    %v2140 = vpop.f32.mrb[0].mxu0
    %v2141 = vpop.f32.mrb[0].mxu0
    %2142 = vdwg.mxu0
    %2143 = vmatprep.subr.bf16.mxu0 %v2007
    %2144 = vmatpush1.bf16.msra.mxu0 %v2006
    %2145 = vmatprep.subr.bf16.mxu0 %v2009
    %2146 = vmatpush1.bf16.msra.mxu0 %v2008
    %2147 = vmatprep.subr.bf16.mxu0 %v2011
    %2148 = vmatpush1.bf16.msra.mxu0 %v2010
    %2149 = vmatprep.subr.bf16.mxu0 %v2013
    %2150 = vmatpush1.bf16.msra.mxu0 %v2012
    %2151 = vmatprep.subr.bf16.mxu0 %v2015
    %2152 = vmatpush1.bf16.msra.mxu0 %v2014
    %2153 = vmatprep.subr.bf16.mxu0 %v2017
    %2154 = vmatpush1.bf16.msra.mxu0 %v2016
    %2155 = vmatprep.subr.bf16.mxu0 %v2019
    %2156 = vmatpush1.bf16.msra.mxu0 %v2018
    %2157 = vmatprep.subr.bf16.mxu0 %v2021
    %2158 = vmatpush1.bf16.msra.mxu0 %v2020
    %2159 = vmatprep.subr.bf16.mxu0 %v2023
    %2160 = vmatpush1.bf16.msra.mxu0 %v2022
    %2161 = vmatprep.subr.bf16.mxu0 %v2025
    %2162 = vmatpush1.bf16.msra.mxu0 %v2024
    %2163 = vmatprep.subr.bf16.mxu0 %v2027
    %2164 = vmatpush1.bf16.msra.mxu0 %v2026
    %2165 = vmatprep.subr.bf16.mxu0 %v2029
    %2166 = vmatpush1.bf16.msra.mxu0 %v2028
    %2167 = vmatprep.subr.bf16.mxu0 %v2031
    %2168 = vmatpush1.bf16.msra.mxu0 %v2030
    %2169 = vmatprep.subr.bf16.mxu0 %v2033
    %2170 = vmatpush1.bf16.msra.mxu0 %v2032
    %2171 = vmatprep.subr.bf16.mxu0 %v2035
    %2172 = vmatpush1.bf16.msra.mxu0 %v2034
    %2173 = vmatprep.subr.bf16.mxu0 %v2037
    %2174 = vmatpush1.bf16.msra.mxu0 %v2036
    %2175 = vmatprep.mubr.bf16.mxu0 %v1781
    %2176 = vmatmul.mubr.bf16.gmra.mrb[0].mxu0 %v1780
    %v2177 = vpop.f32.mrb[0].mxu0
    %v2178 = vadd.f32 %v2137, %v2177
    %v2179 = vpop.f32.mrb[0].mxu0
    %v2180 = vadd.f32 %v2139, %v2179
    %v2181 = vpop.f32.mrb[0].mxu0
    %v2182 = vpop.f32.mrb[0].mxu0
    %2183 = vdwg.mxu0
    %vm2184 = vcmask 1043456
    %v2185 = vsel %vm2184, %v2178, 0.0
    %v2186 = vrot.slane %v2185, 4
    %v2187 = vadd.f32 %v2185, %v2186
    %v2188 = vrot.slane %v2187, 2
    %v2189 = vadd.f32 %v2187, %v2188
    %v2190 = vrot.slane %v2189, 1
    %v2191 = vadd.f32 %v2189, %v2190
    %v2192 = vsel %vm2184, %v2180, 0.0
    %v2193 = vrot.slane %v2192, 4
    %v2194 = vadd.f32 %v2192, %v2193
    %v2195 = vrot.slane %v2194, 2
    %v2196 = vadd.f32 %v2194, %v2195
    %v2197 = vrot.slane %v2196, 1
    %v2198 = vadd.f32 %v2196, %v2197
    %v2199 = vrcp.pop 4.0
    %v2200 = vmul.f32 %v2191, %v2199
    %v2201 = vmul.f32 %v2198, %v2199
    %v2202 = vsub.f32 %v2178, %v2200
    %v2203 = vsub.f32 %v2180, %v2201
    %v2204 = vmul.f32 %v2202, %v2202
    %v2205 = vmul.f32 %v2203, %v2203
    %v2206 = vsel %vm2184, %v2204, 0.0
    %v2207 = vrot.slane %v2206, 4
    %v2208 = vadd.f32 %v2206, %v2207
    %v2209 = vrot.slane %v2208, 2
    %v2210 = vadd.f32 %v2208, %v2209
    %v2211 = vrot.slane %v2210, 1
    %v2212 = vadd.f32 %v2210, %v2211
    %v2213 = vsel %vm2184, %v2205, 0.0
    %v2214 = vrot.slane %v2213, 4
    %v2215 = vadd.f32 %v2213, %v2214
    %v2216 = vrot.slane %v2215, 2
    %v2217 = vadd.f32 %v2215, %v2216
    %v2218 = vrot.slane %v2217, 1
    %v2219 = vadd.f32 %v2217, %v2218
    %v2220 = vmul.f32 %v2212, %v2199
    %v2221 = vmul.f32 %v2219, %v2199
    %v2222 = vadd.f32 %v2220, 1e-05
    %v2223 = vadd.f32 %v2221, 1e-05
    %v2224 = vrsqrt.pop %v2222
    %v2225 = vrsqrt.pop %v2223
    %v2227 = vlaneseq
    %v2228 = vshrl.u32 %v2227, 7
    %v2229 = vsub.s32 0, %v2228
    %v2230 = vrot.slane %v1711, %v2229
    %v2231 = vlaneseq
    %v2232 = vshrl.u32 %v2231, 7
    %v2233 = vsub.s32 1, %v2232
    %v2234 = vrot.slane %v1711, %v2233
    %v2235 = vlaneseq
    %v2236 = vshrl.u32 %v2235, 7
    %v2237 = vsub.s32 2, %v2236
    %v2238 = vrot.slane %v1711, %v2237
    %2239 = vrot.lane.b32.xlu0 %v2230, 32
    %v2240 = vpop.permute.xlu0 %2239
    %2241 = vrot.lane.b32.xlu0 %v2234, 32
    %v2242 = vpop.permute.xlu0 %2241
    %2243 = vrot.lane.b32.xlu0 %v2238, 32
    %v2244 = vpop.permute.xlu0 %2243
    %v2245 = vsel %vm443, %v2240, %v2242
    %v2246 = vsel %vm443, %v2242, %v2244
    %v2249 = vmul.f32 %v2224, %v2245
    %v2250 = vmul.f32 %v2225, %v2246
    %v2251 = vmul.f32 %v2200, %v2249
    %v2252 = vmul.f32 %v2201, %v2250
    %v2255 = vcombine.low %v2251, %v2252
    %v2257 = vunpack.c.l.s4 1966171168
    %v2258 = vunpack.c.0.s8 %v2257
    %v2259 = vlaneseq
    %v2260 = vshrl.u32 %v2259, 7
    %v2261 = vsub.s32 %v2258, %v2260
    %v2262 = vrot.slane %v2255, %v2261
    %v2264 = vunpack.c.l.s4 1966171168
    %v2265 = vunpack.c.0.s8 %v2264
    %v2266 = vlaneseq
    %v2267 = vshrl.u32 %v2266, 7
    %v2268 = vsub.s32 %v2265, %v2267
    %v2269 = vrot.slane %v2262, %v2268
    %2270 = vrot.lane.b32.xlu0 %v2269, 96
    %v2271 = vpop.permute.xlu0 %2270
    %v2272 = vrot.slane %v2271, 7
    %v2273 = vsel %vm446, %v2272, %v2271
    %v2275 = vsub.f32 %v1713, %v2273
    %v2276 = vlaneseq
    %v2277 = vshrl.u32 %v2276, 7
    %v2278 = vsub.s32 0, %v2277
    %v2279 = vrot.slane %v2249, %v2278
    %v2280 = vlaneseq
    %v2281 = vshrl.u32 %v2280, 7
    %v2282 = vsub.s32 0, %v2281
    %v2283 = vrot.slane %v2250, %v2282
    %v2284 = vmul.f32 %v2178, %v2279
    %v2285 = vmul.f32 %v2180, %v2283
    %v2287 = vlaneseq
    %v2288 = vshrl.u32 %v2287, 7
    %v2289 = vsub.s32 0, %v2288
    %v2290 = vrot.slane %v2275, %v2289
    %v2291 = vlaneseq
    %v2292 = vshrl.u32 %v2291, 7
    %v2293 = vsub.s32 1, %v2292
    %v2294 = vrot.slane %v2275, %v2293
    %v2295 = vlaneseq
    %v2296 = vshrl.u32 %v2295, 7
    %v2297 = vsub.s32 2, %v2296
    %v2298 = vrot.slane %v2275, %v2297
    %2299 = vrot.lane.b32.xlu0 %v2290, 32
    %v2300 = vpop.permute.xlu0 %2299
    %2301 = vrot.lane.b32.xlu0 %v2294, 32
    %v2302 = vpop.permute.xlu0 %2301
    %2303 = vrot.lane.b32.xlu0 %v2298, 32
    %v2304 = vpop.permute.xlu0 %2303
    %v2305 = vsel %vm443, %v2300, %v2302
    %v2306 = vsel %vm443, %v2302, %v2304
    %v2309 = vadd.f32 %v2284, %v2305
    %v2310 = vadd.f32 %v2285, %v2306
    %vm2311 = vcmp.gt.f32.partialorder %v2309, 0.0
    %vm2312 = vcmp.gt.f32.partialorder %v2310, 0.0
    %v2313 = vmul.f32 %v2309, 0.01
    %v2314 = vmul.f32 %v2310, 0.01
    %v2315 = vsel %vm2311, %v2309, %v2313
    %v2316 = vsel %vm2312, %v2310, %v2314
    %v2317 = vpack.c.bf16 %v2315, %v2315
    %v2318 = vpack.c.bf16 %v2316, %v2316
    %v2319 = vmul.u32 %v1518, 2
    %vm2320 = vcmp.eq.s32.totalorder %v1520, %v2319
    %v2321 = vsel %vm2320, 1.0, 0.0
    %v2322 = vpack.c.bf16 %v2321, %v2321
    %vm2323 = vcmask 31744
    %v2325 = vsel %vm2323, %v2322, 0
    %vm2327 = vcmask 1041408
    %v2329 = vsel %vm2327, %v2317, 0
    %v2332 = vsel %vm2327, %v2318, 0
    %2334 = vmatprep.subr.bf16.mxu0 %v2332
    %2335 = vmatpush1.bf16.msra.mxu0 %v2329
    %2336 = vmatprep.subr.bf16.mxu0 0
    %2337 = vmatpush1.bf16.msra.mxu0 0
    %2338 = vmatprep.subr.bf16.mxu0 0
    %2339 = vmatpush1.bf16.msra.mxu0 0
    %2340 = vmatprep.subr.bf16.mxu0 0
    %2341 = vmatpush1.bf16.msra.mxu0 0
    %2342 = vmatprep.subr.bf16.mxu0 0
    %2343 = vmatpush1.bf16.msra.mxu0 0
    %2344 = vmatprep.subr.bf16.mxu0 0
    %2345 = vmatpush1.bf16.msra.mxu0 0
    %2346 = vmatprep.subr.bf16.mxu0 0
    %2347 = vmatpush1.bf16.msra.mxu0 0
    %2348 = vmatprep.subr.bf16.mxu0 0
    %2349 = vmatpush1.bf16.msra.mxu0 0
    %2350 = vmatprep.subr.bf16.mxu0 0
    %2351 = vmatpush1.bf16.msra.mxu0 0
    %2352 = vmatprep.subr.bf16.mxu0 0
    %2353 = vmatpush1.bf16.msra.mxu0 0
    %2354 = vmatprep.subr.bf16.mxu0 0
    %2355 = vmatpush1.bf16.msra.mxu0 0
    %2356 = vmatprep.subr.bf16.mxu0 0
    %2357 = vmatpush1.bf16.msra.mxu0 0
    %2358 = vmatprep.subr.bf16.mxu0 0
    %2359 = vmatpush1.bf16.msra.mxu0 0
    %2360 = vmatprep.subr.bf16.mxu0 0
    %2361 = vmatpush1.bf16.msra.mxu0 0
    %2362 = vmatprep.subr.bf16.mxu0 0
    %2363 = vmatpush1.bf16.msra.mxu0 0
    %2364 = vmatprep.subr.bf16.mxu0 0
    %2365 = vmatpush1.bf16.msra.mxu0 0
    %2366 = vmatprep.mubr.bf16.mxu0 0
    %2367 = vmatmul.mubr.bf16.gmra.mrb[0].mxu0 %v2325
    %v2368 = vpop.f32.mrb[0].mxu0
    %v2369 = vadd.f32 0.0, %v2368
    %v2370 = vpop.f32.mrb[0].mxu0
    %v2371 = vadd.f32 0.0, %v2370
    %v2372 = vpop.f32.mrb[0].mxu0
    %v2373 = vpop.f32.mrb[0].mxu0
    %2374 = vdwg.mxu0
    %v2375 = vadd.s32 %v2319, 1
    %vm2376 = vcmp.eq.s32.totalorder %v1520, %v2375
    %v2377 = vsel %vm2376, 1.0, 0.0
    %v2378 = vpack.c.bf16 %v2377, %v2377
    %v2380 = vsel %vm2323, %v2378, 0
    %2382 = vmatprep.subr.bf16.mxu0 %v2332
    %2383 = vmatpush1.bf16.msra.mxu0 %v2329
    %2384 = vmatprep.subr.bf16.mxu0 0
    %2385 = vmatpush1.bf16.msra.mxu0 0
    %2386 = vmatprep.subr.bf16.mxu0 0
    %2387 = vmatpush1.bf16.msra.mxu0 0
    %2388 = vmatprep.subr.bf16.mxu0 0
    %2389 = vmatpush1.bf16.msra.mxu0 0
    %2390 = vmatprep.subr.bf16.mxu0 0
    %2391 = vmatpush1.bf16.msra.mxu0 0
    %2392 = vmatprep.subr.bf16.mxu0 0
    %2393 = vmatpush1.bf16.msra.mxu0 0
    %2394 = vmatprep.subr.bf16.mxu0 0
    %2395 = vmatpush1.bf16.msra.mxu0 0
    %2396 = vmatprep.subr.bf16.mxu0 0
    %2397 = vmatpush1.bf16.msra.mxu0 0
    %2398 = vmatprep.subr.bf16.mxu0 0
    %2399 = vmatpush1.bf16.msra.mxu0 0
    %2400 = vmatprep.subr.bf16.mxu0 0
    %2401 = vmatpush1.bf16.msra.mxu0 0
    %2402 = vmatprep.subr.bf16.mxu0 0
    %2403 = vmatpush1.bf16.msra.mxu0 0
    %2404 = vmatprep.subr.bf16.mxu0 0
    %2405 = vmatpush1.bf16.msra.mxu0 0
    %2406 = vmatprep.subr.bf16.mxu0 0
    %2407 = vmatpush1.bf16.msra.mxu0 0
    %2408 = vmatprep.subr.bf16.mxu0 0
    %2409 = vmatpush1.bf16.msra.mxu0 0
    %2410 = vmatprep.subr.bf16.mxu0 0
    %2411 = vmatpush1.bf16.msra.mxu0 0
    %2412 = vmatprep.subr.bf16.mxu0 0
    %2413 = vmatpush1.bf16.msra.mxu0 0
    %2414 = vmatprep.mubr.bf16.mxu0 0
    %2415 = vmatmul.mubr.bf16.gmra.mrb[0].mxu0 %v2380
    %v2416 = vpop.f32.mrb[0].mxu0
    %v2417 = vadd.f32 0.0, %v2416
    %v2418 = vpop.f32.mrb[0].mxu0
    %v2419 = vadd.f32 0.0, %v2418
    %v2420 = vpop.f32.mrb[0].mxu0
    %v2421 = vpop.f32.mrb[0].mxu0
    %2422 = vdwg.mxu0
    %v2423 = vld [vmem:[%s6] sm:$0xf]
    %v2424 = vld [vmem:[%s6 + $0x4] sm:$0xf]
    %v2425 = vld [vmem:[%s6 + $0x8] sm:$0xf]
    %v2426 = vld [vmem:[%s6 + $0xc] sm:$0xf]
    %v2427 = vld [vmem:[%s6 + $0x10] sm:$0xf]
    %v2428 = vld [vmem:[%s6 + $0x14] sm:$0xf]
    %v2429 = vld [vmem:[%s6 + $0x18] sm:$0xf]
    %v2430 = vld [vmem:[%s6 + $0x1c] sm:$0xf]
    %v2431 = vld [vmem:[%s6 + $0x20] sm:$0xf]
    %v2432 = vld [vmem:[%s6 + $0x24] sm:$0xf]
    %v2433 = vld [vmem:[%s6 + $0x28] sm:$0xf]
    %v2434 = vld [vmem:[%s6 + $0x2c] sm:$0xf]
    %v2435 = vld [vmem:[%s6 + $0x30] sm:$0xf]
    %v2436 = vld [vmem:[%s6 + $0x34] sm:$0xf]
    %v2437 = vld [vmem:[%s6 + $0x38] sm:$0xf]
    %v2438 = vld [vmem:[%s6 + $0x3c] sm:$0xf]
    %v2439 = vld [vmem:[%s6 + $0x40] sm:$0xf]
    %v2440 = vld [vmem:[%s6 + $0x44] sm:$0xf]
    %v2441 = vld [vmem:[%s6 + $0x48] sm:$0xf]
    %v2442 = vld [vmem:[%s6 + $0x4c] sm:$0xf]
    %v2443 = vld [vmem:[%s6 + $0x50] sm:$0xf]
    %v2444 = vld [vmem:[%s6 + $0x54] sm:$0xf]
    %v2445 = vld [vmem:[%s6 + $0x58] sm:$0xf]
    %v2446 = vld [vmem:[%s6 + $0x5c] sm:$0xf]
    %v2447 = vld [vmem:[%s6 + $0x60] sm:$0xf]
    %v2448 = vld [vmem:[%s6 + $0x64] sm:$0xf]
    %v2449 = vld [vmem:[%s6 + $0x68] sm:$0xf]
    %v2450 = vld [vmem:[%s6 + $0x6c] sm:$0xf]
    %v2451 = vld [vmem:[%s6 + $0x70] sm:$0xf]
    %v2452 = vld [vmem:[%s6 + $0x74] sm:$0xf]
    %v2453 = vld [vmem:[%s6 + $0x78] sm:$0xf]
    %v2454 = vld [vmem:[%s6 + $0x7c] sm:$0xf]
    %v2455 = vld [vmem:[%s6 + $0x80] sm:$0xf]
    %v2456 = vld [vmem:[%s6 + $0x84] sm:$0xf]
    %v2457 = vld [vmem:[%s6 + $0x88] sm:$0xf]
    %v2458 = vld [vmem:[%s6 + $0x8c] sm:$0xf]
    %v2459 = vld [vmem:[%s6 + $0x90] sm:$0xf]
    %v2460 = vld [vmem:[%s6 + $0x94] sm:$0xf]
    %v2461 = vld [vmem:[%s6 + $0x98] sm:$0xf]
    %v2462 = vld [vmem:[%s6 + $0x9c] sm:$0xf]
    %v2463 = vld [vmem:[%s6 + $0xa0] sm:$0xf]
    %v2464 = vld [vmem:[%s6 + $0xa4] sm:$0xf]
    %v2465 = vld [vmem:[%s6 + $0xa8] sm:$0xf]
    %v2466 = vld [vmem:[%s6 + $0xac] sm:$0xf]
    %v2467 = vld [vmem:[%s6 + $0xb0] sm:$0xf]
    %v2468 = vld [vmem:[%s6 + $0xb4] sm:$0xf]
    %v2469 = vld [vmem:[%s6 + $0xb8] sm:$0xf]
    %v2470 = vld [vmem:[%s6 + $0xbc] sm:$0xf]
    %v2471 = vld [vmem:[%s6 + $0xc0] sm:$0xf]
    %v2472 = vld [vmem:[%s6 + $0xc4] sm:$0xf]
    %v2473 = vld [vmem:[%s6 + $0xc8] sm:$0xf]
    %v2474 = vld [vmem:[%s6 + $0xcc] sm:$0xf]
    %v2475 = vld [vmem:[%s6 + $0xd0] sm:$0xf]
    %v2476 = vld [vmem:[%s6 + $0xd4] sm:$0xf]
    %v2477 = vld [vmem:[%s6 + $0xd8] sm:$0xf]
    %v2478 = vld [vmem:[%s6 + $0xdc] sm:$0xf]
    %v2479 = vld [vmem:[%s6 + $0xe0] sm:$0xf]
    %v2480 = vld [vmem:[%s6 + $0xe4] sm:$0xf]
    %v2481 = vld [vmem:[%s6 + $0xe8] sm:$0xf]
    %v2482 = vld [vmem:[%s6 + $0xec] sm:$0xf]
    %v2483 = vld [vmem:[%s6 + $0xf0] sm:$0xf]
    %v2484 = vld [vmem:[%s6 + $0xf4] sm:$0xf]
    %v2485 = vld [vmem:[%s6 + $0xf8] sm:$0xf]
    %v2486 = vld [vmem:[%s6 + $0xfc] sm:$0xf]
    %v2487 = vpack.c.bf16 %v2369, %v2369
    %v2488 = vpack.c.bf16 %v2371, %v2371
    %v2489 = vpack.c.bf16 %v2417, %v2417
    %v2490 = vpack.c.bf16 %v2419, %v2419
    %v2491 = vld [vmem:[%s7] sm:$0x1]
    %v2493 = vlaneseq
    %v2494 = vshrl.u32 %v2493, 7
    %v2495 = vsub.s32 0, %v2494
    %v2496 = vrot.slane %v2491, %v2495
    %v2562 = vunpack.c.l.b16 %v2423
    %v2563 = vunpack.c.l.b16 %v2424
    %v2564 = vunpack.c.l.b16 %v2425
    %v2565 = vunpack.c.l.b16 %v2426
    %v2566 = vunpack.c.l.b16 %v2427
    %v2567 = vunpack.c.l.b16 %v2428
    %v2568 = vunpack.c.l.b16 %v2429
    %v2569 = vunpack.c.l.b16 %v2430
    %v2570 = vunpack.c.l.b16 %v2431
    %v2571 = vunpack.c.l.b16 %v2432
    %v2572 = vunpack.c.l.b16 %v2433
    %v2573 = vunpack.c.l.b16 %v2434
    %v2574 = vunpack.c.l.b16 %v2435
    %v2575 = vunpack.c.l.b16 %v2436
    %v2576 = vunpack.c.l.b16 %v2437
    %v2577 = vunpack.c.l.b16 %v2438
    %v2578 = vunpack.c.l.b16 %v2439
    %v2579 = vunpack.c.l.b16 %v2440
    %v2580 = vunpack.c.l.b16 %v2441
    %v2581 = vunpack.c.l.b16 %v2442
    %v2582 = vunpack.c.l.b16 %v2443
    %v2583 = vunpack.c.l.b16 %v2444
    %v2584 = vunpack.c.l.b16 %v2445
    %v2585 = vunpack.c.l.b16 %v2446
    %v2586 = vunpack.c.l.b16 %v2447
    %v2587 = vunpack.c.l.b16 %v2448
    %v2588 = vunpack.c.l.b16 %v2449
    %v2589 = vunpack.c.l.b16 %v2450
    %v2590 = vunpack.c.l.b16 %v2451
    %v2591 = vunpack.c.l.b16 %v2452
    %v2592 = vunpack.c.l.b16 %v2453
    %v2593 = vunpack.c.l.b16 %v2454
    %v2594 = vunpack.c.l.b16 %v2455
    %v2595 = vunpack.c.l.b16 %v2456
    %v2596 = vunpack.c.l.b16 %v2457
    %v2597 = vunpack.c.l.b16 %v2458
    %v2598 = vunpack.c.l.b16 %v2459
    %v2599 = vunpack.c.l.b16 %v2460
    %v2600 = vunpack.c.l.b16 %v2461
    %v2601 = vunpack.c.l.b16 %v2462
    %v2602 = vunpack.c.l.b16 %v2463
    %v2603 = vunpack.c.l.b16 %v2464
    %v2604 = vunpack.c.l.b16 %v2465
    %v2605 = vunpack.c.l.b16 %v2466
    %v2606 = vunpack.c.l.b16 %v2467
    %v2607 = vunpack.c.l.b16 %v2468
    %v2608 = vunpack.c.l.b16 %v2469
    %v2609 = vunpack.c.l.b16 %v2470
    %v2610 = vunpack.c.l.b16 %v2471
    %v2611 = vunpack.c.l.b16 %v2472
    %v2612 = vunpack.c.l.b16 %v2473
    %v2613 = vunpack.c.l.b16 %v2474
    %v2614 = vunpack.c.l.b16 %v2475
    %v2615 = vunpack.c.l.b16 %v2476
    %v2616 = vunpack.c.l.b16 %v2477
    %v2617 = vunpack.c.l.b16 %v2478
    %v2618 = vunpack.c.l.b16 %v2479
    %v2619 = vunpack.c.l.b16 %v2480
    %v2620 = vunpack.c.l.b16 %v2481
    %v2621 = vunpack.c.l.b16 %v2482
    %v2622 = vunpack.c.l.b16 %v2483
    %v2623 = vunpack.c.l.b16 %v2484
    %v2624 = vunpack.c.l.b16 %v2485
    %v2625 = vunpack.c.l.b16 %v2486
    %v2626 = vpack.c.b16 %v2563, %v2562
    %v2627 = vpack.c.b16 %v2565, %v2564
    %v2628 = vpack.c.b16 %v2567, %v2566
    %v2629 = vpack.c.b16 %v2569, %v2568
    %v2630 = vpack.c.b16 %v2571, %v2570
    %v2631 = vpack.c.b16 %v2573, %v2572
    %v2632 = vpack.c.b16 %v2575, %v2574
    %v2633 = vpack.c.b16 %v2577, %v2576
    %v2634 = vpack.c.b16 %v2579, %v2578
    %v2635 = vpack.c.b16 %v2581, %v2580
    %v2636 = vpack.c.b16 %v2583, %v2582
    %v2637 = vpack.c.b16 %v2585, %v2584
    %v2638 = vpack.c.b16 %v2587, %v2586
    %v2639 = vpack.c.b16 %v2589, %v2588
    %v2640 = vpack.c.b16 %v2591, %v2590
    %v2641 = vpack.c.b16 %v2593, %v2592
    %v2642 = vpack.c.b16 %v2595, %v2594
    %v2643 = vpack.c.b16 %v2597, %v2596
    %v2644 = vpack.c.b16 %v2599, %v2598
    %v2645 = vpack.c.b16 %v2601, %v2600
    %v2646 = vpack.c.b16 %v2603, %v2602
    %v2647 = vpack.c.b16 %v2605, %v2604
    %v2648 = vpack.c.b16 %v2607, %v2606
    %v2649 = vpack.c.b16 %v2609, %v2608
    %v2650 = vpack.c.b16 %v2611, %v2610
    %v2651 = vpack.c.b16 %v2613, %v2612
    %v2652 = vpack.c.b16 %v2615, %v2614
    %v2653 = vpack.c.b16 %v2617, %v2616
    %v2654 = vpack.c.b16 %v2619, %v2618
    %v2655 = vpack.c.b16 %v2621, %v2620
    %v2656 = vpack.c.b16 %v2623, %v2622
    %v2657 = vpack.c.b16 %v2625, %v2624
    %2690 = vmatprep.subr.bf16.mxu0 0
    %2691 = vmatpush1.bf16.msra.mxu0 %v2626
    %2692 = vmatprep.subr.bf16.mxu0 0
    %2693 = vmatpush1.bf16.msra.mxu0 %v2627
    %2694 = vmatprep.subr.bf16.mxu0 0
    %2695 = vmatpush1.bf16.msra.mxu0 %v2628
    %2696 = vmatprep.subr.bf16.mxu0 0
    %2697 = vmatpush1.bf16.msra.mxu0 %v2629
    %2698 = vmatprep.subr.bf16.mxu0 0
    %2699 = vmatpush1.bf16.msra.mxu0 %v2630
    %2700 = vmatprep.subr.bf16.mxu0 0
    %2701 = vmatpush1.bf16.msra.mxu0 %v2631
    %2702 = vmatprep.subr.bf16.mxu0 0
    %2703 = vmatpush1.bf16.msra.mxu0 %v2632
    %2704 = vmatprep.subr.bf16.mxu0 0
    %2705 = vmatpush1.bf16.msra.mxu0 %v2633
    %2706 = vmatprep.subr.bf16.mxu0 0
    %2707 = vmatpush1.bf16.msra.mxu0 %v2634
    %2708 = vmatprep.subr.bf16.mxu0 0
    %2709 = vmatpush1.bf16.msra.mxu0 %v2635
    %2710 = vmatprep.subr.bf16.mxu0 0
    %2711 = vmatpush1.bf16.msra.mxu0 %v2636
    %2712 = vmatprep.subr.bf16.mxu0 0
    %2713 = vmatpush1.bf16.msra.mxu0 %v2637
    %2714 = vmatprep.subr.bf16.mxu0 0
    %2715 = vmatpush1.bf16.msra.mxu0 %v2638
    %2716 = vmatprep.subr.bf16.mxu0 0
    %2717 = vmatpush1.bf16.msra.mxu0 %v2639
    %2718 = vmatprep.subr.bf16.mxu0 0
    %2719 = vmatpush1.bf16.msra.mxu0 %v2640
    %2720 = vmatprep.subr.bf16.mxu0 0
    %2721 = vmatpush1.bf16.msra.mxu0 %v2641
    %2722 = vmatprep.mubr.bf16.mxu0 %v2488
    %2723 = vmatmul.mubr.bf16.gmra.mrb[0].mxu0 %v2487
    %v2724 = vpop.f32.mrb[0].mxu0
    %v2725 = vadd.f32 %v2496, %v2724
    %v2726 = vpop.f32.mrb[0].mxu0
    %v2727 = vpop.f32.mrb[0].mxu0
    %v2728 = vpop.f32.mrb[0].mxu0
    %2729 = vdwg.mxu0
    %2730 = vmatprep.subr.bf16.mxu0 0
    %2731 = vmatpush1.bf16.msra.mxu0 %v2642
    %2732 = vmatprep.subr.bf16.mxu0 0
    %2733 = vmatpush1.bf16.msra.mxu0 %v2643
    %2734 = vmatprep.subr.bf16.mxu0 0
    %2735 = vmatpush1.bf16.msra.mxu0 %v2644
    %2736 = vmatprep.subr.bf16.mxu0 0
    %2737 = vmatpush1.bf16.msra.mxu0 %v2645
    %2738 = vmatprep.subr.bf16.mxu0 0
    %2739 = vmatpush1.bf16.msra.mxu0 %v2646
    %2740 = vmatprep.subr.bf16.mxu0 0
    %2741 = vmatpush1.bf16.msra.mxu0 %v2647
    %2742 = vmatprep.subr.bf16.mxu0 0
    %2743 = vmatpush1.bf16.msra.mxu0 %v2648
    %2744 = vmatprep.subr.bf16.mxu0 0
    %2745 = vmatpush1.bf16.msra.mxu0 %v2649
    %2746 = vmatprep.subr.bf16.mxu0 0
    %2747 = vmatpush1.bf16.msra.mxu0 %v2650
    %2748 = vmatprep.subr.bf16.mxu0 0
    %2749 = vmatpush1.bf16.msra.mxu0 %v2651
    %2750 = vmatprep.subr.bf16.mxu0 0
    %2751 = vmatpush1.bf16.msra.mxu0 %v2652
    %2752 = vmatprep.subr.bf16.mxu0 0
    %2753 = vmatpush1.bf16.msra.mxu0 %v2653
    %2754 = vmatprep.subr.bf16.mxu0 0
    %2755 = vmatpush1.bf16.msra.mxu0 %v2654
    %2756 = vmatprep.subr.bf16.mxu0 0
    %2757 = vmatpush1.bf16.msra.mxu0 %v2655
    %2758 = vmatprep.subr.bf16.mxu0 0
    %2759 = vmatpush1.bf16.msra.mxu0 %v2656
    %2760 = vmatprep.subr.bf16.mxu0 0
    %2761 = vmatpush1.bf16.msra.mxu0 %v2657
    %2762 = vmatprep.mubr.bf16.mxu0 %v2490
    %2763 = vmatmul.mubr.bf16.gmra.mrb[0].mxu0 %v2489
    %v2764 = vpop.f32.mrb[0].mxu0
    %v2765 = vadd.f32 %v2725, %v2764
    %v2766 = vpop.f32.mrb[0].mxu0
    %v2767 = vpop.f32.mrb[0].mxu0
    %v2768 = vpop.f32.mrb[0].mxu0
    %2769 = vdwg.mxu0
    %vm2770 = vcmask 254976
    %2771 = vst.msk [vmem:[#allocation15] sm:$0x3] %vm2770, %v2765
    %2773 = vrot.lane.b32.xlu0 %v2765, 96
    %v2774 = vpop.permute.xlu0 %2773
    %2776 = vst.msk [vmem:[#allocation16] sm:$0x3] %vm2770, %v2774
    %v2777 = vld [vmem:[%s1] sm:$0x3]
    %v2778 = vmul.f32 %v2765, 0.5
    %v2779 = vmul.f32 %v2778, 1.442695
    %v2780 = vpow.pop %v2779
    %2782 = vrot.lane.b32.xlu0 %v2780, 96
    %v2783 = vpop.permute.xlu0 %2782
    %v2785 = vmul.f32 %v2777, %v2783
    %v2786 = vadd.f32 %v2785, %v2765
    %v2787 = vld [vmem:[#allocation9] sm:$0xff]
    %v2788 = vld [vmem:[#allocation9 + $0x8] sm:$0xff]
    %v2789 = vld [vmem:[#allocation9 + $0x10] sm:$0xff]
    %v2790 = vld [vmem:[#allocation9 + $0x18] sm:$0xff]
    %v2791 = vld [vmem:[#allocation9 + $0x20] sm:$0xff]
    %v2792 = vld [vmem:[#allocation9 + $0x28] sm:$0xff]
    %v2793 = vld [vmem:[#allocation9 + $0x30] sm:$0xff]
    %v2794 = vld [vmem:[#allocation9 + $0x38] sm:$0xff]
    %v2795 = vpack.c.bf16 %v2786, %v2786
    %v2796 = vld [vmem:[%s9] sm:$0xf]
    %v2798 = vlaneseq
    %v2799 = vshrl.u32 %v2798, 7
    %v2800 = vsub.s32 0, %v2799
    %v2801 = vrot.slane %v2796, %v2800
    %v2802 = vlaneseq
    %v2803 = vshrl.u32 %v2802, 7
    %v2804 = vsub.s32 1, %v2803
    %v2805 = vrot.slane %v2796, %v2804
    %v2806 = vlaneseq
    %v2807 = vshrl.u32 %v2806, 7
    %v2808 = vsub.s32 2, %v2807
    %v2809 = vrot.slane %v2796, %v2808
    %v2810 = vlaneseq
    %v2811 = vshrl.u32 %v2810, 7
    %v2812 = vsub.s32 3, %v2811
    %v2813 = vrot.slane %v2796, %v2812
    %v2826 = vunpack.c.l.b16 %v2787
    %v2827 = vunpack.c.h.b16 %v2787
    %v2828 = vunpack.c.l.b16 %v2788
    %v2829 = vunpack.c.h.b16 %v2788
    %v2830 = vunpack.c.l.b16 %v2789
    %v2831 = vunpack.c.h.b16 %v2789
    %v2832 = vunpack.c.l.b16 %v2790
    %v2833 = vunpack.c.h.b16 %v2790
    %v2834 = vunpack.c.l.b16 %v2791
    %v2835 = vunpack.c.h.b16 %v2791
    %v2836 = vunpack.c.l.b16 %v2792
    %v2837 = vunpack.c.h.b16 %v2792
    %v2838 = vunpack.c.l.b16 %v2793
    %v2839 = vunpack.c.h.b16 %v2793
    %v2840 = vunpack.c.l.b16 %v2794
    %v2841 = vunpack.c.h.b16 %v2794
    %v2842 = vpack.c.b16 %v2830, %v2826
    %v2843 = vpack.c.b16 %v2831, %v2827
    %v2844 = vpack.c.b16 %v2832, %v2828
    %v2845 = vpack.c.b16 %v2833, %v2829
    %v2846 = vpack.c.b16 %v2838, %v2834
    %v2847 = vpack.c.b16 %v2839, %v2835
    %v2848 = vpack.c.b16 %v2840, %v2836
    %v2849 = vpack.c.b16 %v2841, %v2837
    %v2859 = vsel %vm443, %v2795, 0
    %2861 = vmatprep.subr.bf16.mxu0 %v2843
    %2862 = vmatpush1.bf16.msra.mxu0 %v2842
    %2863 = vmatprep.subr.bf16.mxu0 %v2847
    %2864 = vmatpush1.bf16.msra.mxu0 %v2846
    %2865 = vmatprep.subr.bf16.mxu0 0
    %2866 = vmatpush1.bf16.msra.mxu0 0
    %2867 = vmatprep.subr.bf16.mxu0 0
    %2868 = vmatpush1.bf16.msra.mxu0 0
    %2869 = vmatprep.subr.bf16.mxu0 0
    %2870 = vmatpush1.bf16.msra.mxu0 0
    %2871 = vmatprep.subr.bf16.mxu0 0
    %2872 = vmatpush1.bf16.msra.mxu0 0
    %2873 = vmatprep.subr.bf16.mxu0 0
    %2874 = vmatpush1.bf16.msra.mxu0 0
    %2875 = vmatprep.subr.bf16.mxu0 0
    %2876 = vmatpush1.bf16.msra.mxu0 0
    %2877 = vmatprep.subr.bf16.mxu0 0
    %2878 = vmatpush1.bf16.msra.mxu0 0
    %2879 = vmatprep.subr.bf16.mxu0 0
    %2880 = vmatpush1.bf16.msra.mxu0 0
    %2881 = vmatprep.subr.bf16.mxu0 0
    %2882 = vmatpush1.bf16.msra.mxu0 0
    %2883 = vmatprep.subr.bf16.mxu0 0
    %2884 = vmatpush1.bf16.msra.mxu0 0
    %2885 = vmatprep.subr.bf16.mxu0 0
    %2886 = vmatpush1.bf16.msra.mxu0 0
    %2887 = vmatprep.subr.bf16.mxu0 0
    %2888 = vmatpush1.bf16.msra.mxu0 0
    %2889 = vmatprep.subr.bf16.mxu0 0
    %2890 = vmatpush1.bf16.msra.mxu0 0
    %2891 = vmatprep.subr.bf16.mxu0 0
    %2892 = vmatpush1.bf16.msra.mxu0 0
    %2893 = vmatprep.mubr.bf16.mxu0 0
    %2894 = vmatmul.mubr.bf16.gmra.mrb[0].mxu0 %v2859
    %v2895 = vpop.f32.mrb[0].mxu0
    %v2896 = vadd.f32 %v2801, %v2895
    %v2897 = vpop.f32.mrb[0].mxu0
    %v2898 = vadd.f32 %v2805, %v2897
    %v2899 = vpop.f32.mrb[0].mxu0
    %v2900 = vpop.f32.mrb[0].mxu0
    %2901 = vdwg.mxu0
    %2902 = vmatprep.subr.bf16.mxu0 %v2845
    %2903 = vmatpush1.bf16.msra.mxu0 %v2844
    %2904 = vmatprep.subr.bf16.mxu0 %v2849
    %2905 = vmatpush1.bf16.msra.mxu0 %v2848
    %2906 = vmatprep.subr.bf16.mxu0 0
    %2907 = vmatpush1.bf16.msra.mxu0 0
    %2908 = vmatprep.subr.bf16.mxu0 0
    %2909 = vmatpush1.bf16.msra.mxu0 0
    %2910 = vmatprep.subr.bf16.mxu0 0
    %2911 = vmatpush1.bf16.msra.mxu0 0
    %2912 = vmatprep.subr.bf16.mxu0 0
    %2913 = vmatpush1.bf16.msra.mxu0 0
    %2914 = vmatprep.subr.bf16.mxu0 0
    %2915 = vmatpush1.bf16.msra.mxu0 0
    %2916 = vmatprep.subr.bf16.mxu0 0
    %2917 = vmatpush1.bf16.msra.mxu0 0
    %2918 = vmatprep.subr.bf16.mxu0 0
    %2919 = vmatpush1.bf16.msra.mxu0 0
    %2920 = vmatprep.subr.bf16.mxu0 0
    %2921 = vmatpush1.bf16.msra.mxu0 0
    %2922 = vmatprep.subr.bf16.mxu0 0
    %2923 = vmatpush1.bf16.msra.mxu0 0
    %2924 = vmatprep.subr.bf16.mxu0 0
    %2925 = vmatpush1.bf16.msra.mxu0 0
    %2926 = vmatprep.subr.bf16.mxu0 0
    %2927 = vmatpush1.bf16.msra.mxu0 0
    %2928 = vmatprep.subr.bf16.mxu0 0
    %2929 = vmatpush1.bf16.msra.mxu0 0
    %2930 = vmatprep.subr.bf16.mxu0 0
    %2931 = vmatpush1.bf16.msra.mxu0 0
    %2932 = vmatprep.subr.bf16.mxu0 0
    %2933 = vmatpush1.bf16.msra.mxu0 0
    %2934 = vmatprep.mubr.bf16.mxu0 0
    %2935 = vmatmul.mubr.bf16.gmra.mrb[0].mxu0 %v2859
    %v2936 = vpop.f32.mrb[0].mxu0
    %v2937 = vadd.f32 %v2809, %v2936
    %v2938 = vpop.f32.mrb[0].mxu0
    %v2939 = vadd.f32 %v2813, %v2938
    %v2940 = vpop.f32.mrb[0].mxu0
    %v2941 = vpop.f32.mrb[0].mxu0
    %2942 = vdwg.mxu0
    %v2943 = vmul.u32 %v1520, 2
    %vm2944 = vcmp.eq.s32.totalorder %v1518, %v2943
    %v2945 = vsel %vm2944, 1.0, 0.0
    %v2946 = vpack.c.bf16 %v2945, %v2945
    %v2947 = vpack.c.bf16 %v2896, %v2896
    %v2948 = vpack.c.bf16 %v2898, %v2898
    %v2949 = vadd.s32 %v2943, 1
    %vm2950 = vcmp.eq.s32.totalorder %v1518, %v2949
    %v2951 = vsel %vm2950, 1.0, 0.0
    %v2952 = vpack.c.bf16 %v2951, %v2951
    %v2953 = vpack.c.bf16 %v2937, %v2937
    %v2954 = vpack.c.bf16 %v2939, %v2939
    %vm2955 = vcmask 15360
    %v2957 = vsel %vm2955, %v2952, 0
    %vm2959 = vcmask 1040384
    %v2961 = vsel %vm2959, %v2953, 0
    %v2964 = vsel %vm2959, %v2954, 0
    %2966 = vmatprep.subr.bf16.mxu0 %v2964
    %2967 = vmatpush1.bf16.msra.mxu0 %v2961
    %2968 = vmatprep.subr.bf16.mxu0 0
    %2969 = vmatpush1.bf16.msra.mxu0 0
    %2970 = vmatprep.subr.bf16.mxu0 0
    %2971 = vmatpush1.bf16.msra.mxu0 0
    %2972 = vmatprep.subr.bf16.mxu0 0
    %2973 = vmatpush1.bf16.msra.mxu0 0
    %2974 = vmatprep.subr.bf16.mxu0 0
    %2975 = vmatpush1.bf16.msra.mxu0 0
    %2976 = vmatprep.subr.bf16.mxu0 0
    %2977 = vmatpush1.bf16.msra.mxu0 0
    %2978 = vmatprep.subr.bf16.mxu0 0
    %2979 = vmatpush1.bf16.msra.mxu0 0
    %2980 = vmatprep.subr.bf16.mxu0 0
    %2981 = vmatpush1.bf16.msra.mxu0 0
    %2982 = vmatprep.subr.bf16.mxu0 0
    %2983 = vmatpush1.bf16.msra.mxu0 0
    %2984 = vmatprep.subr.bf16.mxu0 0
    %2985 = vmatpush1.bf16.msra.mxu0 0
    %2986 = vmatprep.subr.bf16.mxu0 0
    %2987 = vmatpush1.bf16.msra.mxu0 0
    %2988 = vmatprep.subr.bf16.mxu0 0
    %2989 = vmatpush1.bf16.msra.mxu0 0
    %2990 = vmatprep.subr.bf16.mxu0 0
    %2991 = vmatpush1.bf16.msra.mxu0 0
    %2992 = vmatprep.subr.bf16.mxu0 0
    %2993 = vmatpush1.bf16.msra.mxu0 0
    %2994 = vmatprep.subr.bf16.mxu0 0
    %2995 = vmatpush1.bf16.msra.mxu0 0
    %2996 = vmatprep.subr.bf16.mxu0 0
    %2997 = vmatpush1.bf16.msra.mxu0 0
    %2998 = vmatprep.mubr.bf16.mxu0 0
    %2999 = vmatmul.mubr.bf16.gmra.mrb[0].mxu0 %v2957
    %v3000 = vpop.f32.mrb[0].mxu0
    %v3001 = vadd.f32 0.0, %v3000
    %v3002 = vpop.f32.mrb[0].mxu0
    %v3003 = vadd.f32 0.0, %v3002
    %v3004 = vpop.f32.mrb[0].mxu0
    %v3005 = vpop.f32.mrb[0].mxu0
    %3006 = vdwg.mxu0
    %v3008 = vsel %vm2955, %v2946, 0
    %v3011 = vsel %vm2959, %v2947, 0
    %v3014 = vsel %vm2959, %v2948, 0
    %3016 = vmatprep.subr.bf16.mxu0 %v3014
    %3017 = vmatpush1.bf16.msra.mxu0 %v3011
    %3018 = vmatprep.subr.bf16.mxu0 0
    %3019 = vmatpush1.bf16.msra.mxu0 0
    %3020 = vmatprep.subr.bf16.mxu0 0
    %3021 = vmatpush1.bf16.msra.mxu0 0
    %3022 = vmatprep.subr.bf16.mxu0 0
    %3023 = vmatpush1.bf16.msra.mxu0 0
    %3024 = vmatprep.subr.bf16.mxu0 0
    %3025 = vmatpush1.bf16.msra.mxu0 0
    %3026 = vmatprep.subr.bf16.mxu0 0
    %3027 = vmatpush1.bf16.msra.mxu0 0
    %3028 = vmatprep.subr.bf16.mxu0 0
    %3029 = vmatpush1.bf16.msra.mxu0 0
    %3030 = vmatprep.subr.bf16.mxu0 0
    %3031 = vmatpush1.bf16.msra.mxu0 0
    %3032 = vmatprep.subr.bf16.mxu0 0
    %3033 = vmatpush1.bf16.msra.mxu0 0
    %3034 = vmatprep.subr.bf16.mxu0 0
    %3035 = vmatpush1.bf16.msra.mxu0 0
    %3036 = vmatprep.subr.bf16.mxu0 0
    %3037 = vmatpush1.bf16.msra.mxu0 0
    %3038 = vmatprep.subr.bf16.mxu0 0
    %3039 = vmatpush1.bf16.msra.mxu0 0
    %3040 = vmatprep.subr.bf16.mxu0 0
    %3041 = vmatpush1.bf16.msra.mxu0 0
    %3042 = vmatprep.subr.bf16.mxu0 0
    %3043 = vmatpush1.bf16.msra.mxu0 0
    %3044 = vmatprep.subr.bf16.mxu0 0
    %3045 = vmatpush1.bf16.msra.mxu0 0
    %3046 = vmatprep.subr.bf16.mxu0 0
    %3047 = vmatpush1.bf16.msra.mxu0 0
    %3048 = vmatprep.mubr.bf16.mxu0 0
    %3049 = vmatmul.mubr.bf16.gmra.mrb[0].mxu0 %v3008
    %v3050 = vpop.f32.mrb[0].mxu0
    %v3051 = vadd.f32 %v3001, %v3050
    %v3052 = vpop.f32.mrb[0].mxu0
    %v3053 = vadd.f32 %v3003, %v3052
    %v3054 = vpop.f32.mrb[0].mxu0
    %v3055 = vpop.f32.mrb[0].mxu0
    %3056 = vdwg.mxu0
    %v3057 = vld [vmem:[#allocation14 + $0x6] sm:$0x5]
    %v3058 = vld [vmem:[#allocation14 + $0x7] sm:$0x5]
    %v3059 = vld [vmem:[#allocation11] sm:$0xff]
    %v3060 = vld [vmem:[#allocation11 + $0x8] sm:$0xff]
    %v3061 = vld [vmem:[#allocation11 + $0x10] sm:$0xff]
    %v3062 = vld [vmem:[#allocation11 + $0x18] sm:$0xff]
    %v3063 = vld [vmem:[#allocation11 + $0x20] sm:$0xff]
    %v3064 = vld [vmem:[#allocation11 + $0x28] sm:$0xff]
    %v3065 = vld [vmem:[#allocation11 + $0x30] sm:$0xff]
    %v3066 = vld [vmem:[#allocation11 + $0x38] sm:$0xff]
    %v3067 = vld [vmem:[#allocation11 + $0x40] sm:$0xff]
    %v3068 = vld [vmem:[#allocation11 + $0x48] sm:$0xff]
    %v3069 = vld [vmem:[#allocation11 + $0x50] sm:$0xff]
    %v3070 = vld [vmem:[#allocation11 + $0x58] sm:$0xff]
    %v3071 = vld [vmem:[#allocation11 + $0x60] sm:$0xff]
    %v3072 = vld [vmem:[#allocation11 + $0x68] sm:$0xff]
    %v3073 = vld [vmem:[#allocation11 + $0x70] sm:$0xff]
    %v3074 = vld [vmem:[#allocation11 + $0x78] sm:$0xff]
    %v3075 = vld [vmem:[#allocation11 + $0x80] sm:$0xff]
    %v3076 = vld [vmem:[#allocation11 + $0x88] sm:$0xff]
    %v3077 = vld [vmem:[#allocation11 + $0x90] sm:$0xff]
    %v3078 = vld [vmem:[#allocation11 + $0x98] sm:$0xff]
    %v3079 = vld [vmem:[#allocation11 + $0xa0] sm:$0xff]
    %v3080 = vld [vmem:[#allocation11 + $0xa8] sm:$0xff]
    %v3081 = vld [vmem:[#allocation11 + $0xb0] sm:$0xff]
    %v3082 = vld [vmem:[#allocation11 + $0xb8] sm:$0xff]
    %v3083 = vld [vmem:[#allocation11 + $0xc0] sm:$0xff]
    %v3084 = vld [vmem:[#allocation11 + $0xc8] sm:$0xff]
    %v3085 = vld [vmem:[#allocation11 + $0xd0] sm:$0xff]
    %v3086 = vld [vmem:[#allocation11 + $0xd8] sm:$0xff]
    %v3087 = vld [vmem:[#allocation11 + $0xe0] sm:$0xff]
    %v3088 = vld [vmem:[#allocation11 + $0xe8] sm:$0xff]
    %v3089 = vld [vmem:[#allocation11 + $0xf0] sm:$0xff]
    %v3090 = vld [vmem:[#allocation11 + $0xf8] sm:$0xff]
    %v3091 = vld [vmem:[#allocation11 + $0x100] sm:$0xff]
    %v3092 = vld [vmem:[#allocation11 + $0x108] sm:$0xff]
    %v3093 = vld [vmem:[#allocation11 + $0x110] sm:$0xff]
    %v3094 = vld [vmem:[#allocation11 + $0x118] sm:$0xff]
    %v3095 = vld [vmem:[#allocation11 + $0x120] sm:$0xff]
    %v3096 = vld [vmem:[#allocation11 + $0x128] sm:$0xff]
    %v3097 = vld [vmem:[#allocation11 + $0x130] sm:$0xff]
    %v3098 = vld [vmem:[#allocation11 + $0x138] sm:$0xff]
    %v3099 = vld [vmem:[#allocation11 + $0x140] sm:$0xff]
    %v3100 = vld [vmem:[#allocation11 + $0x148] sm:$0xff]
    %v3101 = vld [vmem:[#allocation11 + $0x150] sm:$0xff]
    %v3102 = vld [vmem:[#allocation11 + $0x158] sm:$0xff]
    %v3103 = vld [vmem:[#allocation11 + $0x160] sm:$0xff]
    %v3104 = vld [vmem:[#allocation11 + $0x168] sm:$0xff]
    %v3105 = vld [vmem:[#allocation11 + $0x170] sm:$0xff]
    %v3106 = vld [vmem:[#allocation11 + $0x178] sm:$0xff]
    %v3107 = vld [vmem:[#allocation11 + $0x180] sm:$0xff]
    %v3108 = vld [vmem:[#allocation11 + $0x188] sm:$0xff]
    %v3109 = vld [vmem:[#allocation11 + $0x190] sm:$0xff]
    %v3110 = vld [vmem:[#allocation11 + $0x198] sm:$0xff]
    %v3111 = vld [vmem:[#allocation11 + $0x1a0] sm:$0xff]
    %v3112 = vld [vmem:[#allocation11 + $0x1a8] sm:$0xff]
    %v3113 = vld [vmem:[#allocation11 + $0x1b0] sm:$0xff]
    %v3114 = vld [vmem:[#allocation11 + $0x1b8] sm:$0xff]
    %v3115 = vld [vmem:[#allocation11 + $0x1c0] sm:$0xff]
    %v3116 = vld [vmem:[#allocation11 + $0x1c8] sm:$0xff]
    %v3117 = vld [vmem:[#allocation11 + $0x1d0] sm:$0xff]
    %v3118 = vld [vmem:[#allocation11 + $0x1d8] sm:$0xff]
    %v3119 = vld [vmem:[#allocation11 + $0x1e0] sm:$0xff]
    %v3120 = vld [vmem:[#allocation11 + $0x1e8] sm:$0xff]
    %v3121 = vld [vmem:[#allocation11 + $0x1f0] sm:$0xff]
    %v3122 = vld [vmem:[#allocation11 + $0x1f8] sm:$0xff]
    %v3123 = vpack.c.bf16 %v3051, %v3051
    %v3124 = vpack.c.bf16 %v3053, %v3053
    %v3189 = vunpack.c.l.b16 %v3059
    %v3190 = vunpack.c.h.b16 %v3059
    %v3191 = vunpack.c.l.b16 %v3060
    %v3192 = vunpack.c.h.b16 %v3060
    %v3193 = vunpack.c.l.b16 %v3061
    %v3194 = vunpack.c.h.b16 %v3061
    %v3195 = vunpack.c.l.b16 %v3062
    %v3196 = vunpack.c.h.b16 %v3062
    %v3197 = vunpack.c.l.b16 %v3063
    %v3198 = vunpack.c.h.b16 %v3063
    %v3199 = vunpack.c.l.b16 %v3064
    %v3200 = vunpack.c.h.b16 %v3064
    %v3201 = vunpack.c.l.b16 %v3065
    %v3202 = vunpack.c.h.b16 %v3065
    %v3203 = vunpack.c.l.b16 %v3066
    %v3204 = vunpack.c.h.b16 %v3066
    %v3205 = vunpack.c.l.b16 %v3067
    %v3206 = vunpack.c.h.b16 %v3067
    %v3207 = vunpack.c.l.b16 %v3068
    %v3208 = vunpack.c.h.b16 %v3068
    %v3209 = vunpack.c.l.b16 %v3069
    %v3210 = vunpack.c.h.b16 %v3069
    %v3211 = vunpack.c.l.b16 %v3070
    %v3212 = vunpack.c.h.b16 %v3070
    %v3213 = vunpack.c.l.b16 %v3071
    %v3214 = vunpack.c.h.b16 %v3071
    %v3215 = vunpack.c.l.b16 %v3072
    %v3216 = vunpack.c.h.b16 %v3072
    %v3217 = vunpack.c.l.b16 %v3073
    %v3218 = vunpack.c.h.b16 %v3073
    %v3219 = vunpack.c.l.b16 %v3074
    %v3220 = vunpack.c.h.b16 %v3074
    %v3221 = vunpack.c.l.b16 %v3075
    %v3222 = vunpack.c.h.b16 %v3075
    %v3223 = vunpack.c.l.b16 %v3076
    %v3224 = vunpack.c.h.b16 %v3076
    %v3225 = vunpack.c.l.b16 %v3077
    %v3226 = vunpack.c.h.b16 %v3077
    %v3227 = vunpack.c.l.b16 %v3078
    %v3228 = vunpack.c.h.b16 %v3078
    %v3229 = vunpack.c.l.b16 %v3079
    %v3230 = vunpack.c.h.b16 %v3079
    %v3231 = vunpack.c.l.b16 %v3080
    %v3232 = vunpack.c.h.b16 %v3080
    %v3233 = vunpack.c.l.b16 %v3081
    %v3234 = vunpack.c.h.b16 %v3081
    %v3235 = vunpack.c.l.b16 %v3082
    %v3236 = vunpack.c.h.b16 %v3082
    %v3237 = vunpack.c.l.b16 %v3083
    %v3238 = vunpack.c.h.b16 %v3083
    %v3239 = vunpack.c.l.b16 %v3084
    %v3240 = vunpack.c.h.b16 %v3084
    %v3241 = vunpack.c.l.b16 %v3085
    %v3242 = vunpack.c.h.b16 %v3085
    %v3243 = vunpack.c.l.b16 %v3086
    %v3244 = vunpack.c.h.b16 %v3086
    %v3245 = vunpack.c.l.b16 %v3087
    %v3246 = vunpack.c.h.b16 %v3087
    %v3247 = vunpack.c.l.b16 %v3088
    %v3248 = vunpack.c.h.b16 %v3088
    %v3249 = vunpack.c.l.b16 %v3089
    %v3250 = vunpack.c.h.b16 %v3089
    %v3251 = vunpack.c.l.b16 %v3090
    %v3252 = vunpack.c.h.b16 %v3090
    %v3253 = vunpack.c.l.b16 %v3091
    %v3254 = vunpack.c.h.b16 %v3091
    %v3255 = vunpack.c.l.b16 %v3092
    %v3256 = vunpack.c.h.b16 %v3092
    %v3257 = vunpack.c.l.b16 %v3093
    %v3258 = vunpack.c.h.b16 %v3093
    %v3259 = vunpack.c.l.b16 %v3094
    %v3260 = vunpack.c.h.b16 %v3094
    %v3261 = vunpack.c.l.b16 %v3095
    %v3262 = vunpack.c.h.b16 %v3095
    %v3263 = vunpack.c.l.b16 %v3096
    %v3264 = vunpack.c.h.b16 %v3096
    %v3265 = vunpack.c.l.b16 %v3097
    %v3266 = vunpack.c.h.b16 %v3097
    %v3267 = vunpack.c.l.b16 %v3098
    %v3268 = vunpack.c.h.b16 %v3098
    %v3269 = vunpack.c.l.b16 %v3099
    %v3270 = vunpack.c.h.b16 %v3099
    %v3271 = vunpack.c.l.b16 %v3100
    %v3272 = vunpack.c.h.b16 %v3100
    %v3273 = vunpack.c.l.b16 %v3101
    %v3274 = vunpack.c.h.b16 %v3101
    %v3275 = vunpack.c.l.b16 %v3102
    %v3276 = vunpack.c.h.b16 %v3102
    %v3277 = vunpack.c.l.b16 %v3103
    %v3278 = vunpack.c.h.b16 %v3103
    %v3279 = vunpack.c.l.b16 %v3104
    %v3280 = vunpack.c.h.b16 %v3104
    %v3281 = vunpack.c.l.b16 %v3105
    %v3282 = vunpack.c.h.b16 %v3105
    %v3283 = vunpack.c.l.b16 %v3106
    %v3284 = vunpack.c.h.b16 %v3106
    %v3285 = vunpack.c.l.b16 %v3107
    %v3286 = vunpack.c.h.b16 %v3107
    %v3287 = vunpack.c.l.b16 %v3108
    %v3288 = vunpack.c.h.b16 %v3108
    %v3289 = vunpack.c.l.b16 %v3109
    %v3290 = vunpack.c.h.b16 %v3109
    %v3291 = vunpack.c.l.b16 %v3110
    %v3292 = vunpack.c.h.b16 %v3110
    %v3293 = vunpack.c.l.b16 %v3111
    %v3294 = vunpack.c.h.b16 %v3111
    %v3295 = vunpack.c.l.b16 %v3112
    %v3296 = vunpack.c.h.b16 %v3112
    %v3297 = vunpack.c.l.b16 %v3113
    %v3298 = vunpack.c.h.b16 %v3113
    %v3299 = vunpack.c.l.b16 %v3114
    %v3300 = vunpack.c.h.b16 %v3114
    %v3301 = vunpack.c.l.b16 %v3115
    %v3302 = vunpack.c.h.b16 %v3115
    %v3303 = vunpack.c.l.b16 %v3116
    %v3304 = vunpack.c.h.b16 %v3116
    %v3305 = vunpack.c.l.b16 %v3117
    %v3306 = vunpack.c.h.b16 %v3117
    %v3307 = vunpack.c.l.b16 %v3118
    %v3308 = vunpack.c.h.b16 %v3118
    %v3309 = vunpack.c.l.b16 %v3119
    %v3310 = vunpack.c.h.b16 %v3119
    %v3311 = vunpack.c.l.b16 %v3120
    %v3312 = vunpack.c.h.b16 %v3120
    %v3313 = vunpack.c.l.b16 %v3121
    %v3314 = vunpack.c.h.b16 %v3121
    %v3315 = vunpack.c.l.b16 %v3122
    %v3316 = vunpack.c.h.b16 %v3122
    %v3317 = vpack.c.b16 %v3193, %v3189
    %v3318 = vpack.c.b16 %v3194, %v3190
    %v3319 = vpack.c.b16 %v3195, %v3191
    %v3320 = vpack.c.b16 %v3196, %v3192
    %v3321 = vpack.c.b16 %v3201, %v3197
    %v3322 = vpack.c.b16 %v3202, %v3198
    %v3323 = vpack.c.b16 %v3203, %v3199
    %v3324 = vpack.c.b16 %v3204, %v3200
    %v3325 = vpack.c.b16 %v3209, %v3205
    %v3326 = vpack.c.b16 %v3210, %v3206
    %v3327 = vpack.c.b16 %v3211, %v3207
    %v3328 = vpack.c.b16 %v3212, %v3208
    %v3329 = vpack.c.b16 %v3217, %v3213
    %v3330 = vpack.c.b16 %v3218, %v3214
    %v3331 = vpack.c.b16 %v3219, %v3215
    %v3332 = vpack.c.b16 %v3220, %v3216
    %v3333 = vpack.c.b16 %v3225, %v3221
    %v3334 = vpack.c.b16 %v3226, %v3222
    %v3335 = vpack.c.b16 %v3227, %v3223
    %v3336 = vpack.c.b16 %v3228, %v3224
    %v3337 = vpack.c.b16 %v3233, %v3229
    %v3338 = vpack.c.b16 %v3234, %v3230
    %v3339 = vpack.c.b16 %v3235, %v3231
    %v3340 = vpack.c.b16 %v3236, %v3232
    %v3341 = vpack.c.b16 %v3241, %v3237
    %v3342 = vpack.c.b16 %v3242, %v3238
    %v3343 = vpack.c.b16 %v3243, %v3239
    %v3344 = vpack.c.b16 %v3244, %v3240
    %v3345 = vpack.c.b16 %v3249, %v3245
    %v3346 = vpack.c.b16 %v3250, %v3246
    %v3347 = vpack.c.b16 %v3251, %v3247
    %v3348 = vpack.c.b16 %v3252, %v3248
    %v3349 = vpack.c.b16 %v3257, %v3253
    %v3350 = vpack.c.b16 %v3258, %v3254
    %v3351 = vpack.c.b16 %v3259, %v3255
    %v3352 = vpack.c.b16 %v3260, %v3256
    %v3353 = vpack.c.b16 %v3265, %v3261
    %v3354 = vpack.c.b16 %v3266, %v3262
    %v3355 = vpack.c.b16 %v3267, %v3263
    %v3356 = vpack.c.b16 %v3268, %v3264
    %v3357 = vpack.c.b16 %v3273, %v3269
    %v3358 = vpack.c.b16 %v3274, %v3270
    %v3359 = vpack.c.b16 %v3275, %v3271
    %v3360 = vpack.c.b16 %v3276, %v3272
    %v3361 = vpack.c.b16 %v3281, %v3277
    %v3362 = vpack.c.b16 %v3282, %v3278
    %v3363 = vpack.c.b16 %v3283, %v3279
    %v3364 = vpack.c.b16 %v3284, %v3280
    %v3365 = vpack.c.b16 %v3289, %v3285
    %v3366 = vpack.c.b16 %v3290, %v3286
    %v3367 = vpack.c.b16 %v3291, %v3287
    %v3368 = vpack.c.b16 %v3292, %v3288
    %v3369 = vpack.c.b16 %v3297, %v3293
    %v3370 = vpack.c.b16 %v3298, %v3294
    %v3371 = vpack.c.b16 %v3299, %v3295
    %v3372 = vpack.c.b16 %v3300, %v3296
    %v3373 = vpack.c.b16 %v3305, %v3301
    %v3374 = vpack.c.b16 %v3306, %v3302
    %v3375 = vpack.c.b16 %v3307, %v3303
    %v3376 = vpack.c.b16 %v3308, %v3304
    %v3377 = vpack.c.b16 %v3313, %v3309
    %v3378 = vpack.c.b16 %v3314, %v3310
    %v3379 = vpack.c.b16 %v3315, %v3311
    %v3380 = vpack.c.b16 %v3316, %v3312
    %3445 = vmatprep.subr.bf16.mxu0 %v3318
    %3446 = vmatpush1.bf16.msra.mxu0 %v3317
    %3447 = vmatprep.subr.bf16.mxu0 %v3322
    %3448 = vmatpush1.bf16.msra.mxu0 %v3321
    %3449 = vmatprep.subr.bf16.mxu0 %v3326
    %3450 = vmatpush1.bf16.msra.mxu0 %v3325
    %3451 = vmatprep.subr.bf16.mxu0 %v3330
    %3452 = vmatpush1.bf16.msra.mxu0 %v3329
    %3453 = vmatprep.subr.bf16.mxu0 %v3334
    %3454 = vmatpush1.bf16.msra.mxu0 %v3333
    %3455 = vmatprep.subr.bf16.mxu0 %v3338
    %3456 = vmatpush1.bf16.msra.mxu0 %v3337
    %3457 = vmatprep.subr.bf16.mxu0 %v3342
    %3458 = vmatpush1.bf16.msra.mxu0 %v3341
    %3459 = vmatprep.subr.bf16.mxu0 %v3346
    %3460 = vmatpush1.bf16.msra.mxu0 %v3345
    %3461 = vmatprep.subr.bf16.mxu0 %v3350
    %3462 = vmatpush1.bf16.msra.mxu0 %v3349
    %3463 = vmatprep.subr.bf16.mxu0 %v3354
    %3464 = vmatpush1.bf16.msra.mxu0 %v3353
    %3465 = vmatprep.subr.bf16.mxu0 %v3358
    %3466 = vmatpush1.bf16.msra.mxu0 %v3357
    %3467 = vmatprep.subr.bf16.mxu0 %v3362
    %3468 = vmatpush1.bf16.msra.mxu0 %v3361
    %3469 = vmatprep.subr.bf16.mxu0 %v3366
    %3470 = vmatpush1.bf16.msra.mxu0 %v3365
    %3471 = vmatprep.subr.bf16.mxu0 %v3370
    %3472 = vmatpush1.bf16.msra.mxu0 %v3369
    %3473 = vmatprep.subr.bf16.mxu0 %v3374
    %3474 = vmatpush1.bf16.msra.mxu0 %v3373
    %3475 = vmatprep.subr.bf16.mxu0 %v3378
    %3476 = vmatpush1.bf16.msra.mxu0 %v3377
    %3477 = vmatprep.mubr.bf16.mxu0 %v3124
    %3478 = vmatmul.mubr.bf16.gmra.mrb[0].mxu0 %v3123
    %v3479 = vpop.f32.mrb[0].mxu0
    %v3480 = vadd.f32 0.0, %v3479
    %v3481 = vpop.f32.mrb[0].mxu0
    %v3482 = vadd.f32 0.0, %v3481
    %v3483 = vpop.f32.mrb[0].mxu0
    %v3484 = vpop.f32.mrb[0].mxu0
    %3485 = vdwg.mxu0
    %3486 = vmatprep.subr.bf16.mxu0 %v3320
    %3487 = vmatpush1.bf16.msra.mxu0 %v3319
    %3488 = vmatprep.subr.bf16.mxu0 %v3324
    %3489 = vmatpush1.bf16.msra.mxu0 %v3323
    %3490 = vmatprep.subr.bf16.mxu0 %v3328
    %3491 = vmatpush1.bf16.msra.mxu0 %v3327
    %3492 = vmatprep.subr.bf16.mxu0 %v3332
    %3493 = vmatpush1.bf16.msra.mxu0 %v3331
    %3494 = vmatprep.subr.bf16.mxu0 %v3336
    %3495 = vmatpush1.bf16.msra.mxu0 %v3335
    %3496 = vmatprep.subr.bf16.mxu0 %v3340
    %3497 = vmatpush1.bf16.msra.mxu0 %v3339
    %3498 = vmatprep.subr.bf16.mxu0 %v3344
    %3499 = vmatpush1.bf16.msra.mxu0 %v3343
    %3500 = vmatprep.subr.bf16.mxu0 %v3348
    %3501 = vmatpush1.bf16.msra.mxu0 %v3347
    %3502 = vmatprep.subr.bf16.mxu0 %v3352
    %3503 = vmatpush1.bf16.msra.mxu0 %v3351
    %3504 = vmatprep.subr.bf16.mxu0 %v3356
    %3505 = vmatpush1.bf16.msra.mxu0 %v3355
    %3506 = vmatprep.subr.bf16.mxu0 %v3360
    %3507 = vmatpush1.bf16.msra.mxu0 %v3359
    %3508 = vmatprep.subr.bf16.mxu0 %v3364
    %3509 = vmatpush1.bf16.msra.mxu0 %v3363
    %3510 = vmatprep.subr.bf16.mxu0 %v3368
    %3511 = vmatpush1.bf16.msra.mxu0 %v3367
    %3512 = vmatprep.subr.bf16.mxu0 %v3372
    %3513 = vmatpush1.bf16.msra.mxu0 %v3371
    %3514 = vmatprep.subr.bf16.mxu0 %v3376
    %3515 = vmatpush1.bf16.msra.mxu0 %v3375
    %3516 = vmatprep.subr.bf16.mxu0 %v3380
    %3517 = vmatpush1.bf16.msra.mxu0 %v3379
    %3518 = vmatprep.mubr.bf16.mxu0 %v3124
    %3519 = vmatmul.mubr.bf16.gmra.mrb[0].mxu0 %v3123
    %v3520 = vpop.f32.mrb[0].mxu0
    %v3521 = vadd.f32 0.0, %v3520
    %v3522 = vpop.f32.mrb[0].mxu0
    %v3523 = vadd.f32 0.0, %v3522
    %v3524 = vpop.f32.mrb[0].mxu0
    %v3525 = vpop.f32.mrb[0].mxu0
    %3526 = vdwg.mxu0
    %v3527 = vsel %vm2184, %v3480, 0.0
    %v3528 = vrot.slane %v3527, 4
    %v3529 = vadd.f32 %v3527, %v3528
    %v3530 = vrot.slane %v3529, 2
    %v3531 = vadd.f32 %v3529, %v3530
    %v3532 = vrot.slane %v3531, 1
    %v3533 = vadd.f32 %v3531, %v3532
    %v3534 = vsel %vm2184, %v3482, 0.0
    %v3535 = vrot.slane %v3534, 4
    %v3536 = vadd.f32 %v3534, %v3535
    %v3537 = vrot.slane %v3536, 2
    %v3538 = vadd.f32 %v3536, %v3537
    %v3539 = vrot.slane %v3538, 1
    %v3540 = vadd.f32 %v3538, %v3539
    %v3541 = vsel %vm2184, %v3521, 0.0
    %v3542 = vrot.slane %v3541, 4
    %v3543 = vadd.f32 %v3541, %v3542
    %v3544 = vrot.slane %v3543, 2
    %v3545 = vadd.f32 %v3543, %v3544
    %v3546 = vrot.slane %v3545, 1
    %v3547 = vadd.f32 %v3545, %v3546
    %v3548 = vsel %vm2184, %v3523, 0.0
    %v3549 = vrot.slane %v3548, 4
    %v3550 = vadd.f32 %v3548, %v3549
    %v3551 = vrot.slane %v3550, 2
    %v3552 = vadd.f32 %v3550, %v3551
    %v3553 = vrot.slane %v3552, 1
    %v3554 = vadd.f32 %v3552, %v3553
    %v3555 = vadd.f32 %v3533, %v3540
    %v3556 = vadd.f32 %v3555, %v3547
    %v3557 = vadd.f32 %v3556, %v3554
    %v3558 = vmul.f32 %v3557, %v1428
    %v3559 = vlaneseq
    %v3560 = vshrl.u32 %v3559, 7
    %v3561 = vsub.s32 0, %v3560
    %v3562 = vrot.slane %v3558, %v3561
    %v3563 = vsub.f32 %v3480, %v3562
    %v3564 = vsub.f32 %v3482, %v3562
    %v3565 = vsub.f32 %v3521, %v3562
    %v3566 = vsub.f32 %v3523, %v3562
    %v3567 = vmul.f32 %v3563, %v3563
    %v3568 = vmul.f32 %v3564, %v3564
    %v3569 = vmul.f32 %v3565, %v3565
    %v3570 = vmul.f32 %v3566, %v3566
    %v3571 = vsel %vm2184, %v3567, 0.0
    %v3572 = vrot.slane %v3571, 4
    %v3573 = vadd.f32 %v3571, %v3572
    %v3574 = vrot.slane %v3573, 2
    %v3575 = vadd.f32 %v3573, %v3574
    %v3576 = vrot.slane %v3575, 1
    %v3577 = vadd.f32 %v3575, %v3576
    %v3578 = vsel %vm2184, %v3568, 0.0
    %v3579 = vrot.slane %v3578, 4
    %v3580 = vadd.f32 %v3578, %v3579
    %v3581 = vrot.slane %v3580, 2
    %v3582 = vadd.f32 %v3580, %v3581
    %v3583 = vrot.slane %v3582, 1
    %v3584 = vadd.f32 %v3582, %v3583
    %v3585 = vsel %vm2184, %v3569, 0.0
    %v3586 = vrot.slane %v3585, 4
    %v3587 = vadd.f32 %v3585, %v3586
    %v3588 = vrot.slane %v3587, 2
    %v3589 = vadd.f32 %v3587, %v3588
    %v3590 = vrot.slane %v3589, 1
    %v3591 = vadd.f32 %v3589, %v3590
    %v3592 = vsel %vm2184, %v3570, 0.0
    %v3593 = vrot.slane %v3592, 4
    %v3594 = vadd.f32 %v3592, %v3593
    %v3595 = vrot.slane %v3594, 2
    %v3596 = vadd.f32 %v3594, %v3595
    %v3597 = vrot.slane %v3596, 1
    %v3598 = vadd.f32 %v3596, %v3597
    %v3599 = vadd.f32 %v3577, %v3584
    %v3600 = vadd.f32 %v3599, %v3591
    %v3601 = vadd.f32 %v3600, %v3598
    %v3602 = vmul.f32 %v3601, %v1428
    %v3603 = vadd.f32 %v3602, 1e-05
    %v3604 = vrsqrt.pop %v3603
    %v3606 = vlaneseq
    %v3607 = vshrl.u32 %v3606, 7
    %v3608 = vsub.s32 0, %v3607
    %v3609 = vrot.slane %v3057, %v3608
    %v3610 = vlaneseq
    %v3611 = vshrl.u32 %v3610, 7
    %v3612 = vsub.s32 2, %v3611
    %v3613 = vrot.slane %v3057, %v3612
    %3614 = vrot.lane.b32.xlu0 %v3609, 32
    %v3615 = vpop.permute.xlu0 %3614
    %3616 = vrot.lane.b32.xlu0 %v3613, 32
    %v3617 = vpop.permute.xlu0 %3616
    %v3618 = vsel %vm443, %v3615, %v3617
    %v3620 = vmul.f32 %v3604, %v3618
    %v3621 = vmul.f32 %v3558, %v3620
    %v3624 = vunpack.c.l.s4 1983009808
    %v3625 = vunpack.c.0.s8 %v3624
    %v3626 = vlaneseq
    %v3627 = vshrl.u32 %v3626, 7
    %v3628 = vsub.s32 %v3625, %v3627
    %v3629 = vrot.slane %v3621, %v3628
    %3630 = vrot.lane.b32.xlu0 %v3629, 96
    %v3631 = vpop.permute.xlu0 %3630
    %v3632 = vrot.slane %v3631, 6
    %v3633 = vsel %vm446, %v3632, %v3631
    %v3635 = vsub.f32 %v3058, %v3633
    %v3636 = vlaneseq
    %v3637 = vshrl.u32 %v3636, 7
    %v3638 = vsub.s32 0, %v3637
    %v3639 = vrot.slane %v3620, %v3638
    %v3640 = vmul.f32 %v3480, %v3639
    %v3641 = vmul.f32 %v3482, %v3639
    %v3642 = vmul.f32 %v3521, %v3639
    %v3643 = vmul.f32 %v3523, %v3639
    %v3645 = vlaneseq
    %v3646 = vshrl.u32 %v3645, 7
    %v3647 = vsub.s32 0, %v3646
    %v3648 = vrot.slane %v3635, %v3647
    %v3649 = vlaneseq
    %v3650 = vshrl.u32 %v3649, 7
    %v3651 = vsub.s32 2, %v3650
    %v3652 = vrot.slane %v3635, %v3651
    %3653 = vrot.lane.b32.xlu0 %v3648, 32
    %v3654 = vpop.permute.xlu0 %3653
    %3655 = vrot.lane.b32.xlu0 %v3652, 32
    %v3656 = vpop.permute.xlu0 %3655
    %v3657 = vsel %vm443, %v3654, %v3656
    %v3659 = vlaneseq
    %v3660 = vshrl.u32 %v3659, 7
    %v3661 = vsub.s32 0, %v3660
    %v3662 = vrot.slane %v3657, %v3661
    %v3663 = vadd.f32 %v3640, %v3662
    %v3664 = vadd.f32 %v3641, %v3662
    %v3665 = vadd.f32 %v3642, %v3662
    %v3666 = vadd.f32 %v3643, %v3662
    %vm3667 = vcmp.gt.f32.partialorder %v3663, 0.0
    %vm3668 = vcmp.gt.f32.partialorder %v3664, 0.0
    %vm3669 = vcmp.gt.f32.partialorder %v3665, 0.0
    %vm3670 = vcmp.gt.f32.partialorder %v3666, 0.0
    %v3671 = vmul.f32 %v3663, 0.01
    %v3672 = vmul.f32 %v3664, 0.01
    %v3673 = vmul.f32 %v3665, 0.01
    %v3674 = vmul.f32 %v3666, 0.01
    %v3675 = vsel %vm3667, %v3663, %v3671
    %v3676 = vsel %vm3668, %v3664, %v3672
    %v3677 = vsel %vm3669, %v3665, %v3673
    %v3678 = vsel %vm3670, %v3666, %v3674
    %v3679 = vpack.c.bf16 %v3675, %v3675
    %v3680 = vpack.c.bf16 %v3676, %v3676
    %v3681 = vpack.c.bf16 %v3677, %v3677
    %v3682 = vpack.c.bf16 %v3678, %v3678
    %v3683 = vadd.s32 %v1518, 8
    %v3684 = vmul.u32 %v1520, 4
    %vm3685 = vcmp.eq.s32.totalorder %v1518, %v3684
    %vm3686 = vcmp.eq.s32.totalorder %v3683, %v3684
    %v3687 = vsel %vm3685, 1.0, 0.0
    %v3688 = vsel %vm3686, 1.0, 0.0
    %v3689 = vpack.c.bf16 %v3688, %v3687
    %v3690 = vadd.s32 %v3684, 1
    %vm3691 = vcmp.eq.s32.totalorder %v1518, %v3690
    %vm3692 = vcmp.eq.s32.totalorder %v3683, %v3690
    %v3693 = vsel %vm3691, 1.0, 0.0
    %v3694 = vsel %vm3692, 1.0, 0.0
    %v3695 = vpack.c.bf16 %v3694, %v3693
    %v3697 = vsel %vm2323, %v3695, 0
    %v3700 = vsel %vm2327, %v3680, 0
    %3702 = vmatprep.subr.bf16.mxu0 0
    %3703 = vmatpush1.bf16.msra.mxu0 %v3700
    %3704 = vmatprep.subr.bf16.mxu0 0
    %3705 = vmatpush1.bf16.msra.mxu0 0
    %3706 = vmatprep.subr.bf16.mxu0 0
    %3707 = vmatpush1.bf16.msra.mxu0 0
    %3708 = vmatprep.subr.bf16.mxu0 0
    %3709 = vmatpush1.bf16.msra.mxu0 0
    %3710 = vmatprep.subr.bf16.mxu0 0
    %3711 = vmatpush1.bf16.msra.mxu0 0
    %3712 = vmatprep.subr.bf16.mxu0 0
    %3713 = vmatpush1.bf16.msra.mxu0 0
    %3714 = vmatprep.subr.bf16.mxu0 0
    %3715 = vmatpush1.bf16.msra.mxu0 0
    %3716 = vmatprep.subr.bf16.mxu0 0
    %3717 = vmatpush1.bf16.msra.mxu0 0
    %3718 = vmatprep.subr.bf16.mxu0 0
    %3719 = vmatpush1.bf16.msra.mxu0 0
    %3720 = vmatprep.subr.bf16.mxu0 0
    %3721 = vmatpush1.bf16.msra.mxu0 0
    %3722 = vmatprep.subr.bf16.mxu0 0
    %3723 = vmatpush1.bf16.msra.mxu0 0
    %3724 = vmatprep.subr.bf16.mxu0 0
    %3725 = vmatpush1.bf16.msra.mxu0 0
    %3726 = vmatprep.subr.bf16.mxu0 0
    %3727 = vmatpush1.bf16.msra.mxu0 0
    %3728 = vmatprep.subr.bf16.mxu0 0
    %3729 = vmatpush1.bf16.msra.mxu0 0
    %3730 = vmatprep.subr.bf16.mxu0 0
    %3731 = vmatpush1.bf16.msra.mxu0 0
    %3732 = vmatprep.subr.bf16.mxu0 0
    %3733 = vmatpush1.bf16.msra.mxu0 0
    %3734 = vmatprep.mubr.bf16.mxu0 0
    %3735 = vmatmul.mubr.bf16.gmra.mrb[0].mxu0 %v3697
    %v3736 = vpop.f32.mrb[0].mxu0
    %v3737 = vadd.f32 0.0, %v3736
    %v3738 = vpop.f32.mrb[0].mxu0
    %v3739 = vpop.f32.mrb[0].mxu0
    %v3740 = vadd.f32 0.0, %v3739
    %v3741 = vpop.f32.mrb[0].mxu0
    %3742 = vdwg.mxu0
    %v3744 = vsel %vm2323, %v3689, 0
    %v3747 = vsel %vm2327, %v3679, 0
    %3749 = vmatprep.subr.bf16.mxu0 0
    %3750 = vmatpush1.bf16.msra.mxu0 %v3747
    %3751 = vmatprep.subr.bf16.mxu0 0
    %3752 = vmatpush1.bf16.msra.mxu0 0
    %3753 = vmatprep.subr.bf16.mxu0 0
    %3754 = vmatpush1.bf16.msra.mxu0 0
    %3755 = vmatprep.subr.bf16.mxu0 0
    %3756 = vmatpush1.bf16.msra.mxu0 0
    %3757 = vmatprep.subr.bf16.mxu0 0
    %3758 = vmatpush1.bf16.msra.mxu0 0
    %3759 = vmatprep.subr.bf16.mxu0 0
    %3760 = vmatpush1.bf16.msra.mxu0 0
    %3761 = vmatprep.subr.bf16.mxu0 0
    %3762 = vmatpush1.bf16.msra.mxu0 0
    %3763 = vmatprep.subr.bf16.mxu0 0
    %3764 = vmatpush1.bf16.msra.mxu0 0
    %3765 = vmatprep.subr.bf16.mxu0 0
    %3766 = vmatpush1.bf16.msra.mxu0 0
    %3767 = vmatprep.subr.bf16.mxu0 0
    %3768 = vmatpush1.bf16.msra.mxu0 0
    %3769 = vmatprep.subr.bf16.mxu0 0
    %3770 = vmatpush1.bf16.msra.mxu0 0
    %3771 = vmatprep.subr.bf16.mxu0 0
    %3772 = vmatpush1.bf16.msra.mxu0 0
    %3773 = vmatprep.subr.bf16.mxu0 0
    %3774 = vmatpush1.bf16.msra.mxu0 0
    %3775 = vmatprep.subr.bf16.mxu0 0
    %3776 = vmatpush1.bf16.msra.mxu0 0
    %3777 = vmatprep.subr.bf16.mxu0 0
    %3778 = vmatpush1.bf16.msra.mxu0 0
    %3779 = vmatprep.subr.bf16.mxu0 0
    %3780 = vmatpush1.bf16.msra.mxu0 0
    %3781 = vmatprep.mubr.bf16.mxu0 0
    %3782 = vmatmul.mubr.bf16.gmra.mrb[0].mxu0 %v3744
    %v3783 = vpop.f32.mrb[0].mxu0
    %v3784 = vadd.f32 %v3737, %v3783
    %v3785 = vpop.f32.mrb[0].mxu0
    %v3786 = vpop.f32.mrb[0].mxu0
    %v3787 = vadd.f32 %v3740, %v3786
    %v3788 = vpop.f32.mrb[0].mxu0
    %3789 = vdwg.mxu0
    %v3790 = vadd.s32 %v3684, 2
    %vm3791 = vcmp.eq.s32.totalorder %v1518, %v3790
    %vm3792 = vcmp.eq.s32.totalorder %v3683, %v3790
    %v3793 = vsel %vm3791, 1.0, 0.0
    %v3794 = vsel %vm3792, 1.0, 0.0
    %v3795 = vpack.c.bf16 %v3794, %v3793
    %v3797 = vsel %vm2323, %v3795, 0
    %v3800 = vsel %vm2327, %v3681, 0
    %3802 = vmatprep.subr.bf16.mxu0 0
    %3803 = vmatpush1.bf16.msra.mxu0 %v3800
    %3804 = vmatprep.subr.bf16.mxu0 0
    %3805 = vmatpush1.bf16.msra.mxu0 0
    %3806 = vmatprep.subr.bf16.mxu0 0
    %3807 = vmatpush1.bf16.msra.mxu0 0
    %3808 = vmatprep.subr.bf16.mxu0 0
    %3809 = vmatpush1.bf16.msra.mxu0 0
    %3810 = vmatprep.subr.bf16.mxu0 0
    %3811 = vmatpush1.bf16.msra.mxu0 0
    %3812 = vmatprep.subr.bf16.mxu0 0
    %3813 = vmatpush1.bf16.msra.mxu0 0
    %3814 = vmatprep.subr.bf16.mxu0 0
    %3815 = vmatpush1.bf16.msra.mxu0 0
    %3816 = vmatprep.subr.bf16.mxu0 0
    %3817 = vmatpush1.bf16.msra.mxu0 0
    %3818 = vmatprep.subr.bf16.mxu0 0
    %3819 = vmatpush1.bf16.msra.mxu0 0
    %3820 = vmatprep.subr.bf16.mxu0 0
    %3821 = vmatpush1.bf16.msra.mxu0 0
    %3822 = vmatprep.subr.bf16.mxu0 0
    %3823 = vmatpush1.bf16.msra.mxu0 0
    %3824 = vmatprep.subr.bf16.mxu0 0
    %3825 = vmatpush1.bf16.msra.mxu0 0
    %3826 = vmatprep.subr.bf16.mxu0 0
    %3827 = vmatpush1.bf16.msra.mxu0 0
    %3828 = vmatprep.subr.bf16.mxu0 0
    %3829 = vmatpush1.bf16.msra.mxu0 0
    %3830 = vmatprep.subr.bf16.mxu0 0
    %3831 = vmatpush1.bf16.msra.mxu0 0
    %3832 = vmatprep.subr.bf16.mxu0 0
    %3833 = vmatpush1.bf16.msra.mxu0 0
    %3834 = vmatprep.mubr.bf16.mxu0 0
    %3835 = vmatmul.mubr.bf16.gmra.mrb[0].mxu0 %v3797
    %v3836 = vpop.f32.mrb[0].mxu0
    %v3837 = vadd.f32 0.0, %v3836
    %v3838 = vpop.f32.mrb[0].mxu0
    %v3839 = vpop.f32.mrb[0].mxu0
    %v3840 = vadd.f32 0.0, %v3839
    %v3841 = vpop.f32.mrb[0].mxu0
    %3842 = vdwg.mxu0
    %v3843 = vadd.f32 %v3784, %v3837
    %v3844 = vadd.f32 %v3787, %v3840
    %v3845 = vadd.s32 %v3684, 3
    %vm3846 = vcmp.eq.s32.totalorder %v1518, %v3845
    %vm3847 = vcmp.eq.s32.totalorder %v3683, %v3845
    %v3848 = vsel %vm3846, 1.0, 0.0
    %v3849 = vsel %vm3847, 1.0, 0.0
    %v3850 = vpack.c.bf16 %v3849, %v3848
    %v3852 = vsel %vm2323, %v3850, 0
    %v3855 = vsel %vm2327, %v3682, 0
    %3857 = vmatprep.subr.bf16.mxu0 0
    %3858 = vmatpush1.bf16.msra.mxu0 %v3855
    %3859 = vmatprep.subr.bf16.mxu0 0
    %3860 = vmatpush1.bf16.msra.mxu0 0
    %3861 = vmatprep.subr.bf16.mxu0 0
    %3862 = vmatpush1.bf16.msra.mxu0 0
    %3863 = vmatprep.subr.bf16.mxu0 0
    %3864 = vmatpush1.bf16.msra.mxu0 0
    %3865 = vmatprep.subr.bf16.mxu0 0
    %3866 = vmatpush1.bf16.msra.mxu0 0
    %3867 = vmatprep.subr.bf16.mxu0 0
    %3868 = vmatpush1.bf16.msra.mxu0 0
    %3869 = vmatprep.subr.bf16.mxu0 0
    %3870 = vmatpush1.bf16.msra.mxu0 0
    %3871 = vmatprep.subr.bf16.mxu0 0
    %3872 = vmatpush1.bf16.msra.mxu0 0
    %3873 = vmatprep.subr.bf16.mxu0 0
    %3874 = vmatpush1.bf16.msra.mxu0 0
    %3875 = vmatprep.subr.bf16.mxu0 0
    %3876 = vmatpush1.bf16.msra.mxu0 0
    %3877 = vmatprep.subr.bf16.mxu0 0
    %3878 = vmatpush1.bf16.msra.mxu0 0
    %3879 = vmatprep.subr.bf16.mxu0 0
    %3880 = vmatpush1.bf16.msra.mxu0 0
    %3881 = vmatprep.subr.bf16.mxu0 0
    %3882 = vmatpush1.bf16.msra.mxu0 0
    %3883 = vmatprep.subr.bf16.mxu0 0
    %3884 = vmatpush1.bf16.msra.mxu0 0
    %3885 = vmatprep.subr.bf16.mxu0 0
    %3886 = vmatpush1.bf16.msra.mxu0 0
    %3887 = vmatprep.subr.bf16.mxu0 0
    %3888 = vmatpush1.bf16.msra.mxu0 0
    %3889 = vmatprep.mubr.bf16.mxu0 0
    %3890 = vmatmul.mubr.bf16.gmra.mrb[0].mxu0 %v3852
    %v3891 = vpop.f32.mrb[0].mxu0
    %v3892 = vadd.f32 0.0, %v3891
    %v3893 = vpop.f32.mrb[0].mxu0
    %v3894 = vpop.f32.mrb[0].mxu0
    %v3895 = vadd.f32 0.0, %v3894
    %v3896 = vpop.f32.mrb[0].mxu0
    %3897 = vdwg.mxu0
    %v3898 = vadd.f32 %v3843, %v3892
    %v3899 = vadd.f32 %v3844, %v3895
    %v3900 = vld [vmem:[#allocation14 + $0x8] sm:$0x5]
    %v3901 = vld [vmem:[#allocation14 + $0x9] sm:$0x5]
    %v3902 = vld [vmem:[#allocation12] sm:$0xff]
    %v3903 = vld [vmem:[#allocation12 + $0x8] sm:$0xff]
    %v3904 = vld [vmem:[#allocation12 + $0x10] sm:$0xff]
    %v3905 = vld [vmem:[#allocation12 + $0x18] sm:$0xff]
    %v3906 = vld [vmem:[#allocation12 + $0x20] sm:$0xff]
    %v3907 = vld [vmem:[#allocation12 + $0x28] sm:$0xff]
    %v3908 = vld [vmem:[#allocation12 + $0x30] sm:$0xff]
    %v3909 = vld [vmem:[#allocation12 + $0x38] sm:$0xff]
    %v3910 = vld [vmem:[#allocation12 + $0x40] sm:$0xff]
    %v3911 = vld [vmem:[#allocation12 + $0x48] sm:$0xff]
    %v3912 = vld [vmem:[#allocation12 + $0x50] sm:$0xff]
    %v3913 = vld [vmem:[#allocation12 + $0x58] sm:$0xff]
    %v3914 = vld [vmem:[#allocation12 + $0x60] sm:$0xff]
    %v3915 = vld [vmem:[#allocation12 + $0x68] sm:$0xff]
    %v3916 = vld [vmem:[#allocation12 + $0x70] sm:$0xff]
    %v3917 = vld [vmem:[#allocation12 + $0x78] sm:$0xff]
    %v3918 = vpack.c.bf16 %v3899, %v3898
    %v3935 = vunpack.c.l.b16 %v3902
    %v3936 = vunpack.c.h.b16 %v3902
    %v3937 = vunpack.c.l.b16 %v3903
    %v3938 = vunpack.c.h.b16 %v3903
    %v3939 = vunpack.c.l.b16 %v3904
    %v3940 = vunpack.c.h.b16 %v3904
    %v3941 = vunpack.c.l.b16 %v3905
    %v3942 = vunpack.c.h.b16 %v3905
    %v3943 = vunpack.c.l.b16 %v3906
    %v3944 = vunpack.c.h.b16 %v3906
    %v3945 = vunpack.c.l.b16 %v3907
    %v3946 = vunpack.c.h.b16 %v3907
    %v3947 = vunpack.c.l.b16 %v3908
    %v3948 = vunpack.c.h.b16 %v3908
    %v3949 = vunpack.c.l.b16 %v3909
    %v3950 = vunpack.c.h.b16 %v3909
    %v3951 = vunpack.c.l.b16 %v3910
    %v3952 = vunpack.c.h.b16 %v3910
    %v3953 = vunpack.c.l.b16 %v3911
    %v3954 = vunpack.c.h.b16 %v3911
    %v3955 = vunpack.c.l.b16 %v3912
    %v3956 = vunpack.c.h.b16 %v3912
    %v3957 = vunpack.c.l.b16 %v3913
    %v3958 = vunpack.c.h.b16 %v3913
    %v3959 = vunpack.c.l.b16 %v3914
    %v3960 = vunpack.c.h.b16 %v3914
    %v3961 = vunpack.c.l.b16 %v3915
    %v3962 = vunpack.c.h.b16 %v3915
    %v3963 = vunpack.c.l.b16 %v3916
    %v3964 = vunpack.c.h.b16 %v3916
    %v3965 = vunpack.c.l.b16 %v3917
    %v3966 = vunpack.c.h.b16 %v3917
    %v3967 = vpack.c.b16 %v3937, %v3935
    %v3968 = vpack.c.b16 %v3938, %v3936
    %v3969 = vpack.c.b16 %v3941, %v3939
    %v3970 = vpack.c.b16 %v3942, %v3940
    %v3971 = vpack.c.b16 %v3945, %v3943
    %v3972 = vpack.c.b16 %v3946, %v3944
    %v3973 = vpack.c.b16 %v3949, %v3947
    %v3974 = vpack.c.b16 %v3950, %v3948
    %v3975 = vpack.c.b16 %v3953, %v3951
    %v3976 = vpack.c.b16 %v3954, %v3952
    %v3977 = vpack.c.b16 %v3957, %v3955
    %v3978 = vpack.c.b16 %v3958, %v3956
    %v3979 = vpack.c.b16 %v3961, %v3959
    %v3980 = vpack.c.b16 %v3962, %v3960
    %v3981 = vpack.c.b16 %v3965, %v3963
    %v3982 = vpack.c.b16 %v3966, %v3964
    %3999 = vmatprep.subr.bf16.mxu0 %v3968
    %4000 = vmatpush1.bf16.msra.mxu0 %v3967
    %4001 = vmatprep.subr.bf16.mxu0 %v3970
    %4002 = vmatpush1.bf16.msra.mxu0 %v3969
    %4003 = vmatprep.subr.bf16.mxu0 %v3972
    %4004 = vmatpush1.bf16.msra.mxu0 %v3971
    %4005 = vmatprep.subr.bf16.mxu0 %v3974
    %4006 = vmatpush1.bf16.msra.mxu0 %v3973
    %4007 = vmatprep.subr.bf16.mxu0 %v3976
    %4008 = vmatpush1.bf16.msra.mxu0 %v3975
    %4009 = vmatprep.subr.bf16.mxu0 %v3978
    %4010 = vmatpush1.bf16.msra.mxu0 %v3977
    %4011 = vmatprep.subr.bf16.mxu0 %v3980
    %4012 = vmatpush1.bf16.msra.mxu0 %v3979
    %4013 = vmatprep.subr.bf16.mxu0 %v3982
    %4014 = vmatpush1.bf16.msra.mxu0 %v3981
    %4015 = vmatprep.subr.bf16.mxu0 0
    %4016 = vmatpush1.bf16.msra.mxu0 0
    %4017 = vmatprep.subr.bf16.mxu0 0
    %4018 = vmatpush1.bf16.msra.mxu0 0
    %4019 = vmatprep.subr.bf16.mxu0 0
    %4020 = vmatpush1.bf16.msra.mxu0 0
    %4021 = vmatprep.subr.bf16.mxu0 0
    %4022 = vmatpush1.bf16.msra.mxu0 0
    %4023 = vmatprep.subr.bf16.mxu0 0
    %4024 = vmatpush1.bf16.msra.mxu0 0
    %4025 = vmatprep.subr.bf16.mxu0 0
    %4026 = vmatpush1.bf16.msra.mxu0 0
    %4027 = vmatprep.subr.bf16.mxu0 0
    %4028 = vmatpush1.bf16.msra.mxu0 0
    %4029 = vmatprep.subr.bf16.mxu0 0
    %4030 = vmatpush1.bf16.msra.mxu0 0
    %4031 = vmatprep.mubr.bf16.mxu0 0
    %4032 = vmatmul.mubr.bf16.gmra.mrb[0].mxu0 %v3918
    %v4033 = vpop.f32.mrb[0].mxu0
    %v4034 = vadd.f32 0.0, %v4033
    %v4035 = vpop.f32.mrb[0].mxu0
    %v4036 = vadd.f32 0.0, %v4035
    %v4037 = vpop.f32.mrb[0].mxu0
    %v4038 = vadd.f32 0.0, %v4037
    %v4039 = vpop.f32.mrb[0].mxu0
    %v4040 = vadd.f32 0.0, %v4039
    %4041 = vdwg.mxu0
    %v4042 = vadd.f32 %v4034, %v4038
    %v4043 = vrot.slane %v4042, 4
    %v4044 = vadd.f32 %v4042, %v4043
    %v4045 = vrot.slane %v4044, 2
    %v4046 = vadd.f32 %v4044, %v4045
    %v4047 = vrot.slane %v4046, 1
    %v4048 = vadd.f32 %v4046, %v4047
    %v4049 = vadd.f32 %v4036, %v4040
    %v4050 = vrot.slane %v4049, 4
    %v4051 = vadd.f32 %v4049, %v4050
    %v4052 = vrot.slane %v4051, 2
    %v4053 = vadd.f32 %v4051, %v4052
    %v4054 = vrot.slane %v4053, 1
    %v4055 = vadd.f32 %v4053, %v4054
    %4057 = vrot.lane.b32.xlu0 %v4048, 64
    %v4058 = vpop.permute.xlu0 %4057
    %v4060 = vadd.f32 %v4048, %v4058
    %v4061 = vadd.f32 %v4060, %v4055
    %4063 = vrot.lane.b32.xlu0 %v4055, 64
    %v4064 = vpop.permute.xlu0 %4063
    %v4066 = vadd.f32 %v4061, %v4064
    %v4067 = vmul.f32 %v4066, %v1134
    %4069 = vrot.lane.b32.xlu0 %v4067, 64
    %v4070 = vpop.permute.xlu0 %4069
    %v4072 = vsel %vm258, %v4067, %v4070
    %v4073 = vlaneseq
    %v4074 = vshrl.u32 %v4073, 7
    %v4075 = vsub.s32 0, %v4074
    %v4076 = vrot.slane %v4072, %v4075
    %v4077 = vsub.f32 %v4034, %v4076
    %v4078 = vsub.f32 %v4036, %v4076
    %v4079 = vsub.f32 %v4038, %v4076
    %v4080 = vsub.f32 %v4040, %v4076
    %v4081 = vmul.f32 %v4077, %v4077
    %v4082 = vmul.f32 %v4078, %v4078
    %v4083 = vmul.f32 %v4079, %v4079
    %v4084 = vmul.f32 %v4080, %v4080
    %v4085 = vadd.f32 %v4081, %v4083
    %v4086 = vrot.slane %v4085, 4
    %v4087 = vadd.f32 %v4085, %v4086
    %v4088 = vrot.slane %v4087, 2
    %v4089 = vadd.f32 %v4087, %v4088
    %v4090 = vrot.slane %v4089, 1
    %v4091 = vadd.f32 %v4089, %v4090
    %v4092 = vadd.f32 %v4082, %v4084
    %v4093 = vrot.slane %v4092, 4
    %v4094 = vadd.f32 %v4092, %v4093
    %v4095 = vrot.slane %v4094, 2
    %v4096 = vadd.f32 %v4094, %v4095
    %v4097 = vrot.slane %v4096, 1
    %v4098 = vadd.f32 %v4096, %v4097
    %4100 = vrot.lane.b32.xlu0 %v4091, 64
    %v4101 = vpop.permute.xlu0 %4100
    %v4103 = vadd.f32 %v4091, %v4101
    %v4104 = vadd.f32 %v4103, %v4098
    %4106 = vrot.lane.b32.xlu0 %v4098, 64
    %v4107 = vpop.permute.xlu0 %4106
    %v4109 = vadd.f32 %v4104, %v4107
    %v4110 = vmul.f32 %v4109, %v1134
    %v4111 = vadd.f32 %v4110, 1e-05
    %v4112 = vrsqrt.pop %v4111
    %v4114 = vlaneseq
    %v4115 = vshrl.u32 %v4114, 7
    %v4116 = vsub.s32 0, %v4115
    %v4117 = vrot.slane %v3900, %v4116
    %v4118 = vlaneseq
    %v4119 = vshrl.u32 %v4118, 7
    %v4120 = vsub.s32 2, %v4119
    %v4121 = vrot.slane %v3900, %v4120
    %4122 = vrot.lane.b32.xlu0 %v4117, 32
    %v4123 = vpop.permute.xlu0 %4122
    %4124 = vrot.lane.b32.xlu0 %v4121, 32
    %v4125 = vpop.permute.xlu0 %4124
    %v4126 = vsel %vm443, %v4123, %v4125
    %v4128 = vmul.f32 %v4112, %v4126
    %v4129 = vmul.f32 %v4067, %v4128
    %v4132 = vunpack.c.l.s4 1983009808
    %v4133 = vunpack.c.0.s8 %v4132
    %v4134 = vlaneseq
    %v4135 = vshrl.u32 %v4134, 7
    %v4136 = vsub.s32 %v4133, %v4135
    %v4137 = vrot.slane %v4129, %v4136
    %4138 = vrot.lane.b32.xlu0 %v4137, 96
    %v4139 = vpop.permute.xlu0 %4138
    %v4140 = vrot.slane %v4139, 6
    %v4141 = vsel %vm446, %v4140, %v4139
    %v4143 = vsub.f32 %v3901, %v4141
    %4145 = vrot.lane.b32.xlu0 %v4128, 64
    %v4146 = vpop.permute.xlu0 %4145
    %v4148 = vsel %vm258, %v4128, %v4146
    %v4149 = vlaneseq
    %v4150 = vshrl.u32 %v4149, 7
    %v4151 = vsub.s32 0, %v4150
    %v4152 = vrot.slane %v4148, %v4151
    %v4153 = vmul.f32 %v4034, %v4152
    %v4154 = vmul.f32 %v4036, %v4152
    %v4155 = vmul.f32 %v4038, %v4152
    %v4156 = vmul.f32 %v4040, %v4152
    %v4158 = vlaneseq
    %v4159 = vshrl.u32 %v4158, 7
    %v4160 = vsub.s32 0, %v4159
    %v4161 = vrot.slane %v4143, %v4160
    %v4162 = vlaneseq
    %v4163 = vshrl.u32 %v4162, 7
    %v4164 = vsub.s32 2, %v4163
    %v4165 = vrot.slane %v4143, %v4164
    %4166 = vrot.lane.b32.xlu0 %v4161, 32
    %v4167 = vpop.permute.xlu0 %4166
    %4168 = vrot.lane.b32.xlu0 %v4165, 32
    %v4169 = vpop.permute.xlu0 %4168
    %v4170 = vsel %vm443, %v4167, %v4169
    %4172 = vrot.lane.b32.xlu0 %v4161, 96
    %v4173 = vpop.permute.xlu0 %4172
    %4174 = vrot.lane.b32.xlu0 %v4165, 96
    %v4175 = vpop.permute.xlu0 %4174
    %v4176 = vsel %vm446, %v4173, %v4175
    %v4178 = vsel %vm258, %v4170, %v4176
    %v4179 = vlaneseq
    %v4180 = vshrl.u32 %v4179, 7
    %v4181 = vsub.s32 0, %v4180
    %v4182 = vrot.slane %v4178, %v4181
    %v4183 = vadd.f32 %v4153, %v4182
    %v4184 = vadd.f32 %v4154, %v4182
    %v4185 = vadd.f32 %v4155, %v4182
    %v4186 = vadd.f32 %v4156, %v4182
    %vm4187 = vcmp.gt.f32.partialorder %v4183, 0.0
    %vm4188 = vcmp.gt.f32.partialorder %v4184, 0.0
    %vm4189 = vcmp.gt.f32.partialorder %v4185, 0.0
    %vm4190 = vcmp.gt.f32.partialorder %v4186, 0.0
    %v4191 = vmul.f32 %v4183, 0.01
    %v4192 = vmul.f32 %v4184, 0.01
    %v4193 = vmul.f32 %v4185, 0.01
    %v4194 = vmul.f32 %v4186, 0.01
    %v4195 = vsel %vm4187, %v4183, %v4191
    %v4196 = vsel %vm4188, %v4184, %v4192
    %v4197 = vsel %vm4189, %v4185, %v4193
    %v4198 = vsel %vm4190, %v4186, %v4194
    %v4199 = vpack.c.bf16 %v4197, %v4195
    %v4200 = vpack.c.bf16 %v4198, %v4196
    %v4201 = vadd.s32 %v1518, 16
    %v4202 = vadd.s32 %v1518, 24
    %v4203 = vadd.s32 %v1518, 32
    %v4204 = vadd.s32 %v1518, 40
    %v4205 = vadd.s32 %v1518, 48
    %v4206 = vadd.s32 %v1518, 56
    %vm4207 = vcmp.eq.s32.totalorder %v4201, %v3684
    %vm4208 = vcmp.eq.s32.totalorder %v4202, %v3684
    %vm4209 = vcmp.eq.s32.totalorder %v4203, %v3684
    %vm4210 = vcmp.eq.s32.totalorder %v4204, %v3684
    %vm4211 = vcmp.eq.s32.totalorder %v4205, %v3684
    %vm4212 = vcmp.eq.s32.totalorder %v4206, %v3684
    %v4213 = vsel %vm4207, 1.0, 0.0
    %v4214 = vsel %vm4208, 1.0, 0.0
    %v4215 = vsel %vm4209, 1.0, 0.0
    %v4216 = vsel %vm4210, 1.0, 0.0
    %v4217 = vsel %vm4211, 1.0, 0.0
    %v4218 = vsel %vm4212, 1.0, 0.0
    %v4219 = vpack.c.bf16 %v4214, %v4213
    %v4220 = vpack.c.bf16 %v4216, %v4215
    %v4221 = vpack.c.bf16 %v4218, %v4217
    %vm4222 = vcmp.eq.s32.totalorder %v4201, %v3690
    %vm4223 = vcmp.eq.s32.totalorder %v4202, %v3690
    %vm4224 = vcmp.eq.s32.totalorder %v4203, %v3690
    %vm4225 = vcmp.eq.s32.totalorder %v4204, %v3690
    %vm4226 = vcmp.eq.s32.totalorder %v4205, %v3690
    %vm4227 = vcmp.eq.s32.totalorder %v4206, %v3690
    %v4228 = vsel %vm4222, 1.0, 0.0
    %v4229 = vsel %vm4223, 1.0, 0.0
    %v4230 = vsel %vm4224, 1.0, 0.0
    %v4231 = vsel %vm4225, 1.0, 0.0
    %v4232 = vsel %vm4226, 1.0, 0.0
    %v4233 = vsel %vm4227, 1.0, 0.0
    %v4234 = vpack.c.bf16 %v4229, %v4228
    %v4235 = vpack.c.bf16 %v4231, %v4230
    %v4236 = vpack.c.bf16 %v4233, %v4232
    %4238 = vrot.lane.b32.xlu0 %v4199, 64
    %v4239 = vpop.permute.xlu0 %4238
    %v4241 = vsel %vm1525, %v3695, 0
    %v4244 = vsel %vm1525, %v4234, 0
    %v4247 = vsel %vm1525, %v4235, 0
    %v4250 = vsel %vm1525, %v4236, 0
    %4252 = vmatprep.subr.bf16.mxu0 0
    %4253 = vmatpush1.bf16.msra.mxu0 %v4239
    %4254 = vmatprep.subr.bf16.mxu0 0
    %4255 = vmatpush1.bf16.msra.mxu0 0
    %4256 = vmatprep.subr.bf16.mxu0 0
    %4257 = vmatpush1.bf16.msra.mxu0 0
    %4258 = vmatprep.subr.bf16.mxu0 0
    %4259 = vmatpush1.bf16.msra.mxu0 0
    %4260 = vmatprep.subr.bf16.mxu0 0
    %4261 = vmatpush1.bf16.msra.mxu0 0
    %4262 = vmatprep.subr.bf16.mxu0 0
    %4263 = vmatpush1.bf16.msra.mxu0 0
    %4264 = vmatprep.subr.bf16.mxu0 0
    %4265 = vmatpush1.bf16.msra.mxu0 0
    %4266 = vmatprep.subr.bf16.mxu0 0
    %4267 = vmatpush1.bf16.msra.mxu0 0
    %4268 = vmatprep.subr.bf16.mxu0 0
    %4269 = vmatpush1.bf16.msra.mxu0 0
    %4270 = vmatprep.subr.bf16.mxu0 0
    %4271 = vmatpush1.bf16.msra.mxu0 0
    %4272 = vmatprep.subr.bf16.mxu0 0
    %4273 = vmatpush1.bf16.msra.mxu0 0
    %4274 = vmatprep.subr.bf16.mxu0 0
    %4275 = vmatpush1.bf16.msra.mxu0 0
    %4276 = vmatprep.subr.bf16.mxu0 0
    %4277 = vmatpush1.bf16.msra.mxu0 0
    %4278 = vmatprep.subr.bf16.mxu0 0
    %4279 = vmatpush1.bf16.msra.mxu0 0
    %4280 = vmatprep.subr.bf16.mxu0 0
    %4281 = vmatpush1.bf16.msra.mxu0 0
    %4282 = vmatprep.subr.bf16.mxu0 0
    %4283 = vmatpush1.bf16.msra.mxu0 0
    %4284 = vmatprep.mubr.bf16.mxu0 0
    %4285 = vmatmul.mubr.bf16.gmra.mrb[0].mxu0 %v4241
    %v4286 = vpop.f32.mrb[0].mxu0
    %v4287 = vadd.f32 0.0, %v4286
    %v4288 = vpop.f32.mrb[0].mxu0
    %v4289 = vpop.f32.mrb[0].mxu0
    %v4290 = vadd.f32 0.0, %v4289
    %v4291 = vpop.f32.mrb[0].mxu0
    %4292 = vmatprep.mubr.bf16.mxu0 0
    %4293 = vmatmul.mubr.bf16.gmra.mrb[0].mxu0 %v4244
    %v4294 = vpop.f32.mrb[0].mxu0
    %v4295 = vadd.f32 0.0, %v4294
    %v4296 = vpop.f32.mrb[0].mxu0
    %v4297 = vpop.f32.mrb[0].mxu0
    %v4298 = vadd.f32 0.0, %v4297
    %v4299 = vpop.f32.mrb[0].mxu0
    %4300 = vmatprep.mubr.bf16.mxu0 0
    %4301 = vmatmul.mubr.bf16.gmra.mrb[0].mxu0 %v4247
    %v4302 = vpop.f32.mrb[0].mxu0
    %v4303 = vadd.f32 0.0, %v4302
    %v4304 = vpop.f32.mrb[0].mxu0
    %v4305 = vpop.f32.mrb[0].mxu0
    %v4306 = vadd.f32 0.0, %v4305
    %v4307 = vpop.f32.mrb[0].mxu0
    %4308 = vmatprep.mubr.bf16.mxu0 0
    %4309 = vmatmul.mubr.bf16.gmra.mrb[0].mxu0 %v4250
    %v4310 = vpop.f32.mrb[0].mxu0
    %v4311 = vadd.f32 0.0, %v4310
    %v4312 = vpop.f32.mrb[0].mxu0
    %v4313 = vpop.f32.mrb[0].mxu0
    %v4314 = vadd.f32 0.0, %v4313
    %v4315 = vpop.f32.mrb[0].mxu0
    %4316 = vdwg.mxu0
    %v4317 = vsel %vm1525, %v3689, 0
    %v4320 = vsel %vm1525, %v4219, 0
    %v4323 = vsel %vm1525, %v4220, 0
    %v4326 = vsel %vm1525, %v4221, 0
    %4328 = vmatprep.subr.bf16.mxu0 0
    %4329 = vmatpush1.bf16.msra.mxu0 %v4199
    %4330 = vmatprep.subr.bf16.mxu0 0
    %4331 = vmatpush1.bf16.msra.mxu0 0
    %4332 = vmatprep.subr.bf16.mxu0 0
    %4333 = vmatpush1.bf16.msra.mxu0 0
    %4334 = vmatprep.subr.bf16.mxu0 0
    %4335 = vmatpush1.bf16.msra.mxu0 0
    %4336 = vmatprep.subr.bf16.mxu0 0
    %4337 = vmatpush1.bf16.msra.mxu0 0
    %4338 = vmatprep.subr.bf16.mxu0 0
    %4339 = vmatpush1.bf16.msra.mxu0 0
    %4340 = vmatprep.subr.bf16.mxu0 0
    %4341 = vmatpush1.bf16.msra.mxu0 0
    %4342 = vmatprep.subr.bf16.mxu0 0
    %4343 = vmatpush1.bf16.msra.mxu0 0
    %4344 = vmatprep.subr.bf16.mxu0 0
    %4345 = vmatpush1.bf16.msra.mxu0 0
    %4346 = vmatprep.subr.bf16.mxu0 0
    %4347 = vmatpush1.bf16.msra.mxu0 0
    %4348 = vmatprep.subr.bf16.mxu0 0
    %4349 = vmatpush1.bf16.msra.mxu0 0
    %4350 = vmatprep.subr.bf16.mxu0 0
    %4351 = vmatpush1.bf16.msra.mxu0 0
    %4352 = vmatprep.subr.bf16.mxu0 0
    %4353 = vmatpush1.bf16.msra.mxu0 0
    %4354 = vmatprep.subr.bf16.mxu0 0
    %4355 = vmatpush1.bf16.msra.mxu0 0
    %4356 = vmatprep.subr.bf16.mxu0 0
    %4357 = vmatpush1.bf16.msra.mxu0 0
    %4358 = vmatprep.subr.bf16.mxu0 0
    %4359 = vmatpush1.bf16.msra.mxu0 0
    %4360 = vmatprep.mubr.bf16.mxu0 0
    %4361 = vmatmul.mubr.bf16.gmra.mrb[0].mxu0 %v4317
    %v4362 = vpop.f32.mrb[0].mxu0
    %v4363 = vadd.f32 %v4287, %v4362
    %v4364 = vpop.f32.mrb[0].mxu0
    %v4365 = vpop.f32.mrb[0].mxu0
    %v4366 = vadd.f32 %v4290, %v4365
    %v4367 = vpop.f32.mrb[0].mxu0
    %4368 = vmatprep.mubr.bf16.mxu0 0
    %4369 = vmatmul.mubr.bf16.gmra.mrb[0].mxu0 %v4320
    %v4370 = vpop.f32.mrb[0].mxu0
    %v4371 = vadd.f32 %v4295, %v4370
    %v4372 = vpop.f32.mrb[0].mxu0
    %v4373 = vpop.f32.mrb[0].mxu0
    %v4374 = vadd.f32 %v4298, %v4373
    %v4375 = vpop.f32.mrb[0].mxu0
    %4376 = vmatprep.mubr.bf16.mxu0 0
    %4377 = vmatmul.mubr.bf16.gmra.mrb[0].mxu0 %v4323
    %v4378 = vpop.f32.mrb[0].mxu0
    %v4379 = vadd.f32 %v4303, %v4378
    %v4380 = vpop.f32.mrb[0].mxu0
    %v4381 = vpop.f32.mrb[0].mxu0
    %v4382 = vadd.f32 %v4306, %v4381
    %v4383 = vpop.f32.mrb[0].mxu0
    %4384 = vmatprep.mubr.bf16.mxu0 0
    %4385 = vmatmul.mubr.bf16.gmra.mrb[0].mxu0 %v4326
    %v4386 = vpop.f32.mrb[0].mxu0
    %v4387 = vadd.f32 %v4311, %v4386
    %v4388 = vpop.f32.mrb[0].mxu0
    %v4389 = vpop.f32.mrb[0].mxu0
    %v4390 = vadd.f32 %v4314, %v4389
    %v4391 = vpop.f32.mrb[0].mxu0
    %4392 = vdwg.mxu0
    %vm4393 = vcmp.eq.s32.totalorder %v4201, %v3790
    %vm4394 = vcmp.eq.s32.totalorder %v4202, %v3790
    %vm4395 = vcmp.eq.s32.totalorder %v4203, %v3790
    %vm4396 = vcmp.eq.s32.totalorder %v4204, %v3790
    %vm4397 = vcmp.eq.s32.totalorder %v4205, %v3790
    %vm4398 = vcmp.eq.s32.totalorder %v4206, %v3790
    %v4399 = vsel %vm4393, 1.0, 0.0
    %v4400 = vsel %vm4394, 1.0, 0.0
    %v4401 = vsel %vm4395, 1.0, 0.0
    %v4402 = vsel %vm4396, 1.0, 0.0
    %v4403 = vsel %vm4397, 1.0, 0.0
    %v4404 = vsel %vm4398, 1.0, 0.0
    %v4405 = vpack.c.bf16 %v4400, %v4399
    %v4406 = vpack.c.bf16 %v4402, %v4401
    %v4407 = vpack.c.bf16 %v4404, %v4403
    %v4408 = vsel %vm1525, %v3795, 0
    %v4411 = vsel %vm1525, %v4405, 0
    %v4414 = vsel %vm1525, %v4406, 0
    %v4417 = vsel %vm1525, %v4407, 0
    %4419 = vmatprep.subr.bf16.mxu0 0
    %4420 = vmatpush1.bf16.msra.mxu0 %v4200
    %4421 = vmatprep.subr.bf16.mxu0 0
    %4422 = vmatpush1.bf16.msra.mxu0 0
    %4423 = vmatprep.subr.bf16.mxu0 0
    %4424 = vmatpush1.bf16.msra.mxu0 0
    %4425 = vmatprep.subr.bf16.mxu0 0
    %4426 = vmatpush1.bf16.msra.mxu0 0
    %4427 = vmatprep.subr.bf16.mxu0 0
    %4428 = vmatpush1.bf16.msra.mxu0 0
    %4429 = vmatprep.subr.bf16.mxu0 0
    %4430 = vmatpush1.bf16.msra.mxu0 0
    %4431 = vmatprep.subr.bf16.mxu0 0
    %4432 = vmatpush1.bf16.msra.mxu0 0
    %4433 = vmatprep.subr.bf16.mxu0 0
    %4434 = vmatpush1.bf16.msra.mxu0 0
    %4435 = vmatprep.subr.bf16.mxu0 0
    %4436 = vmatpush1.bf16.msra.mxu0 0
    %4437 = vmatprep.subr.bf16.mxu0 0
    %4438 = vmatpush1.bf16.msra.mxu0 0
    %4439 = vmatprep.subr.bf16.mxu0 0
    %4440 = vmatpush1.bf16.msra.mxu0 0
    %4441 = vmatprep.subr.bf16.mxu0 0
    %4442 = vmatpush1.bf16.msra.mxu0 0
    %4443 = vmatprep.subr.bf16.mxu0 0
    %4444 = vmatpush1.bf16.msra.mxu0 0
    %4445 = vmatprep.subr.bf16.mxu0 0
    %4446 = vmatpush1.bf16.msra.mxu0 0
    %4447 = vmatprep.subr.bf16.mxu0 0
    %4448 = vmatpush1.bf16.msra.mxu0 0
    %4449 = vmatprep.subr.bf16.mxu0 0
    %4450 = vmatpush1.bf16.msra.mxu0 0
    %4451 = vmatprep.mubr.bf16.mxu0 0
    %4452 = vmatmul.mubr.bf16.gmra.mrb[0].mxu0 %v4408
    %v4453 = vpop.f32.mrb[0].mxu0
    %v4454 = vadd.f32 0.0, %v4453
    %v4455 = vpop.f32.mrb[0].mxu0
    %v4456 = vpop.f32.mrb[0].mxu0
    %v4457 = vadd.f32 0.0, %v4456
    %v4458 = vpop.f32.mrb[0].mxu0
    %4459 = vmatprep.mubr.bf16.mxu0 0
    %4460 = vmatmul.mubr.bf16.gmra.mrb[0].mxu0 %v4411
    %v4461 = vpop.f32.mrb[0].mxu0
    %v4462 = vadd.f32 0.0, %v4461
    %v4463 = vpop.f32.mrb[0].mxu0
    %v4464 = vpop.f32.mrb[0].mxu0
    %v4465 = vadd.f32 0.0, %v4464
    %v4466 = vpop.f32.mrb[0].mxu0
    %4467 = vmatprep.mubr.bf16.mxu0 0
    %4468 = vmatmul.mubr.bf16.gmra.mrb[0].mxu0 %v4414
    %v4469 = vpop.f32.mrb[0].mxu0
    %v4470 = vadd.f32 0.0, %v4469
    %v4471 = vpop.f32.mrb[0].mxu0
    %v4472 = vpop.f32.mrb[0].mxu0
    %v4473 = vadd.f32 0.0, %v4472
    %v4474 = vpop.f32.mrb[0].mxu0
    %4475 = vmatprep.mubr.bf16.mxu0 0
    %4476 = vmatmul.mubr.bf16.gmra.mrb[0].mxu0 %v4417
    %v4477 = vpop.f32.mrb[0].mxu0
    %v4478 = vadd.f32 0.0, %v4477
    %v4479 = vpop.f32.mrb[0].mxu0
    %v4480 = vpop.f32.mrb[0].mxu0
    %v4481 = vadd.f32 0.0, %v4480
    %v4482 = vpop.f32.mrb[0].mxu0
    %4483 = vdwg.mxu0
    %v4484 = vadd.f32 %v4363, %v4454
    %v4485 = vadd.f32 %v4366, %v4457
    %v4486 = vadd.f32 %v4371, %v4462
    %v4487 = vadd.f32 %v4374, %v4465
    %v4488 = vadd.f32 %v4379, %v4470
    %v4489 = vadd.f32 %v4382, %v4473
    %v4490 = vadd.f32 %v4387, %v4478
    %v4491 = vadd.f32 %v4390, %v4481
    %vm4492 = vcmp.eq.s32.totalorder %v4201, %v3845
    %vm4493 = vcmp.eq.s32.totalorder %v4202, %v3845
    %vm4494 = vcmp.eq.s32.totalorder %v4203, %v3845
    %vm4495 = vcmp.eq.s32.totalorder %v4204, %v3845
    %vm4496 = vcmp.eq.s32.totalorder %v4205, %v3845
    %vm4497 = vcmp.eq.s32.totalorder %v4206, %v3845
    %v4498 = vsel %vm4492, 1.0, 0.0
    %v4499 = vsel %vm4493, 1.0, 0.0
    %v4500 = vsel %vm4494, 1.0, 0.0
    %v4501 = vsel %vm4495, 1.0, 0.0
    %v4502 = vsel %vm4496, 1.0, 0.0
    %v4503 = vsel %vm4497, 1.0, 0.0
    %v4504 = vpack.c.bf16 %v4499, %v4498
    %v4505 = vpack.c.bf16 %v4501, %v4500
    %v4506 = vpack.c.bf16 %v4503, %v4502
    %4508 = vrot.lane.b32.xlu0 %v4200, 64
    %v4509 = vpop.permute.xlu0 %4508
    %v4511 = vsel %vm1525, %v3850, 0
    %v4514 = vsel %vm1525, %v4504, 0
    %v4517 = vsel %vm1525, %v4505, 0
    %v4520 = vsel %vm1525, %v4506, 0
    %4522 = vmatprep.subr.bf16.mxu0 0
    %4523 = vmatpush1.bf16.msra.mxu0 %v4509
    %4524 = vmatprep.subr.bf16.mxu0 0
    %4525 = vmatpush1.bf16.msra.mxu0 0
    %4526 = vmatprep.subr.bf16.mxu0 0
    %4527 = vmatpush1.bf16.msra.mxu0 0
    %4528 = vmatprep.subr.bf16.mxu0 0
    %4529 = vmatpush1.bf16.msra.mxu0 0
    %4530 = vmatprep.subr.bf16.mxu0 0
    %4531 = vmatpush1.bf16.msra.mxu0 0
    %4532 = vmatprep.subr.bf16.mxu0 0
    %4533 = vmatpush1.bf16.msra.mxu0 0
    %4534 = vmatprep.subr.bf16.mxu0 0
    %4535 = vmatpush1.bf16.msra.mxu0 0
    %4536 = vmatprep.subr.bf16.mxu0 0
    %4537 = vmatpush1.bf16.msra.mxu0 0
    %4538 = vmatprep.subr.bf16.mxu0 0
    %4539 = vmatpush1.bf16.msra.mxu0 0
    %4540 = vmatprep.subr.bf16.mxu0 0
    %4541 = vmatpush1.bf16.msra.mxu0 0
    %4542 = vmatprep.subr.bf16.mxu0 0
    %4543 = vmatpush1.bf16.msra.mxu0 0
    %4544 = vmatprep.subr.bf16.mxu0 0
    %4545 = vmatpush1.bf16.msra.mxu0 0
    %4546 = vmatprep.subr.bf16.mxu0 0
    %4547 = vmatpush1.bf16.msra.mxu0 0
    %4548 = vmatprep.subr.bf16.mxu0 0
    %4549 = vmatpush1.bf16.msra.mxu0 0
    %4550 = vmatprep.subr.bf16.mxu0 0
    %4551 = vmatpush1.bf16.msra.mxu0 0
    %4552 = vmatprep.subr.bf16.mxu0 0
    %4553 = vmatpush1.bf16.msra.mxu0 0
    %4554 = vmatprep.mubr.bf16.mxu0 0
    %4555 = vmatmul.mubr.bf16.gmra.mrb[0].mxu0 %v4511
    %v4556 = vpop.f32.mrb[0].mxu0
    %v4557 = vadd.f32 0.0, %v4556
    %v4558 = vpop.f32.mrb[0].mxu0
    %v4559 = vpop.f32.mrb[0].mxu0
    %v4560 = vadd.f32 0.0, %v4559
    %v4561 = vpop.f32.mrb[0].mxu0
    %4562 = vmatprep.mubr.bf16.mxu0 0
    %4563 = vmatmul.mubr.bf16.gmra.mrb[0].mxu0 %v4514
    %v4564 = vpop.f32.mrb[0].mxu0
    %v4565 = vadd.f32 0.0, %v4564
    %v4566 = vpop.f32.mrb[0].mxu0
    %v4567 = vpop.f32.mrb[0].mxu0
    %v4568 = vadd.f32 0.0, %v4567
    %v4569 = vpop.f32.mrb[0].mxu0
    %4570 = vmatprep.mubr.bf16.mxu0 0
    %4571 = vmatmul.mubr.bf16.gmra.mrb[0].mxu0 %v4517
    %v4572 = vpop.f32.mrb[0].mxu0
    %v4573 = vadd.f32 0.0, %v4572
    %v4574 = vpop.f32.mrb[0].mxu0
    %v4575 = vpop.f32.mrb[0].mxu0
    %v4576 = vadd.f32 0.0, %v4575
    %v4577 = vpop.f32.mrb[0].mxu0
    %4578 = vmatprep.mubr.bf16.mxu0 0
    %4579 = vmatmul.mubr.bf16.gmra.mrb[0].mxu0 %v4520
    %v4580 = vpop.f32.mrb[0].mxu0
    %v4581 = vadd.f32 0.0, %v4580
    %v4582 = vpop.f32.mrb[0].mxu0
    %v4583 = vpop.f32.mrb[0].mxu0
    %v4584 = vadd.f32 0.0, %v4583
    %v4585 = vpop.f32.mrb[0].mxu0
    %4586 = vdwg.mxu0
    %v4587 = vadd.f32 %v4484, %v4557
    %v4588 = vadd.f32 %v4485, %v4560
    %v4589 = vadd.f32 %v4486, %v4565
    %v4590 = vadd.f32 %v4487, %v4568
    %v4591 = vadd.f32 %v4488, %v4573
    %v4592 = vadd.f32 %v4489, %v4576
    %v4593 = vadd.f32 %v4490, %v4581
    %v4594 = vadd.f32 %v4491, %v4584
    %v4595 = vld [vmem:[#allocation14 + $0xa] sm:$0x1]
    %v4596 = vld [vmem:[#allocation14 + $0xb] sm:$0x1]
    %v4597 = vld [vmem:[%s12] sm:$0xf]
    %v4598 = vld [vmem:[%s12 + $0x4] sm:$0xf]
    %v4599 = vld [vmem:[%s12 + $0x8] sm:$0xf]
    %v4600 = vld [vmem:[%s12 + $0xc] sm:$0xf]
    %v4601 = vld [vmem:[%s12 + $0x10] sm:$0xf]
    %v4602 = vld [vmem:[%s12 + $0x14] sm:$0xf]
    %v4603 = vld [vmem:[%s12 + $0x18] sm:$0xf]
    %v4604 = vld [vmem:[%s12 + $0x1c] sm:$0xf]
    %v4605 = vpack.c.bf16 %v4588, %v4587
    %v4606 = vpack.c.bf16 %v4590, %v4589
    %v4607 = vpack.c.bf16 %v4592, %v4591
    %v4608 = vpack.c.bf16 %v4594, %v4593
    %v4617 = vunpack.c.l.b16 %v4597
    %v4618 = vunpack.c.l.b16 %v4598
    %v4619 = vunpack.c.l.b16 %v4599
    %v4620 = vunpack.c.l.b16 %v4600
    %v4621 = vunpack.c.l.b16 %v4601
    %v4622 = vunpack.c.l.b16 %v4602
    %v4623 = vunpack.c.l.b16 %v4603
    %v4624 = vunpack.c.l.b16 %v4604
    %v4625 = vpack.c.b16 %v4618, %v4617
    %v4626 = vpack.c.b16 %v4620, %v4619
    %v4627 = vpack.c.b16 %v4622, %v4621
    %v4628 = vpack.c.b16 %v4624, %v4623
    %v4634 = vsel %vm258, %v4605, 0
    %v4637 = vsel %vm258, %v4606, 0
    %v4640 = vsel %vm258, %v4607, 0
    %v4643 = vsel %vm258, %v4608, 0
    %4645 = vmatprep.subr.bf16.mxu0 0
    %4646 = vmatpush1.bf16.msra.mxu0 %v4625
    %4647 = vmatprep.subr.bf16.mxu0 0
    %4648 = vmatpush1.bf16.msra.mxu0 %v4626
    %4649 = vmatprep.subr.bf16.mxu0 0
    %4650 = vmatpush1.bf16.msra.mxu0 %v4627
    %4651 = vmatprep.subr.bf16.mxu0 0
    %4652 = vmatpush1.bf16.msra.mxu0 %v4628
    %4653 = vmatprep.subr.bf16.mxu0 0
    %4654 = vmatpush1.bf16.msra.mxu0 0
    %4655 = vmatprep.subr.bf16.mxu0 0
    %4656 = vmatpush1.bf16.msra.mxu0 0
    %4657 = vmatprep.subr.bf16.mxu0 0
    %4658 = vmatpush1.bf16.msra.mxu0 0
    %4659 = vmatprep.subr.bf16.mxu0 0
    %4660 = vmatpush1.bf16.msra.mxu0 0
    %4661 = vmatprep.subr.bf16.mxu0 0
    %4662 = vmatpush1.bf16.msra.mxu0 0
    %4663 = vmatprep.subr.bf16.mxu0 0
    %4664 = vmatpush1.bf16.msra.mxu0 0
    %4665 = vmatprep.subr.bf16.mxu0 0
    %4666 = vmatpush1.bf16.msra.mxu0 0
    %4667 = vmatprep.subr.bf16.mxu0 0
    %4668 = vmatpush1.bf16.msra.mxu0 0
    %4669 = vmatprep.subr.bf16.mxu0 0
    %4670 = vmatpush1.bf16.msra.mxu0 0
    %4671 = vmatprep.subr.bf16.mxu0 0
    %4672 = vmatpush1.bf16.msra.mxu0 0
    %4673 = vmatprep.subr.bf16.mxu0 0
    %4674 = vmatpush1.bf16.msra.mxu0 0
    %4675 = vmatprep.subr.bf16.mxu0 0
    %4676 = vmatpush1.bf16.msra.mxu0 0
    %4677 = vmatprep.mubr.bf16.mxu0 0
    %4678 = vmatmul.mubr.bf16.gmra.mrb[0].mxu0 %v4634
    %v4679 = vpop.f32.mrb[0].mxu0
    %v4680 = vadd.f32 0.0, %v4679
    %v4681 = vpop.f32.mrb[0].mxu0
    %v4682 = vpop.f32.mrb[0].mxu0
    %v4683 = vadd.f32 0.0, %v4682
    %v4684 = vpop.f32.mrb[0].mxu0
    %4685 = vmatprep.mubr.bf16.mxu0 0
    %4686 = vmatmul.mubr.bf16.gmra.mrb[0].mxu0 %v4637
    %v4687 = vpop.f32.mrb[0].mxu0
    %v4688 = vadd.f32 0.0, %v4687
    %v4689 = vpop.f32.mrb[0].mxu0
    %v4690 = vpop.f32.mrb[0].mxu0
    %v4691 = vadd.f32 0.0, %v4690
    %v4692 = vpop.f32.mrb[0].mxu0
    %4693 = vmatprep.mubr.bf16.mxu0 0
    %4694 = vmatmul.mubr.bf16.gmra.mrb[0].mxu0 %v4640
    %v4695 = vpop.f32.mrb[0].mxu0
    %v4696 = vadd.f32 0.0, %v4695
    %v4697 = vpop.f32.mrb[0].mxu0
    %v4698 = vpop.f32.mrb[0].mxu0
    %v4699 = vadd.f32 0.0, %v4698
    %v4700 = vpop.f32.mrb[0].mxu0
    %4701 = vmatprep.mubr.bf16.mxu0 0
    %4702 = vmatmul.mubr.bf16.gmra.mrb[0].mxu0 %v4643
    %v4703 = vpop.f32.mrb[0].mxu0
    %v4704 = vadd.f32 0.0, %v4703
    %v4705 = vpop.f32.mrb[0].mxu0
    %v4706 = vpop.f32.mrb[0].mxu0
    %v4707 = vadd.f32 0.0, %v4706
    %v4708 = vpop.f32.mrb[0].mxu0
    %4709 = vdwg.mxu0
    %v4710 = vadd.f32 %v4680, %v4683
    %v4711 = vadd.f32 %v4710, %v4688
    %v4712 = vadd.f32 %v4711, %v4691
    %v4713 = vadd.f32 %v4712, %v4696
    %v4714 = vadd.f32 %v4713, %v4699
    %v4715 = vadd.f32 %v4714, %v4704
    %v4716 = vadd.f32 %v4715, %v4707
    %v4717 = vrot.slane %v4716, 4
    %v4718 = vadd.f32 %v4716, %v4717
    %v4719 = vrot.slane %v4718, 2
    %v4720 = vadd.f32 %v4718, %v4719
    %v4721 = vrot.slane %v4720, 1
    %v4722 = vadd.f32 %v4720, %v4721
    %4724 = vrot.lane.b32.xlu0 %v4722, 96
    %v4725 = vpop.permute.xlu0 %4724
    %v4727 = vadd.f32 %v4722, %v4725
    %4728 = vrot.lane.b32.xlu0 %v4722, 64
    %v4729 = vpop.permute.xlu0 %4728
    %v4731 = vadd.f32 %v4727, %v4729
    %4732 = vrot.lane.b32.xlu0 %v4722, 32
    %v4733 = vpop.permute.xlu0 %4732
    %v4735 = vadd.f32 %v4731, %v4733
    %v4736 = vmul.f32 %v4735, %v431
    %4738 = vrot.lane.b32.xlu0 %v4736, 32
    %v4739 = vpop.permute.xlu0 %4738
    %4741 = vrot.lane.b32.xlu0 %v4736, 64
    %v4742 = vpop.permute.xlu0 %4741
    %4744 = vrot.lane.b32.xlu0 %v4736, 96
    %v4745 = vpop.permute.xlu0 %4744
    %v4747 = vsel %vm443, %v4736, %v4739
    %v4748 = vsel %vm258, %v4747, %v4742
    %v4749 = vsel %vm446, %v4748, %v4745
    %v4750 = vlaneseq
    %v4751 = vshrl.u32 %v4750, 7
    %v4752 = vsub.s32 0, %v4751
    %v4753 = vrot.slane %v4749, %v4752
    %v4754 = vsub.f32 %v4680, %v4753
    %v4755 = vsub.f32 %v4683, %v4753
    %v4756 = vsub.f32 %v4688, %v4753
    %v4757 = vsub.f32 %v4691, %v4753
    %v4758 = vsub.f32 %v4696, %v4753
    %v4759 = vsub.f32 %v4699, %v4753
    %v4760 = vsub.f32 %v4704, %v4753
    %v4761 = vsub.f32 %v4707, %v4753
    %v4762 = vmul.f32 %v4754, %v4754
    %v4763 = vmul.f32 %v4755, %v4755
    %v4764 = vmul.f32 %v4756, %v4756
    %v4765 = vmul.f32 %v4757, %v4757
    %v4766 = vmul.f32 %v4758, %v4758
    %v4767 = vmul.f32 %v4759, %v4759
    %v4768 = vmul.f32 %v4760, %v4760
    %v4769 = vmul.f32 %v4761, %v4761
    %v4770 = vadd.f32 %v4762, %v4763
    %v4771 = vadd.f32 %v4770, %v4764
    %v4772 = vadd.f32 %v4771, %v4765
    %v4773 = vadd.f32 %v4772, %v4766
    %v4774 = vadd.f32 %v4773, %v4767
    %v4775 = vadd.f32 %v4774, %v4768
    %v4776 = vadd.f32 %v4775, %v4769
    %v4777 = vrot.slane %v4776, 4
    %v4778 = vadd.f32 %v4776, %v4777
    %v4779 = vrot.slane %v4778, 2
    %v4780 = vadd.f32 %v4778, %v4779
    %v4781 = vrot.slane %v4780, 1
    %v4782 = vadd.f32 %v4780, %v4781
    %4784 = vrot.lane.b32.xlu0 %v4782, 96
    %v4785 = vpop.permute.xlu0 %4784
    %v4787 = vadd.f32 %v4782, %v4785
    %4788 = vrot.lane.b32.xlu0 %v4782, 64
    %v4789 = vpop.permute.xlu0 %4788
    %v4791 = vadd.f32 %v4787, %v4789
    %4792 = vrot.lane.b32.xlu0 %v4782, 32
    %v4793 = vpop.permute.xlu0 %4792
    %v4795 = vadd.f32 %v4791, %v4793
    %v4796 = vmul.f32 %v4795, %v431
    %v4797 = vadd.f32 %v4796, 1e-05
    %v4798 = vrsqrt.pop %v4797
    %v4800 = vlaneseq
    %v4801 = vshrl.u32 %v4800, 7
    %v4802 = vsub.s32 0, %v4801
    %v4803 = vrot.slane %v4595, %v4802
    %4804 = vrot.lane.b32.xlu0 %v4803, 96
    %v4805 = vpop.permute.xlu0 %4804
    %v4807 = vmul.f32 %v4798, %v4805
    %v4808 = vmul.f32 %v4736, %v4807
    %v4811 = vunpack.c.l.s4 1983009808
    %v4812 = vunpack.c.0.s8 %v4811
    %v4813 = vlaneseq
    %v4814 = vshrl.u32 %v4813, 7
    %v4815 = vsub.s32 %v4812, %v4814
    %v4816 = vrot.slane %v4808, %v4815
    %4817 = vrot.lane.b32.xlu0 %v4816, 32
    %v4818 = vpop.permute.xlu0 %4817
    %v4820 = vsub.f32 %v4596, %v4818
    %4822 = vrot.lane.b32.xlu0 %v4807, 32
    %v4823 = vpop.permute.xlu0 %4822
    %4825 = vrot.lane.b32.xlu0 %v4807, 64
    %v4826 = vpop.permute.xlu0 %4825
    %4828 = vrot.lane.b32.xlu0 %v4807, 96
    %v4829 = vpop.permute.xlu0 %4828
    %v4831 = vsel %vm443, %v4807, %v4823
    %v4832 = vsel %vm258, %v4831, %v4826
    %v4833 = vsel %vm446, %v4832, %v4829
    %v4834 = vlaneseq
    %v4835 = vshrl.u32 %v4834, 7
    %v4836 = vsub.s32 0, %v4835
    %v4837 = vrot.slane %v4833, %v4836
    %v4838 = vmul.f32 %v4680, %v4837
    %v4839 = vmul.f32 %v4683, %v4837
    %v4840 = vmul.f32 %v4688, %v4837
    %v4841 = vmul.f32 %v4691, %v4837
    %v4842 = vmul.f32 %v4696, %v4837
    %v4843 = vmul.f32 %v4699, %v4837
    %v4844 = vmul.f32 %v4704, %v4837
    %v4845 = vmul.f32 %v4707, %v4837
    %v4847 = vlaneseq
    %v4848 = vshrl.u32 %v4847, 7
    %v4849 = vsub.s32 0, %v4848
    %v4850 = vrot.slane %v4820, %v4849
    %4851 = vrot.lane.b32.xlu0 %v4850, 96
    %v4852 = vpop.permute.xlu0 %4851
    %4854 = vrot.lane.b32.xlu0 %v4850, 32
    %v4855 = vpop.permute.xlu0 %4854
    %4857 = vrot.lane.b32.xlu0 %v4850, 64
    %v4858 = vpop.permute.xlu0 %4857
    %v4860 = vsel %vm443, %v4852, %v4820
    %v4861 = vsel %vm258, %v4860, %v4855
    %v4862 = vsel %vm446, %v4861, %v4858
    %v4863 = vlaneseq
    %v4864 = vshrl.u32 %v4863, 7
    %v4865 = vsub.s32 0, %v4864
    %v4866 = vrot.slane %v4862, %v4865
    %v4867 = vadd.f32 %v4838, %v4866
    %v4868 = vadd.f32 %v4839, %v4866
    %v4869 = vadd.f32 %v4840, %v4866
    %v4870 = vadd.f32 %v4841, %v4866
    %v4871 = vadd.f32 %v4842, %v4866
    %v4872 = vadd.f32 %v4843, %v4866
    %v4873 = vadd.f32 %v4844, %v4866
    %v4874 = vadd.f32 %v4845, %v4866
    %vm4875 = vcmp.gt.f32.partialorder %v4867, 0.0
    %vm4876 = vcmp.gt.f32.partialorder %v4868, 0.0
    %vm4877 = vcmp.gt.f32.partialorder %v4869, 0.0
    %vm4878 = vcmp.gt.f32.partialorder %v4870, 0.0
    %vm4879 = vcmp.gt.f32.partialorder %v4871, 0.0
    %vm4880 = vcmp.gt.f32.partialorder %v4872, 0.0
    %vm4881 = vcmp.gt.f32.partialorder %v4873, 0.0
    %vm4882 = vcmp.gt.f32.partialorder %v4874, 0.0
    %v4883 = vmul.f32 %v4867, 0.01
    %v4884 = vmul.f32 %v4868, 0.01
    %v4885 = vmul.f32 %v4869, 0.01
    %v4886 = vmul.f32 %v4870, 0.01
    %v4887 = vmul.f32 %v4871, 0.01
    %v4888 = vmul.f32 %v4872, 0.01
    %v4889 = vmul.f32 %v4873, 0.01
    %v4890 = vmul.f32 %v4874, 0.01
    %v4891 = vsel %vm4875, %v4867, %v4883
    %v4892 = vsel %vm4876, %v4868, %v4884
    %v4893 = vsel %vm4877, %v4869, %v4885
    %v4894 = vsel %vm4878, %v4870, %v4886
    %v4895 = vsel %vm4879, %v4871, %v4887
    %v4896 = vsel %vm4880, %v4872, %v4888
    %v4897 = vsel %vm4881, %v4873, %v4889
    %v4898 = vsel %vm4882, %v4874, %v4890
    %v4899 = vpack.c.bf16 %v4892, %v4891
    %v4900 = vpack.c.bf16 %v4894, %v4893
    %v4901 = vpack.c.bf16 %v4896, %v4895
    %v4902 = vpack.c.bf16 %v4898, %v4897
    %v4903 = vadd.s32 %v1518, 64
    %v4904 = vadd.s32 %v1518, 72
    %v4905 = vadd.s32 %v1518, 80
    %v4906 = vadd.s32 %v1518, 88
    %v4907 = vadd.s32 %v1518, 96
    %v4908 = vadd.s32 %v1518, 104
    %v4909 = vadd.s32 %v1518, 112
    %v4910 = vadd.s32 %v1518, 120
    %v4911 = vadd.s32 %v1518, 128
    %v4912 = vadd.s32 %v1518, 136
    %v4913 = vadd.s32 %v1518, 144
    %v4914 = vadd.s32 %v1518, 152
    %v4915 = vadd.s32 %v1518, 160
    %v4916 = vadd.s32 %v1518, 168
    %v4917 = vadd.s32 %v1518, 176
    %v4918 = vadd.s32 %v1518, 184
    %v4919 = vadd.s32 %v1518, 192
    %v4920 = vadd.s32 %v1518, 200
    %v4921 = vadd.s32 %v1518, 208
    %v4922 = vadd.s32 %v1518, 216
    %v4923 = vadd.s32 %v1518, 224
    %v4924 = vadd.s32 %v1518, 232
    %v4925 = vadd.s32 %v1518, 240
    %v4926 = vadd.s32 %v1518, 248
    %vm4927 = vcmp.eq.s32.totalorder %v4903, %v3684
    %vm4928 = vcmp.eq.s32.totalorder %v4904, %v3684
    %vm4929 = vcmp.eq.s32.totalorder %v4905, %v3684
    %vm4930 = vcmp.eq.s32.totalorder %v4906, %v3684
    %vm4931 = vcmp.eq.s32.totalorder %v4907, %v3684
    %vm4932 = vcmp.eq.s32.totalorder %v4908, %v3684
    %vm4933 = vcmp.eq.s32.totalorder %v4909, %v3684
    %vm4934 = vcmp.eq.s32.totalorder %v4910, %v3684
    %vm4935 = vcmp.eq.s32.totalorder %v4911, %v3684
    %vm4936 = vcmp.eq.s32.totalorder %v4912, %v3684
    %vm4937 = vcmp.eq.s32.totalorder %v4913, %v3684
    %vm4938 = vcmp.eq.s32.totalorder %v4914, %v3684
    %vm4939 = vcmp.eq.s32.totalorder %v4915, %v3684
    %vm4940 = vcmp.eq.s32.totalorder %v4916, %v3684
    %vm4941 = vcmp.eq.s32.totalorder %v4917, %v3684
    %vm4942 = vcmp.eq.s32.totalorder %v4918, %v3684
    %vm4943 = vcmp.eq.s32.totalorder %v4919, %v3684
    %vm4944 = vcmp.eq.s32.totalorder %v4920, %v3684
    %vm4945 = vcmp.eq.s32.totalorder %v4921, %v3684
    %vm4946 = vcmp.eq.s32.totalorder %v4922, %v3684
    %vm4947 = vcmp.eq.s32.totalorder %v4923, %v3684
    %vm4948 = vcmp.eq.s32.totalorder %v4924, %v3684
    %vm4949 = vcmp.eq.s32.totalorder %v4925, %v3684
    %vm4950 = vcmp.eq.s32.totalorder %v4926, %v3684
    %v4951 = vsel %vm4927, 1.0, 0.0
    %v4952 = vsel %vm4928, 1.0, 0.0
    %v4953 = vsel %vm4929, 1.0, 0.0
    %v4954 = vsel %vm4930, 1.0, 0.0
    %v4955 = vsel %vm4931, 1.0, 0.0
    %v4956 = vsel %vm4932, 1.0, 0.0
    %v4957 = vsel %vm4933, 1.0, 0.0
    %v4958 = vsel %vm4934, 1.0, 0.0
    %v4959 = vsel %vm4935, 1.0, 0.0
    %v4960 = vsel %vm4936, 1.0, 0.0
    %v4961 = vsel %vm4937, 1.0, 0.0
    %v4962 = vsel %vm4938, 1.0, 0.0
    %v4963 = vsel %vm4939, 1.0, 0.0
    %v4964 = vsel %vm4940, 1.0, 0.0
    %v4965 = vsel %vm4941, 1.0, 0.0
    %v4966 = vsel %vm4942, 1.0, 0.0
    %v4967 = vsel %vm4943, 1.0, 0.0
    %v4968 = vsel %vm4944, 1.0, 0.0
    %v4969 = vsel %vm4945, 1.0, 0.0
    %v4970 = vsel %vm4946, 1.0, 0.0
    %v4971 = vsel %vm4947, 1.0, 0.0
    %v4972 = vsel %vm4948, 1.0, 0.0
    %v4973 = vsel %vm4949, 1.0, 0.0
    %v4974 = vsel %vm4950, 1.0, 0.0
    %v4975 = vpack.c.bf16 %v4952, %v4951
    %v4976 = vpack.c.bf16 %v4954, %v4953
    %v4977 = vpack.c.bf16 %v4956, %v4955
    %v4978 = vpack.c.bf16 %v4958, %v4957
    %v4979 = vpack.c.bf16 %v4960, %v4959
    %v4980 = vpack.c.bf16 %v4962, %v4961
    %v4981 = vpack.c.bf16 %v4964, %v4963
    %v4982 = vpack.c.bf16 %v4966, %v4965
    %v4983 = vpack.c.bf16 %v4968, %v4967
    %v4984 = vpack.c.bf16 %v4970, %v4969
    %v4985 = vpack.c.bf16 %v4972, %v4971
    %v4986 = vpack.c.bf16 %v4974, %v4973
    %vm4987 = vcmp.eq.s32.totalorder %v4903, %v3690
    %vm4988 = vcmp.eq.s32.totalorder %v4904, %v3690
    %vm4989 = vcmp.eq.s32.totalorder %v4905, %v3690
    %vm4990 = vcmp.eq.s32.totalorder %v4906, %v3690
    %vm4991 = vcmp.eq.s32.totalorder %v4907, %v3690
    %vm4992 = vcmp.eq.s32.totalorder %v4908, %v3690
    %vm4993 = vcmp.eq.s32.totalorder %v4909, %v3690
    %vm4994 = vcmp.eq.s32.totalorder %v4910, %v3690
    %vm4995 = vcmp.eq.s32.totalorder %v4911, %v3690
    %vm4996 = vcmp.eq.s32.totalorder %v4912, %v3690
    %vm4997 = vcmp.eq.s32.totalorder %v4913, %v3690
    %vm4998 = vcmp.eq.s32.totalorder %v4914, %v3690
    %vm4999 = vcmp.eq.s32.totalorder %v4915, %v3690
    %vm5000 = vcmp.eq.s32.totalorder %v4916, %v3690
    %vm5001 = vcmp.eq.s32.totalorder %v4917, %v3690
    %vm5002 = vcmp.eq.s32.totalorder %v4918, %v3690
    %vm5003 = vcmp.eq.s32.totalorder %v4919, %v3690
    %vm5004 = vcmp.eq.s32.totalorder %v4920, %v3690
    %vm5005 = vcmp.eq.s32.totalorder %v4921, %v3690
    %vm5006 = vcmp.eq.s32.totalorder %v4922, %v3690
    %vm5007 = vcmp.eq.s32.totalorder %v4923, %v3690
    %vm5008 = vcmp.eq.s32.totalorder %v4924, %v3690
    %vm5009 = vcmp.eq.s32.totalorder %v4925, %v3690
    %vm5010 = vcmp.eq.s32.totalorder %v4926, %v3690
    %v5011 = vsel %vm4987, 1.0, 0.0
    %v5012 = vsel %vm4988, 1.0, 0.0
    %v5013 = vsel %vm4989, 1.0, 0.0
    %v5014 = vsel %vm4990, 1.0, 0.0
    %v5015 = vsel %vm4991, 1.0, 0.0
    %v5016 = vsel %vm4992, 1.0, 0.0
    %v5017 = vsel %vm4993, 1.0, 0.0
    %v5018 = vsel %vm4994, 1.0, 0.0
    %v5019 = vsel %vm4995, 1.0, 0.0
    %v5020 = vsel %vm4996, 1.0, 0.0
    %v5021 = vsel %vm4997, 1.0, 0.0
    %v5022 = vsel %vm4998, 1.0, 0.0
    %v5023 = vsel %vm4999, 1.0, 0.0
    %v5024 = vsel %vm5000, 1.0, 0.0
    %v5025 = vsel %vm5001, 1.0, 0.0
    %v5026 = vsel %vm5002, 1.0, 0.0
    %v5027 = vsel %vm5003, 1.0, 0.0
    %v5028 = vsel %vm5004, 1.0, 0.0
    %v5029 = vsel %vm5005, 1.0, 0.0
    %v5030 = vsel %vm5006, 1.0, 0.0
    %v5031 = vsel %vm5007, 1.0, 0.0
    %v5032 = vsel %vm5008, 1.0, 0.0
    %v5033 = vsel %vm5009, 1.0, 0.0
    %v5034 = vsel %vm5010, 1.0, 0.0
    %v5035 = vpack.c.bf16 %v5012, %v5011
    %v5036 = vpack.c.bf16 %v5014, %v5013
    %v5037 = vpack.c.bf16 %v5016, %v5015
    %v5038 = vpack.c.bf16 %v5018, %v5017
    %v5039 = vpack.c.bf16 %v5020, %v5019
    %v5040 = vpack.c.bf16 %v5022, %v5021
    %v5041 = vpack.c.bf16 %v5024, %v5023
    %v5042 = vpack.c.bf16 %v5026, %v5025
    %v5043 = vpack.c.bf16 %v5028, %v5027
    %v5044 = vpack.c.bf16 %v5030, %v5029
    %v5045 = vpack.c.bf16 %v5032, %v5031
    %v5046 = vpack.c.bf16 %v5034, %v5033
    %5051 = vrot.lane.b32.xlu0 %v4899, 96
    %v5052 = vpop.permute.xlu0 %5051
    %5053 = vrot.lane.b32.xlu0 %v4900, 96
    %v5054 = vpop.permute.xlu0 %5053
    %5055 = vrot.lane.b32.xlu0 %v4901, 96
    %v5056 = vpop.permute.xlu0 %5055
    %5057 = vrot.lane.b32.xlu0 %v4902, 96
    %v5058 = vpop.permute.xlu0 %5057
    %v5063 = vsel %vm258, %v3695, 0
    %v5065 = vsel %vm258, %v4234, 0
    %v5067 = vsel %vm258, %v4235, 0
    %v5069 = vsel %vm258, %v4236, 0
    %v5072 = vsel %vm258, %v5035, 0
    %v5075 = vsel %vm258, %v5036, 0
    %v5078 = vsel %vm258, %v5037, 0
    %v5081 = vsel %vm258, %v5038, 0
    %v5084 = vsel %vm258, %v5039, 0
    %v5087 = vsel %vm258, %v5040, 0
    %v5090 = vsel %vm258, %v5041, 0
    %v5093 = vsel %vm258, %v5042, 0
    %v5096 = vsel %vm258, %v5043, 0
    %v5099 = vsel %vm258, %v5044, 0
    %v5102 = vsel %vm258, %v5045, 0
    %v5105 = vsel %vm258, %v5046, 0
    %5107 = vmatprep.subr.bf16.mxu0 0
    %5108 = vmatpush1.bf16.msra.mxu0 %v5052
    %5109 = vmatprep.subr.bf16.mxu0 0
    %5110 = vmatpush1.bf16.msra.mxu0 %v5054
    %5111 = vmatprep.subr.bf16.mxu0 0
    %5112 = vmatpush1.bf16.msra.mxu0 %v5056
    %5113 = vmatprep.subr.bf16.mxu0 0
    %5114 = vmatpush1.bf16.msra.mxu0 %v5058
    %5115 = vmatprep.subr.bf16.mxu0 0
    %5116 = vmatpush1.bf16.msra.mxu0 0
    %5117 = vmatprep.subr.bf16.mxu0 0
    %5118 = vmatpush1.bf16.msra.mxu0 0
    %5119 = vmatprep.subr.bf16.mxu0 0
    %5120 = vmatpush1.bf16.msra.mxu0 0
    %5121 = vmatprep.subr.bf16.mxu0 0
    %5122 = vmatpush1.bf16.msra.mxu0 0
    %5123 = vmatprep.subr.bf16.mxu0 0
    %5124 = vmatpush1.bf16.msra.mxu0 0
    %5125 = vmatprep.subr.bf16.mxu0 0
    %5126 = vmatpush1.bf16.msra.mxu0 0
    %5127 = vmatprep.subr.bf16.mxu0 0
    %5128 = vmatpush1.bf16.msra.mxu0 0
    %5129 = vmatprep.subr.bf16.mxu0 0
    %5130 = vmatpush1.bf16.msra.mxu0 0
    %5131 = vmatprep.subr.bf16.mxu0 0
    %5132 = vmatpush1.bf16.msra.mxu0 0
    %5133 = vmatprep.subr.bf16.mxu0 0
    %5134 = vmatpush1.bf16.msra.mxu0 0
    %5135 = vmatprep.subr.bf16.mxu0 0
    %5136 = vmatpush1.bf16.msra.mxu0 0
    %5137 = vmatprep.subr.bf16.mxu0 0
    %5138 = vmatpush1.bf16.msra.mxu0 0
    %5139 = vmatprep.mubr.bf16.mxu0 0
    %5140 = vmatmul.mubr.bf16.gmra.mrb[0].mxu0 %v5063
    %v5141 = vpop.f32.mrb[0].mxu0
    %v5142 = vadd.f32 0.0, %v5141
    %v5143 = vpop.f32.mrb[0].mxu0
    %v5144 = vpop.f32.mrb[0].mxu0
    %v5145 = vadd.f32 0.0, %v5144
    %v5146 = vpop.f32.mrb[0].mxu0
    %5147 = vmatprep.mubr.bf16.mxu0 0
    %5148 = vmatmul.mubr.bf16.gmra.mrb[0].mxu0 %v5065
    %v5149 = vpop.f32.mrb[0].mxu0
    %v5150 = vadd.f32 0.0, %v5149
    %v5151 = vpop.f32.mrb[0].mxu0
    %v5152 = vpop.f32.mrb[0].mxu0
    %v5153 = vadd.f32 0.0, %v5152
    %v5154 = vpop.f32.mrb[0].mxu0
    %5155 = vmatprep.mubr.bf16.mxu0 0
    %5156 = vmatmul.mubr.bf16.gmra.mrb[0].mxu0 %v5067
    %v5157 = vpop.f32.mrb[0].mxu0
    %v5158 = vadd.f32 0.0, %v5157
    %v5159 = vpop.f32.mrb[0].mxu0
    %v5160 = vpop.f32.mrb[0].mxu0
    %v5161 = vadd.f32 0.0, %v5160
    %v5162 = vpop.f32.mrb[0].mxu0
    %5163 = vmatprep.mubr.bf16.mxu0 0
    %5164 = vmatmul.mubr.bf16.gmra.mrb[0].mxu0 %v5069
    %v5165 = vpop.f32.mrb[0].mxu0
    %v5166 = vadd.f32 0.0, %v5165
    %v5167 = vpop.f32.mrb[0].mxu0
    %v5168 = vpop.f32.mrb[0].mxu0
    %v5169 = vadd.f32 0.0, %v5168
    %v5170 = vpop.f32.mrb[0].mxu0
    %5171 = vmatprep.mubr.bf16.mxu0 0
    %5172 = vmatmul.mubr.bf16.gmra.mrb[0].mxu0 %v5072
    %v5173 = vpop.f32.mrb[0].mxu0
    %v5174 = vadd.f32 0.0, %v5173
    %v5175 = vpop.f32.mrb[0].mxu0
    %v5176 = vpop.f32.mrb[0].mxu0
    %v5177 = vadd.f32 0.0, %v5176
    %v5178 = vpop.f32.mrb[0].mxu0
    %5179 = vmatprep.mubr.bf16.mxu0 0
    %5180 = vmatmul.mubr.bf16.gmra.mrb[0].mxu0 %v5075
    %v5181 = vpop.f32.mrb[0].mxu0
    %v5182 = vadd.f32 0.0, %v5181
    %v5183 = vpop.f32.mrb[0].mxu0
    %v5184 = vpop.f32.mrb[0].mxu0
    %v5185 = vadd.f32 0.0, %v5184
    %v5186 = vpop.f32.mrb[0].mxu0
    %5187 = vmatprep.mubr.bf16.mxu0 0
    %5188 = vmatmul.mubr.bf16.gmra.mrb[0].mxu0 %v5078
    %v5189 = vpop.f32.mrb[0].mxu0
    %v5190 = vadd.f32 0.0, %v5189
    %v5191 = vpop.f32.mrb[0].mxu0
    %v5192 = vpop.f32.mrb[0].mxu0
    %v5193 = vadd.f32 0.0, %v5192
    %v5194 = vpop.f32.mrb[0].mxu0
    %5195 = vmatprep.mubr.bf16.mxu0 0
    %5196 = vmatmul.mubr.bf16.gmra.mrb[0].mxu0 %v5081
    %v5197 = vpop.f32.mrb[0].mxu0
    %v5198 = vadd.f32 0.0, %v5197
    %v5199 = vpop.f32.mrb[0].mxu0
    %v5200 = vpop.f32.mrb[0].mxu0
    %v5201 = vadd.f32 0.0, %v5200
    %v5202 = vpop.f32.mrb[0].mxu0
    %5203 = vmatprep.mubr.bf16.mxu0 0
    %5204 = vmatmul.mubr.bf16.gmra.mrb[0].mxu0 %v5084
    %v5205 = vpop.f32.mrb[0].mxu0
    %v5206 = vadd.f32 0.0, %v5205
    %v5207 = vpop.f32.mrb[0].mxu0
    %v5208 = vpop.f32.mrb[0].mxu0
    %v5209 = vadd.f32 0.0, %v5208
    %v5210 = vpop.f32.mrb[0].mxu0
    %5211 = vmatprep.mubr.bf16.mxu0 0
    %5212 = vmatmul.mubr.bf16.gmra.mrb[0].mxu0 %v5087
    %v5213 = vpop.f32.mrb[0].mxu0
    %v5214 = vadd.f32 0.0, %v5213
    %v5215 = vpop.f32.mrb[0].mxu0
    %v5216 = vpop.f32.mrb[0].mxu0
    %v5217 = vadd.f32 0.0, %v5216
    %v5218 = vpop.f32.mrb[0].mxu0
    %5219 = vmatprep.mubr.bf16.mxu0 0
    %5220 = vmatmul.mubr.bf16.gmra.mrb[0].mxu0 %v5090
    %v5221 = vpop.f32.mrb[0].mxu0
    %v5222 = vadd.f32 0.0, %v5221
    %v5223 = vpop.f32.mrb[0].mxu0
    %v5224 = vpop.f32.mrb[0].mxu0
    %v5225 = vadd.f32 0.0, %v5224
    %v5226 = vpop.f32.mrb[0].mxu0
    %5227 = vmatprep.mubr.bf16.mxu0 0
    %5228 = vmatmul.mubr.bf16.gmra.mrb[0].mxu0 %v5093
    %v5229 = vpop.f32.mrb[0].mxu0
    %v5230 = vadd.f32 0.0, %v5229
    %v5231 = vpop.f32.mrb[0].mxu0
    %v5232 = vpop.f32.mrb[0].mxu0
    %v5233 = vadd.f32 0.0, %v5232
    %v5234 = vpop.f32.mrb[0].mxu0
    %5235 = vmatprep.mubr.bf16.mxu0 0
    %5236 = vmatmul.mubr.bf16.gmra.mrb[0].mxu0 %v5096
    %v5237 = vpop.f32.mrb[0].mxu0
    %v5238 = vadd.f32 0.0, %v5237
    %v5239 = vpop.f32.mrb[0].mxu0
    %v5240 = vpop.f32.mrb[0].mxu0
    %v5241 = vadd.f32 0.0, %v5240
    %v5242 = vpop.f32.mrb[0].mxu0
    %5243 = vmatprep.mubr.bf16.mxu0 0
    %5244 = vmatmul.mubr.bf16.gmra.mrb[0].mxu0 %v5099
    %v5245 = vpop.f32.mrb[0].mxu0
    %v5246 = vadd.f32 0.0, %v5245
    %v5247 = vpop.f32.mrb[0].mxu0
    %v5248 = vpop.f32.mrb[0].mxu0
    %v5249 = vadd.f32 0.0, %v5248
    %v5250 = vpop.f32.mrb[0].mxu0
    %5251 = vmatprep.mubr.bf16.mxu0 0
    %5252 = vmatmul.mubr.bf16.gmra.mrb[0].mxu0 %v5102
    %v5253 = vpop.f32.mrb[0].mxu0
    %v5254 = vadd.f32 0.0, %v5253
    %v5255 = vpop.f32.mrb[0].mxu0
    %v5256 = vpop.f32.mrb[0].mxu0
    %v5257 = vadd.f32 0.0, %v5256
    %v5258 = vpop.f32.mrb[0].mxu0
    %5259 = vmatprep.mubr.bf16.mxu0 0
    %5260 = vmatmul.mubr.bf16.gmra.mrb[0].mxu0 %v5105
    %v5261 = vpop.f32.mrb[0].mxu0
    %v5262 = vadd.f32 0.0, %v5261
    %v5263 = vpop.f32.mrb[0].mxu0
    %v5264 = vpop.f32.mrb[0].mxu0
    %v5265 = vadd.f32 0.0, %v5264
    %v5266 = vpop.f32.mrb[0].mxu0
    %5267 = vdwg.mxu0
    %v5268 = vsel %vm258, %v3689, 0
    %v5270 = vsel %vm258, %v4219, 0
    %v5272 = vsel %vm258, %v4220, 0
    %v5274 = vsel %vm258, %v4221, 0
    %v5277 = vsel %vm258, %v4975, 0
    %v5280 = vsel %vm258, %v4976, 0
    %v5283 = vsel %vm258, %v4977, 0
    %v5286 = vsel %vm258, %v4978, 0
    %v5289 = vsel %vm258, %v4979, 0
    %v5292 = vsel %vm258, %v4980, 0
    %v5295 = vsel %vm258, %v4981, 0
    %v5298 = vsel %vm258, %v4982, 0
    %v5301 = vsel %vm258, %v4983, 0
    %v5304 = vsel %vm258, %v4984, 0
    %v5307 = vsel %vm258, %v4985, 0
    %v5310 = vsel %vm258, %v4986, 0
    %5312 = vmatprep.subr.bf16.mxu0 0
    %5313 = vmatpush1.bf16.msra.mxu0 %v4899
    %5314 = vmatprep.subr.bf16.mxu0 0
    %5315 = vmatpush1.bf16.msra.mxu0 %v4900
    %5316 = vmatprep.subr.bf16.mxu0 0
    %5317 = vmatpush1.bf16.msra.mxu0 %v4901
    %5318 = vmatprep.subr.bf16.mxu0 0
    %5319 = vmatpush1.bf16.msra.mxu0 %v4902
    %5320 = vmatprep.subr.bf16.mxu0 0
    %5321 = vmatpush1.bf16.msra.mxu0 0
    %5322 = vmatprep.subr.bf16.mxu0 0
    %5323 = vmatpush1.bf16.msra.mxu0 0
    %5324 = vmatprep.subr.bf16.mxu0 0
    %5325 = vmatpush1.bf16.msra.mxu0 0
    %5326 = vmatprep.subr.bf16.mxu0 0
    %5327 = vmatpush1.bf16.msra.mxu0 0
    %5328 = vmatprep.subr.bf16.mxu0 0
    %5329 = vmatpush1.bf16.msra.mxu0 0
    %5330 = vmatprep.subr.bf16.mxu0 0
    %5331 = vmatpush1.bf16.msra.mxu0 0
    %5332 = vmatprep.subr.bf16.mxu0 0
    %5333 = vmatpush1.bf16.msra.mxu0 0
    %5334 = vmatprep.subr.bf16.mxu0 0
    %5335 = vmatpush1.bf16.msra.mxu0 0
    %5336 = vmatprep.subr.bf16.mxu0 0
    %5337 = vmatpush1.bf16.msra.mxu0 0
    %5338 = vmatprep.subr.bf16.mxu0 0
    %5339 = vmatpush1.bf16.msra.mxu0 0
    %5340 = vmatprep.subr.bf16.mxu0 0
    %5341 = vmatpush1.bf16.msra.mxu0 0
    %5342 = vmatprep.subr.bf16.mxu0 0
    %5343 = vmatpush1.bf16.msra.mxu0 0
    %5344 = vmatprep.mubr.bf16.mxu0 0
    %5345 = vmatmul.mubr.bf16.gmra.mrb[0].mxu0 %v5268
    %v5346 = vpop.f32.mrb[0].mxu0
    %v5347 = vadd.f32 %v5142, %v5346
    %v5348 = vpop.f32.mrb[0].mxu0
    %v5349 = vpop.f32.mrb[0].mxu0
    %v5350 = vadd.f32 %v5145, %v5349
    %v5351 = vpop.f32.mrb[0].mxu0
    %5352 = vmatprep.mubr.bf16.mxu0 0
    %5353 = vmatmul.mubr.bf16.gmra.mrb[0].mxu0 %v5270
    %v5354 = vpop.f32.mrb[0].mxu0
    %v5355 = vadd.f32 %v5150, %v5354
    %v5356 = vpop.f32.mrb[0].mxu0
    %v5357 = vpop.f32.mrb[0].mxu0
    %v5358 = vadd.f32 %v5153, %v5357
    %v5359 = vpop.f32.mrb[0].mxu0
    %5360 = vmatprep.mubr.bf16.mxu0 0
    %5361 = vmatmul.mubr.bf16.gmra.mrb[0].mxu0 %v5272
    %v5362 = vpop.f32.mrb[0].mxu0
    %v5363 = vadd.f32 %v5158, %v5362
    %v5364 = vpop.f32.mrb[0].mxu0
    %v5365 = vpop.f32.mrb[0].mxu0
    %v5366 = vadd.f32 %v5161, %v5365
    %v5367 = vpop.f32.mrb[0].mxu0
    %5368 = vmatprep.mubr.bf16.mxu0 0
    %5369 = vmatmul.mubr.bf16.gmra.mrb[0].mxu0 %v5274
    %v5370 = vpop.f32.mrb[0].mxu0
    %v5371 = vadd.f32 %v5166, %v5370
    %v5372 = vpop.f32.mrb[0].mxu0
    %v5373 = vpop.f32.mrb[0].mxu0
    %v5374 = vadd.f32 %v5169, %v5373
    %v5375 = vpop.f32.mrb[0].mxu0
    %5376 = vmatprep.mubr.bf16.mxu0 0
    %5377 = vmatmul.mubr.bf16.gmra.mrb[0].mxu0 %v5277
    %v5378 = vpop.f32.mrb[0].mxu0
    %v5379 = vadd.f32 %v5174, %v5378
    %v5380 = vpop.f32.mrb[0].mxu0
    %v5381 = vpop.f32.mrb[0].mxu0
    %v5382 = vadd.f32 %v5177, %v5381
    %v5383 = vpop.f32.mrb[0].mxu0
    %5384 = vmatprep.mubr.bf16.mxu0 0
    %5385 = vmatmul.mubr.bf16.gmra.mrb[0].mxu0 %v5280
    %v5386 = vpop.f32.mrb[0].mxu0
    %v5387 = vadd.f32 %v5182, %v5386
    %v5388 = vpop.f32.mrb[0].mxu0
    %v5389 = vpop.f32.mrb[0].mxu0
    %v5390 = vadd.f32 %v5185, %v5389
    %v5391 = vpop.f32.mrb[0].mxu0
    %5392 = vmatprep.mubr.bf16.mxu0 0
    %5393 = vmatmul.mubr.bf16.gmra.mrb[0].mxu0 %v5283
    %v5394 = vpop.f32.mrb[0].mxu0
    %v5395 = vadd.f32 %v5190, %v5394
    %v5396 = vpop.f32.mrb[0].mxu0
    %v5397 = vpop.f32.mrb[0].mxu0
    %v5398 = vadd.f32 %v5193, %v5397
    %v5399 = vpop.f32.mrb[0].mxu0
    %5400 = vmatprep.mubr.bf16.mxu0 0
    %5401 = vmatmul.mubr.bf16.gmra.mrb[0].mxu0 %v5286
    %v5402 = vpop.f32.mrb[0].mxu0
    %v5403 = vadd.f32 %v5198, %v5402
    %v5404 = vpop.f32.mrb[0].mxu0
    %v5405 = vpop.f32.mrb[0].mxu0
    %v5406 = vadd.f32 %v5201, %v5405
    %v5407 = vpop.f32.mrb[0].mxu0
    %5408 = vmatprep.mubr.bf16.mxu0 0
    %5409 = vmatmul.mubr.bf16.gmra.mrb[0].mxu0 %v5289
    %v5410 = vpop.f32.mrb[0].mxu0
    %v5411 = vadd.f32 %v5206, %v5410
    %v5412 = vpop.f32.mrb[0].mxu0
    %v5413 = vpop.f32.mrb[0].mxu0
    %v5414 = vadd.f32 %v5209, %v5413
    %v5415 = vpop.f32.mrb[0].mxu0
    %5416 = vmatprep.mubr.bf16.mxu0 0
    %5417 = vmatmul.mubr.bf16.gmra.mrb[0].mxu0 %v5292
    %v5418 = vpop.f32.mrb[0].mxu0
    %v5419 = vadd.f32 %v5214, %v5418
    %v5420 = vpop.f32.mrb[0].mxu0
    %v5421 = vpop.f32.mrb[0].mxu0
    %v5422 = vadd.f32 %v5217, %v5421
    %v5423 = vpop.f32.mrb[0].mxu0
    %5424 = vmatprep.mubr.bf16.mxu0 0
    %5425 = vmatmul.mubr.bf16.gmra.mrb[0].mxu0 %v5295
    %v5426 = vpop.f32.mrb[0].mxu0
    %v5427 = vadd.f32 %v5222, %v5426
    %v5428 = vpop.f32.mrb[0].mxu0
    %v5429 = vpop.f32.mrb[0].mxu0
    %v5430 = vadd.f32 %v5225, %v5429
    %v5431 = vpop.f32.mrb[0].mxu0
    %5432 = vmatprep.mubr.bf16.mxu0 0
    %5433 = vmatmul.mubr.bf16.gmra.mrb[0].mxu0 %v5298
    %v5434 = vpop.f32.mrb[0].mxu0
    %v5435 = vadd.f32 %v5230, %v5434
    %v5436 = vpop.f32.mrb[0].mxu0
    %v5437 = vpop.f32.mrb[0].mxu0
    %v5438 = vadd.f32 %v5233, %v5437
    %v5439 = vpop.f32.mrb[0].mxu0
    %5440 = vmatprep.mubr.bf16.mxu0 0
    %5441 = vmatmul.mubr.bf16.gmra.mrb[0].mxu0 %v5301
    %v5442 = vpop.f32.mrb[0].mxu0
    %v5443 = vadd.f32 %v5238, %v5442
    %v5444 = vpop.f32.mrb[0].mxu0
    %v5445 = vpop.f32.mrb[0].mxu0
    %v5446 = vadd.f32 %v5241, %v5445
    %v5447 = vpop.f32.mrb[0].mxu0
    %5448 = vmatprep.mubr.bf16.mxu0 0
    %5449 = vmatmul.mubr.bf16.gmra.mrb[0].mxu0 %v5304
    %v5450 = vpop.f32.mrb[0].mxu0
    %v5451 = vadd.f32 %v5246, %v5450
    %v5452 = vpop.f32.mrb[0].mxu0
    %v5453 = vpop.f32.mrb[0].mxu0
    %v5454 = vadd.f32 %v5249, %v5453
    %v5455 = vpop.f32.mrb[0].mxu0
    %5456 = vmatprep.mubr.bf16.mxu0 0
    %5457 = vmatmul.mubr.bf16.gmra.mrb[0].mxu0 %v5307
    %v5458 = vpop.f32.mrb[0].mxu0
    %v5459 = vadd.f32 %v5254, %v5458
    %v5460 = vpop.f32.mrb[0].mxu0
    %v5461 = vpop.f32.mrb[0].mxu0
    %v5462 = vadd.f32 %v5257, %v5461
    %v5463 = vpop.f32.mrb[0].mxu0
    %5464 = vmatprep.mubr.bf16.mxu0 0
    %5465 = vmatmul.mubr.bf16.gmra.mrb[0].mxu0 %v5310
    %v5466 = vpop.f32.mrb[0].mxu0
    %v5467 = vadd.f32 %v5262, %v5466
    %v5468 = vpop.f32.mrb[0].mxu0
    %v5469 = vpop.f32.mrb[0].mxu0
    %v5470 = vadd.f32 %v5265, %v5469
    %v5471 = vpop.f32.mrb[0].mxu0
    %5472 = vdwg.mxu0
    %vm5473 = vcmp.eq.s32.totalorder %v4903, %v3790
    %vm5474 = vcmp.eq.s32.totalorder %v4904, %v3790
    %vm5475 = vcmp.eq.s32.totalorder %v4905, %v3790
    %vm5476 = vcmp.eq.s32.totalorder %v4906, %v3790
    %vm5477 = vcmp.eq.s32.totalorder %v4907, %v3790
    %vm5478 = vcmp.eq.s32.totalorder %v4908, %v3790
    %vm5479 = vcmp.eq.s32.totalorder %v4909, %v3790
    %vm5480 = vcmp.eq.s32.totalorder %v4910, %v3790
    %vm5481 = vcmp.eq.s32.totalorder %v4911, %v3790
    %vm5482 = vcmp.eq.s32.totalorder %v4912, %v3790
    %vm5483 = vcmp.eq.s32.totalorder %v4913, %v3790
    %vm5484 = vcmp.eq.s32.totalorder %v4914, %v3790
    %vm5485 = vcmp.eq.s32.totalorder %v4915, %v3790
    %vm5486 = vcmp.eq.s32.totalorder %v4916, %v3790
    %vm5487 = vcmp.eq.s32.totalorder %v4917, %v3790
    %vm5488 = vcmp.eq.s32.totalorder %v4918, %v3790
    %vm5489 = vcmp.eq.s32.totalorder %v4919, %v3790
    %vm5490 = vcmp.eq.s32.totalorder %v4920, %v3790
    %vm5491 = vcmp.eq.s32.totalorder %v4921, %v3790
    %vm5492 = vcmp.eq.s32.totalorder %v4922, %v3790
    %vm5493 = vcmp.eq.s32.totalorder %v4923, %v3790
    %vm5494 = vcmp.eq.s32.totalorder %v4924, %v3790
    %vm5495 = vcmp.eq.s32.totalorder %v4925, %v3790
    %vm5496 = vcmp.eq.s32.totalorder %v4926, %v3790
    %v5497 = vsel %vm5473, 1.0, 0.0
    %v5498 = vsel %vm5474, 1.0, 0.0
    %v5499 = vsel %vm5475, 1.0, 0.0
    %v5500 = vsel %vm5476, 1.0, 0.0
    %v5501 = vsel %vm5477, 1.0, 0.0
    %v5502 = vsel %vm5478, 1.0, 0.0
    %v5503 = vsel %vm5479, 1.0, 0.0
    %v5504 = vsel %vm5480, 1.0, 0.0
    %v5505 = vsel %vm5481, 1.0, 0.0
    %v5506 = vsel %vm5482, 1.0, 0.0
    %v5507 = vsel %vm5483, 1.0, 0.0
    %v5508 = vsel %vm5484, 1.0, 0.0
    %v5509 = vsel %vm5485, 1.0, 0.0
    %v5510 = vsel %vm5486, 1.0, 0.0
    %v5511 = vsel %vm5487, 1.0, 0.0
    %v5512 = vsel %vm5488, 1.0, 0.0
    %v5513 = vsel %vm5489, 1.0, 0.0
    %v5514 = vsel %vm5490, 1.0, 0.0
    %v5515 = vsel %vm5491, 1.0, 0.0
    %v5516 = vsel %vm5492, 1.0, 0.0
    %v5517 = vsel %vm5493, 1.0, 0.0
    %v5518 = vsel %vm5494, 1.0, 0.0
    %v5519 = vsel %vm5495, 1.0, 0.0
    %v5520 = vsel %vm5496, 1.0, 0.0
    %v5521 = vpack.c.bf16 %v5498, %v5497
    %v5522 = vpack.c.bf16 %v5500, %v5499
    %v5523 = vpack.c.bf16 %v5502, %v5501
    %v5524 = vpack.c.bf16 %v5504, %v5503
    %v5525 = vpack.c.bf16 %v5506, %v5505
    %v5526 = vpack.c.bf16 %v5508, %v5507
    %v5527 = vpack.c.bf16 %v5510, %v5509
    %v5528 = vpack.c.bf16 %v5512, %v5511
    %v5529 = vpack.c.bf16 %v5514, %v5513
    %v5530 = vpack.c.bf16 %v5516, %v5515
    %v5531 = vpack.c.bf16 %v5518, %v5517
    %v5532 = vpack.c.bf16 %v5520, %v5519
    %5533 = vrot.lane.b32.xlu0 %v4899, 64
    %v5534 = vpop.permute.xlu0 %5533
    %5535 = vrot.lane.b32.xlu0 %v4900, 64
    %v5536 = vpop.permute.xlu0 %5535
    %5537 = vrot.lane.b32.xlu0 %v4901, 64
    %v5538 = vpop.permute.xlu0 %5537
    %5539 = vrot.lane.b32.xlu0 %v4902, 64
    %v5540 = vpop.permute.xlu0 %5539
    %v5545 = vsel %vm258, %v3795, 0
    %v5547 = vsel %vm258, %v4405, 0
    %v5549 = vsel %vm258, %v4406, 0
    %v5551 = vsel %vm258, %v4407, 0
    %v5554 = vsel %vm258, %v5521, 0
    %v5557 = vsel %vm258, %v5522, 0
    %v5560 = vsel %vm258, %v5523, 0
    %v5563 = vsel %vm258, %v5524, 0
    %v5566 = vsel %vm258, %v5525, 0
    %v5569 = vsel %vm258, %v5526, 0
    %v5572 = vsel %vm258, %v5527, 0
    %v5575 = vsel %vm258, %v5528, 0
    %v5578 = vsel %vm258, %v5529, 0
    %v5581 = vsel %vm258, %v5530, 0
    %v5584 = vsel %vm258, %v5531, 0
    %v5587 = vsel %vm258, %v5532, 0
    %5589 = vmatprep.subr.bf16.mxu0 0
    %5590 = vmatpush1.bf16.msra.mxu0 %v5534
    %5591 = vmatprep.subr.bf16.mxu0 0
    %5592 = vmatpush1.bf16.msra.mxu0 %v5536
    %5593 = vmatprep.subr.bf16.mxu0 0
    %5594 = vmatpush1.bf16.msra.mxu0 %v5538
    %5595 = vmatprep.subr.bf16.mxu0 0
    %5596 = vmatpush1.bf16.msra.mxu0 %v5540
    %5597 = vmatprep.subr.bf16.mxu0 0
    %5598 = vmatpush1.bf16.msra.mxu0 0
    %5599 = vmatprep.subr.bf16.mxu0 0
    %5600 = vmatpush1.bf16.msra.mxu0 0
    %5601 = vmatprep.subr.bf16.mxu0 0
    %5602 = vmatpush1.bf16.msra.mxu0 0
    %5603 = vmatprep.subr.bf16.mxu0 0
    %5604 = vmatpush1.bf16.msra.mxu0 0
    %5605 = vmatprep.subr.bf16.mxu0 0
    %5606 = vmatpush1.bf16.msra.mxu0 0
    %5607 = vmatprep.subr.bf16.mxu0 0
    %5608 = vmatpush1.bf16.msra.mxu0 0
    %5609 = vmatprep.subr.bf16.mxu0 0
    %5610 = vmatpush1.bf16.msra.mxu0 0
    %5611 = vmatprep.subr.bf16.mxu0 0
    %5612 = vmatpush1.bf16.msra.mxu0 0
    %5613 = vmatprep.subr.bf16.mxu0 0
    %5614 = vmatpush1.bf16.msra.mxu0 0
    %5615 = vmatprep.subr.bf16.mxu0 0
    %5616 = vmatpush1.bf16.msra.mxu0 0
    %5617 = vmatprep.subr.bf16.mxu0 0
    %5618 = vmatpush1.bf16.msra.mxu0 0
    %5619 = vmatprep.subr.bf16.mxu0 0
    %5620 = vmatpush1.bf16.msra.mxu0 0
    %5621 = vmatprep.mubr.bf16.mxu0 0
    %5622 = vmatmul.mubr.bf16.gmra.mrb[0].mxu0 %v5545
    %v5623 = vpop.f32.mrb[0].mxu0
    %v5624 = vadd.f32 0.0, %v5623
    %v5625 = vpop.f32.mrb[0].mxu0
    %v5626 = vpop.f32.mrb[0].mxu0
    %v5627 = vadd.f32 0.0, %v5626
    %v5628 = vpop.f32.mrb[0].mxu0
    %5629 = vmatprep.mubr.bf16.mxu0 0
    %5630 = vmatmul.mubr.bf16.gmra.mrb[0].mxu0 %v5547
    %v5631 = vpop.f32.mrb[0].mxu0
    %v5632 = vadd.f32 0.0, %v5631
    %v5633 = vpop.f32.mrb[0].mxu0
    %v5634 = vpop.f32.mrb[0].mxu0
    %v5635 = vadd.f32 0.0, %v5634
    %v5636 = vpop.f32.mrb[0].mxu0
    %5637 = vmatprep.mubr.bf16.mxu0 0
    %5638 = vmatmul.mubr.bf16.gmra.mrb[0].mxu0 %v5549
    %v5639 = vpop.f32.mrb[0].mxu0
    %v5640 = vadd.f32 0.0, %v5639
    %v5641 = vpop.f32.mrb[0].mxu0
    %v5642 = vpop.f32.mrb[0].mxu0
    %v5643 = vadd.f32 0.0, %v5642
    %v5644 = vpop.f32.mrb[0].mxu0
    %5645 = vmatprep.mubr.bf16.mxu0 0
    %5646 = vmatmul.mubr.bf16.gmra.mrb[0].mxu0 %v5551
    %v5647 = vpop.f32.mrb[0].mxu0
    %v5648 = vadd.f32 0.0, %v5647
    %v5649 = vpop.f32.mrb[0].mxu0
    %v5650 = vpop.f32.mrb[0].mxu0
    %v5651 = vadd.f32 0.0, %v5650
    %v5652 = vpop.f32.mrb[0].mxu0
    %5653 = vmatprep.mubr.bf16.mxu0 0
    %5654 = vmatmul.mubr.bf16.gmra.mrb[0].mxu0 %v5554
    %v5655 = vpop.f32.mrb[0].mxu0
    %v5656 = vadd.f32 0.0, %v5655
    %v5657 = vpop.f32.mrb[0].mxu0
    %v5658 = vpop.f32.mrb[0].mxu0
    %v5659 = vadd.f32 0.0, %v5658
    %v5660 = vpop.f32.mrb[0].mxu0
    %5661 = vmatprep.mubr.bf16.mxu0 0
    %5662 = vmatmul.mubr.bf16.gmra.mrb[0].mxu0 %v5557
    %v5663 = vpop.f32.mrb[0].mxu0
    %v5664 = vadd.f32 0.0, %v5663
    %v5665 = vpop.f32.mrb[0].mxu0
    %v5666 = vpop.f32.mrb[0].mxu0
    %v5667 = vadd.f32 0.0, %v5666
    %v5668 = vpop.f32.mrb[0].mxu0
    %5669 = vmatprep.mubr.bf16.mxu0 0
    %5670 = vmatmul.mubr.bf16.gmra.mrb[0].mxu0 %v5560
    %v5671 = vpop.f32.mrb[0].mxu0
    %v5672 = vadd.f32 0.0, %v5671
    %v5673 = vpop.f32.mrb[0].mxu0
    %v5674 = vpop.f32.mrb[0].mxu0
    %v5675 = vadd.f32 0.0, %v5674
    %v5676 = vpop.f32.mrb[0].mxu0
    %5677 = vmatprep.mubr.bf16.mxu0 0
    %5678 = vmatmul.mubr.bf16.gmra.mrb[0].mxu0 %v5563
    %v5679 = vpop.f32.mrb[0].mxu0
    %v5680 = vadd.f32 0.0, %v5679
    %v5681 = vpop.f32.mrb[0].mxu0
    %v5682 = vpop.f32.mrb[0].mxu0
    %v5683 = vadd.f32 0.0, %v5682
    %v5684 = vpop.f32.mrb[0].mxu0
    %5685 = vmatprep.mubr.bf16.mxu0 0
    %5686 = vmatmul.mubr.bf16.gmra.mrb[0].mxu0 %v5566
    %v5687 = vpop.f32.mrb[0].mxu0
    %v5688 = vadd.f32 0.0, %v5687
    %v5689 = vpop.f32.mrb[0].mxu0
    %v5690 = vpop.f32.mrb[0].mxu0
    %v5691 = vadd.f32 0.0, %v5690
    %v5692 = vpop.f32.mrb[0].mxu0
    %5693 = vmatprep.mubr.bf16.mxu0 0
    %5694 = vmatmul.mubr.bf16.gmra.mrb[0].mxu0 %v5569
    %v5695 = vpop.f32.mrb[0].mxu0
    %v5696 = vadd.f32 0.0, %v5695
    %v5697 = vpop.f32.mrb[0].mxu0
    %v5698 = vpop.f32.mrb[0].mxu0
    %v5699 = vadd.f32 0.0, %v5698
    %v5700 = vpop.f32.mrb[0].mxu0
    %5701 = vmatprep.mubr.bf16.mxu0 0
    %5702 = vmatmul.mubr.bf16.gmra.mrb[0].mxu0 %v5572
    %v5703 = vpop.f32.mrb[0].mxu0
    %v5704 = vadd.f32 0.0, %v5703
    %v5705 = vpop.f32.mrb[0].mxu0
    %v5706 = vpop.f32.mrb[0].mxu0
    %v5707 = vadd.f32 0.0, %v5706
    %v5708 = vpop.f32.mrb[0].mxu0
    %5709 = vmatprep.mubr.bf16.mxu0 0
    %5710 = vmatmul.mubr.bf16.gmra.mrb[0].mxu0 %v5575
    %v5711 = vpop.f32.mrb[0].mxu0
    %v5712 = vadd.f32 0.0, %v5711
    %v5713 = vpop.f32.mrb[0].mxu0
    %v5714 = vpop.f32.mrb[0].mxu0
    %v5715 = vadd.f32 0.0, %v5714
    %v5716 = vpop.f32.mrb[0].mxu0
    %5717 = vmatprep.mubr.bf16.mxu0 0
    %5718 = vmatmul.mubr.bf16.gmra.mrb[0].mxu0 %v5578
    %v5719 = vpop.f32.mrb[0].mxu0
    %v5720 = vadd.f32 0.0, %v5719
    %v5721 = vpop.f32.mrb[0].mxu0
    %v5722 = vpop.f32.mrb[0].mxu0
    %v5723 = vadd.f32 0.0, %v5722
    %v5724 = vpop.f32.mrb[0].mxu0
    %5725 = vmatprep.mubr.bf16.mxu0 0
    %5726 = vmatmul.mubr.bf16.gmra.mrb[0].mxu0 %v5581
    %v5727 = vpop.f32.mrb[0].mxu0
    %v5728 = vadd.f32 0.0, %v5727
    %v5729 = vpop.f32.mrb[0].mxu0
    %v5730 = vpop.f32.mrb[0].mxu0
    %v5731 = vadd.f32 0.0, %v5730
    %v5732 = vpop.f32.mrb[0].mxu0
    %5733 = vmatprep.mubr.bf16.mxu0 0
    %5734 = vmatmul.mubr.bf16.gmra.mrb[0].mxu0 %v5584
    %v5735 = vpop.f32.mrb[0].mxu0
    %v5736 = vadd.f32 0.0, %v5735
    %v5737 = vpop.f32.mrb[0].mxu0
    %v5738 = vpop.f32.mrb[0].mxu0
    %v5739 = vadd.f32 0.0, %v5738
    %v5740 = vpop.f32.mrb[0].mxu0
    %5741 = vmatprep.mubr.bf16.mxu0 0
    %5742 = vmatmul.mubr.bf16.gmra.mrb[0].mxu0 %v5587
    %v5743 = vpop.f32.mrb[0].mxu0
    %v5744 = vadd.f32 0.0, %v5743
    %v5745 = vpop.f32.mrb[0].mxu0
    %v5746 = vpop.f32.mrb[0].mxu0
    %v5747 = vadd.f32 0.0, %v5746
    %v5748 = vpop.f32.mrb[0].mxu0
    %5749 = vdwg.mxu0
    %v5750 = vadd.f32 %v5347, %v5624
    %v5751 = vadd.f32 %v5350, %v5627
    %v5752 = vadd.f32 %v5355, %v5632
    %v5753 = vadd.f32 %v5358, %v5635
    %v5754 = vadd.f32 %v5363, %v5640
    %v5755 = vadd.f32 %v5366, %v5643
    %v5756 = vadd.f32 %v5371, %v5648
    %v5757 = vadd.f32 %v5374, %v5651
    %v5758 = vadd.f32 %v5379, %v5656
    %v5759 = vadd.f32 %v5382, %v5659
    %v5760 = vadd.f32 %v5387, %v5664
    %v5761 = vadd.f32 %v5390, %v5667
    %v5762 = vadd.f32 %v5395, %v5672
    %v5763 = vadd.f32 %v5398, %v5675
    %v5764 = vadd.f32 %v5403, %v5680
    %v5765 = vadd.f32 %v5406, %v5683
    %v5766 = vadd.f32 %v5411, %v5688
    %v5767 = vadd.f32 %v5414, %v5691
    %v5768 = vadd.f32 %v5419, %v5696
    %v5769 = vadd.f32 %v5422, %v5699
    %v5770 = vadd.f32 %v5427, %v5704
    %v5771 = vadd.f32 %v5430, %v5707
    %v5772 = vadd.f32 %v5435, %v5712
    %v5773 = vadd.f32 %v5438, %v5715
    %v5774 = vadd.f32 %v5443, %v5720
    %v5775 = vadd.f32 %v5446, %v5723
    %v5776 = vadd.f32 %v5451, %v5728
    %v5777 = vadd.f32 %v5454, %v5731
    %v5778 = vadd.f32 %v5459, %v5736
    %v5779 = vadd.f32 %v5462, %v5739
    %v5780 = vadd.f32 %v5467, %v5744
    %v5781 = vadd.f32 %v5470, %v5747
    %vm5782 = vcmp.eq.s32.totalorder %v4903, %v3845
    %vm5783 = vcmp.eq.s32.totalorder %v4904, %v3845
    %vm5784 = vcmp.eq.s32.totalorder %v4905, %v3845
    %vm5785 = vcmp.eq.s32.totalorder %v4906, %v3845
    %vm5786 = vcmp.eq.s32.totalorder %v4907, %v3845
    %vm5787 = vcmp.eq.s32.totalorder %v4908, %v3845
    %vm5788 = vcmp.eq.s32.totalorder %v4909, %v3845
    %vm5789 = vcmp.eq.s32.totalorder %v4910, %v3845
    %vm5790 = vcmp.eq.s32.totalorder %v4911, %v3845
    %vm5791 = vcmp.eq.s32.totalorder %v4912, %v3845
    %vm5792 = vcmp.eq.s32.totalorder %v4913, %v3845
    %vm5793 = vcmp.eq.s32.totalorder %v4914, %v3845
    %vm5794 = vcmp.eq.s32.totalorder %v4915, %v3845
    %vm5795 = vcmp.eq.s32.totalorder %v4916, %v3845
    %vm5796 = vcmp.eq.s32.totalorder %v4917, %v3845
    %vm5797 = vcmp.eq.s32.totalorder %v4918, %v3845
    %vm5798 = vcmp.eq.s32.totalorder %v4919, %v3845
    %vm5799 = vcmp.eq.s32.totalorder %v4920, %v3845
    %vm5800 = vcmp.eq.s32.totalorder %v4921, %v3845
    %vm5801 = vcmp.eq.s32.totalorder %v4922, %v3845
    %vm5802 = vcmp.eq.s32.totalorder %v4923, %v3845
    %vm5803 = vcmp.eq.s32.totalorder %v4924, %v3845
    %vm5804 = vcmp.eq.s32.totalorder %v4925, %v3845
    %vm5805 = vcmp.eq.s32.totalorder %v4926, %v3845
    %v5806 = vsel %vm5782, 1.0, 0.0
    %v5807 = vsel %vm5783, 1.0, 0.0
    %v5808 = vsel %vm5784, 1.0, 0.0
    %v5809 = vsel %vm5785, 1.0, 0.0
    %v5810 = vsel %vm5786, 1.0, 0.0
    %v5811 = vsel %vm5787, 1.0, 0.0
    %v5812 = vsel %vm5788, 1.0, 0.0
    %v5813 = vsel %vm5789, 1.0, 0.0
    %v5814 = vsel %vm5790, 1.0, 0.0
    %v5815 = vsel %vm5791, 1.0, 0.0
    %v5816 = vsel %vm5792, 1.0, 0.0
    %v5817 = vsel %vm5793, 1.0, 0.0
    %v5818 = vsel %vm5794, 1.0, 0.0
    %v5819 = vsel %vm5795, 1.0, 0.0
    %v5820 = vsel %vm5796, 1.0, 0.0
    %v5821 = vsel %vm5797, 1.0, 0.0
    %v5822 = vsel %vm5798, 1.0, 0.0
    %v5823 = vsel %vm5799, 1.0, 0.0
    %v5824 = vsel %vm5800, 1.0, 0.0
    %v5825 = vsel %vm5801, 1.0, 0.0
    %v5826 = vsel %vm5802, 1.0, 0.0
    %v5827 = vsel %vm5803, 1.0, 0.0
    %v5828 = vsel %vm5804, 1.0, 0.0
    %v5829 = vsel %vm5805, 1.0, 0.0
    %v5830 = vpack.c.bf16 %v5807, %v5806
    %v5831 = vpack.c.bf16 %v5809, %v5808
    %v5832 = vpack.c.bf16 %v5811, %v5810
    %v5833 = vpack.c.bf16 %v5813, %v5812
    %v5834 = vpack.c.bf16 %v5815, %v5814
    %v5835 = vpack.c.bf16 %v5817, %v5816
    %v5836 = vpack.c.bf16 %v5819, %v5818
    %v5837 = vpack.c.bf16 %v5821, %v5820
    %v5838 = vpack.c.bf16 %v5823, %v5822
    %v5839 = vpack.c.bf16 %v5825, %v5824
    %v5840 = vpack.c.bf16 %v5827, %v5826
    %v5841 = vpack.c.bf16 %v5829, %v5828
    %5842 = vrot.lane.b32.xlu0 %v4899, 32
    %v5843 = vpop.permute.xlu0 %5842
    %5844 = vrot.lane.b32.xlu0 %v4900, 32
    %v5845 = vpop.permute.xlu0 %5844
    %5846 = vrot.lane.b32.xlu0 %v4901, 32
    %v5847 = vpop.permute.xlu0 %5846
    %5848 = vrot.lane.b32.xlu0 %v4902, 32
    %v5849 = vpop.permute.xlu0 %5848
    %v5854 = vsel %vm258, %v3850, 0
    %v5856 = vsel %vm258, %v4504, 0
    %v5858 = vsel %vm258, %v4505, 0
    %v5860 = vsel %vm258, %v4506, 0
    %v5863 = vsel %vm258, %v5830, 0
    %v5866 = vsel %vm258, %v5831, 0
    %v5869 = vsel %vm258, %v5832, 0
    %v5872 = vsel %vm258, %v5833, 0
    %v5875 = vsel %vm258, %v5834, 0
    %v5878 = vsel %vm258, %v5835, 0
    %v5881 = vsel %vm258, %v5836, 0
    %v5884 = vsel %vm258, %v5837, 0
    %v5887 = vsel %vm258, %v5838, 0
    %v5890 = vsel %vm258, %v5839, 0
    %v5893 = vsel %vm258, %v5840, 0
    %v5896 = vsel %vm258, %v5841, 0
    %5898 = vmatprep.subr.bf16.mxu0 0
    %5899 = vmatpush1.bf16.msra.mxu0 %v5843
    %5900 = vmatprep.subr.bf16.mxu0 0
    %5901 = vmatpush1.bf16.msra.mxu0 %v5845
    %5902 = vmatprep.subr.bf16.mxu0 0
    %5903 = vmatpush1.bf16.msra.mxu0 %v5847
    %5904 = vmatprep.subr.bf16.mxu0 0
    %5905 = vmatpush1.bf16.msra.mxu0 %v5849
    %5906 = vmatprep.subr.bf16.mxu0 0
    %5907 = vmatpush1.bf16.msra.mxu0 0
    %5908 = vmatprep.subr.bf16.mxu0 0
    %5909 = vmatpush1.bf16.msra.mxu0 0
    %5910 = vmatprep.subr.bf16.mxu0 0
    %5911 = vmatpush1.bf16.msra.mxu0 0
    %5912 = vmatprep.subr.bf16.mxu0 0
    %5913 = vmatpush1.bf16.msra.mxu0 0
    %5914 = vmatprep.subr.bf16.mxu0 0
    %5915 = vmatpush1.bf16.msra.mxu0 0
    %5916 = vmatprep.subr.bf16.mxu0 0
    %5917 = vmatpush1.bf16.msra.mxu0 0
    %5918 = vmatprep.subr.bf16.mxu0 0
    %5919 = vmatpush1.bf16.msra.mxu0 0
    %5920 = vmatprep.subr.bf16.mxu0 0
    %5921 = vmatpush1.bf16.msra.mxu0 0
    %5922 = vmatprep.subr.bf16.mxu0 0
    %5923 = vmatpush1.bf16.msra.mxu0 0
    %5924 = vmatprep.subr.bf16.mxu0 0
    %5925 = vmatpush1.bf16.msra.mxu0 0
    %5926 = vmatprep.subr.bf16.mxu0 0
    %5927 = vmatpush1.bf16.msra.mxu0 0
    %5928 = vmatprep.subr.bf16.mxu0 0
    %5929 = vmatpush1.bf16.msra.mxu0 0
    %5930 = vmatprep.mubr.bf16.mxu0 0
    %5931 = vmatmul.mubr.bf16.gmra.mrb[0].mxu0 %v5854
    %v5932 = vpop.f32.mrb[0].mxu0
    %v5933 = vadd.f32 0.0, %v5932
    %v5934 = vpop.f32.mrb[0].mxu0
    %v5935 = vpop.f32.mrb[0].mxu0
    %v5936 = vadd.f32 0.0, %v5935
    %v5937 = vpop.f32.mrb[0].mxu0
    %5938 = vmatprep.mubr.bf16.mxu0 0
    %5939 = vmatmul.mubr.bf16.gmra.mrb[0].mxu0 %v5856
    %v5940 = vpop.f32.mrb[0].mxu0
    %v5941 = vadd.f32 0.0, %v5940
    %v5942 = vpop.f32.mrb[0].mxu0
    %v5943 = vpop.f32.mrb[0].mxu0
    %v5944 = vadd.f32 0.0, %v5943
    %v5945 = vpop.f32.mrb[0].mxu0
    %5946 = vmatprep.mubr.bf16.mxu0 0
    %5947 = vmatmul.mubr.bf16.gmra.mrb[0].mxu0 %v5858
    %v5948 = vpop.f32.mrb[0].mxu0
    %v5949 = vadd.f32 0.0, %v5948
    %v5950 = vpop.f32.mrb[0].mxu0
    %v5951 = vpop.f32.mrb[0].mxu0
    %v5952 = vadd.f32 0.0, %v5951
    %v5953 = vpop.f32.mrb[0].mxu0
    %5954 = vmatprep.mubr.bf16.mxu0 0
    %5955 = vmatmul.mubr.bf16.gmra.mrb[0].mxu0 %v5860
    %v5956 = vpop.f32.mrb[0].mxu0
    %v5957 = vadd.f32 0.0, %v5956
    %v5958 = vpop.f32.mrb[0].mxu0
    %v5959 = vpop.f32.mrb[0].mxu0
    %v5960 = vadd.f32 0.0, %v5959
    %v5961 = vpop.f32.mrb[0].mxu0
    %5962 = vmatprep.mubr.bf16.mxu0 0
    %5963 = vmatmul.mubr.bf16.gmra.mrb[0].mxu0 %v5863
    %v5964 = vpop.f32.mrb[0].mxu0
    %v5965 = vadd.f32 0.0, %v5964
    %v5966 = vpop.f32.mrb[0].mxu0
    %v5967 = vpop.f32.mrb[0].mxu0
    %v5968 = vadd.f32 0.0, %v5967
    %v5969 = vpop.f32.mrb[0].mxu0
    %5970 = vmatprep.mubr.bf16.mxu0 0
    %5971 = vmatmul.mubr.bf16.gmra.mrb[0].mxu0 %v5866
    %v5972 = vpop.f32.mrb[0].mxu0
    %v5973 = vadd.f32 0.0, %v5972
    %v5974 = vpop.f32.mrb[0].mxu0
    %v5975 = vpop.f32.mrb[0].mxu0
    %v5976 = vadd.f32 0.0, %v5975
    %v5977 = vpop.f32.mrb[0].mxu0
    %5978 = vmatprep.mubr.bf16.mxu0 0
    %5979 = vmatmul.mubr.bf16.gmra.mrb[0].mxu0 %v5869
    %v5980 = vpop.f32.mrb[0].mxu0
    %v5981 = vadd.f32 0.0, %v5980
    %v5982 = vpop.f32.mrb[0].mxu0
    %v5983 = vpop.f32.mrb[0].mxu0
    %v5984 = vadd.f32 0.0, %v5983
    %v5985 = vpop.f32.mrb[0].mxu0
    %5986 = vmatprep.mubr.bf16.mxu0 0
    %5987 = vmatmul.mubr.bf16.gmra.mrb[0].mxu0 %v5872
    %v5988 = vpop.f32.mrb[0].mxu0
    %v5989 = vadd.f32 0.0, %v5988
    %v5990 = vpop.f32.mrb[0].mxu0
    %v5991 = vpop.f32.mrb[0].mxu0
    %v5992 = vadd.f32 0.0, %v5991
    %v5993 = vpop.f32.mrb[0].mxu0
    %5994 = vmatprep.mubr.bf16.mxu0 0
    %5995 = vmatmul.mubr.bf16.gmra.mrb[0].mxu0 %v5875
    %v5996 = vpop.f32.mrb[0].mxu0
    %v5997 = vadd.f32 0.0, %v5996
    %v5998 = vpop.f32.mrb[0].mxu0
    %v5999 = vpop.f32.mrb[0].mxu0
    %v6000 = vadd.f32 0.0, %v5999
    %v6001 = vpop.f32.mrb[0].mxu0
    %6002 = vmatprep.mubr.bf16.mxu0 0
    %6003 = vmatmul.mubr.bf16.gmra.mrb[0].mxu0 %v5878
    %v6004 = vpop.f32.mrb[0].mxu0
    %v6005 = vadd.f32 0.0, %v6004
    %v6006 = vpop.f32.mrb[0].mxu0
    %v6007 = vpop.f32.mrb[0].mxu0
    %v6008 = vadd.f32 0.0, %v6007
    %v6009 = vpop.f32.mrb[0].mxu0
    %6010 = vmatprep.mubr.bf16.mxu0 0
    %6011 = vmatmul.mubr.bf16.gmra.mrb[0].mxu0 %v5881
    %v6012 = vpop.f32.mrb[0].mxu0
    %v6013 = vadd.f32 0.0, %v6012
    %v6014 = vpop.f32.mrb[0].mxu0
    %v6015 = vpop.f32.mrb[0].mxu0
    %v6016 = vadd.f32 0.0, %v6015
    %v6017 = vpop.f32.mrb[0].mxu0
    %6018 = vmatprep.mubr.bf16.mxu0 0
    %6019 = vmatmul.mubr.bf16.gmra.mrb[0].mxu0 %v5884
    %v6020 = vpop.f32.mrb[0].mxu0
    %v6021 = vadd.f32 0.0, %v6020
    %v6022 = vpop.f32.mrb[0].mxu0
    %v6023 = vpop.f32.mrb[0].mxu0
    %v6024 = vadd.f32 0.0, %v6023
    %v6025 = vpop.f32.mrb[0].mxu0
    %6026 = vmatprep.mubr.bf16.mxu0 0
    %6027 = vmatmul.mubr.bf16.gmra.mrb[0].mxu0 %v5887
    %v6028 = vpop.f32.mrb[0].mxu0
    %v6029 = vadd.f32 0.0, %v6028
    %v6030 = vpop.f32.mrb[0].mxu0
    %v6031 = vpop.f32.mrb[0].mxu0
    %v6032 = vadd.f32 0.0, %v6031
    %v6033 = vpop.f32.mrb[0].mxu0
    %6034 = vmatprep.mubr.bf16.mxu0 0
    %6035 = vmatmul.mubr.bf16.gmra.mrb[0].mxu0 %v5890
    %v6036 = vpop.f32.mrb[0].mxu0
    %v6037 = vadd.f32 0.0, %v6036
    %v6038 = vpop.f32.mrb[0].mxu0
    %v6039 = vpop.f32.mrb[0].mxu0
    %v6040 = vadd.f32 0.0, %v6039
    %v6041 = vpop.f32.mrb[0].mxu0
    %6042 = vmatprep.mubr.bf16.mxu0 0
    %6043 = vmatmul.mubr.bf16.gmra.mrb[0].mxu0 %v5893
    %v6044 = vpop.f32.mrb[0].mxu0
    %v6045 = vadd.f32 0.0, %v6044
    %v6046 = vpop.f32.mrb[0].mxu0
    %v6047 = vpop.f32.mrb[0].mxu0
    %v6048 = vadd.f32 0.0, %v6047
    %v6049 = vpop.f32.mrb[0].mxu0
    %6050 = vmatprep.mubr.bf16.mxu0 0
    %6051 = vmatmul.mubr.bf16.gmra.mrb[0].mxu0 %v5896
    %v6052 = vpop.f32.mrb[0].mxu0
    %v6053 = vadd.f32 0.0, %v6052
    %v6054 = vpop.f32.mrb[0].mxu0
    %v6055 = vpop.f32.mrb[0].mxu0
    %v6056 = vadd.f32 0.0, %v6055
    %v6057 = vpop.f32.mrb[0].mxu0
    %6058 = vdwg.mxu0
    %v6059 = vadd.f32 %v5750, %v5933
    %v6060 = vadd.f32 %v5751, %v5936
    %v6061 = vadd.f32 %v5752, %v5941
    %v6062 = vadd.f32 %v5753, %v5944
    %v6063 = vadd.f32 %v5754, %v5949
    %v6064 = vadd.f32 %v5755, %v5952
    %v6065 = vadd.f32 %v5756, %v5957
    %v6066 = vadd.f32 %v5757, %v5960
    %v6067 = vadd.f32 %v5758, %v5965
    %v6068 = vadd.f32 %v5759, %v5968
    %v6069 = vadd.f32 %v5760, %v5973
    %v6070 = vadd.f32 %v5761, %v5976
    %v6071 = vadd.f32 %v5762, %v5981
    %v6072 = vadd.f32 %v5763, %v5984
    %v6073 = vadd.f32 %v5764, %v5989
    %v6074 = vadd.f32 %v5765, %v5992
    %v6075 = vadd.f32 %v5766, %v5997
    %v6076 = vadd.f32 %v5767, %v6000
    %v6077 = vadd.f32 %v5768, %v6005
    %v6078 = vadd.f32 %v5769, %v6008
    %v6079 = vadd.f32 %v5770, %v6013
    %v6080 = vadd.f32 %v5771, %v6016
    %v6081 = vadd.f32 %v5772, %v6021
    %v6082 = vadd.f32 %v5773, %v6024
    %v6083 = vadd.f32 %v5774, %v6029
    %v6084 = vadd.f32 %v5775, %v6032
    %v6085 = vadd.f32 %v5776, %v6037
    %v6086 = vadd.f32 %v5777, %v6040
    %v6087 = vadd.f32 %v5778, %v6045
    %v6088 = vadd.f32 %v5779, %v6048
    %v6089 = vadd.f32 %v5780, %v6053
    %v6090 = vadd.f32 %v5781, %v6056
    %v6091 = vld [vmem:[#allocation14 + $0xa] sm:$0x1]
    %v6092 = vld [vmem:[#allocation14 + $0xb] sm:$0x1]
    %v6093 = vld [vmem:[%s13] sm:$0xf]
    %v6094 = vld [vmem:[%s13 + $0x4] sm:$0xf]
    %v6095 = vld [vmem:[%s13 + $0x8] sm:$0xf]
    %v6096 = vld [vmem:[%s13 + $0xc] sm:$0xf]
    %v6097 = vpack.c.bf16 %v6060, %v6059
    %v6098 = vpack.c.bf16 %v6062, %v6061
    %v6099 = vpack.c.bf16 %v6064, %v6063
    %v6100 = vpack.c.bf16 %v6066, %v6065
    %v6101 = vpack.c.bf16 %v6068, %v6067
    %v6102 = vpack.c.bf16 %v6070, %v6069
    %v6103 = vpack.c.bf16 %v6072, %v6071
    %v6104 = vpack.c.bf16 %v6074, %v6073
    %v6105 = vpack.c.bf16 %v6076, %v6075
    %v6106 = vpack.c.bf16 %v6078, %v6077
    %v6107 = vpack.c.bf16 %v6080, %v6079
    %v6108 = vpack.c.bf16 %v6082, %v6081
    %v6109 = vpack.c.bf16 %v6084, %v6083
    %v6110 = vpack.c.bf16 %v6086, %v6085
    %v6111 = vpack.c.bf16 %v6088, %v6087
    %v6112 = vpack.c.bf16 %v6090, %v6089
    %v6117 = vunpack.c.l.b16 %v6093
    %v6118 = vunpack.c.l.b16 %v6094
    %v6119 = vunpack.c.l.b16 %v6095
    %v6120 = vunpack.c.l.b16 %v6096
    %v6121 = vpack.c.b16 %v6118, %v6117
    %v6122 = vpack.c.b16 %v6120, %v6119
    %v6126 = vsel %vm443, %v6097, 0
    %v6129 = vsel %vm443, %v6098, 0
    %v6132 = vsel %vm443, %v6099, 0
    %v6135 = vsel %vm443, %v6100, 0
    %v6138 = vsel %vm443, %v6101, 0
    %v6141 = vsel %vm443, %v6102, 0
    %v6144 = vsel %vm443, %v6103, 0
    %v6147 = vsel %vm443, %v6104, 0
    %v6150 = vsel %vm443, %v6105, 0
    %v6153 = vsel %vm443, %v6106, 0
    %v6156 = vsel %vm443, %v6107, 0
    %v6159 = vsel %vm443, %v6108, 0
    %v6162 = vsel %vm443, %v6109, 0
    %v6165 = vsel %vm443, %v6110, 0
    %v6168 = vsel %vm443, %v6111, 0
    %v6171 = vsel %vm443, %v6112, 0
    %6173 = vmatprep.subr.bf16.mxu0 0
    %6174 = vmatpush1.bf16.msra.mxu0 %v6121
    %6175 = vmatprep.subr.bf16.mxu0 0
    %6176 = vmatpush1.bf16.msra.mxu0 %v6122
    %6177 = vmatprep.subr.bf16.mxu0 0
    %6178 = vmatpush1.bf16.msra.mxu0 0
    %6179 = vmatprep.subr.bf16.mxu0 0
    %6180 = vmatpush1.bf16.msra.mxu0 0
    %6181 = vmatprep.subr.bf16.mxu0 0
    %6182 = vmatpush1.bf16.msra.mxu0 0
    %6183 = vmatprep.subr.bf16.mxu0 0
    %6184 = vmatpush1.bf16.msra.mxu0 0
    %6185 = vmatprep.subr.bf16.mxu0 0
    %6186 = vmatpush1.bf16.msra.mxu0 0
    %6187 = vmatprep.subr.bf16.mxu0 0
    %6188 = vmatpush1.bf16.msra.mxu0 0
    %6189 = vmatprep.subr.bf16.mxu0 0
    %6190 = vmatpush1.bf16.msra.mxu0 0
    %6191 = vmatprep.subr.bf16.mxu0 0
    %6192 = vmatpush1.bf16.msra.mxu0 0
    %6193 = vmatprep.subr.bf16.mxu0 0
    %6194 = vmatpush1.bf16.msra.mxu0 0
    %6195 = vmatprep.subr.bf16.mxu0 0
    %6196 = vmatpush1.bf16.msra.mxu0 0
    %6197 = vmatprep.subr.bf16.mxu0 0
    %6198 = vmatpush1.bf16.msra.mxu0 0
    %6199 = vmatprep.subr.bf16.mxu0 0
    %6200 = vmatpush1.bf16.msra.mxu0 0
    %6201 = vmatprep.subr.bf16.mxu0 0
    %6202 = vmatpush1.bf16.msra.mxu0 0
    %6203 = vmatprep.subr.bf16.mxu0 0
    %6204 = vmatpush1.bf16.msra.mxu0 0
    %6205 = vmatprep.mubr.bf16.mxu0 0
    %6206 = vmatmul.mubr.bf16.gmra.mrb[0].mxu0 %v6126
    %v6207 = vpop.f32.mrb[0].mxu0
    %v6208 = vadd.f32 0.0, %v6207
    %v6209 = vpop.f32.mrb[0].mxu0
    %v6210 = vpop.f32.mrb[0].mxu0
    %v6211 = vadd.f32 0.0, %v6210
    %v6212 = vpop.f32.mrb[0].mxu0
    %6213 = vmatprep.mubr.bf16.mxu0 0
    %6214 = vmatmul.mubr.bf16.gmra.mrb[0].mxu0 %v6129
    %v6215 = vpop.f32.mrb[0].mxu0
    %v6216 = vadd.f32 0.0, %v6215
    %v6217 = vpop.f32.mrb[0].mxu0
    %v6218 = vpop.f32.mrb[0].mxu0
    %v6219 = vadd.f32 0.0, %v6218
    %v6220 = vpop.f32.mrb[0].mxu0
    %6221 = vmatprep.mubr.bf16.mxu0 0
    %6222 = vmatmul.mubr.bf16.gmra.mrb[0].mxu0 %v6132
    %v6223 = vpop.f32.mrb[0].mxu0
    %v6224 = vadd.f32 0.0, %v6223
    %v6225 = vpop.f32.mrb[0].mxu0
    %v6226 = vpop.f32.mrb[0].mxu0
    %v6227 = vadd.f32 0.0, %v6226
    %v6228 = vpop.f32.mrb[0].mxu0
    %6229 = vmatprep.mubr.bf16.mxu0 0
    %6230 = vmatmul.mubr.bf16.gmra.mrb[0].mxu0 %v6135
    %v6231 = vpop.f32.mrb[0].mxu0
    %v6232 = vadd.f32 0.0, %v6231
    %v6233 = vpop.f32.mrb[0].mxu0
    %v6234 = vpop.f32.mrb[0].mxu0
    %v6235 = vadd.f32 0.0, %v6234
    %v6236 = vpop.f32.mrb[0].mxu0
    %6237 = vmatprep.mubr.bf16.mxu0 0
    %6238 = vmatmul.mubr.bf16.gmra.mrb[0].mxu0 %v6138
    %v6239 = vpop.f32.mrb[0].mxu0
    %v6240 = vadd.f32 0.0, %v6239
    %v6241 = vpop.f32.mrb[0].mxu0
    %v6242 = vpop.f32.mrb[0].mxu0
    %v6243 = vadd.f32 0.0, %v6242
    %v6244 = vpop.f32.mrb[0].mxu0
    %6245 = vmatprep.mubr.bf16.mxu0 0
    %6246 = vmatmul.mubr.bf16.gmra.mrb[0].mxu0 %v6141
    %v6247 = vpop.f32.mrb[0].mxu0
    %v6248 = vadd.f32 0.0, %v6247
    %v6249 = vpop.f32.mrb[0].mxu0
    %v6250 = vpop.f32.mrb[0].mxu0
    %v6251 = vadd.f32 0.0, %v6250
    %v6252 = vpop.f32.mrb[0].mxu0
    %6253 = vmatprep.mubr.bf16.mxu0 0
    %6254 = vmatmul.mubr.bf16.gmra.mrb[0].mxu0 %v6144
    %v6255 = vpop.f32.mrb[0].mxu0
    %v6256 = vadd.f32 0.0, %v6255
    %v6257 = vpop.f32.mrb[0].mxu0
    %v6258 = vpop.f32.mrb[0].mxu0
    %v6259 = vadd.f32 0.0, %v6258
    %v6260 = vpop.f32.mrb[0].mxu0
    %6261 = vmatprep.mubr.bf16.mxu0 0
    %6262 = vmatmul.mubr.bf16.gmra.mrb[0].mxu0 %v6147
    %v6263 = vpop.f32.mrb[0].mxu0
    %v6264 = vadd.f32 0.0, %v6263
    %v6265 = vpop.f32.mrb[0].mxu0
    %v6266 = vpop.f32.mrb[0].mxu0
    %v6267 = vadd.f32 0.0, %v6266
    %v6268 = vpop.f32.mrb[0].mxu0
    %6269 = vmatprep.mubr.bf16.mxu0 0
    %6270 = vmatmul.mubr.bf16.gmra.mrb[0].mxu0 %v6150
    %v6271 = vpop.f32.mrb[0].mxu0
    %v6272 = vadd.f32 0.0, %v6271
    %v6273 = vpop.f32.mrb[0].mxu0
    %v6274 = vpop.f32.mrb[0].mxu0
    %v6275 = vadd.f32 0.0, %v6274
    %v6276 = vpop.f32.mrb[0].mxu0
    %6277 = vmatprep.mubr.bf16.mxu0 0
    %6278 = vmatmul.mubr.bf16.gmra.mrb[0].mxu0 %v6153
    %v6279 = vpop.f32.mrb[0].mxu0
    %v6280 = vadd.f32 0.0, %v6279
    %v6281 = vpop.f32.mrb[0].mxu0
    %v6282 = vpop.f32.mrb[0].mxu0
    %v6283 = vadd.f32 0.0, %v6282
    %v6284 = vpop.f32.mrb[0].mxu0
    %6285 = vmatprep.mubr.bf16.mxu0 0
    %6286 = vmatmul.mubr.bf16.gmra.mrb[0].mxu0 %v6156
    %v6287 = vpop.f32.mrb[0].mxu0
    %v6288 = vadd.f32 0.0, %v6287
    %v6289 = vpop.f32.mrb[0].mxu0
    %v6290 = vpop.f32.mrb[0].mxu0
    %v6291 = vadd.f32 0.0, %v6290
    %v6292 = vpop.f32.mrb[0].mxu0
    %6293 = vmatprep.mubr.bf16.mxu0 0
    %6294 = vmatmul.mubr.bf16.gmra.mrb[0].mxu0 %v6159
    %v6295 = vpop.f32.mrb[0].mxu0
    %v6296 = vadd.f32 0.0, %v6295
    %v6297 = vpop.f32.mrb[0].mxu0
    %v6298 = vpop.f32.mrb[0].mxu0
    %v6299 = vadd.f32 0.0, %v6298
    %v6300 = vpop.f32.mrb[0].mxu0
    %6301 = vmatprep.mubr.bf16.mxu0 0
    %6302 = vmatmul.mubr.bf16.gmra.mrb[0].mxu0 %v6162
    %v6303 = vpop.f32.mrb[0].mxu0
    %v6304 = vadd.f32 0.0, %v6303
    %v6305 = vpop.f32.mrb[0].mxu0
    %v6306 = vpop.f32.mrb[0].mxu0
    %v6307 = vadd.f32 0.0, %v6306
    %v6308 = vpop.f32.mrb[0].mxu0
    %6309 = vmatprep.mubr.bf16.mxu0 0
    %6310 = vmatmul.mubr.bf16.gmra.mrb[0].mxu0 %v6165
    %v6311 = vpop.f32.mrb[0].mxu0
    %v6312 = vadd.f32 0.0, %v6311
    %v6313 = vpop.f32.mrb[0].mxu0
    %v6314 = vpop.f32.mrb[0].mxu0
    %v6315 = vadd.f32 0.0, %v6314
    %v6316 = vpop.f32.mrb[0].mxu0
    %6317 = vmatprep.mubr.bf16.mxu0 0
    %6318 = vmatmul.mubr.bf16.gmra.mrb[0].mxu0 %v6168
    %v6319 = vpop.f32.mrb[0].mxu0
    %v6320 = vadd.f32 0.0, %v6319
    %v6321 = vpop.f32.mrb[0].mxu0
    %v6322 = vpop.f32.mrb[0].mxu0
    %v6323 = vadd.f32 0.0, %v6322
    %v6324 = vpop.f32.mrb[0].mxu0
    %6325 = vmatprep.mubr.bf16.mxu0 0
    %6326 = vmatmul.mubr.bf16.gmra.mrb[0].mxu0 %v6171
    %v6327 = vpop.f32.mrb[0].mxu0
    %v6328 = vadd.f32 0.0, %v6327
    %v6329 = vpop.f32.mrb[0].mxu0
    %v6330 = vpop.f32.mrb[0].mxu0
    %v6331 = vadd.f32 0.0, %v6330
    %v6332 = vpop.f32.mrb[0].mxu0
    %6333 = vdwg.mxu0
    %v6334 = vadd.f32 %v6208, %v6211
    %v6335 = vadd.f32 %v6334, %v6216
    %v6336 = vadd.f32 %v6335, %v6219
    %v6337 = vadd.f32 %v6336, %v6224
    %v6338 = vadd.f32 %v6337, %v6227
    %v6339 = vadd.f32 %v6338, %v6232
    %v6340 = vadd.f32 %v6339, %v6235
    %v6341 = vadd.f32 %v6340, %v6240
    %v6342 = vadd.f32 %v6341, %v6243
    %v6343 = vadd.f32 %v6342, %v6248
    %v6344 = vadd.f32 %v6343, %v6251
    %v6345 = vadd.f32 %v6344, %v6256
    %v6346 = vadd.f32 %v6345, %v6259
    %v6347 = vadd.f32 %v6346, %v6264
    %v6348 = vadd.f32 %v6347, %v6267
    %v6349 = vadd.f32 %v6348, %v6272
    %v6350 = vadd.f32 %v6349, %v6275
    %v6351 = vadd.f32 %v6350, %v6280
    %v6352 = vadd.f32 %v6351, %v6283
    %v6353 = vadd.f32 %v6352, %v6288
    %v6354 = vadd.f32 %v6353, %v6291
    %v6355 = vadd.f32 %v6354, %v6296
    %v6356 = vadd.f32 %v6355, %v6299
    %v6357 = vadd.f32 %v6356, %v6304
    %v6358 = vadd.f32 %v6357, %v6307
    %v6359 = vadd.f32 %v6358, %v6312
    %v6360 = vadd.f32 %v6359, %v6315
    %v6361 = vadd.f32 %v6360, %v6320
    %v6362 = vadd.f32 %v6361, %v6323
    %v6363 = vadd.f32 %v6362, %v6328
    %v6364 = vadd.f32 %v6363, %v6331
    %v6365 = vrot.slane %v6364, 4
    %v6366 = vadd.f32 %v6364, %v6365
    %v6367 = vrot.slane %v6366, 2
    %v6368 = vadd.f32 %v6366, %v6367
    %v6369 = vrot.slane %v6368, 1
    %v6370 = vadd.f32 %v6368, %v6369
    %6372 = vrot.lane.b32.xlu0 %v6370, 96
    %v6373 = vpop.permute.xlu0 %6372
    %v6375 = vadd.f32 %v6370, %v6373
    %6376 = vrot.lane.b32.xlu0 %v6370, 64
    %v6377 = vpop.permute.xlu0 %6376
    %v6379 = vadd.f32 %v6375, %v6377
    %6380 = vrot.lane.b32.xlu0 %v6370, 32
    %v6381 = vpop.permute.xlu0 %6380
    %v6383 = vadd.f32 %v6379, %v6381
    %v6384 = vrcp.pop 1026.0
    %v6385 = vmul.f32 %v6383, %v6384
    %6387 = vrot.lane.b32.xlu0 %v6385, 32
    %v6388 = vpop.permute.xlu0 %6387
    %6390 = vrot.lane.b32.xlu0 %v6385, 64
    %v6391 = vpop.permute.xlu0 %6390
    %6393 = vrot.lane.b32.xlu0 %v6385, 96
    %v6394 = vpop.permute.xlu0 %6393
    %v6396 = vsel %vm443, %v6385, %v6388
    %v6397 = vsel %vm258, %v6396, %v6391
    %v6398 = vsel %vm446, %v6397, %v6394
    %v6399 = vlaneseq
    %v6400 = vshrl.u32 %v6399, 7
    %v6401 = vsub.s32 0, %v6400
    %v6402 = vrot.slane %v6398, %v6401
    %v6403 = vsub.f32 %v6208, %v6402
    %v6404 = vsub.f32 %v6211, %v6402
    %v6405 = vsub.f32 %v6216, %v6402
    %v6406 = vsub.f32 %v6219, %v6402
    %v6407 = vsub.f32 %v6224, %v6402
    %v6408 = vsub.f32 %v6227, %v6402
    %v6409 = vsub.f32 %v6232, %v6402
    %v6410 = vsub.f32 %v6235, %v6402
    %v6411 = vsub.f32 %v6240, %v6402
    %v6412 = vsub.f32 %v6243, %v6402
    %v6413 = vsub.f32 %v6248, %v6402
    %v6414 = vsub.f32 %v6251, %v6402
    %v6415 = vsub.f32 %v6256, %v6402
    %v6416 = vsub.f32 %v6259, %v6402
    %v6417 = vsub.f32 %v6264, %v6402
    %v6418 = vsub.f32 %v6267, %v6402
    %v6419 = vsub.f32 %v6272, %v6402
    %v6420 = vsub.f32 %v6275, %v6402
    %v6421 = vsub.f32 %v6280, %v6402
    %v6422 = vsub.f32 %v6283, %v6402
    %v6423 = vsub.f32 %v6288, %v6402
    %v6424 = vsub.f32 %v6291, %v6402
    %v6425 = vsub.f32 %v6296, %v6402
    %v6426 = vsub.f32 %v6299, %v6402
    %v6427 = vsub.f32 %v6304, %v6402
    %v6428 = vsub.f32 %v6307, %v6402
    %v6429 = vsub.f32 %v6312, %v6402
    %v6430 = vsub.f32 %v6315, %v6402
    %v6431 = vsub.f32 %v6320, %v6402
    %v6432 = vsub.f32 %v6323, %v6402
    %v6433 = vsub.f32 %v6328, %v6402
    %v6434 = vsub.f32 %v6331, %v6402
    %v6435 = vmul.f32 %v6403, %v6403
    %v6436 = vmul.f32 %v6404, %v6404
    %v6437 = vmul.f32 %v6405, %v6405
    %v6438 = vmul.f32 %v6406, %v6406
    %v6439 = vmul.f32 %v6407, %v6407
    %v6440 = vmul.f32 %v6408, %v6408
    %v6441 = vmul.f32 %v6409, %v6409
    %v6442 = vmul.f32 %v6410, %v6410
    %v6443 = vmul.f32 %v6411, %v6411
    %v6444 = vmul.f32 %v6412, %v6412
    %v6445 = vmul.f32 %v6413, %v6413
    %v6446 = vmul.f32 %v6414, %v6414
    %v6447 = vmul.f32 %v6415, %v6415
    %v6448 = vmul.f32 %v6416, %v6416
    %v6449 = vmul.f32 %v6417, %v6417
    %v6450 = vmul.f32 %v6418, %v6418
    %v6451 = vmul.f32 %v6419, %v6419
    %v6452 = vmul.f32 %v6420, %v6420
    %v6453 = vmul.f32 %v6421, %v6421
    %v6454 = vmul.f32 %v6422, %v6422
    %v6455 = vmul.f32 %v6423, %v6423
    %v6456 = vmul.f32 %v6424, %v6424
    %v6457 = vmul.f32 %v6425, %v6425
    %v6458 = vmul.f32 %v6426, %v6426
    %v6459 = vmul.f32 %v6427, %v6427
    %v6460 = vmul.f32 %v6428, %v6428
    %v6461 = vmul.f32 %v6429, %v6429
    %v6462 = vmul.f32 %v6430, %v6430
    %v6463 = vmul.f32 %v6431, %v6431
    %v6464 = vmul.f32 %v6432, %v6432
    %v6465 = vmul.f32 %v6433, %v6433
    %v6466 = vmul.f32 %v6434, %v6434
    %v6467 = vadd.f32 %v6435, %v6436
    %v6468 = vadd.f32 %v6467, %v6437
    %v6469 = vadd.f32 %v6468, %v6438
    %v6470 = vadd.f32 %v6469, %v6439
    %v6471 = vadd.f32 %v6470, %v6440
    %v6472 = vadd.f32 %v6471, %v6441
    %v6473 = vadd.f32 %v6472, %v6442
    %v6474 = vadd.f32 %v6473, %v6443
    %v6475 = vadd.f32 %v6474, %v6444
    %v6476 = vadd.f32 %v6475, %v6445
    %v6477 = vadd.f32 %v6476, %v6446
    %v6478 = vadd.f32 %v6477, %v6447
    %v6479 = vadd.f32 %v6478, %v6448
    %v6480 = vadd.f32 %v6479, %v6449
    %v6481 = vadd.f32 %v6480, %v6450
    %v6482 = vadd.f32 %v6481, %v6451
    %v6483 = vadd.f32 %v6482, %v6452
    %v6484 = vadd.f32 %v6483, %v6453
    %v6485 = vadd.f32 %v6484, %v6454
    %v6486 = vadd.f32 %v6485, %v6455
    %v6487 = vadd.f32 %v6486, %v6456
    %v6488 = vadd.f32 %v6487, %v6457
    %v6489 = vadd.f32 %v6488, %v6458
    %v6490 = vadd.f32 %v6489, %v6459
    %v6491 = vadd.f32 %v6490, %v6460
    %v6492 = vadd.f32 %v6491, %v6461
    %v6493 = vadd.f32 %v6492, %v6462
    %v6494 = vadd.f32 %v6493, %v6463
    %v6495 = vadd.f32 %v6494, %v6464
    %v6496 = vadd.f32 %v6495, %v6465
    %v6497 = vadd.f32 %v6496, %v6466
    %v6498 = vrot.slane %v6497, 4
    %v6499 = vadd.f32 %v6497, %v6498
    %v6500 = vrot.slane %v6499, 2
    %v6501 = vadd.f32 %v6499, %v6500
    %v6502 = vrot.slane %v6501, 1
    %v6503 = vadd.f32 %v6501, %v6502
    %6505 = vrot.lane.b32.xlu0 %v6503, 96
    %v6506 = vpop.permute.xlu0 %6505
    %v6508 = vadd.f32 %v6503, %v6506
    %6509 = vrot.lane.b32.xlu0 %v6503, 64
    %v6510 = vpop.permute.xlu0 %6509
    %v6512 = vadd.f32 %v6508, %v6510
    %6513 = vrot.lane.b32.xlu0 %v6503, 32
    %v6514 = vpop.permute.xlu0 %6513
    %v6516 = vadd.f32 %v6512, %v6514
    %v6517 = vmul.f32 %v6385, %v6385
    %v6518 = vmul.f32 %v6517, 2.0
    %v6519 = vadd.f32 %v6516, %v6518
    %v6520 = vmul.f32 %v6519, %v6384
    %v6521 = vadd.f32 %v6520, 1e-05
    %v6522 = vrsqrt.pop %v6521
    %v6524 = vlaneseq
    %v6525 = vshrl.u32 %v6524, 7
    %v6526 = vsub.s32 0, %v6525
    %v6527 = vrot.slane %v6091, %v6526
    %6528 = vrot.lane.b32.xlu0 %v6527, 64
    %v6529 = vpop.permute.xlu0 %6528
    %v6531 = vmul.f32 %v6522, %v6529
    %v6532 = vmul.f32 %v6385, %v6531
    %v6535 = vunpack.c.l.s4 1983009808
    %v6536 = vunpack.c.0.s8 %v6535
    %v6537 = vlaneseq
    %v6538 = vshrl.u32 %v6537, 7
    %v6539 = vsub.s32 %v6536, %v6538
    %v6540 = vrot.slane %v6532, %v6539
    %6541 = vrot.lane.b32.xlu0 %v6540, 64
    %v6542 = vpop.permute.xlu0 %6541
    %v6544 = vsub.f32 %v6092, %v6542
    %6546 = vrot.lane.b32.xlu0 %v6531, 32
    %v6547 = vpop.permute.xlu0 %6546
    %6549 = vrot.lane.b32.xlu0 %v6531, 64
    %v6550 = vpop.permute.xlu0 %6549
    %6552 = vrot.lane.b32.xlu0 %v6531, 96
    %v6553 = vpop.permute.xlu0 %6552
    %v6555 = vsel %vm443, %v6531, %v6547
    %v6556 = vsel %vm258, %v6555, %v6550
    %v6557 = vsel %vm446, %v6556, %v6553
    %v6558 = vlaneseq
    %v6559 = vshrl.u32 %v6558, 7
    %v6560 = vsub.s32 0, %v6559
    %v6561 = vrot.slane %v6557, %v6560
    %v6562 = vmul.f32 %v6208, %v6561
    %v6563 = vmul.f32 %v6211, %v6561
    %v6564 = vmul.f32 %v6216, %v6561
    %v6565 = vmul.f32 %v6219, %v6561
    %v6566 = vmul.f32 %v6224, %v6561
    %v6567 = vmul.f32 %v6227, %v6561
    %v6568 = vmul.f32 %v6232, %v6561
    %v6569 = vmul.f32 %v6235, %v6561
    %v6570 = vmul.f32 %v6240, %v6561
    %v6571 = vmul.f32 %v6243, %v6561
    %v6572 = vmul.f32 %v6248, %v6561
    %v6573 = vmul.f32 %v6251, %v6561
    %v6574 = vmul.f32 %v6256, %v6561
    %v6575 = vmul.f32 %v6259, %v6561
    %v6576 = vmul.f32 %v6264, %v6561
    %v6577 = vmul.f32 %v6267, %v6561
    %v6578 = vmul.f32 %v6272, %v6561
    %v6579 = vmul.f32 %v6275, %v6561
    %v6580 = vmul.f32 %v6280, %v6561
    %v6581 = vmul.f32 %v6283, %v6561
    %v6582 = vmul.f32 %v6288, %v6561
    %v6583 = vmul.f32 %v6291, %v6561
    %v6584 = vmul.f32 %v6296, %v6561
    %v6585 = vmul.f32 %v6299, %v6561
    %v6586 = vmul.f32 %v6304, %v6561
    %v6587 = vmul.f32 %v6307, %v6561
    %v6588 = vmul.f32 %v6312, %v6561
    %v6589 = vmul.f32 %v6315, %v6561
    %v6590 = vmul.f32 %v6320, %v6561
    %v6591 = vmul.f32 %v6323, %v6561
    %v6592 = vmul.f32 %v6328, %v6561
    %v6593 = vmul.f32 %v6331, %v6561
    %v6595 = vlaneseq
    %v6596 = vshrl.u32 %v6595, 7
    %v6597 = vsub.s32 0, %v6596
    %v6598 = vrot.slane %v6544, %v6597
    %6599 = vrot.lane.b32.xlu0 %v6598, 64
    %v6600 = vpop.permute.xlu0 %6599
    %6602 = vrot.lane.b32.xlu0 %v6598, 96
    %v6603 = vpop.permute.xlu0 %6602
    %6605 = vrot.lane.b32.xlu0 %v6598, 32
    %v6606 = vpop.permute.xlu0 %6605
    %v6608 = vsel %vm443, %v6600, %v6603
    %v6609 = vsel %vm258, %v6608, %v6544
    %v6610 = vsel %vm446, %v6609, %v6606
    %v6611 = vlaneseq
    %v6612 = vshrl.u32 %v6611, 7
    %v6613 = vsub.s32 0, %v6612
    %v6614 = vrot.slane %v6610, %v6613
    %v6615 = vadd.f32 %v6562, %v6614
    %v6616 = vadd.f32 %v6563, %v6614
    %v6617 = vadd.f32 %v6564, %v6614
    %v6618 = vadd.f32 %v6565, %v6614
    %v6619 = vadd.f32 %v6566, %v6614
    %v6620 = vadd.f32 %v6567, %v6614
    %v6621 = vadd.f32 %v6568, %v6614
    %v6622 = vadd.f32 %v6569, %v6614
    %v6623 = vadd.f32 %v6570, %v6614
    %v6624 = vadd.f32 %v6571, %v6614
    %v6625 = vadd.f32 %v6572, %v6614
    %v6626 = vadd.f32 %v6573, %v6614
    %v6627 = vadd.f32 %v6574, %v6614
    %v6628 = vadd.f32 %v6575, %v6614
    %v6629 = vadd.f32 %v6576, %v6614
    %v6630 = vadd.f32 %v6577, %v6614
    %v6631 = vadd.f32 %v6578, %v6614
    %v6632 = vadd.f32 %v6579, %v6614
    %v6633 = vadd.f32 %v6580, %v6614
    %v6634 = vadd.f32 %v6581, %v6614
    %v6635 = vadd.f32 %v6582, %v6614
    %v6636 = vadd.f32 %v6583, %v6614
    %v6637 = vadd.f32 %v6584, %v6614
    %v6638 = vadd.f32 %v6585, %v6614
    %v6639 = vadd.f32 %v6586, %v6614
    %v6640 = vadd.f32 %v6587, %v6614
    %v6641 = vadd.f32 %v6588, %v6614
    %v6642 = vadd.f32 %v6589, %v6614
    %v6643 = vadd.f32 %v6590, %v6614
    %v6644 = vadd.f32 %v6591, %v6614
    %v6645 = vadd.f32 %v6592, %v6614
    %v6646 = vadd.f32 %v6593, %v6614
    %vm6647 = vcmp.gt.f32.partialorder %v6615, 0.0
    %vm6648 = vcmp.gt.f32.partialorder %v6616, 0.0
    %vm6649 = vcmp.gt.f32.partialorder %v6617, 0.0
    %vm6650 = vcmp.gt.f32.partialorder %v6618, 0.0
    %vm6651 = vcmp.gt.f32.partialorder %v6619, 0.0
    %vm6652 = vcmp.gt.f32.partialorder %v6620, 0.0
    %vm6653 = vcmp.gt.f32.partialorder %v6621, 0.0
    %vm6654 = vcmp.gt.f32.partialorder %v6622, 0.0
    %vm6655 = vcmp.gt.f32.partialorder %v6623, 0.0
    %vm6656 = vcmp.gt.f32.partialorder %v6624, 0.0
    %vm6657 = vcmp.gt.f32.partialorder %v6625, 0.0
    %vm6658 = vcmp.gt.f32.partialorder %v6626, 0.0
    %vm6659 = vcmp.gt.f32.partialorder %v6627, 0.0
    %vm6660 = vcmp.gt.f32.partialorder %v6628, 0.0
    %vm6661 = vcmp.gt.f32.partialorder %v6629, 0.0
    %vm6662 = vcmp.gt.f32.partialorder %v6630, 0.0
    %vm6663 = vcmp.gt.f32.partialorder %v6631, 0.0
    %vm6664 = vcmp.gt.f32.partialorder %v6632, 0.0
    %vm6665 = vcmp.gt.f32.partialorder %v6633, 0.0
    %vm6666 = vcmp.gt.f32.partialorder %v6634, 0.0
    %vm6667 = vcmp.gt.f32.partialorder %v6635, 0.0
    %vm6668 = vcmp.gt.f32.partialorder %v6636, 0.0
    %vm6669 = vcmp.gt.f32.partialorder %v6637, 0.0
    %vm6670 = vcmp.gt.f32.partialorder %v6638, 0.0
    %vm6671 = vcmp.gt.f32.partialorder %v6639, 0.0
    %vm6672 = vcmp.gt.f32.partialorder %v6640, 0.0
    %vm6673 = vcmp.gt.f32.partialorder %v6641, 0.0
    %vm6674 = vcmp.gt.f32.partialorder %v6642, 0.0
    %vm6675 = vcmp.gt.f32.partialorder %v6643, 0.0
    %vm6676 = vcmp.gt.f32.partialorder %v6644, 0.0
    %vm6677 = vcmp.gt.f32.partialorder %v6645, 0.0
    %vm6678 = vcmp.gt.f32.partialorder %v6646, 0.0
    %v6679 = vmul.f32 %v6615, 0.01
    %v6680 = vmul.f32 %v6616, 0.01
    %v6681 = vmul.f32 %v6617, 0.01
    %v6682 = vmul.f32 %v6618, 0.01
    %v6683 = vmul.f32 %v6619, 0.01
    %v6684 = vmul.f32 %v6620, 0.01
    %v6685 = vmul.f32 %v6621, 0.01
    %v6686 = vmul.f32 %v6622, 0.01
    %v6687 = vmul.f32 %v6623, 0.01
    %v6688 = vmul.f32 %v6624, 0.01
    %v6689 = vmul.f32 %v6625, 0.01
    %v6690 = vmul.f32 %v6626, 0.01
    %v6691 = vmul.f32 %v6627, 0.01
    %v6692 = vmul.f32 %v6628, 0.01
    %v6693 = vmul.f32 %v6629, 0.01
    %v6694 = vmul.f32 %v6630, 0.01
    %v6695 = vmul.f32 %v6631, 0.01
    %v6696 = vmul.f32 %v6632, 0.01
    %v6697 = vmul.f32 %v6633, 0.01
    %v6698 = vmul.f32 %v6634, 0.01
    %v6699 = vmul.f32 %v6635, 0.01
    %v6700 = vmul.f32 %v6636, 0.01
    %v6701 = vmul.f32 %v6637, 0.01
    %v6702 = vmul.f32 %v6638, 0.01
    %v6703 = vmul.f32 %v6639, 0.01
    %v6704 = vmul.f32 %v6640, 0.01
    %v6705 = vmul.f32 %v6641, 0.01
    %v6706 = vmul.f32 %v6642, 0.01
    %v6707 = vmul.f32 %v6643, 0.01
    %v6708 = vmul.f32 %v6644, 0.01
    %v6709 = vmul.f32 %v6645, 0.01
    %v6710 = vmul.f32 %v6646, 0.01
    %v6711 = vsel %vm6647, %v6615, %v6679
    %v6712 = vsel %vm6648, %v6616, %v6680
    %v6713 = vsel %vm6649, %v6617, %v6681
    %v6714 = vsel %vm6650, %v6618, %v6682
    %v6715 = vsel %vm6651, %v6619, %v6683
    %v6716 = vsel %vm6652, %v6620, %v6684
    %v6717 = vsel %vm6653, %v6621, %v6685
    %v6718 = vsel %vm6654, %v6622, %v6686
    %v6719 = vsel %vm6655, %v6623, %v6687
    %v6720 = vsel %vm6656, %v6624, %v6688
    %v6721 = vsel %vm6657, %v6625, %v6689
    %v6722 = vsel %vm6658, %v6626, %v6690
    %v6723 = vsel %vm6659, %v6627, %v6691
    %v6724 = vsel %vm6660, %v6628, %v6692
    %v6725 = vsel %vm6661, %v6629, %v6693
    %v6726 = vsel %vm6662, %v6630, %v6694
    %v6727 = vsel %vm6663, %v6631, %v6695
    %v6728 = vsel %vm6664, %v6632, %v6696
    %v6729 = vsel %vm6665, %v6633, %v6697
    %v6730 = vsel %vm6666, %v6634, %v6698
    %v6731 = vsel %vm6667, %v6635, %v6699
    %v6732 = vsel %vm6668, %v6636, %v6700
    %v6733 = vsel %vm6669, %v6637, %v6701
    %v6734 = vsel %vm6670, %v6638, %v6702
    %v6735 = vsel %vm6671, %v6639, %v6703
    %v6736 = vsel %vm6672, %v6640, %v6704
    %v6737 = vsel %vm6673, %v6641, %v6705
    %v6738 = vsel %vm6674, %v6642, %v6706
    %v6739 = vsel %vm6675, %v6643, %v6707
    %v6740 = vsel %vm6676, %v6644, %v6708
    %v6741 = vsel %vm6677, %v6645, %v6709
    %v6742 = vsel %vm6678, %v6646, %v6710
    %vm6743 = vcmp.gt.f32.partialorder %v6544, 0.0
    %v6744 = vmul.f32 %v6544, 0.01
    %v6745 = vsel %vm6743, %v6544, %v6744
    %v6746 = vpack.c.bf16 %v6712, %v6711
    %v6747 = vpack.c.bf16 %v6714, %v6713
    %v6748 = vpack.c.bf16 %v6716, %v6715
    %v6749 = vpack.c.bf16 %v6718, %v6717
    %v6750 = vpack.c.bf16 %v6720, %v6719
    %v6751 = vpack.c.bf16 %v6722, %v6721
    %v6752 = vpack.c.bf16 %v6724, %v6723
    %v6753 = vpack.c.bf16 %v6726, %v6725
    %v6754 = vpack.c.bf16 %v6728, %v6727
    %v6755 = vpack.c.bf16 %v6730, %v6729
    %v6756 = vpack.c.bf16 %v6732, %v6731
    %v6757 = vpack.c.bf16 %v6734, %v6733
    %v6758 = vpack.c.bf16 %v6736, %v6735
    %v6759 = vpack.c.bf16 %v6738, %v6737
    %v6760 = vpack.c.bf16 %v6740, %v6739
    %v6761 = vpack.c.bf16 %v6742, %v6741
    %v6762 = vadd.s32 %v1520, 128
    %v6763 = vadd.s32 %v1518, 4294967295
    %v6764 = vadd.s32 %v3683, 4294967295
    %v6765 = vadd.s32 %v4201, 4294967295
    %v6766 = vadd.s32 %v4202, 4294967295
    %v6767 = vadd.s32 %v4203, 4294967295
    %v6768 = vadd.s32 %v4204, 4294967295
    %v6769 = vadd.s32 %v4205, 4294967295
    %v6770 = vadd.s32 %v4206, 4294967295
    %v6771 = vadd.s32 %v4903, 4294967295
    %v6772 = vadd.s32 %v4904, 4294967295
    %v6773 = vadd.s32 %v4905, 4294967295
    %v6774 = vadd.s32 %v4906, 4294967295
    %v6775 = vadd.s32 %v4907, 4294967295
    %v6776 = vadd.s32 %v4908, 4294967295
    %v6777 = vadd.s32 %v4909, 4294967295
    %v6778 = vadd.s32 %v4910, 4294967295
    %v6779 = vadd.s32 %v4911, 4294967295
    %v6780 = vadd.s32 %v4912, 4294967295
    %v6781 = vadd.s32 %v4913, 4294967295
    %v6782 = vadd.s32 %v4914, 4294967295
    %v6783 = vadd.s32 %v4915, 4294967295
    %v6784 = vadd.s32 %v4916, 4294967295
    %v6785 = vadd.s32 %v4917, 4294967295
    %v6786 = vadd.s32 %v4918, 4294967295
    %v6787 = vadd.s32 %v4919, 4294967295
    %v6788 = vadd.s32 %v4920, 4294967295
    %v6789 = vadd.s32 %v4921, 4294967295
    %v6790 = vadd.s32 %v4922, 4294967295
    %v6791 = vadd.s32 %v4923, 4294967295
    %v6792 = vadd.s32 %v4924, 4294967295
    %v6793 = vadd.s32 %v4925, 4294967295
    %v6794 = vadd.s32 %v4926, 4294967295
    %vm6795 = vcmp.eq.s32.totalorder %v1520, %v6763
    %vm6796 = vcmp.eq.s32.totalorder %v6762, %v6763
    %vm6797 = vcmp.eq.s32.totalorder %v1520, %v6764
    %vm6798 = vcmp.eq.s32.totalorder %v6762, %v6764
    %vm6799 = vcmp.eq.s32.totalorder %v1520, %v6765
    %vm6800 = vcmp.eq.s32.totalorder %v6762, %v6765
    %vm6801 = vcmp.eq.s32.totalorder %v1520, %v6766
    %vm6802 = vcmp.eq.s32.totalorder %v6762, %v6766
    %vm6803 = vcmp.eq.s32.totalorder %v1520, %v6767
    %vm6804 = vcmp.eq.s32.totalorder %v6762, %v6767
    %vm6805 = vcmp.eq.s32.totalorder %v1520, %v6768
    %vm6806 = vcmp.eq.s32.totalorder %v6762, %v6768
    %vm6807 = vcmp.eq.s32.totalorder %v1520, %v6769
    %vm6808 = vcmp.eq.s32.totalorder %v6762, %v6769
    %vm6809 = vcmp.eq.s32.totalorder %v1520, %v6770
    %vm6810 = vcmp.eq.s32.totalorder %v6762, %v6770
    %vm6811 = vcmp.eq.s32.totalorder %v1520, %v6771
    %vm6812 = vcmp.eq.s32.totalorder %v6762, %v6771
    %vm6813 = vcmp.eq.s32.totalorder %v1520, %v6772
    %vm6814 = vcmp.eq.s32.totalorder %v6762, %v6772
    %vm6815 = vcmp.eq.s32.totalorder %v1520, %v6773
    %vm6816 = vcmp.eq.s32.totalorder %v6762, %v6773
    %vm6817 = vcmp.eq.s32.totalorder %v1520, %v6774
    %vm6818 = vcmp.eq.s32.totalorder %v6762, %v6774
    %vm6819 = vcmp.eq.s32.totalorder %v1520, %v6775
    %vm6820 = vcmp.eq.s32.totalorder %v6762, %v6775
    %vm6821 = vcmp.eq.s32.totalorder %v1520, %v6776
    %vm6822 = vcmp.eq.s32.totalorder %v6762, %v6776
    %vm6823 = vcmp.eq.s32.totalorder %v1520, %v6777
    %vm6824 = vcmp.eq.s32.totalorder %v6762, %v6777
    %vm6825 = vcmp.eq.s32.totalorder %v1520, %v6778
    %vm6826 = vcmp.eq.s32.totalorder %v6762, %v6778
    %vm6827 = vcmp.eq.s32.totalorder %v1520, %v6779
    %vm6828 = vcmp.eq.s32.totalorder %v6762, %v6779
    %vm6829 = vcmp.eq.s32.totalorder %v1520, %v6780
    %vm6830 = vcmp.eq.s32.totalorder %v6762, %v6780
    %vm6831 = vcmp.eq.s32.totalorder %v1520, %v6781
    %vm6832 = vcmp.eq.s32.totalorder %v6762, %v6781
    %vm6833 = vcmp.eq.s32.totalorder %v1520, %v6782
    %vm6834 = vcmp.eq.s32.totalorder %v6762, %v6782
    %vm6835 = vcmp.eq.s32.totalorder %v1520, %v6783
    %vm6836 = vcmp.eq.s32.totalorder %v6762, %v6783
    %vm6837 = vcmp.eq.s32.totalorder %v1520, %v6784
    %vm6838 = vcmp.eq.s32.totalorder %v6762, %v6784
    %vm6839 = vcmp.eq.s32.totalorder %v1520, %v6785
    %vm6840 = vcmp.eq.s32.totalorder %v6762, %v6785
    %vm6841 = vcmp.eq.s32.totalorder %v1520, %v6786
    %vm6842 = vcmp.eq.s32.totalorder %v6762, %v6786
    %vm6843 = vcmp.eq.s32.totalorder %v1520, %v6787
    %vm6844 = vcmp.eq.s32.totalorder %v6762, %v6787
    %vm6845 = vcmp.eq.s32.totalorder %v1520, %v6788
    %vm6846 = vcmp.eq.s32.totalorder %v6762, %v6788
    %vm6847 = vcmp.eq.s32.totalorder %v1520, %v6789
    %vm6848 = vcmp.eq.s32.totalorder %v6762, %v6789
    %vm6849 = vcmp.eq.s32.totalorder %v1520, %v6790
    %vm6850 = vcmp.eq.s32.totalorder %v6762, %v6790
    %vm6851 = vcmp.eq.s32.totalorder %v1520, %v6791
    %vm6852 = vcmp.eq.s32.totalorder %v6762, %v6791
    %vm6853 = vcmp.eq.s32.totalorder %v1520, %v6792
    %vm6854 = vcmp.eq.s32.totalorder %v6762, %v6792
    %vm6855 = vcmp.eq.s32.totalorder %v1520, %v6793
    %vm6856 = vcmp.eq.s32.totalorder %v6762, %v6793
    %vm6857 = vcmp.eq.s32.totalorder %v1520, %v6794
    %vm6858 = vcmp.eq.s32.totalorder %v6762, %v6794
    %v6859 = vand.u32 %v1518, 127
    %v6860 = vand.u32 %v3683, 127
    %v6861 = vand.u32 %v4201, 127
    %v6862 = vand.u32 %v4202, 127
    %v6863 = vand.u32 %v4203, 127
    %v6864 = vand.u32 %v4204, 127
    %v6865 = vand.u32 %v4205, 127
    %v6866 = vand.u32 %v4206, 127
    %v6867 = vand.u32 %v4903, 127
    %v6868 = vand.u32 %v4904, 127
    %v6869 = vand.u32 %v4905, 127
    %v6870 = vand.u32 %v4906, 127
    %v6871 = vand.u32 %v4907, 127
    %v6872 = vand.u32 %v4908, 127
    %v6873 = vand.u32 %v4909, 127
    %v6874 = vand.u32 %v4910, 127
    %v6875 = vand.u32 %v4911, 127
    %v6876 = vand.u32 %v4912, 127
    %v6877 = vand.u32 %v4913, 127
    %v6878 = vand.u32 %v4914, 127
    %v6879 = vand.u32 %v4915, 127
    %v6880 = vand.u32 %v4916, 127
    %v6881 = vand.u32 %v4917, 127
    %v6882 = vand.u32 %v4918, 127
    %v6883 = vand.u32 %v4919, 127
    %v6884 = vand.u32 %v4920, 127
    %v6885 = vand.u32 %v4921, 127
    %v6886 = vand.u32 %v4922, 127
    %v6887 = vand.u32 %v4923, 127
    %v6888 = vand.u32 %v4924, 127
    %v6889 = vand.u32 %v4925, 127
    %v6890 = vand.u32 %v4926, 127
    %vm6891 = vcmp.ge.s32.totalorder %v6859, 1
    %vm6892 = vcmp.ge.s32.totalorder %v6860, 1
    %vm6893 = vcmp.ge.s32.totalorder %v6861, 1
    %vm6894 = vcmp.ge.s32.totalorder %v6862, 1
    %vm6895 = vcmp.ge.s32.totalorder %v6863, 1
    %vm6896 = vcmp.ge.s32.totalorder %v6864, 1
    %vm6897 = vcmp.ge.s32.totalorder %v6865, 1
    %vm6898 = vcmp.ge.s32.totalorder %v6866, 1
    %vm6899 = vcmp.ge.s32.totalorder %v6867, 1
    %vm6900 = vcmp.ge.s32.totalorder %v6868, 1
    %vm6901 = vcmp.ge.s32.totalorder %v6869, 1
    %vm6902 = vcmp.ge.s32.totalorder %v6870, 1
    %vm6903 = vcmp.ge.s32.totalorder %v6871, 1
    %vm6904 = vcmp.ge.s32.totalorder %v6872, 1
    %vm6905 = vcmp.ge.s32.totalorder %v6873, 1
    %vm6906 = vcmp.ge.s32.totalorder %v6874, 1
    %vm6907 = vcmp.ge.s32.totalorder %v6875, 1
    %vm6908 = vcmp.ge.s32.totalorder %v6876, 1
    %vm6909 = vcmp.ge.s32.totalorder %v6877, 1
    %vm6910 = vcmp.ge.s32.totalorder %v6878, 1
    %vm6911 = vcmp.ge.s32.totalorder %v6879, 1
    %vm6912 = vcmp.ge.s32.totalorder %v6880, 1
    %vm6913 = vcmp.ge.s32.totalorder %v6881, 1
    %vm6914 = vcmp.ge.s32.totalorder %v6882, 1
    %vm6915 = vcmp.ge.s32.totalorder %v6883, 1
    %vm6916 = vcmp.ge.s32.totalorder %v6884, 1
    %vm6917 = vcmp.ge.s32.totalorder %v6885, 1
    %vm6918 = vcmp.ge.s32.totalorder %v6886, 1
    %vm6919 = vcmp.ge.s32.totalorder %v6887, 1
    %vm6920 = vcmp.ge.s32.totalorder %v6888, 1
    %vm6921 = vcmp.ge.s32.totalorder %v6889, 1
    %vm6922 = vcmp.ge.s32.totalorder %v6890, 1
    %vm6923 = vmand %vm6795, %vm6891
    %vm6924 = vmand %vm6796, %vm6891
    %vm6925 = vmand %vm6797, %vm6892
    %vm6926 = vmand %vm6798, %vm6892
    %vm6927 = vmand %vm6799, %vm6893
    %vm6928 = vmand %vm6800, %vm6893
    %vm6929 = vmand %vm6801, %vm6894
    %vm6930 = vmand %vm6802, %vm6894
    %vm6931 = vmand %vm6803, %vm6895
    %vm6932 = vmand %vm6804, %vm6895
    %vm6933 = vmand %vm6805, %vm6896
    %vm6934 = vmand %vm6806, %vm6896
    %vm6935 = vmand %vm6807, %vm6897
    %vm6936 = vmand %vm6808, %vm6897
    %vm6937 = vmand %vm6809, %vm6898
    %vm6938 = vmand %vm6810, %vm6898
    %vm6939 = vmand %vm6811, %vm6899
    %vm6940 = vmand %vm6812, %vm6899
    %vm6941 = vmand %vm6813, %vm6900
    %vm6942 = vmand %vm6814, %vm6900
    %vm6943 = vmand %vm6815, %vm6901
    %vm6944 = vmand %vm6816, %vm6901
    %vm6945 = vmand %vm6817, %vm6902
    %vm6946 = vmand %vm6818, %vm6902
    %vm6947 = vmand %vm6819, %vm6903
    %vm6948 = vmand %vm6820, %vm6903
    %vm6949 = vmand %vm6821, %vm6904
    %vm6950 = vmand %vm6822, %vm6904
    %vm6951 = vmand %vm6823, %vm6905
    %vm6952 = vmand %vm6824, %vm6905
    %vm6953 = vmand %vm6825, %vm6906
    %vm6954 = vmand %vm6826, %vm6906
    %vm6955 = vmand %vm6827, %vm6907
    %vm6956 = vmand %vm6828, %vm6907
    %vm6957 = vmand %vm6829, %vm6908
    %vm6958 = vmand %vm6830, %vm6908
    %vm6959 = vmand %vm6831, %vm6909
    %vm6960 = vmand %vm6832, %vm6909
    %vm6961 = vmand %vm6833, %vm6910
    %vm6962 = vmand %vm6834, %vm6910
    %vm6963 = vmand %vm6835, %vm6911
    %vm6964 = vmand %vm6836, %vm6911
    %vm6965 = vmand %vm6837, %vm6912
    %vm6966 = vmand %vm6838, %vm6912
    %vm6967 = vmand %vm6839, %vm6913
    %vm6968 = vmand %vm6840, %vm6913
    %vm6969 = vmand %vm6841, %vm6914
    %vm6970 = vmand %vm6842, %vm6914
    %vm6971 = vmand %vm6843, %vm6915
    %vm6972 = vmand %vm6844, %vm6915
    %vm6973 = vmand %vm6845, %vm6916
    %vm6974 = vmand %vm6846, %vm6916
    %vm6975 = vmand %vm6847, %vm6917
    %vm6976 = vmand %vm6848, %vm6917
    %vm6977 = vmand %vm6849, %vm6918
    %vm6978 = vmand %vm6850, %vm6918
    %vm6979 = vmand %vm6851, %vm6919
    %vm6980 = vmand %vm6852, %vm6919
    %vm6981 = vmand %vm6853, %vm6920
    %vm6982 = vmand %vm6854, %vm6920
    %vm6983 = vmand %vm6855, %vm6921
    %vm6984 = vmand %vm6856, %vm6921
    %vm6985 = vmand %vm6857, %vm6922
    %vm6986 = vmand %vm6858, %vm6922
    %v6987 = vsel %vm6923, 1.0, 0.0
    %v6988 = vsel %vm6924, 1.0, 0.0
    %v6989 = vsel %vm6925, 1.0, 0.0
    %v6990 = vsel %vm6926, 1.0, 0.0
    %v6991 = vsel %vm6927, 1.0, 0.0
    %v6992 = vsel %vm6928, 1.0, 0.0
    %v6993 = vsel %vm6929, 1.0, 0.0
    %v6994 = vsel %vm6930, 1.0, 0.0
    %v6995 = vsel %vm6931, 1.0, 0.0
    %v6996 = vsel %vm6932, 1.0, 0.0
    %v6997 = vsel %vm6933, 1.0, 0.0
    %v6998 = vsel %vm6934, 1.0, 0.0
    %v6999 = vsel %vm6935, 1.0, 0.0
    %v7000 = vsel %vm6936, 1.0, 0.0
    %v7001 = vsel %vm6937, 1.0, 0.0
    %v7002 = vsel %vm6938, 1.0, 0.0
    %v7003 = vsel %vm6939, 1.0, 0.0
    %v7004 = vsel %vm6940, 1.0, 0.0
    %v7005 = vsel %vm6941, 1.0, 0.0
    %v7006 = vsel %vm6942, 1.0, 0.0
    %v7007 = vsel %vm6943, 1.0, 0.0
    %v7008 = vsel %vm6944, 1.0, 0.0
    %v7009 = vsel %vm6945, 1.0, 0.0
    %v7010 = vsel %vm6946, 1.0, 0.0
    %v7011 = vsel %vm6947, 1.0, 0.0
    %v7012 = vsel %vm6948, 1.0, 0.0
    %v7013 = vsel %vm6949, 1.0, 0.0
    %v7014 = vsel %vm6950, 1.0, 0.0
    %v7015 = vsel %vm6951, 1.0, 0.0
    %v7016 = vsel %vm6952, 1.0, 0.0
    %v7017 = vsel %vm6953, 1.0, 0.0
    %v7018 = vsel %vm6954, 1.0, 0.0
    %v7019 = vsel %vm6955, 1.0, 0.0
    %v7020 = vsel %vm6956, 1.0, 0.0
    %v7021 = vsel %vm6957, 1.0, 0.0
    %v7022 = vsel %vm6958, 1.0, 0.0
    %v7023 = vsel %vm6959, 1.0, 0.0
    %v7024 = vsel %vm6960, 1.0, 0.0
    %v7025 = vsel %vm6961, 1.0, 0.0
    %v7026 = vsel %vm6962, 1.0, 0.0
    %v7027 = vsel %vm6963, 1.0, 0.0
    %v7028 = vsel %vm6964, 1.0, 0.0
    %v7029 = vsel %vm6965, 1.0, 0.0
    %v7030 = vsel %vm6966, 1.0, 0.0
    %v7031 = vsel %vm6967, 1.0, 0.0
    %v7032 = vsel %vm6968, 1.0, 0.0
    %v7033 = vsel %vm6969, 1.0, 0.0
    %v7034 = vsel %vm6970, 1.0, 0.0
    %v7035 = vsel %vm6971, 1.0, 0.0
    %v7036 = vsel %vm6972, 1.0, 0.0
    %v7037 = vsel %vm6973, 1.0, 0.0
    %v7038 = vsel %vm6974, 1.0, 0.0
    %v7039 = vsel %vm6975, 1.0, 0.0
    %v7040 = vsel %vm6976, 1.0, 0.0
    %v7041 = vsel %vm6977, 1.0, 0.0
    %v7042 = vsel %vm6978, 1.0, 0.0
    %v7043 = vsel %vm6979, 1.0, 0.0
    %v7044 = vsel %vm6980, 1.0, 0.0
    %v7045 = vsel %vm6981, 1.0, 0.0
    %v7046 = vsel %vm6982, 1.0, 0.0
    %v7047 = vsel %vm6983, 1.0, 0.0
    %v7048 = vsel %vm6984, 1.0, 0.0
    %v7049 = vsel %vm6985, 1.0, 0.0
    %v7050 = vsel %vm6986, 1.0, 0.0
    %v7051 = vpack.c.bf16 %v6989, %v6987
    %v7052 = vpack.c.bf16 %v6990, %v6988
    %v7053 = vpack.c.bf16 %v6993, %v6991
    %v7054 = vpack.c.bf16 %v6994, %v6992
    %v7055 = vpack.c.bf16 %v6997, %v6995
    %v7056 = vpack.c.bf16 %v6998, %v6996
    %v7057 = vpack.c.bf16 %v7001, %v6999
    %v7058 = vpack.c.bf16 %v7002, %v7000
    %v7059 = vpack.c.bf16 %v7005, %v7003
    %v7060 = vpack.c.bf16 %v7006, %v7004
    %v7061 = vpack.c.bf16 %v7009, %v7007
    %v7062 = vpack.c.bf16 %v7010, %v7008
    %v7063 = vpack.c.bf16 %v7013, %v7011
    %v7064 = vpack.c.bf16 %v7014, %v7012
    %v7065 = vpack.c.bf16 %v7017, %v7015
    %v7066 = vpack.c.bf16 %v7018, %v7016
    %v7067 = vpack.c.bf16 %v7021, %v7019
    %v7068 = vpack.c.bf16 %v7022, %v7020
    %v7069 = vpack.c.bf16 %v7025, %v7023
    %v7070 = vpack.c.bf16 %v7026, %v7024
    %v7071 = vpack.c.bf16 %v7029, %v7027
    %v7072 = vpack.c.bf16 %v7030, %v7028
    %v7073 = vpack.c.bf16 %v7033, %v7031
    %v7074 = vpack.c.bf16 %v7034, %v7032
    %v7075 = vpack.c.bf16 %v7037, %v7035
    %v7076 = vpack.c.bf16 %v7038, %v7036
    %v7077 = vpack.c.bf16 %v7041, %v7039
    %v7078 = vpack.c.bf16 %v7042, %v7040
    %v7079 = vpack.c.bf16 %v7045, %v7043
    %v7080 = vpack.c.bf16 %v7046, %v7044
    %v7081 = vpack.c.bf16 %v7049, %v7047
    %v7082 = vpack.c.bf16 %v7050, %v7048
    %7099 = vrot.lane.b32.xlu0 %v6746, 32
    %v7100 = vpop.permute.xlu0 %7099
    %7101 = vrot.lane.b32.xlu0 %v6747, 32
    %v7102 = vpop.permute.xlu0 %7101
    %7103 = vrot.lane.b32.xlu0 %v6748, 32
    %v7104 = vpop.permute.xlu0 %7103
    %7105 = vrot.lane.b32.xlu0 %v6749, 32
    %v7106 = vpop.permute.xlu0 %7105
    %7107 = vrot.lane.b32.xlu0 %v6750, 32
    %v7108 = vpop.permute.xlu0 %7107
    %7109 = vrot.lane.b32.xlu0 %v6751, 32
    %v7110 = vpop.permute.xlu0 %7109
    %7111 = vrot.lane.b32.xlu0 %v6752, 32
    %v7112 = vpop.permute.xlu0 %7111
    %7113 = vrot.lane.b32.xlu0 %v6753, 32
    %v7114 = vpop.permute.xlu0 %7113
    %7115 = vrot.lane.b32.xlu0 %v6754, 32
    %v7116 = vpop.permute.xlu0 %7115
    %7117 = vrot.lane.b32.xlu0 %v6755, 32
    %v7118 = vpop.permute.xlu0 %7117
    %7119 = vrot.lane.b32.xlu0 %v6756, 32
    %v7120 = vpop.permute.xlu0 %7119
    %7121 = vrot.lane.b32.xlu0 %v6757, 32
    %v7122 = vpop.permute.xlu0 %7121
    %7123 = vrot.lane.b32.xlu0 %v6758, 32
    %v7124 = vpop.permute.xlu0 %7123
    %7125 = vrot.lane.b32.xlu0 %v6759, 32
    %v7126 = vpop.permute.xlu0 %7125
    %7127 = vrot.lane.b32.xlu0 %v6760, 32
    %v7128 = vpop.permute.xlu0 %7127
    %7129 = vrot.lane.b32.xlu0 %v6761, 32
    %v7130 = vpop.permute.xlu0 %7129
    %7147 = vmatprep.subr.bf16.mxu0 0
    %7148 = vmatpush1.bf16.msra.mxu0 %v7100
    %7149 = vmatprep.subr.bf16.mxu0 0
    %7150 = vmatpush1.bf16.msra.mxu0 %v7102
    %7151 = vmatprep.subr.bf16.mxu0 0
    %7152 = vmatpush1.bf16.msra.mxu0 %v7104
    %7153 = vmatprep.subr.bf16.mxu0 0
    %7154 = vmatpush1.bf16.msra.mxu0 %v7106
    %7155 = vmatprep.subr.bf16.mxu0 0
    %7156 = vmatpush1.bf16.msra.mxu0 %v7108
    %7157 = vmatprep.subr.bf16.mxu0 0
    %7158 = vmatpush1.bf16.msra.mxu0 %v7110
    %7159 = vmatprep.subr.bf16.mxu0 0
    %7160 = vmatpush1.bf16.msra.mxu0 %v7112
    %7161 = vmatprep.subr.bf16.mxu0 0
    %7162 = vmatpush1.bf16.msra.mxu0 %v7114
    %7163 = vmatprep.subr.bf16.mxu0 0
    %7164 = vmatpush1.bf16.msra.mxu0 %v7116
    %7165 = vmatprep.subr.bf16.mxu0 0
    %7166 = vmatpush1.bf16.msra.mxu0 %v7118
    %7167 = vmatprep.subr.bf16.mxu0 0
    %7168 = vmatpush1.bf16.msra.mxu0 %v7120
    %7169 = vmatprep.subr.bf16.mxu0 0
    %7170 = vmatpush1.bf16.msra.mxu0 %v7122
    %7171 = vmatprep.subr.bf16.mxu0 0
    %7172 = vmatpush1.bf16.msra.mxu0 %v7124
    %7173 = vmatprep.subr.bf16.mxu0 0
    %7174 = vmatpush1.bf16.msra.mxu0 %v7126
    %7175 = vmatprep.subr.bf16.mxu0 0
    %7176 = vmatpush1.bf16.msra.mxu0 %v7128
    %7177 = vmatprep.subr.bf16.mxu0 0
    %7178 = vmatpush1.bf16.msra.mxu0 %v7130
    %7179 = vmatprep.mubr.bf16.mxu0 %v7052
    %7180 = vmatmul.mubr.bf16.gmra.mrb[0].mxu0 %v7051
    %v7181 = vpop.f32.mrb[0].mxu0
    %v7182 = vadd.f32 0.0, %v7181
    %v7183 = vpop.f32.mrb[0].mxu0
    %v7184 = vpop.f32.mrb[0].mxu0
    %v7185 = vadd.f32 0.0, %v7184
    %v7186 = vpop.f32.mrb[0].mxu0
    %7187 = vmatprep.mubr.bf16.mxu0 %v7054
    %7188 = vmatmul.mubr.bf16.gmra.mrb[0].mxu0 %v7053
    %v7189 = vpop.f32.mrb[0].mxu0
    %v7190 = vadd.f32 0.0, %v7189
    %v7191 = vpop.f32.mrb[0].mxu0
    %v7192 = vpop.f32.mrb[0].mxu0
    %v7193 = vadd.f32 0.0, %v7192
    %v7194 = vpop.f32.mrb[0].mxu0
    %7195 = vmatprep.mubr.bf16.mxu0 %v7056
    %7196 = vmatmul.mubr.bf16.gmra.mrb[0].mxu0 %v7055
    %v7197 = vpop.f32.mrb[0].mxu0
    %v7198 = vadd.f32 0.0, %v7197
    %v7199 = vpop.f32.mrb[0].mxu0
    %v7200 = vpop.f32.mrb[0].mxu0
    %v7201 = vadd.f32 0.0, %v7200
    %v7202 = vpop.f32.mrb[0].mxu0
    %7203 = vmatprep.mubr.bf16.mxu0 %v7058
    %7204 = vmatmul.mubr.bf16.gmra.mrb[0].mxu0 %v7057
    %v7205 = vpop.f32.mrb[0].mxu0
    %v7206 = vadd.f32 0.0, %v7205
    %v7207 = vpop.f32.mrb[0].mxu0
    %v7208 = vpop.f32.mrb[0].mxu0
    %v7209 = vadd.f32 0.0, %v7208
    %v7210 = vpop.f32.mrb[0].mxu0
    %7211 = vmatprep.mubr.bf16.mxu0 %v7060
    %7212 = vmatmul.mubr.bf16.gmra.mrb[0].mxu0 %v7059
    %v7213 = vpop.f32.mrb[0].mxu0
    %v7214 = vadd.f32 0.0, %v7213
    %v7215 = vpop.f32.mrb[0].mxu0
    %v7216 = vpop.f32.mrb[0].mxu0
    %v7217 = vadd.f32 0.0, %v7216
    %v7218 = vpop.f32.mrb[0].mxu0
    %7219 = vmatprep.mubr.bf16.mxu0 %v7062
    %7220 = vmatmul.mubr.bf16.gmra.mrb[0].mxu0 %v7061
    %v7221 = vpop.f32.mrb[0].mxu0
    %v7222 = vadd.f32 0.0, %v7221
    %v7223 = vpop.f32.mrb[0].mxu0
    %v7224 = vpop.f32.mrb[0].mxu0
    %v7225 = vadd.f32 0.0, %v7224
    %v7226 = vpop.f32.mrb[0].mxu0
    %7227 = vmatprep.mubr.bf16.mxu0 %v7064
    %7228 = vmatmul.mubr.bf16.gmra.mrb[0].mxu0 %v7063
    %v7229 = vpop.f32.mrb[0].mxu0
    %v7230 = vadd.f32 0.0, %v7229
    %v7231 = vpop.f32.mrb[0].mxu0
    %v7232 = vpop.f32.mrb[0].mxu0
    %v7233 = vadd.f32 0.0, %v7232
    %v7234 = vpop.f32.mrb[0].mxu0
    %7235 = vmatprep.mubr.bf16.mxu0 %v7066
    %7236 = vmatmul.mubr.bf16.gmra.mrb[0].mxu0 %v7065
    %v7237 = vpop.f32.mrb[0].mxu0
    %v7238 = vadd.f32 0.0, %v7237
    %v7239 = vpop.f32.mrb[0].mxu0
    %v7240 = vpop.f32.mrb[0].mxu0
    %v7241 = vadd.f32 0.0, %v7240
    %v7242 = vpop.f32.mrb[0].mxu0
    %7243 = vmatprep.mubr.bf16.mxu0 %v7068
    %7244 = vmatmul.mubr.bf16.gmra.mrb[0].mxu0 %v7067
    %v7245 = vpop.f32.mrb[0].mxu0
    %v7246 = vadd.f32 0.0, %v7245
    %v7247 = vpop.f32.mrb[0].mxu0
    %v7248 = vpop.f32.mrb[0].mxu0
    %v7249 = vadd.f32 0.0, %v7248
    %v7250 = vpop.f32.mrb[0].mxu0
    %7251 = vmatprep.mubr.bf16.mxu0 %v7070
    %7252 = vmatmul.mubr.bf16.gmra.mrb[0].mxu0 %v7069
    %v7253 = vpop.f32.mrb[0].mxu0
    %v7254 = vadd.f32 0.0, %v7253
    %v7255 = vpop.f32.mrb[0].mxu0
    %v7256 = vpop.f32.mrb[0].mxu0
    %v7257 = vadd.f32 0.0, %v7256
    %v7258 = vpop.f32.mrb[0].mxu0
    %7259 = vmatprep.mubr.bf16.mxu0 %v7072
    %7260 = vmatmul.mubr.bf16.gmra.mrb[0].mxu0 %v7071
    %v7261 = vpop.f32.mrb[0].mxu0
    %v7262 = vadd.f32 0.0, %v7261
    %v7263 = vpop.f32.mrb[0].mxu0
    %v7264 = vpop.f32.mrb[0].mxu0
    %v7265 = vadd.f32 0.0, %v7264
    %v7266 = vpop.f32.mrb[0].mxu0
    %7267 = vmatprep.mubr.bf16.mxu0 %v7074
    %7268 = vmatmul.mubr.bf16.gmra.mrb[0].mxu0 %v7073
    %v7269 = vpop.f32.mrb[0].mxu0
    %v7270 = vadd.f32 0.0, %v7269
    %v7271 = vpop.f32.mrb[0].mxu0
    %v7272 = vpop.f32.mrb[0].mxu0
    %v7273 = vadd.f32 0.0, %v7272
    %v7274 = vpop.f32.mrb[0].mxu0
    %7275 = vmatprep.mubr.bf16.mxu0 %v7076
    %7276 = vmatmul.mubr.bf16.gmra.mrb[0].mxu0 %v7075
    %v7277 = vpop.f32.mrb[0].mxu0
    %v7278 = vadd.f32 0.0, %v7277
    %v7279 = vpop.f32.mrb[0].mxu0
    %v7280 = vpop.f32.mrb[0].mxu0
    %v7281 = vadd.f32 0.0, %v7280
    %v7282 = vpop.f32.mrb[0].mxu0
    %7283 = vmatprep.mubr.bf16.mxu0 %v7078
    %7284 = vmatmul.mubr.bf16.gmra.mrb[0].mxu0 %v7077
    %v7285 = vpop.f32.mrb[0].mxu0
    %v7286 = vadd.f32 0.0, %v7285
    %v7287 = vpop.f32.mrb[0].mxu0
    %v7288 = vpop.f32.mrb[0].mxu0
    %v7289 = vadd.f32 0.0, %v7288
    %v7290 = vpop.f32.mrb[0].mxu0
    %7291 = vmatprep.mubr.bf16.mxu0 %v7080
    %7292 = vmatmul.mubr.bf16.gmra.mrb[0].mxu0 %v7079
    %v7293 = vpop.f32.mrb[0].mxu0
    %v7294 = vadd.f32 0.0, %v7293
    %v7295 = vpop.f32.mrb[0].mxu0
    %v7296 = vpop.f32.mrb[0].mxu0
    %v7297 = vadd.f32 0.0, %v7296
    %v7298 = vpop.f32.mrb[0].mxu0
    %7299 = vmatprep.mubr.bf16.mxu0 %v7082
    %7300 = vmatmul.mubr.bf16.gmra.mrb[0].mxu0 %v7081
    %v7301 = vpop.f32.mrb[0].mxu0
    %v7302 = vadd.f32 0.0, %v7301
    %v7303 = vpop.f32.mrb[0].mxu0
    %v7304 = vpop.f32.mrb[0].mxu0
    %v7305 = vadd.f32 0.0, %v7304
    %v7306 = vpop.f32.mrb[0].mxu0
    %7307 = vdwg.mxu0
    %v7308 = vadd.s32 %v1518, 1
    %v7309 = vadd.s32 %v3683, 1
    %v7310 = vadd.s32 %v4201, 1
    %v7311 = vadd.s32 %v4202, 1
    %v7312 = vadd.s32 %v4203, 1
    %v7313 = vadd.s32 %v4204, 1
    %v7314 = vadd.s32 %v4205, 1
    %v7315 = vadd.s32 %v4206, 1
    %v7316 = vadd.s32 %v4903, 1
    %v7317 = vadd.s32 %v4904, 1
    %v7318 = vadd.s32 %v4905, 1
    %v7319 = vadd.s32 %v4906, 1
    %v7320 = vadd.s32 %v4907, 1
    %v7321 = vadd.s32 %v4908, 1
    %v7322 = vadd.s32 %v4909, 1
    %v7323 = vadd.s32 %v4910, 1
    %v7324 = vadd.s32 %v4911, 1
    %v7325 = vadd.s32 %v4912, 1
    %v7326 = vadd.s32 %v4913, 1
    %v7327 = vadd.s32 %v4914, 1
    %v7328 = vadd.s32 %v4915, 1
    %v7329 = vadd.s32 %v4916, 1
    %v7330 = vadd.s32 %v4917, 1
    %v7331 = vadd.s32 %v4918, 1
    %v7332 = vadd.s32 %v4919, 1
    %v7333 = vadd.s32 %v4920, 1
    %v7334 = vadd.s32 %v4921, 1
    %v7335 = vadd.s32 %v4922, 1
    %v7336 = vadd.s32 %v4923, 1
    %v7337 = vadd.s32 %v4924, 1
    %v7338 = vadd.s32 %v4925, 1
    %v7339 = vadd.s32 %v4926, 1
    %vm7340 = vcmp.eq.s32.totalorder %v1520, %v7308
    %vm7341 = vcmp.eq.s32.totalorder %v6762, %v7308
    %vm7342 = vcmp.eq.s32.totalorder %v1520, %v7309
    %vm7343 = vcmp.eq.s32.totalorder %v6762, %v7309
    %vm7344 = vcmp.eq.s32.totalorder %v1520, %v7310
    %vm7345 = vcmp.eq.s32.totalorder %v6762, %v7310
    %vm7346 = vcmp.eq.s32.totalorder %v1520, %v7311
    %vm7347 = vcmp.eq.s32.totalorder %v6762, %v7311
    %vm7348 = vcmp.eq.s32.totalorder %v1520, %v7312
    %vm7349 = vcmp.eq.s32.totalorder %v6762, %v7312
    %vm7350 = vcmp.eq.s32.totalorder %v1520, %v7313
    %vm7351 = vcmp.eq.s32.totalorder %v6762, %v7313
    %vm7352 = vcmp.eq.s32.totalorder %v1520, %v7314
    %vm7353 = vcmp.eq.s32.totalorder %v6762, %v7314
    %vm7354 = vcmp.eq.s32.totalorder %v1520, %v7315
    %vm7355 = vcmp.eq.s32.totalorder %v6762, %v7315
    %vm7356 = vcmp.eq.s32.totalorder %v1520, %v7316
    %vm7357 = vcmp.eq.s32.totalorder %v6762, %v7316
    %vm7358 = vcmp.eq.s32.totalorder %v1520, %v7317
    %vm7359 = vcmp.eq.s32.totalorder %v6762, %v7317
    %vm7360 = vcmp.eq.s32.totalorder %v1520, %v7318
    %vm7361 = vcmp.eq.s32.totalorder %v6762, %v7318
    %vm7362 = vcmp.eq.s32.totalorder %v1520, %v7319
    %vm7363 = vcmp.eq.s32.totalorder %v6762, %v7319
    %vm7364 = vcmp.eq.s32.totalorder %v1520, %v7320
    %vm7365 = vcmp.eq.s32.totalorder %v6762, %v7320
    %vm7366 = vcmp.eq.s32.totalorder %v1520, %v7321
    %vm7367 = vcmp.eq.s32.totalorder %v6762, %v7321
    %vm7368 = vcmp.eq.s32.totalorder %v1520, %v7322
    %vm7369 = vcmp.eq.s32.totalorder %v6762, %v7322
    %vm7370 = vcmp.eq.s32.totalorder %v1520, %v7323
    %vm7371 = vcmp.eq.s32.totalorder %v6762, %v7323
    %vm7372 = vcmp.eq.s32.totalorder %v1520, %v7324
    %vm7373 = vcmp.eq.s32.totalorder %v6762, %v7324
    %vm7374 = vcmp.eq.s32.totalorder %v1520, %v7325
    %vm7375 = vcmp.eq.s32.totalorder %v6762, %v7325
    %vm7376 = vcmp.eq.s32.totalorder %v1520, %v7326
    %vm7377 = vcmp.eq.s32.totalorder %v6762, %v7326
    %vm7378 = vcmp.eq.s32.totalorder %v1520, %v7327
    %vm7379 = vcmp.eq.s32.totalorder %v6762, %v7327
    %vm7380 = vcmp.eq.s32.totalorder %v1520, %v7328
    %vm7381 = vcmp.eq.s32.totalorder %v6762, %v7328
    %vm7382 = vcmp.eq.s32.totalorder %v1520, %v7329
    %vm7383 = vcmp.eq.s32.totalorder %v6762, %v7329
    %vm7384 = vcmp.eq.s32.totalorder %v1520, %v7330
    %vm7385 = vcmp.eq.s32.totalorder %v6762, %v7330
    %vm7386 = vcmp.eq.s32.totalorder %v1520, %v7331
    %vm7387 = vcmp.eq.s32.totalorder %v6762, %v7331
    %vm7388 = vcmp.eq.s32.totalorder %v1520, %v7332
    %vm7389 = vcmp.eq.s32.totalorder %v6762, %v7332
    %vm7390 = vcmp.eq.s32.totalorder %v1520, %v7333
    %vm7391 = vcmp.eq.s32.totalorder %v6762, %v7333
    %vm7392 = vcmp.eq.s32.totalorder %v1520, %v7334
    %vm7393 = vcmp.eq.s32.totalorder %v6762, %v7334
    %vm7394 = vcmp.eq.s32.totalorder %v1520, %v7335
    %vm7395 = vcmp.eq.s32.totalorder %v6762, %v7335
    %vm7396 = vcmp.eq.s32.totalorder %v1520, %v7336
    %vm7397 = vcmp.eq.s32.totalorder %v6762, %v7336
    %vm7398 = vcmp.eq.s32.totalorder %v1520, %v7337
    %vm7399 = vcmp.eq.s32.totalorder %v6762, %v7337
    %vm7400 = vcmp.eq.s32.totalorder %v1520, %v7338
    %vm7401 = vcmp.eq.s32.totalorder %v6762, %v7338
    %vm7402 = vcmp.eq.s32.totalorder %v1520, %v7339
    %vm7403 = vcmp.eq.s32.totalorder %v6762, %v7339
    %vm7404 = vcmp.lt.s32.totalorder %v6859, 127
    %vm7405 = vcmp.lt.s32.totalorder %v6860, 127
    %vm7406 = vcmp.lt.s32.totalorder %v6861, 127
    %vm7407 = vcmp.lt.s32.totalorder %v6862, 127
    %vm7408 = vcmp.lt.s32.totalorder %v6863, 127
    %vm7409 = vcmp.lt.s32.totalorder %v6864, 127
    %vm7410 = vcmp.lt.s32.totalorder %v6865, 127
    %vm7411 = vcmp.lt.s32.totalorder %v6866, 127
    %vm7412 = vcmp.lt.s32.totalorder %v6867, 127
    %vm7413 = vcmp.lt.s32.totalorder %v6868, 127
    %vm7414 = vcmp.lt.s32.totalorder %v6869, 127
    %vm7415 = vcmp.lt.s32.totalorder %v6870, 127
    %vm7416 = vcmp.lt.s32.totalorder %v6871, 127
    %vm7417 = vcmp.lt.s32.totalorder %v6872, 127
    %vm7418 = vcmp.lt.s32.totalorder %v6873, 127
    %vm7419 = vcmp.lt.s32.totalorder %v6874, 127
    %vm7420 = vcmp.lt.s32.totalorder %v6875, 127
    %vm7421 = vcmp.lt.s32.totalorder %v6876, 127
    %vm7422 = vcmp.lt.s32.totalorder %v6877, 127
    %vm7423 = vcmp.lt.s32.totalorder %v6878, 127
    %vm7424 = vcmp.lt.s32.totalorder %v6879, 127
    %vm7425 = vcmp.lt.s32.totalorder %v6880, 127
    %vm7426 = vcmp.lt.s32.totalorder %v6881, 127
    %vm7427 = vcmp.lt.s32.totalorder %v6882, 127
    %vm7428 = vcmp.lt.s32.totalorder %v6883, 127
    %vm7429 = vcmp.lt.s32.totalorder %v6884, 127
    %vm7430 = vcmp.lt.s32.totalorder %v6885, 127
    %vm7431 = vcmp.lt.s32.totalorder %v6886, 127
    %vm7432 = vcmp.lt.s32.totalorder %v6887, 127
    %vm7433 = vcmp.lt.s32.totalorder %v6888, 127
    %vm7434 = vcmp.lt.s32.totalorder %v6889, 127
    %vm7435 = vcmp.lt.s32.totalorder %v6890, 127
    %vm7436 = vmand %vm7340, %vm7404
    %vm7437 = vmand %vm7341, %vm7404
    %vm7438 = vmand %vm7342, %vm7405
    %vm7439 = vmand %vm7343, %vm7405
    %vm7440 = vmand %vm7344, %vm7406
    %vm7441 = vmand %vm7345, %vm7406
    %vm7442 = vmand %vm7346, %vm7407
    %vm7443 = vmand %vm7347, %vm7407
    %vm7444 = vmand %vm7348, %vm7408
    %vm7445 = vmand %vm7349, %vm7408
    %vm7446 = vmand %vm7350, %vm7409
    %vm7447 = vmand %vm7351, %vm7409
    %vm7448 = vmand %vm7352, %vm7410
    %vm7449 = vmand %vm7353, %vm7410
    %vm7450 = vmand %vm7354, %vm7411
    %vm7451 = vmand %vm7355, %vm7411
    %vm7452 = vmand %vm7356, %vm7412
    %vm7453 = vmand %vm7357, %vm7412
    %vm7454 = vmand %vm7358, %vm7413
    %vm7455 = vmand %vm7359, %vm7413
    %vm7456 = vmand %vm7360, %vm7414
    %vm7457 = vmand %vm7361, %vm7414
    %vm7458 = vmand %vm7362, %vm7415
    %vm7459 = vmand %vm7363, %vm7415
    %vm7460 = vmand %vm7364, %vm7416
    %vm7461 = vmand %vm7365, %vm7416
    %vm7462 = vmand %vm7366, %vm7417
    %vm7463 = vmand %vm7367, %vm7417
    %vm7464 = vmand %vm7368, %vm7418
    %vm7465 = vmand %vm7369, %vm7418
    %vm7466 = vmand %vm7370, %vm7419
    %vm7467 = vmand %vm7371, %vm7419
    %vm7468 = vmand %vm7372, %vm7420
    %vm7469 = vmand %vm7373, %vm7420
    %vm7470 = vmand %vm7374, %vm7421
    %vm7471 = vmand %vm7375, %vm7421
    %vm7472 = vmand %vm7376, %vm7422
    %vm7473 = vmand %vm7377, %vm7422
    %vm7474 = vmand %vm7378, %vm7423
    %vm7475 = vmand %vm7379, %vm7423
    %vm7476 = vmand %vm7380, %vm7424
    %vm7477 = vmand %vm7381, %vm7424
    %vm7478 = vmand %vm7382, %vm7425
    %vm7479 = vmand %vm7383, %vm7425
    %vm7480 = vmand %vm7384, %vm7426
    %vm7481 = vmand %vm7385, %vm7426
    %vm7482 = vmand %vm7386, %vm7427
    %vm7483 = vmand %vm7387, %vm7427
    %vm7484 = vmand %vm7388, %vm7428
    %vm7485 = vmand %vm7389, %vm7428
    %vm7486 = vmand %vm7390, %vm7429
    %vm7487 = vmand %vm7391, %vm7429
    %vm7488 = vmand %vm7392, %vm7430
    %vm7489 = vmand %vm7393, %vm7430
    %vm7490 = vmand %vm7394, %vm7431
    %vm7491 = vmand %vm7395, %vm7431
    %vm7492 = vmand %vm7396, %vm7432
    %vm7493 = vmand %vm7397, %vm7432
    %vm7494 = vmand %vm7398, %vm7433
    %vm7495 = vmand %vm7399, %vm7433
    %vm7496 = vmand %vm7400, %vm7434
    %vm7497 = vmand %vm7401, %vm7434
    %vm7498 = vmand %vm7402, %vm7435
    %vm7499 = vmand %vm7403, %vm7435
    %v7500 = vsel %vm7436, 1.0, 0.0
    %v7501 = vsel %vm7437, 1.0, 0.0
    %v7502 = vsel %vm7438, 1.0, 0.0
    %v7503 = vsel %vm7439, 1.0, 0.0
    %v7504 = vsel %vm7440, 1.0, 0.0
    %v7505 = vsel %vm7441, 1.0, 0.0
    %v7506 = vsel %vm7442, 1.0, 0.0
    %v7507 = vsel %vm7443, 1.0, 0.0
    %v7508 = vsel %vm7444, 1.0, 0.0
    %v7509 = vsel %vm7445, 1.0, 0.0
    %v7510 = vsel %vm7446, 1.0, 0.0
    %v7511 = vsel %vm7447, 1.0, 0.0
    %v7512 = vsel %vm7448, 1.0, 0.0
    %v7513 = vsel %vm7449, 1.0, 0.0
    %v7514 = vsel %vm7450, 1.0, 0.0
    %v7515 = vsel %vm7451, 1.0, 0.0
    %v7516 = vsel %vm7452, 1.0, 0.0
    %v7517 = vsel %vm7453, 1.0, 0.0
    %v7518 = vsel %vm7454, 1.0, 0.0
    %v7519 = vsel %vm7455, 1.0, 0.0
    %v7520 = vsel %vm7456, 1.0, 0.0
    %v7521 = vsel %vm7457, 1.0, 0.0
    %v7522 = vsel %vm7458, 1.0, 0.0
    %v7523 = vsel %vm7459, 1.0, 0.0
    %v7524 = vsel %vm7460, 1.0, 0.0
    %v7525 = vsel %vm7461, 1.0, 0.0
    %v7526 = vsel %vm7462, 1.0, 0.0
    %v7527 = vsel %vm7463, 1.0, 0.0
    %v7528 = vsel %vm7464, 1.0, 0.0
    %v7529 = vsel %vm7465, 1.0, 0.0
    %v7530 = vsel %vm7466, 1.0, 0.0
    %v7531 = vsel %vm7467, 1.0, 0.0
    %v7532 = vsel %vm7468, 1.0, 0.0
    %v7533 = vsel %vm7469, 1.0, 0.0
    %v7534 = vsel %vm7470, 1.0, 0.0
    %v7535 = vsel %vm7471, 1.0, 0.0
    %v7536 = vsel %vm7472, 1.0, 0.0
    %v7537 = vsel %vm7473, 1.0, 0.0
    %v7538 = vsel %vm7474, 1.0, 0.0
    %v7539 = vsel %vm7475, 1.0, 0.0
    %v7540 = vsel %vm7476, 1.0, 0.0
    %v7541 = vsel %vm7477, 1.0, 0.0
    %v7542 = vsel %vm7478, 1.0, 0.0
    %v7543 = vsel %vm7479, 1.0, 0.0
    %v7544 = vsel %vm7480, 1.0, 0.0
    %v7545 = vsel %vm7481, 1.0, 0.0
    %v7546 = vsel %vm7482, 1.0, 0.0
    %v7547 = vsel %vm7483, 1.0, 0.0
    %v7548 = vsel %vm7484, 1.0, 0.0
    %v7549 = vsel %vm7485, 1.0, 0.0
    %v7550 = vsel %vm7486, 1.0, 0.0
    %v7551 = vsel %vm7487, 1.0, 0.0
    %v7552 = vsel %vm7488, 1.0, 0.0
    %v7553 = vsel %vm7489, 1.0, 0.0
    %v7554 = vsel %vm7490, 1.0, 0.0
    %v7555 = vsel %vm7491, 1.0, 0.0
    %v7556 = vsel %vm7492, 1.0, 0.0
    %v7557 = vsel %vm7493, 1.0, 0.0
    %v7558 = vsel %vm7494, 1.0, 0.0
    %v7559 = vsel %vm7495, 1.0, 0.0
    %v7560 = vsel %vm7496, 1.0, 0.0
    %v7561 = vsel %vm7497, 1.0, 0.0
    %v7562 = vsel %vm7498, 1.0, 0.0
    %v7563 = vsel %vm7499, 1.0, 0.0
    %v7564 = vpack.c.bf16 %v7502, %v7500
    %v7565 = vpack.c.bf16 %v7503, %v7501
    %v7566 = vpack.c.bf16 %v7506, %v7504
    %v7567 = vpack.c.bf16 %v7507, %v7505
    %v7568 = vpack.c.bf16 %v7510, %v7508
    %v7569 = vpack.c.bf16 %v7511, %v7509
    %v7570 = vpack.c.bf16 %v7514, %v7512
    %v7571 = vpack.c.bf16 %v7515, %v7513
    %v7572 = vpack.c.bf16 %v7518, %v7516
    %v7573 = vpack.c.bf16 %v7519, %v7517
    %v7574 = vpack.c.bf16 %v7522, %v7520
    %v7575 = vpack.c.bf16 %v7523, %v7521
    %v7576 = vpack.c.bf16 %v7526, %v7524
    %v7577 = vpack.c.bf16 %v7527, %v7525
    %v7578 = vpack.c.bf16 %v7530, %v7528
    %v7579 = vpack.c.bf16 %v7531, %v7529
    %v7580 = vpack.c.bf16 %v7534, %v7532
    %v7581 = vpack.c.bf16 %v7535, %v7533
    %v7582 = vpack.c.bf16 %v7538, %v7536
    %v7583 = vpack.c.bf16 %v7539, %v7537
    %v7584 = vpack.c.bf16 %v7542, %v7540
    %v7585 = vpack.c.bf16 %v7543, %v7541
    %v7586 = vpack.c.bf16 %v7546, %v7544
    %v7587 = vpack.c.bf16 %v7547, %v7545
    %v7588 = vpack.c.bf16 %v7550, %v7548
    %v7589 = vpack.c.bf16 %v7551, %v7549
    %v7590 = vpack.c.bf16 %v7554, %v7552
    %v7591 = vpack.c.bf16 %v7555, %v7553
    %v7592 = vpack.c.bf16 %v7558, %v7556
    %v7593 = vpack.c.bf16 %v7559, %v7557
    %v7594 = vpack.c.bf16 %v7562, %v7560
    %v7595 = vpack.c.bf16 %v7563, %v7561
    %7596 = vrot.lane.b32.xlu0 %v6746, 96
    %v7597 = vpop.permute.xlu0 %7596
    %7598 = vrot.lane.b32.xlu0 %v6747, 96
    %v7599 = vpop.permute.xlu0 %7598
    %7600 = vrot.lane.b32.xlu0 %v6748, 96
    %v7601 = vpop.permute.xlu0 %7600
    %7602 = vrot.lane.b32.xlu0 %v6749, 96
    %v7603 = vpop.permute.xlu0 %7602
    %7604 = vrot.lane.b32.xlu0 %v6750, 96
    %v7605 = vpop.permute.xlu0 %7604
    %7606 = vrot.lane.b32.xlu0 %v6751, 96
    %v7607 = vpop.permute.xlu0 %7606
    %7608 = vrot.lane.b32.xlu0 %v6752, 96
    %v7609 = vpop.permute.xlu0 %7608
    %7610 = vrot.lane.b32.xlu0 %v6753, 96
    %v7611 = vpop.permute.xlu0 %7610
    %7612 = vrot.lane.b32.xlu0 %v6754, 96
    %v7613 = vpop.permute.xlu0 %7612
    %7614 = vrot.lane.b32.xlu0 %v6755, 96
    %v7615 = vpop.permute.xlu0 %7614
    %7616 = vrot.lane.b32.xlu0 %v6756, 96
    %v7617 = vpop.permute.xlu0 %7616
    %7618 = vrot.lane.b32.xlu0 %v6757, 96
    %v7619 = vpop.permute.xlu0 %7618
    %7620 = vrot.lane.b32.xlu0 %v6758, 96
    %v7621 = vpop.permute.xlu0 %7620
    %7622 = vrot.lane.b32.xlu0 %v6759, 96
    %v7623 = vpop.permute.xlu0 %7622
    %7624 = vrot.lane.b32.xlu0 %v6760, 96
    %v7625 = vpop.permute.xlu0 %7624
    %7626 = vrot.lane.b32.xlu0 %v6761, 96
    %v7627 = vpop.permute.xlu0 %7626
    %7644 = vmatprep.subr.bf16.mxu0 0
    %7645 = vmatpush1.bf16.msra.mxu0 %v7597
    %7646 = vmatprep.subr.bf16.mxu0 0
    %7647 = vmatpush1.bf16.msra.mxu0 %v7599
    %7648 = vmatprep.subr.bf16.mxu0 0
    %7649 = vmatpush1.bf16.msra.mxu0 %v7601
    %7650 = vmatprep.subr.bf16.mxu0 0
    %7651 = vmatpush1.bf16.msra.mxu0 %v7603
    %7652 = vmatprep.subr.bf16.mxu0 0
    %7653 = vmatpush1.bf16.msra.mxu0 %v7605
    %7654 = vmatprep.subr.bf16.mxu0 0
    %7655 = vmatpush1.bf16.msra.mxu0 %v7607
    %7656 = vmatprep.subr.bf16.mxu0 0
    %7657 = vmatpush1.bf16.msra.mxu0 %v7609
    %7658 = vmatprep.subr.bf16.mxu0 0
    %7659 = vmatpush1.bf16.msra.mxu0 %v7611
    %7660 = vmatprep.subr.bf16.mxu0 0
    %7661 = vmatpush1.bf16.msra.mxu0 %v7613
    %7662 = vmatprep.subr.bf16.mxu0 0
    %7663 = vmatpush1.bf16.msra.mxu0 %v7615
    %7664 = vmatprep.subr.bf16.mxu0 0
    %7665 = vmatpush1.bf16.msra.mxu0 %v7617
    %7666 = vmatprep.subr.bf16.mxu0 0
    %7667 = vmatpush1.bf16.msra.mxu0 %v7619
    %7668 = vmatprep.subr.bf16.mxu0 0
    %7669 = vmatpush1.bf16.msra.mxu0 %v7621
    %7670 = vmatprep.subr.bf16.mxu0 0
    %7671 = vmatpush1.bf16.msra.mxu0 %v7623
    %7672 = vmatprep.subr.bf16.mxu0 0
    %7673 = vmatpush1.bf16.msra.mxu0 %v7625
    %7674 = vmatprep.subr.bf16.mxu0 0
    %7675 = vmatpush1.bf16.msra.mxu0 %v7627
    %7676 = vmatprep.mubr.bf16.mxu0 %v7565
    %7677 = vmatmul.mubr.bf16.gmra.mrb[0].mxu0 %v7564
    %v7678 = vpop.f32.mrb[0].mxu0
    %v7679 = vadd.f32 0.0, %v7678
    %v7680 = vpop.f32.mrb[0].mxu0
    %v7681 = vpop.f32.mrb[0].mxu0
    %v7682 = vadd.f32 0.0, %v7681
    %v7683 = vpop.f32.mrb[0].mxu0
    %7684 = vmatprep.mubr.bf16.mxu0 %v7567
    %7685 = vmatmul.mubr.bf16.gmra.mrb[0].mxu0 %v7566
    %v7686 = vpop.f32.mrb[0].mxu0
    %v7687 = vadd.f32 0.0, %v7686
    %v7688 = vpop.f32.mrb[0].mxu0
    %v7689 = vpop.f32.mrb[0].mxu0
    %v7690 = vadd.f32 0.0, %v7689
    %v7691 = vpop.f32.mrb[0].mxu0
    %7692 = vmatprep.mubr.bf16.mxu0 %v7569
    %7693 = vmatmul.mubr.bf16.gmra.mrb[0].mxu0 %v7568
    %v7694 = vpop.f32.mrb[0].mxu0
    %v7695 = vadd.f32 0.0, %v7694
    %v7696 = vpop.f32.mrb[0].mxu0
    %v7697 = vpop.f32.mrb[0].mxu0
    %v7698 = vadd.f32 0.0, %v7697
    %v7699 = vpop.f32.mrb[0].mxu0
    %7700 = vmatprep.mubr.bf16.mxu0 %v7571
    %7701 = vmatmul.mubr.bf16.gmra.mrb[0].mxu0 %v7570
    %v7702 = vpop.f32.mrb[0].mxu0
    %v7703 = vadd.f32 0.0, %v7702
    %v7704 = vpop.f32.mrb[0].mxu0
    %v7705 = vpop.f32.mrb[0].mxu0
    %v7706 = vadd.f32 0.0, %v7705
    %v7707 = vpop.f32.mrb[0].mxu0
    %7708 = vmatprep.mubr.bf16.mxu0 %v7573
    %7709 = vmatmul.mubr.bf16.gmra.mrb[0].mxu0 %v7572
    %v7710 = vpop.f32.mrb[0].mxu0
    %v7711 = vadd.f32 0.0, %v7710
    %v7712 = vpop.f32.mrb[0].mxu0
    %v7713 = vpop.f32.mrb[0].mxu0
    %v7714 = vadd.f32 0.0, %v7713
    %v7715 = vpop.f32.mrb[0].mxu0
    %7716 = vmatprep.mubr.bf16.mxu0 %v7575
    %7717 = vmatmul.mubr.bf16.gmra.mrb[0].mxu0 %v7574
    %v7718 = vpop.f32.mrb[0].mxu0
    %v7719 = vadd.f32 0.0, %v7718
    %v7720 = vpop.f32.mrb[0].mxu0
    %v7721 = vpop.f32.mrb[0].mxu0
    %v7722 = vadd.f32 0.0, %v7721
    %v7723 = vpop.f32.mrb[0].mxu0
    %7724 = vmatprep.mubr.bf16.mxu0 %v7577
    %7725 = vmatmul.mubr.bf16.gmra.mrb[0].mxu0 %v7576
    %v7726 = vpop.f32.mrb[0].mxu0
    %v7727 = vadd.f32 0.0, %v7726
    %v7728 = vpop.f32.mrb[0].mxu0
    %v7729 = vpop.f32.mrb[0].mxu0
    %v7730 = vadd.f32 0.0, %v7729
    %v7731 = vpop.f32.mrb[0].mxu0
    %7732 = vmatprep.mubr.bf16.mxu0 %v7579
    %7733 = vmatmul.mubr.bf16.gmra.mrb[0].mxu0 %v7578
    %v7734 = vpop.f32.mrb[0].mxu0
    %v7735 = vadd.f32 0.0, %v7734
    %v7736 = vpop.f32.mrb[0].mxu0
    %v7737 = vpop.f32.mrb[0].mxu0
    %v7738 = vadd.f32 0.0, %v7737
    %v7739 = vpop.f32.mrb[0].mxu0
    %7740 = vmatprep.mubr.bf16.mxu0 %v7581
    %7741 = vmatmul.mubr.bf16.gmra.mrb[0].mxu0 %v7580
    %v7742 = vpop.f32.mrb[0].mxu0
    %v7743 = vadd.f32 0.0, %v7742
    %v7744 = vpop.f32.mrb[0].mxu0
    %v7745 = vpop.f32.mrb[0].mxu0
    %v7746 = vadd.f32 0.0, %v7745
    %v7747 = vpop.f32.mrb[0].mxu0
    %7748 = vmatprep.mubr.bf16.mxu0 %v7583
    %7749 = vmatmul.mubr.bf16.gmra.mrb[0].mxu0 %v7582
    %v7750 = vpop.f32.mrb[0].mxu0
    %v7751 = vadd.f32 0.0, %v7750
    %v7752 = vpop.f32.mrb[0].mxu0
    %v7753 = vpop.f32.mrb[0].mxu0
    %v7754 = vadd.f32 0.0, %v7753
    %v7755 = vpop.f32.mrb[0].mxu0
    %7756 = vmatprep.mubr.bf16.mxu0 %v7585
    %7757 = vmatmul.mubr.bf16.gmra.mrb[0].mxu0 %v7584
    %v7758 = vpop.f32.mrb[0].mxu0
    %v7759 = vadd.f32 0.0, %v7758
    %v7760 = vpop.f32.mrb[0].mxu0
    %v7761 = vpop.f32.mrb[0].mxu0
    %v7762 = vadd.f32 0.0, %v7761
    %v7763 = vpop.f32.mrb[0].mxu0
    %7764 = vmatprep.mubr.bf16.mxu0 %v7587
    %7765 = vmatmul.mubr.bf16.gmra.mrb[0].mxu0 %v7586
    %v7766 = vpop.f32.mrb[0].mxu0
    %v7767 = vadd.f32 0.0, %v7766
    %v7768 = vpop.f32.mrb[0].mxu0
    %v7769 = vpop.f32.mrb[0].mxu0
    %v7770 = vadd.f32 0.0, %v7769
    %v7771 = vpop.f32.mrb[0].mxu0
    %7772 = vmatprep.mubr.bf16.mxu0 %v7589
    %7773 = vmatmul.mubr.bf16.gmra.mrb[0].mxu0 %v7588
    %v7774 = vpop.f32.mrb[0].mxu0
    %v7775 = vadd.f32 0.0, %v7774
    %v7776 = vpop.f32.mrb[0].mxu0
    %v7777 = vpop.f32.mrb[0].mxu0
    %v7778 = vadd.f32 0.0, %v7777
    %v7779 = vpop.f32.mrb[0].mxu0
    %7780 = vmatprep.mubr.bf16.mxu0 %v7591
    %7781 = vmatmul.mubr.bf16.gmra.mrb[0].mxu0 %v7590
    %v7782 = vpop.f32.mrb[0].mxu0
    %v7783 = vadd.f32 0.0, %v7782
    %v7784 = vpop.f32.mrb[0].mxu0
    %v7785 = vpop.f32.mrb[0].mxu0
    %v7786 = vadd.f32 0.0, %v7785
    %v7787 = vpop.f32.mrb[0].mxu0
    %7788 = vmatprep.mubr.bf16.mxu0 %v7593
    %7789 = vmatmul.mubr.bf16.gmra.mrb[0].mxu0 %v7592
    %v7790 = vpop.f32.mrb[0].mxu0
    %v7791 = vadd.f32 0.0, %v7790
    %v7792 = vpop.f32.mrb[0].mxu0
    %v7793 = vpop.f32.mrb[0].mxu0
    %v7794 = vadd.f32 0.0, %v7793
    %v7795 = vpop.f32.mrb[0].mxu0
    %7796 = vmatprep.mubr.bf16.mxu0 %v7595
    %7797 = vmatmul.mubr.bf16.gmra.mrb[0].mxu0 %v7594
    %v7798 = vpop.f32.mrb[0].mxu0
    %v7799 = vadd.f32 0.0, %v7798
    %v7800 = vpop.f32.mrb[0].mxu0
    %v7801 = vpop.f32.mrb[0].mxu0
    %v7802 = vadd.f32 0.0, %v7801
    %v7803 = vpop.f32.mrb[0].mxu0
    %7804 = vdwg.mxu0
    %vm7805 = vcmp.eq.s32.totalorder %v6859, 127
    %vm7806 = vcmp.eq.s32.totalorder %v6860, 127
    %vm7807 = vcmp.eq.s32.totalorder %v6861, 127
    %vm7808 = vcmp.eq.s32.totalorder %v6862, 127
    %vm7809 = vcmp.eq.s32.totalorder %v6863, 127
    %vm7810 = vcmp.eq.s32.totalorder %v6864, 127
    %vm7811 = vcmp.eq.s32.totalorder %v6865, 127
    %vm7812 = vcmp.eq.s32.totalorder %v6866, 127
    %vm7813 = vcmp.eq.s32.totalorder %v6867, 127
    %vm7814 = vcmp.eq.s32.totalorder %v6868, 127
    %vm7815 = vcmp.eq.s32.totalorder %v6869, 127
    %vm7816 = vcmp.eq.s32.totalorder %v6870, 127
    %vm7817 = vcmp.eq.s32.totalorder %v6871, 127
    %vm7818 = vcmp.eq.s32.totalorder %v6872, 127
    %vm7819 = vcmp.eq.s32.totalorder %v6873, 127
    %vm7820 = vcmp.eq.s32.totalorder %v6874, 127
    %vm7821 = vcmp.eq.s32.totalorder %v6875, 127
    %vm7822 = vcmp.eq.s32.totalorder %v6876, 127
    %vm7823 = vcmp.eq.s32.totalorder %v6877, 127
    %vm7824 = vcmp.eq.s32.totalorder %v6878, 127
    %vm7825 = vcmp.eq.s32.totalorder %v6879, 127
    %vm7826 = vcmp.eq.s32.totalorder %v6880, 127
    %vm7827 = vcmp.eq.s32.totalorder %v6881, 127
    %vm7828 = vcmp.eq.s32.totalorder %v6882, 127
    %vm7829 = vcmp.eq.s32.totalorder %v6883, 127
    %vm7830 = vcmp.eq.s32.totalorder %v6884, 127
    %vm7831 = vcmp.eq.s32.totalorder %v6885, 127
    %vm7832 = vcmp.eq.s32.totalorder %v6886, 127
    %vm7833 = vcmp.eq.s32.totalorder %v6887, 127
    %vm7834 = vcmp.eq.s32.totalorder %v6888, 127
    %vm7835 = vcmp.eq.s32.totalorder %v6889, 127
    %vm7836 = vcmp.eq.s32.totalorder %v6890, 127
    %v7837 = vsel %vm7805, 1.0, 0.0
    %v7838 = vsel %vm7806, 1.0, 0.0
    %v7839 = vsel %vm7807, 1.0, 0.0
    %v7840 = vsel %vm7808, 1.0, 0.0
    %v7841 = vsel %vm7809, 1.0, 0.0
    %v7842 = vsel %vm7810, 1.0, 0.0
    %v7843 = vsel %vm7811, 1.0, 0.0
    %v7844 = vsel %vm7812, 1.0, 0.0
    %v7845 = vsel %vm7813, 1.0, 0.0
    %v7846 = vsel %vm7814, 1.0, 0.0
    %v7847 = vsel %vm7815, 1.0, 0.0
    %v7848 = vsel %vm7816, 1.0, 0.0
    %v7849 = vsel %vm7817, 1.0, 0.0
    %v7850 = vsel %vm7818, 1.0, 0.0
    %v7851 = vsel %vm7819, 1.0, 0.0
    %v7852 = vsel %vm7820, 1.0, 0.0
    %v7853 = vsel %vm7821, 1.0, 0.0
    %v7854 = vsel %vm7822, 1.0, 0.0
    %v7855 = vsel %vm7823, 1.0, 0.0
    %v7856 = vsel %vm7824, 1.0, 0.0
    %v7857 = vsel %vm7825, 1.0, 0.0
    %v7858 = vsel %vm7826, 1.0, 0.0
    %v7859 = vsel %vm7827, 1.0, 0.0
    %v7860 = vsel %vm7828, 1.0, 0.0
    %v7861 = vsel %vm7829, 1.0, 0.0
    %v7862 = vsel %vm7830, 1.0, 0.0
    %v7863 = vsel %vm7831, 1.0, 0.0
    %v7864 = vsel %vm7832, 1.0, 0.0
    %v7865 = vsel %vm7833, 1.0, 0.0
    %v7866 = vsel %vm7834, 1.0, 0.0
    %v7867 = vsel %vm7835, 1.0, 0.0
    %v7868 = vsel %vm7836, 1.0, 0.0
    %v7869 = vlaneseq
    %v7870 = vshrl.u32 %v7869, 7
    %v7871 = vsub.s32 0, %v7870
    %v7872 = vrot.slane %v6745, %v7871
    %v7873 = vmul.f32 %v7837, %v7872
    %v7874 = vmul.f32 %v7838, %v7872
    %v7875 = vmul.f32 %v7839, %v7872
    %v7876 = vmul.f32 %v7840, %v7872
    %v7877 = vmul.f32 %v7841, %v7872
    %v7878 = vmul.f32 %v7842, %v7872
    %v7879 = vmul.f32 %v7843, %v7872
    %v7880 = vmul.f32 %v7844, %v7872
    %v7881 = vmul.f32 %v7845, %v7872
    %v7882 = vmul.f32 %v7846, %v7872
    %v7883 = vmul.f32 %v7847, %v7872
    %v7884 = vmul.f32 %v7848, %v7872
    %v7885 = vmul.f32 %v7849, %v7872
    %v7886 = vmul.f32 %v7850, %v7872
    %v7887 = vmul.f32 %v7851, %v7872
    %v7888 = vmul.f32 %v7852, %v7872
    %v7889 = vmul.f32 %v7853, %v7872
    %v7890 = vmul.f32 %v7854, %v7872
    %v7891 = vmul.f32 %v7855, %v7872
    %v7892 = vmul.f32 %v7856, %v7872
    %v7893 = vmul.f32 %v7857, %v7872
    %v7894 = vmul.f32 %v7858, %v7872
    %v7895 = vmul.f32 %v7859, %v7872
    %v7896 = vmul.f32 %v7860, %v7872
    %v7897 = vmul.f32 %v7861, %v7872
    %v7898 = vmul.f32 %v7862, %v7872
    %v7899 = vmul.f32 %v7863, %v7872
    %v7900 = vmul.f32 %v7864, %v7872
    %v7901 = vmul.f32 %v7865, %v7872
    %v7902 = vmul.f32 %v7866, %v7872
    %v7903 = vmul.f32 %v7867, %v7872
    %v7904 = vmul.f32 %v7868, %v7872
    %7937 = vrot.lane.b32.xlu0 %v7873, 64
    %v7938 = vpop.permute.xlu0 %7937
    %7939 = vrot.lane.b32.xlu0 %v7874, 64
    %v7940 = vpop.permute.xlu0 %7939
    %7941 = vrot.lane.b32.xlu0 %v7875, 64
    %v7942 = vpop.permute.xlu0 %7941
    %7943 = vrot.lane.b32.xlu0 %v7876, 64
    %v7944 = vpop.permute.xlu0 %7943
    %7945 = vrot.lane.b32.xlu0 %v7877, 64
    %v7946 = vpop.permute.xlu0 %7945
    %7947 = vrot.lane.b32.xlu0 %v7878, 64
    %v7948 = vpop.permute.xlu0 %7947
    %7949 = vrot.lane.b32.xlu0 %v7879, 64
    %v7950 = vpop.permute.xlu0 %7949
    %7951 = vrot.lane.b32.xlu0 %v7880, 64
    %v7952 = vpop.permute.xlu0 %7951
    %7953 = vrot.lane.b32.xlu0 %v7881, 64
    %v7954 = vpop.permute.xlu0 %7953
    %7955 = vrot.lane.b32.xlu0 %v7882, 64
    %v7956 = vpop.permute.xlu0 %7955
    %7957 = vrot.lane.b32.xlu0 %v7883, 64
    %v7958 = vpop.permute.xlu0 %7957
    %7959 = vrot.lane.b32.xlu0 %v7884, 64
    %v7960 = vpop.permute.xlu0 %7959
    %7961 = vrot.lane.b32.xlu0 %v7885, 64
    %v7962 = vpop.permute.xlu0 %7961
    %7963 = vrot.lane.b32.xlu0 %v7886, 64
    %v7964 = vpop.permute.xlu0 %7963
    %7965 = vrot.lane.b32.xlu0 %v7887, 64
    %v7966 = vpop.permute.xlu0 %7965
    %7967 = vrot.lane.b32.xlu0 %v7888, 64
    %v7968 = vpop.permute.xlu0 %7967
    %7969 = vrot.lane.b32.xlu0 %v7889, 64
    %v7970 = vpop.permute.xlu0 %7969
    %7971 = vrot.lane.b32.xlu0 %v7890, 64
    %v7972 = vpop.permute.xlu0 %7971
    %7973 = vrot.lane.b32.xlu0 %v7891, 64
    %v7974 = vpop.permute.xlu0 %7973
    %7975 = vrot.lane.b32.xlu0 %v7892, 64
    %v7976 = vpop.permute.xlu0 %7975
    %7977 = vrot.lane.b32.xlu0 %v7893, 64
    %v7978 = vpop.permute.xlu0 %7977
    %7979 = vrot.lane.b32.xlu0 %v7894, 64
    %v7980 = vpop.permute.xlu0 %7979
    %7981 = vrot.lane.b32.xlu0 %v7895, 64
    %v7982 = vpop.permute.xlu0 %7981
    %7983 = vrot.lane.b32.xlu0 %v7896, 64
    %v7984 = vpop.permute.xlu0 %7983
    %7985 = vrot.lane.b32.xlu0 %v7897, 64
    %v7986 = vpop.permute.xlu0 %7985
    %7987 = vrot.lane.b32.xlu0 %v7898, 64
    %v7988 = vpop.permute.xlu0 %7987
    %7989 = vrot.lane.b32.xlu0 %v7899, 64
    %v7990 = vpop.permute.xlu0 %7989
    %7991 = vrot.lane.b32.xlu0 %v7900, 64
    %v7992 = vpop.permute.xlu0 %7991
    %7993 = vrot.lane.b32.xlu0 %v7901, 64
    %v7994 = vpop.permute.xlu0 %7993
    %7995 = vrot.lane.b32.xlu0 %v7902, 64
    %v7996 = vpop.permute.xlu0 %7995
    %7997 = vrot.lane.b32.xlu0 %v7903, 64
    %v7998 = vpop.permute.xlu0 %7997
    %7999 = vrot.lane.b32.xlu0 %v7904, 64
    %v8000 = vpop.permute.xlu0 %7999
    %8033 = vmatprep.subr.bf16.mxu0 0
    %8034 = vmatpush1.bf16.msra.mxu0 %v6746
    %8035 = vmatprep.subr.bf16.mxu0 0
    %8036 = vmatpush1.bf16.msra.mxu0 %v6747
    %8037 = vmatprep.subr.bf16.mxu0 0
    %8038 = vmatpush1.bf16.msra.mxu0 %v6748
    %8039 = vmatprep.subr.bf16.mxu0 0
    %8040 = vmatpush1.bf16.msra.mxu0 %v6749
    %8041 = vmatprep.subr.bf16.mxu0 0
    %8042 = vmatpush1.bf16.msra.mxu0 %v6750
    %8043 = vmatprep.subr.bf16.mxu0 0
    %8044 = vmatpush1.bf16.msra.mxu0 %v6751
    %8045 = vmatprep.subr.bf16.mxu0 0
    %8046 = vmatpush1.bf16.msra.mxu0 %v6752
    %8047 = vmatprep.subr.bf16.mxu0 0
    %8048 = vmatpush1.bf16.msra.mxu0 %v6753
    %8049 = vmatprep.subr.bf16.mxu0 0
    %8050 = vmatpush1.bf16.msra.mxu0 %v6754
    %8051 = vmatprep.subr.bf16.mxu0 0
    %8052 = vmatpush1.bf16.msra.mxu0 %v6755
    %8053 = vmatprep.subr.bf16.mxu0 0
    %8054 = vmatpush1.bf16.msra.mxu0 %v6756
    %8055 = vmatprep.subr.bf16.mxu0 0
    %8056 = vmatpush1.bf16.msra.mxu0 %v6757
    %8057 = vmatprep.subr.bf16.mxu0 0
    %8058 = vmatpush1.bf16.msra.mxu0 %v6758
    %8059 = vmatprep.subr.bf16.mxu0 0
    %8060 = vmatpush1.bf16.msra.mxu0 %v6759
    %8061 = vmatprep.subr.bf16.mxu0 0
    %8062 = vmatpush1.bf16.msra.mxu0 %v6760
    %8063 = vmatprep.subr.bf16.mxu0 0
    %8064 = vmatpush1.bf16.msra.mxu0 %v6761
    %8065 = vmatprep.mubr.bf16.mxu0 %v7565
    %8066 = vmatmul.mubr.bf16.gmra.mrb[0].mxu0 %v7564
    %v8067 = vpop.f32.mrb[0].mxu0
    %v8068 = vadd.f32 %v7938, %v8067
    %v8069 = vpop.f32.mrb[0].mxu0
    %v8070 = vpop.f32.mrb[0].mxu0
    %v8071 = vadd.f32 %v7940, %v8070
    %v8072 = vpop.f32.mrb[0].mxu0
    %8073 = vmatprep.mubr.bf16.mxu0 %v7567
    %8074 = vmatmul.mubr.bf16.gmra.mrb[0].mxu0 %v7566
    %v8075 = vpop.f32.mrb[0].mxu0
    %v8076 = vadd.f32 %v7942, %v8075
    %v8077 = vpop.f32.mrb[0].mxu0
    %v8078 = vpop.f32.mrb[0].mxu0
    %v8079 = vadd.f32 %v7944, %v8078
    %v8080 = vpop.f32.mrb[0].mxu0
    %8081 = vmatprep.mubr.bf16.mxu0 %v7569
    %8082 = vmatmul.mubr.bf16.gmra.mrb[0].mxu0 %v7568
    %v8083 = vpop.f32.mrb[0].mxu0
    %v8084 = vadd.f32 %v7946, %v8083
    %v8085 = vpop.f32.mrb[0].mxu0
    %v8086 = vpop.f32.mrb[0].mxu0
    %v8087 = vadd.f32 %v7948, %v8086
    %v8088 = vpop.f32.mrb[0].mxu0
    %8089 = vmatprep.mubr.bf16.mxu0 %v7571
    %8090 = vmatmul.mubr.bf16.gmra.mrb[0].mxu0 %v7570
    %v8091 = vpop.f32.mrb[0].mxu0
    %v8092 = vadd.f32 %v7950, %v8091
    %v8093 = vpop.f32.mrb[0].mxu0
    %v8094 = vpop.f32.mrb[0].mxu0
    %v8095 = vadd.f32 %v7952, %v8094
    %v8096 = vpop.f32.mrb[0].mxu0
    %8097 = vmatprep.mubr.bf16.mxu0 %v7573
    %8098 = vmatmul.mubr.bf16.gmra.mrb[0].mxu0 %v7572
    %v8099 = vpop.f32.mrb[0].mxu0
    %v8100 = vadd.f32 %v7954, %v8099
    %v8101 = vpop.f32.mrb[0].mxu0
    %v8102 = vpop.f32.mrb[0].mxu0
    %v8103 = vadd.f32 %v7956, %v8102
    %v8104 = vpop.f32.mrb[0].mxu0
    %8105 = vmatprep.mubr.bf16.mxu0 %v7575
    %8106 = vmatmul.mubr.bf16.gmra.mrb[0].mxu0 %v7574
    %v8107 = vpop.f32.mrb[0].mxu0
    %v8108 = vadd.f32 %v7958, %v8107
    %v8109 = vpop.f32.mrb[0].mxu0
    %v8110 = vpop.f32.mrb[0].mxu0
    %v8111 = vadd.f32 %v7960, %v8110
    %v8112 = vpop.f32.mrb[0].mxu0
    %8113 = vmatprep.mubr.bf16.mxu0 %v7577
    %8114 = vmatmul.mubr.bf16.gmra.mrb[0].mxu0 %v7576
    %v8115 = vpop.f32.mrb[0].mxu0
    %v8116 = vadd.f32 %v7962, %v8115
    %v8117 = vpop.f32.mrb[0].mxu0
    %v8118 = vpop.f32.mrb[0].mxu0
    %v8119 = vadd.f32 %v7964, %v8118
    %v8120 = vpop.f32.mrb[0].mxu0
    %8121 = vmatprep.mubr.bf16.mxu0 %v7579
    %8122 = vmatmul.mubr.bf16.gmra.mrb[0].mxu0 %v7578
    %v8123 = vpop.f32.mrb[0].mxu0
    %v8124 = vadd.f32 %v7966, %v8123
    %v8125 = vpop.f32.mrb[0].mxu0
    %v8126 = vpop.f32.mrb[0].mxu0
    %v8127 = vadd.f32 %v7968, %v8126
    %v8128 = vpop.f32.mrb[0].mxu0
    %8129 = vmatprep.mubr.bf16.mxu0 %v7581
    %8130 = vmatmul.mubr.bf16.gmra.mrb[0].mxu0 %v7580
    %v8131 = vpop.f32.mrb[0].mxu0
    %v8132 = vadd.f32 %v7970, %v8131
    %v8133 = vpop.f32.mrb[0].mxu0
    %v8134 = vpop.f32.mrb[0].mxu0
    %v8135 = vadd.f32 %v7972, %v8134
    %v8136 = vpop.f32.mrb[0].mxu0
    %8137 = vmatprep.mubr.bf16.mxu0 %v7583
    %8138 = vmatmul.mubr.bf16.gmra.mrb[0].mxu0 %v7582
    %v8139 = vpop.f32.mrb[0].mxu0
    %v8140 = vadd.f32 %v7974, %v8139
    %v8141 = vpop.f32.mrb[0].mxu0
    %v8142 = vpop.f32.mrb[0].mxu0
    %v8143 = vadd.f32 %v7976, %v8142
    %v8144 = vpop.f32.mrb[0].mxu0
    %8145 = vmatprep.mubr.bf16.mxu0 %v7585
    %8146 = vmatmul.mubr.bf16.gmra.mrb[0].mxu0 %v7584
    %v8147 = vpop.f32.mrb[0].mxu0
    %v8148 = vadd.f32 %v7978, %v8147
    %v8149 = vpop.f32.mrb[0].mxu0
    %v8150 = vpop.f32.mrb[0].mxu0
    %v8151 = vadd.f32 %v7980, %v8150
    %v8152 = vpop.f32.mrb[0].mxu0
    %8153 = vmatprep.mubr.bf16.mxu0 %v7587
    %8154 = vmatmul.mubr.bf16.gmra.mrb[0].mxu0 %v7586
    %v8155 = vpop.f32.mrb[0].mxu0
    %v8156 = vadd.f32 %v7982, %v8155
    %v8157 = vpop.f32.mrb[0].mxu0
    %v8158 = vpop.f32.mrb[0].mxu0
    %v8159 = vadd.f32 %v7984, %v8158
    %v8160 = vpop.f32.mrb[0].mxu0
    %8161 = vmatprep.mubr.bf16.mxu0 %v7589
    %8162 = vmatmul.mubr.bf16.gmra.mrb[0].mxu0 %v7588
    %v8163 = vpop.f32.mrb[0].mxu0
    %v8164 = vadd.f32 %v7986, %v8163
    %v8165 = vpop.f32.mrb[0].mxu0
    %v8166 = vpop.f32.mrb[0].mxu0
    %v8167 = vadd.f32 %v7988, %v8166
    %v8168 = vpop.f32.mrb[0].mxu0
    %8169 = vmatprep.mubr.bf16.mxu0 %v7591
    %8170 = vmatmul.mubr.bf16.gmra.mrb[0].mxu0 %v7590
    %v8171 = vpop.f32.mrb[0].mxu0
    %v8172 = vadd.f32 %v7990, %v8171
    %v8173 = vpop.f32.mrb[0].mxu0
    %v8174 = vpop.f32.mrb[0].mxu0
    %v8175 = vadd.f32 %v7992, %v8174
    %v8176 = vpop.f32.mrb[0].mxu0
    %8177 = vmatprep.mubr.bf16.mxu0 %v7593
    %8178 = vmatmul.mubr.bf16.gmra.mrb[0].mxu0 %v7592
    %v8179 = vpop.f32.mrb[0].mxu0
    %v8180 = vadd.f32 %v7994, %v8179
    %v8181 = vpop.f32.mrb[0].mxu0
    %v8182 = vpop.f32.mrb[0].mxu0
    %v8183 = vadd.f32 %v7996, %v8182
    %v8184 = vpop.f32.mrb[0].mxu0
    %8185 = vmatprep.mubr.bf16.mxu0 %v7595
    %8186 = vmatmul.mubr.bf16.gmra.mrb[0].mxu0 %v7594
    %v8187 = vpop.f32.mrb[0].mxu0
    %v8188 = vadd.f32 %v7998, %v8187
    %v8189 = vpop.f32.mrb[0].mxu0
    %v8190 = vpop.f32.mrb[0].mxu0
    %v8191 = vadd.f32 %v8000, %v8190
    %v8192 = vpop.f32.mrb[0].mxu0
    %8193 = vdwg.mxu0
    %8226 = vrot.lane.b32.xlu0 %v6711, 32
    %v8227 = vpop.permute.xlu0 %8226
    %8228 = vrot.lane.b32.xlu0 %v6712, 32
    %v8229 = vpop.permute.xlu0 %8228
    %8230 = vrot.lane.b32.xlu0 %v6713, 32
    %v8231 = vpop.permute.xlu0 %8230
    %8232 = vrot.lane.b32.xlu0 %v6714, 32
    %v8233 = vpop.permute.xlu0 %8232
    %8234 = vrot.lane.b32.xlu0 %v6715, 32
    %v8235 = vpop.permute.xlu0 %8234
    %8236 = vrot.lane.b32.xlu0 %v6716, 32
    %v8237 = vpop.permute.xlu0 %8236
    %8238 = vrot.lane.b32.xlu0 %v6717, 32
    %v8239 = vpop.permute.xlu0 %8238
    %8240 = vrot.lane.b32.xlu0 %v6718, 32
    %v8241 = vpop.permute.xlu0 %8240
    %8242 = vrot.lane.b32.xlu0 %v6719, 32
    %v8243 = vpop.permute.xlu0 %8242
    %8244 = vrot.lane.b32.xlu0 %v6720, 32
    %v8245 = vpop.permute.xlu0 %8244
    %8246 = vrot.lane.b32.xlu0 %v6721, 32
    %v8247 = vpop.permute.xlu0 %8246
    %8248 = vrot.lane.b32.xlu0 %v6722, 32
    %v8249 = vpop.permute.xlu0 %8248
    %8250 = vrot.lane.b32.xlu0 %v6723, 32
    %v8251 = vpop.permute.xlu0 %8250
    %8252 = vrot.lane.b32.xlu0 %v6724, 32
    %v8253 = vpop.permute.xlu0 %8252
    %8254 = vrot.lane.b32.xlu0 %v6725, 32
    %v8255 = vpop.permute.xlu0 %8254
    %8256 = vrot.lane.b32.xlu0 %v6726, 32
    %v8257 = vpop.permute.xlu0 %8256
    %8258 = vrot.lane.b32.xlu0 %v6727, 32
    %v8259 = vpop.permute.xlu0 %8258
    %8260 = vrot.lane.b32.xlu0 %v6728, 32
    %v8261 = vpop.permute.xlu0 %8260
    %8262 = vrot.lane.b32.xlu0 %v6729, 32
    %v8263 = vpop.permute.xlu0 %8262
    %8264 = vrot.lane.b32.xlu0 %v6730, 32
    %v8265 = vpop.permute.xlu0 %8264
    %8266 = vrot.lane.b32.xlu0 %v6731, 32
    %v8267 = vpop.permute.xlu0 %8266
    %8268 = vrot.lane.b32.xlu0 %v6732, 32
    %v8269 = vpop.permute.xlu0 %8268
    %8270 = vrot.lane.b32.xlu0 %v6733, 32
    %v8271 = vpop.permute.xlu0 %8270
    %8272 = vrot.lane.b32.xlu0 %v6734, 32
    %v8273 = vpop.permute.xlu0 %8272
    %8274 = vrot.lane.b32.xlu0 %v6735, 32
    %v8275 = vpop.permute.xlu0 %8274
    %8276 = vrot.lane.b32.xlu0 %v6736, 32
    %v8277 = vpop.permute.xlu0 %8276
    %8278 = vrot.lane.b32.xlu0 %v6737, 32
    %v8279 = vpop.permute.xlu0 %8278
    %8280 = vrot.lane.b32.xlu0 %v6738, 32
    %v8281 = vpop.permute.xlu0 %8280
    %8282 = vrot.lane.b32.xlu0 %v6739, 32
    %v8283 = vpop.permute.xlu0 %8282
    %8284 = vrot.lane.b32.xlu0 %v6740, 32
    %v8285 = vpop.permute.xlu0 %8284
    %8286 = vrot.lane.b32.xlu0 %v6741, 32
    %v8287 = vpop.permute.xlu0 %8286
    %8288 = vrot.lane.b32.xlu0 %v6742, 32
    %v8289 = vpop.permute.xlu0 %8288
    %8354 = vrot.lane.b32.xlu0 %v8068, 32
    %v8355 = vpop.permute.xlu0 %8354
    %8356 = vrot.lane.b32.xlu0 %v8071, 32
    %v8357 = vpop.permute.xlu0 %8356
    %8358 = vrot.lane.b32.xlu0 %v8076, 32
    %v8359 = vpop.permute.xlu0 %8358
    %8360 = vrot.lane.b32.xlu0 %v8079, 32
    %v8361 = vpop.permute.xlu0 %8360
    %8362 = vrot.lane.b32.xlu0 %v8084, 32
    %v8363 = vpop.permute.xlu0 %8362
    %8364 = vrot.lane.b32.xlu0 %v8087, 32
    %v8365 = vpop.permute.xlu0 %8364
    %8366 = vrot.lane.b32.xlu0 %v8092, 32
    %v8367 = vpop.permute.xlu0 %8366
    %8368 = vrot.lane.b32.xlu0 %v8095, 32
    %v8369 = vpop.permute.xlu0 %8368
    %8370 = vrot.lane.b32.xlu0 %v8100, 32
    %v8371 = vpop.permute.xlu0 %8370
    %8372 = vrot.lane.b32.xlu0 %v8103, 32
    %v8373 = vpop.permute.xlu0 %8372
    %8374 = vrot.lane.b32.xlu0 %v8108, 32
    %v8375 = vpop.permute.xlu0 %8374
    %8376 = vrot.lane.b32.xlu0 %v8111, 32
    %v8377 = vpop.permute.xlu0 %8376
    %8378 = vrot.lane.b32.xlu0 %v8116, 32
    %v8379 = vpop.permute.xlu0 %8378
    %8380 = vrot.lane.b32.xlu0 %v8119, 32
    %v8381 = vpop.permute.xlu0 %8380
    %8382 = vrot.lane.b32.xlu0 %v8124, 32
    %v8383 = vpop.permute.xlu0 %8382
    %8384 = vrot.lane.b32.xlu0 %v8127, 32
    %v8385 = vpop.permute.xlu0 %8384
    %8386 = vrot.lane.b32.xlu0 %v8132, 32
    %v8387 = vpop.permute.xlu0 %8386
    %8388 = vrot.lane.b32.xlu0 %v8135, 32
    %v8389 = vpop.permute.xlu0 %8388
    %8390 = vrot.lane.b32.xlu0 %v8140, 32
    %v8391 = vpop.permute.xlu0 %8390
    %8392 = vrot.lane.b32.xlu0 %v8143, 32
    %v8393 = vpop.permute.xlu0 %8392
    %8394 = vrot.lane.b32.xlu0 %v8148, 32
    %v8395 = vpop.permute.xlu0 %8394
    %8396 = vrot.lane.b32.xlu0 %v8151, 32
    %v8397 = vpop.permute.xlu0 %8396
    %8398 = vrot.lane.b32.xlu0 %v8156, 32
    %v8399 = vpop.permute.xlu0 %8398
    %8400 = vrot.lane.b32.xlu0 %v8159, 32
    %v8401 = vpop.permute.xlu0 %8400
    %8402 = vrot.lane.b32.xlu0 %v8164, 32
    %v8403 = vpop.permute.xlu0 %8402
    %8404 = vrot.lane.b32.xlu0 %v8167, 32
    %v8405 = vpop.permute.xlu0 %8404
    %8406 = vrot.lane.b32.xlu0 %v8172, 32
    %v8407 = vpop.permute.xlu0 %8406
    %8408 = vrot.lane.b32.xlu0 %v8175, 32
    %v8409 = vpop.permute.xlu0 %8408
    %8410 = vrot.lane.b32.xlu0 %v8180, 32
    %v8411 = vpop.permute.xlu0 %8410
    %8412 = vrot.lane.b32.xlu0 %v8183, 32
    %v8413 = vpop.permute.xlu0 %8412
    %8414 = vrot.lane.b32.xlu0 %v8188, 32
    %v8415 = vpop.permute.xlu0 %8414
    %8416 = vrot.lane.b32.xlu0 %v8191, 32
    %v8417 = vpop.permute.xlu0 %8416
    %8482 = vrot.lane.b32.xlu0 %v7679, 64
    %v8483 = vpop.permute.xlu0 %8482
    %8484 = vrot.lane.b32.xlu0 %v7682, 64
    %v8485 = vpop.permute.xlu0 %8484
    %8486 = vrot.lane.b32.xlu0 %v7687, 64
    %v8487 = vpop.permute.xlu0 %8486
    %8488 = vrot.lane.b32.xlu0 %v7690, 64
    %v8489 = vpop.permute.xlu0 %8488
    %8490 = vrot.lane.b32.xlu0 %v7695, 64
    %v8491 = vpop.permute.xlu0 %8490
    %8492 = vrot.lane.b32.xlu0 %v7698, 64
    %v8493 = vpop.permute.xlu0 %8492
    %8494 = vrot.lane.b32.xlu0 %v7703, 64
    %v8495 = vpop.permute.xlu0 %8494
    %8496 = vrot.lane.b32.xlu0 %v7706, 64
    %v8497 = vpop.permute.xlu0 %8496
    %8498 = vrot.lane.b32.xlu0 %v7711, 64
    %v8499 = vpop.permute.xlu0 %8498
    %8500 = vrot.lane.b32.xlu0 %v7714, 64
    %v8501 = vpop.permute.xlu0 %8500
    %8502 = vrot.lane.b32.xlu0 %v7719, 64
    %v8503 = vpop.permute.xlu0 %8502
    %8504 = vrot.lane.b32.xlu0 %v7722, 64
    %v8505 = vpop.permute.xlu0 %8504
    %8506 = vrot.lane.b32.xlu0 %v7727, 64
    %v8507 = vpop.permute.xlu0 %8506
    %8508 = vrot.lane.b32.xlu0 %v7730, 64
    %v8509 = vpop.permute.xlu0 %8508
    %8510 = vrot.lane.b32.xlu0 %v7735, 64
    %v8511 = vpop.permute.xlu0 %8510
    %8512 = vrot.lane.b32.xlu0 %v7738, 64
    %v8513 = vpop.permute.xlu0 %8512
    %8514 = vrot.lane.b32.xlu0 %v7743, 64
    %v8515 = vpop.permute.xlu0 %8514
    %8516 = vrot.lane.b32.xlu0 %v7746, 64
    %v8517 = vpop.permute.xlu0 %8516
    %8518 = vrot.lane.b32.xlu0 %v7751, 64
    %v8519 = vpop.permute.xlu0 %8518
    %8520 = vrot.lane.b32.xlu0 %v7754, 64
    %v8521 = vpop.permute.xlu0 %8520
    %8522 = vrot.lane.b32.xlu0 %v7759, 64
    %v8523 = vpop.permute.xlu0 %8522
    %8524 = vrot.lane.b32.xlu0 %v7762, 64
    %v8525 = vpop.permute.xlu0 %8524
    %8526 = vrot.lane.b32.xlu0 %v7767, 64
    %v8527 = vpop.permute.xlu0 %8526
    %8528 = vrot.lane.b32.xlu0 %v7770, 64
    %v8529 = vpop.permute.xlu0 %8528
    %8530 = vrot.lane.b32.xlu0 %v7775, 64
    %v8531 = vpop.permute.xlu0 %8530
    %8532 = vrot.lane.b32.xlu0 %v7778, 64
    %v8533 = vpop.permute.xlu0 %8532
    %8534 = vrot.lane.b32.xlu0 %v7783, 64
    %v8535 = vpop.permute.xlu0 %8534
    %8536 = vrot.lane.b32.xlu0 %v7786, 64
    %v8537 = vpop.permute.xlu0 %8536
    %8538 = vrot.lane.b32.xlu0 %v7791, 64
    %v8539 = vpop.permute.xlu0 %8538
    %8540 = vrot.lane.b32.xlu0 %v7794, 64
    %v8541 = vpop.permute.xlu0 %8540
    %8542 = vrot.lane.b32.xlu0 %v7799, 64
    %v8543 = vpop.permute.xlu0 %8542
    %8544 = vrot.lane.b32.xlu0 %v7802, 64
    %v8545 = vpop.permute.xlu0 %8544
    %v8578 = vsel %vm443, %v7182, %v8227
    %v8579 = vsel %vm443, %v7185, %v8229
    %v8580 = vsel %vm443, %v7190, %v8231
    %v8581 = vsel %vm443, %v7193, %v8233
    %v8582 = vsel %vm443, %v7198, %v8235
    %v8583 = vsel %vm443, %v7201, %v8237
    %v8584 = vsel %vm443, %v7206, %v8239
    %v8585 = vsel %vm443, %v7209, %v8241
    %v8586 = vsel %vm443, %v7214, %v8243
    %v8587 = vsel %vm443, %v7217, %v8245
    %v8588 = vsel %vm443, %v7222, %v8247
    %v8589 = vsel %vm443, %v7225, %v8249
    %v8590 = vsel %vm443, %v7230, %v8251
    %v8591 = vsel %vm443, %v7233, %v8253
    %v8592 = vsel %vm443, %v7238, %v8255
    %v8593 = vsel %vm443, %v7241, %v8257
    %v8594 = vsel %vm443, %v7246, %v8259
    %v8595 = vsel %vm443, %v7249, %v8261
    %v8596 = vsel %vm443, %v7254, %v8263
    %v8597 = vsel %vm443, %v7257, %v8265
    %v8598 = vsel %vm443, %v7262, %v8267
    %v8599 = vsel %vm443, %v7265, %v8269
    %v8600 = vsel %vm443, %v7270, %v8271
    %v8601 = vsel %vm443, %v7273, %v8273
    %v8602 = vsel %vm443, %v7278, %v8275
    %v8603 = vsel %vm443, %v7281, %v8277
    %v8604 = vsel %vm443, %v7286, %v8279
    %v8605 = vsel %vm443, %v7289, %v8281
    %v8606 = vsel %vm443, %v7294, %v8283
    %v8607 = vsel %vm443, %v7297, %v8285
    %v8608 = vsel %vm443, %v7302, %v8287
    %v8609 = vsel %vm443, %v7305, %v8289
    %v8610 = vsel %vm443, %v8227, %v8355
    %v8611 = vsel %vm443, %v8229, %v8357
    %v8612 = vsel %vm443, %v8231, %v8359
    %v8613 = vsel %vm443, %v8233, %v8361
    %v8614 = vsel %vm443, %v8235, %v8363
    %v8615 = vsel %vm443, %v8237, %v8365
    %v8616 = vsel %vm443, %v8239, %v8367
    %v8617 = vsel %vm443, %v8241, %v8369
    %v8618 = vsel %vm443, %v8243, %v8371
    %v8619 = vsel %vm443, %v8245, %v8373
    %v8620 = vsel %vm443, %v8247, %v8375
    %v8621 = vsel %vm443, %v8249, %v8377
    %v8622 = vsel %vm443, %v8251, %v8379
    %v8623 = vsel %vm443, %v8253, %v8381
    %v8624 = vsel %vm443, %v8255, %v8383
    %v8625 = vsel %vm443, %v8257, %v8385
    %v8626 = vsel %vm443, %v8259, %v8387
    %v8627 = vsel %vm443, %v8261, %v8389
    %v8628 = vsel %vm443, %v8263, %v8391
    %v8629 = vsel %vm443, %v8265, %v8393
    %v8630 = vsel %vm443, %v8267, %v8395
    %v8631 = vsel %vm443, %v8269, %v8397
    %v8632 = vsel %vm443, %v8271, %v8399
    %v8633 = vsel %vm443, %v8273, %v8401
    %v8634 = vsel %vm443, %v8275, %v8403
    %v8635 = vsel %vm443, %v8277, %v8405
    %v8636 = vsel %vm443, %v8279, %v8407
    %v8637 = vsel %vm443, %v8281, %v8409
    %v8638 = vsel %vm443, %v8283, %v8411
    %v8639 = vsel %vm443, %v8285, %v8413
    %v8640 = vsel %vm443, %v8287, %v8415
    %v8641 = vsel %vm443, %v8289, %v8417
    %v8642 = vsel %vm258, %v8610, %v8483
    %v8643 = vsel %vm258, %v8611, %v8485
    %v8644 = vsel %vm258, %v8612, %v8487
    %v8645 = vsel %vm258, %v8613, %v8489
    %v8646 = vsel %vm258, %v8614, %v8491
    %v8647 = vsel %vm258, %v8615, %v8493
    %v8648 = vsel %vm258, %v8616, %v8495
    %v8649 = vsel %vm258, %v8617, %v8497
    %v8650 = vsel %vm258, %v8618, %v8499
    %v8651 = vsel %vm258, %v8619, %v8501
    %v8652 = vsel %vm258, %v8620, %v8503
    %v8653 = vsel %vm258, %v8621, %v8505
    %v8654 = vsel %vm258, %v8622, %v8507
    %v8655 = vsel %vm258, %v8623, %v8509
    %v8656 = vsel %vm258, %v8624, %v8511
    %v8657 = vsel %vm258, %v8625, %v8513
    %v8658 = vsel %vm258, %v8626, %v8515
    %v8659 = vsel %vm258, %v8627, %v8517
    %v8660 = vsel %vm258, %v8628, %v8519
    %v8661 = vsel %vm258, %v8629, %v8521
    %v8662 = vsel %vm258, %v8630, %v8523
    %v8663 = vsel %vm258, %v8631, %v8525
    %v8664 = vsel %vm258, %v8632, %v8527
    %v8665 = vsel %vm258, %v8633, %v8529
    %v8666 = vsel %vm258, %v8634, %v8531
    %v8667 = vsel %vm258, %v8635, %v8533
    %v8668 = vsel %vm258, %v8636, %v8535
    %v8669 = vsel %vm258, %v8637, %v8537
    %v8670 = vsel %vm258, %v8638, %v8539
    %v8671 = vsel %vm258, %v8639, %v8541
    %v8672 = vsel %vm258, %v8640, %v8543
    %v8673 = vsel %vm258, %v8641, %v8545
    %v8674 = vld [vmem:[%s14] sm:$0xf]
    %v8675 = vld [vmem:[%s14 + $0x4] sm:$0xf]
    %v8676 = vld [vmem:[%s14 + $0x8] sm:$0xf]
    %v8677 = vld [vmem:[%s14 + $0xc] sm:$0xf]
    %v8678 = vld [vmem:[%s14 + $0x10] sm:$0xf]
    %v8679 = vld [vmem:[%s14 + $0x14] sm:$0xf]
    %v8680 = vld [vmem:[%s14 + $0x18] sm:$0xf]
    %v8681 = vld [vmem:[%s14 + $0x1c] sm:$0xf]
    %v8682 = vld [vmem:[%s14 + $0x20] sm:$0xf]
    %v8683 = vld [vmem:[%s14 + $0x24] sm:$0xf]
    %v8684 = vld [vmem:[%s14 + $0x28] sm:$0xf]
    %v8685 = vld [vmem:[%s14 + $0x2c] sm:$0xf]
    %v8686 = vld [vmem:[%s14 + $0x30] sm:$0xf]
    %v8687 = vld [vmem:[%s14 + $0x34] sm:$0xf]
    %v8688 = vld [vmem:[%s14 + $0x38] sm:$0xf]
    %v8689 = vld [vmem:[%s14 + $0x3c] sm:$0xf]
    %v8690 = vld [vmem:[%s14 + $0x40] sm:$0xf]
    %v8691 = vld [vmem:[%s14 + $0x44] sm:$0xf]
    %v8692 = vld [vmem:[%s14 + $0x48] sm:$0xf]
    %v8693 = vld [vmem:[%s14 + $0x4c] sm:$0xf]
    %v8694 = vld [vmem:[%s14 + $0x50] sm:$0xf]
    %v8695 = vld [vmem:[%s14 + $0x54] sm:$0xf]
    %v8696 = vld [vmem:[%s14 + $0x58] sm:$0xf]
    %v8697 = vld [vmem:[%s14 + $0x5c] sm:$0xf]
    %v8698 = vld [vmem:[%s14 + $0x60] sm:$0xf]
    %v8699 = vld [vmem:[%s14 + $0x64] sm:$0xf]
    %v8700 = vld [vmem:[%s14 + $0x68] sm:$0xf]
    %v8701 = vld [vmem:[%s14 + $0x6c] sm:$0xf]
    %v8702 = vpack.c.bf16 %v8579, %v8578
    %v8703 = vpack.c.bf16 %v8643, %v8642
    %v8704 = vpack.c.bf16 %v8581, %v8580
    %v8705 = vpack.c.bf16 %v8645, %v8644
    %v8706 = vpack.c.bf16 %v8583, %v8582
    %v8707 = vpack.c.bf16 %v8647, %v8646
    %v8708 = vpack.c.bf16 %v8585, %v8584
    %v8709 = vpack.c.bf16 %v8649, %v8648
    %v8710 = vpack.c.bf16 %v8587, %v8586
    %v8711 = vpack.c.bf16 %v8651, %v8650
    %v8712 = vpack.c.bf16 %v8589, %v8588
    %v8713 = vpack.c.bf16 %v8653, %v8652
    %v8714 = vpack.c.bf16 %v8591, %v8590
    %v8715 = vpack.c.bf16 %v8655, %v8654
    %v8716 = vpack.c.bf16 %v8593, %v8592
    %v8717 = vpack.c.bf16 %v8657, %v8656
    %v8718 = vpack.c.bf16 %v8595, %v8594
    %v8719 = vpack.c.bf16 %v8659, %v8658
    %v8720 = vpack.c.bf16 %v8597, %v8596
    %v8721 = vpack.c.bf16 %v8661, %v8660
    %v8722 = vpack.c.bf16 %v8599, %v8598
    %v8723 = vpack.c.bf16 %v8663, %v8662
    %v8724 = vpack.c.bf16 %v8601, %v8600
    %v8725 = vpack.c.bf16 %v8665, %v8664
    %v8726 = vpack.c.bf16 %v8603, %v8602
    %v8727 = vpack.c.bf16 %v8667, %v8666
    %v8728 = vpack.c.bf16 %v8605, %v8604
    %v8729 = vpack.c.bf16 %v8669, %v8668
    %v8730 = vpack.c.bf16 %v8607, %v8606
    %v8731 = vpack.c.bf16 %v8671, %v8670
    %v8732 = vpack.c.bf16 %v8609, %v8608
    %v8733 = vpack.c.bf16 %v8673, %v8672
    %v8734 = vld [vmem:[#allocation2] sm:$0x1]
    %v8736 = vlaneseq
    %v8737 = vshrl.u32 %v8736, 7
    %v8738 = vsub.s32 0, %v8737
    %v8739 = vrot.slane %v8734, %v8738
    %8740 = vset.pattern.permute.xlu0 0
    %8741 = vperm.xlu0 %8740, %v8739
    %v8742 = vpop.permute.xlu0 %8741
    %v8772 = vunpack.c.l.b16 %v8674
    %v8773 = vunpack.c.l.b16 %v8675
    %v8774 = vunpack.c.l.b16 %v8676
    %v8775 = vunpack.c.l.b16 %v8677
    %v8776 = vunpack.c.l.b16 %v8678
    %v8777 = vunpack.c.l.b16 %v8679
    %v8778 = vunpack.c.l.b16 %v8680
    %v8779 = vunpack.c.l.b16 %v8681
    %v8780 = vunpack.c.l.b16 %v8682
    %v8781 = vunpack.c.l.b16 %v8683
    %v8782 = vunpack.c.l.b16 %v8684
    %v8783 = vunpack.c.l.b16 %v8685
    %v8784 = vunpack.c.l.b16 %v8686
    %v8785 = vunpack.c.l.b16 %v8687
    %v8786 = vunpack.c.l.b16 %v8688
    %v8787 = vunpack.c.l.b16 %v8689
    %v8788 = vunpack.c.l.b16 %v8690
    %v8789 = vunpack.c.l.b16 %v8691
    %v8790 = vunpack.c.l.b16 %v8692
    %v8791 = vunpack.c.l.b16 %v8693
    %v8792 = vunpack.c.l.b16 %v8694
    %v8793 = vunpack.c.l.b16 %v8695
    %v8794 = vunpack.c.l.b16 %v8696
    %v8795 = vunpack.c.l.b16 %v8697
    %v8796 = vunpack.c.l.b16 %v8698
    %v8797 = vunpack.c.l.b16 %v8699
    %v8798 = vunpack.c.l.b16 %v8700
    %v8799 = vunpack.c.l.b16 %v8701
    %v8800 = vpack.c.b16 %v8773, %v8772
    %v8801 = vpack.c.b16 %v8775, %v8774
    %v8802 = vpack.c.b16 %v8777, %v8776
    %v8803 = vpack.c.b16 %v8779, %v8778
    %v8804 = vpack.c.b16 %v8781, %v8780
    %v8805 = vpack.c.b16 %v8783, %v8782
    %v8806 = vpack.c.b16 %v8785, %v8784
    %v8807 = vpack.c.b16 %v8787, %v8786
    %v8808 = vpack.c.b16 %v8789, %v8788
    %v8809 = vpack.c.b16 %v8791, %v8790
    %v8810 = vpack.c.b16 %v8793, %v8792
    %v8811 = vpack.c.b16 %v8795, %v8794
    %v8812 = vpack.c.b16 %v8797, %v8796
    %v8813 = vpack.c.b16 %v8799, %v8798
    %v8829 = vsel %vm446, %v8703, 0
    %v8832 = vsel %vm446, %v8705, 0
    %v8835 = vsel %vm446, %v8707, 0
    %v8838 = vsel %vm446, %v8709, 0
    %v8841 = vsel %vm446, %v8711, 0
    %v8844 = vsel %vm446, %v8713, 0
    %v8847 = vsel %vm446, %v8715, 0
    %v8850 = vsel %vm446, %v8717, 0
    %v8853 = vsel %vm446, %v8719, 0
    %v8856 = vsel %vm446, %v8721, 0
    %v8859 = vsel %vm446, %v8723, 0
    %v8862 = vsel %vm446, %v8725, 0
    %v8865 = vsel %vm446, %v8727, 0
    %v8868 = vsel %vm446, %v8729, 0
    %v8871 = vsel %vm446, %v8731, 0
    %v8874 = vsel %vm446, %v8733, 0
    %8876 = vmatprep.subr.bf16.mxu0 0
    %8877 = vmatpush1.bf16.msra.mxu0 %v8800
    %8878 = vmatprep.subr.bf16.mxu0 0
    %8879 = vmatpush1.bf16.msra.mxu0 %v8801
    %8880 = vmatprep.subr.bf16.mxu0 0
    %8881 = vmatpush1.bf16.msra.mxu0 %v8802
    %8882 = vmatprep.subr.bf16.mxu0 0
    %8883 = vmatpush1.bf16.msra.mxu0 %v8803
    %8884 = vmatprep.subr.bf16.mxu0 0
    %8885 = vmatpush1.bf16.msra.mxu0 %v8804
    %8886 = vmatprep.subr.bf16.mxu0 0
    %8887 = vmatpush1.bf16.msra.mxu0 %v8805
    %8888 = vmatprep.subr.bf16.mxu0 0
    %8889 = vmatpush1.bf16.msra.mxu0 %v8806
    %8890 = vmatprep.subr.bf16.mxu0 0
    %8891 = vmatpush1.bf16.msra.mxu0 %v8807
    %8892 = vmatprep.subr.bf16.mxu0 0
    %8893 = vmatpush1.bf16.msra.mxu0 %v8808
    %8894 = vmatprep.subr.bf16.mxu0 0
    %8895 = vmatpush1.bf16.msra.mxu0 %v8809
    %8896 = vmatprep.subr.bf16.mxu0 0
    %8897 = vmatpush1.bf16.msra.mxu0 %v8810
    %8898 = vmatprep.subr.bf16.mxu0 0
    %8899 = vmatpush1.bf16.msra.mxu0 %v8811
    %8900 = vmatprep.subr.bf16.mxu0 0
    %8901 = vmatpush1.bf16.msra.mxu0 %v8812
    %8902 = vmatprep.subr.bf16.mxu0 0
    %8903 = vmatpush1.bf16.msra.mxu0 %v8813
    %8904 = vmatprep.subr.bf16.mxu0 0
    %8905 = vmatpush1.bf16.msra.mxu0 0
    %8906 = vmatprep.subr.bf16.mxu0 0
    %8907 = vmatpush1.bf16.msra.mxu0 0
    %8908 = vmatprep.mubr.bf16.mxu0 %v8829
    %8909 = vmatmul.mubr.bf16.gmra.mrb[0].mxu0 %v8702
    %v8910 = vpop.f32.mrb[0].mxu0
    %v8911 = vadd.f32 %v8742, %v8910
    %v8912 = vpop.f32.mrb[0].mxu0
    %v8913 = vpop.f32.mrb[0].mxu0
    %v8914 = vadd.f32 %v8742, %v8913
    %v8915 = vpop.f32.mrb[0].mxu0
    %8916 = vmatprep.mubr.bf16.mxu0 %v8832
    %8917 = vmatmul.mubr.bf16.gmra.mrb[0].mxu0 %v8704
    %v8918 = vpop.f32.mrb[0].mxu0
    %v8919 = vadd.f32 %v8742, %v8918
    %v8920 = vpop.f32.mrb[0].mxu0
    %v8921 = vpop.f32.mrb[0].mxu0
    %v8922 = vadd.f32 %v8742, %v8921
    %v8923 = vpop.f32.mrb[0].mxu0
    %8924 = vmatprep.mubr.bf16.mxu0 %v8835
    %8925 = vmatmul.mubr.bf16.gmra.mrb[0].mxu0 %v8706
    %v8926 = vpop.f32.mrb[0].mxu0
    %v8927 = vadd.f32 %v8742, %v8926
    %v8928 = vpop.f32.mrb[0].mxu0
    %v8929 = vpop.f32.mrb[0].mxu0
    %v8930 = vadd.f32 %v8742, %v8929
    %v8931 = vpop.f32.mrb[0].mxu0
    %8932 = vmatprep.mubr.bf16.mxu0 %v8838
    %8933 = vmatmul.mubr.bf16.gmra.mrb[0].mxu0 %v8708
    %v8934 = vpop.f32.mrb[0].mxu0
    %v8935 = vadd.f32 %v8742, %v8934
    %v8936 = vpop.f32.mrb[0].mxu0
    %v8937 = vpop.f32.mrb[0].mxu0
    %v8938 = vadd.f32 %v8742, %v8937
    %v8939 = vpop.f32.mrb[0].mxu0
    %8940 = vmatprep.mubr.bf16.mxu0 %v8841
    %8941 = vmatmul.mubr.bf16.gmra.mrb[0].mxu0 %v8710
    %v8942 = vpop.f32.mrb[0].mxu0
    %v8943 = vadd.f32 %v8742, %v8942
    %v8944 = vpop.f32.mrb[0].mxu0
    %v8945 = vpop.f32.mrb[0].mxu0
    %v8946 = vadd.f32 %v8742, %v8945
    %v8947 = vpop.f32.mrb[0].mxu0
    %8948 = vmatprep.mubr.bf16.mxu0 %v8844
    %8949 = vmatmul.mubr.bf16.gmra.mrb[0].mxu0 %v8712
    %v8950 = vpop.f32.mrb[0].mxu0
    %v8951 = vadd.f32 %v8742, %v8950
    %v8952 = vpop.f32.mrb[0].mxu0
    %v8953 = vpop.f32.mrb[0].mxu0
    %v8954 = vadd.f32 %v8742, %v8953
    %v8955 = vpop.f32.mrb[0].mxu0
    %8956 = vmatprep.mubr.bf16.mxu0 %v8847
    %8957 = vmatmul.mubr.bf16.gmra.mrb[0].mxu0 %v8714
    %v8958 = vpop.f32.mrb[0].mxu0
    %v8959 = vadd.f32 %v8742, %v8958
    %v8960 = vpop.f32.mrb[0].mxu0
    %v8961 = vpop.f32.mrb[0].mxu0
    %v8962 = vadd.f32 %v8742, %v8961
    %v8963 = vpop.f32.mrb[0].mxu0
    %8964 = vmatprep.mubr.bf16.mxu0 %v8850
    %8965 = vmatmul.mubr.bf16.gmra.mrb[0].mxu0 %v8716
    %v8966 = vpop.f32.mrb[0].mxu0
    %v8967 = vadd.f32 %v8742, %v8966
    %v8968 = vpop.f32.mrb[0].mxu0
    %v8969 = vpop.f32.mrb[0].mxu0
    %v8970 = vadd.f32 %v8742, %v8969
    %v8971 = vpop.f32.mrb[0].mxu0
    %8972 = vmatprep.mubr.bf16.mxu0 %v8853
    %8973 = vmatmul.mubr.bf16.gmra.mrb[0].mxu0 %v8718
    %v8974 = vpop.f32.mrb[0].mxu0
    %v8975 = vadd.f32 %v8742, %v8974
    %v8976 = vpop.f32.mrb[0].mxu0
    %v8977 = vpop.f32.mrb[0].mxu0
    %v8978 = vadd.f32 %v8742, %v8977
    %v8979 = vpop.f32.mrb[0].mxu0
    %8980 = vmatprep.mubr.bf16.mxu0 %v8856
    %8981 = vmatmul.mubr.bf16.gmra.mrb[0].mxu0 %v8720
    %v8982 = vpop.f32.mrb[0].mxu0
    %v8983 = vadd.f32 %v8742, %v8982
    %v8984 = vpop.f32.mrb[0].mxu0
    %v8985 = vpop.f32.mrb[0].mxu0
    %v8986 = vadd.f32 %v8742, %v8985
    %v8987 = vpop.f32.mrb[0].mxu0
    %8988 = vmatprep.mubr.bf16.mxu0 %v8859
    %8989 = vmatmul.mubr.bf16.gmra.mrb[0].mxu0 %v8722
    %v8990 = vpop.f32.mrb[0].mxu0
    %v8991 = vadd.f32 %v8742, %v8990
    %v8992 = vpop.f32.mrb[0].mxu0
    %v8993 = vpop.f32.mrb[0].mxu0
    %v8994 = vadd.f32 %v8742, %v8993
    %v8995 = vpop.f32.mrb[0].mxu0
    %8996 = vmatprep.mubr.bf16.mxu0 %v8862
    %8997 = vmatmul.mubr.bf16.gmra.mrb[0].mxu0 %v8724
    %v8998 = vpop.f32.mrb[0].mxu0
    %v8999 = vadd.f32 %v8742, %v8998
    %v9000 = vpop.f32.mrb[0].mxu0
    %v9001 = vpop.f32.mrb[0].mxu0
    %v9002 = vadd.f32 %v8742, %v9001
    %v9003 = vpop.f32.mrb[0].mxu0
    %9004 = vmatprep.mubr.bf16.mxu0 %v8865
    %9005 = vmatmul.mubr.bf16.gmra.mrb[0].mxu0 %v8726
    %v9006 = vpop.f32.mrb[0].mxu0
    %v9007 = vadd.f32 %v8742, %v9006
    %v9008 = vpop.f32.mrb[0].mxu0
    %v9009 = vpop.f32.mrb[0].mxu0
    %v9010 = vadd.f32 %v8742, %v9009
    %v9011 = vpop.f32.mrb[0].mxu0
    %9012 = vmatprep.mubr.bf16.mxu0 %v8868
    %9013 = vmatmul.mubr.bf16.gmra.mrb[0].mxu0 %v8728
    %v9014 = vpop.f32.mrb[0].mxu0
    %v9015 = vadd.f32 %v8742, %v9014
    %v9016 = vpop.f32.mrb[0].mxu0
    %v9017 = vpop.f32.mrb[0].mxu0
    %v9018 = vadd.f32 %v8742, %v9017
    %v9019 = vpop.f32.mrb[0].mxu0
    %9020 = vmatprep.mubr.bf16.mxu0 %v8871
    %9021 = vmatmul.mubr.bf16.gmra.mrb[0].mxu0 %v8730
    %v9022 = vpop.f32.mrb[0].mxu0
    %v9023 = vadd.f32 %v8742, %v9022
    %v9024 = vpop.f32.mrb[0].mxu0
    %v9025 = vpop.f32.mrb[0].mxu0
    %v9026 = vadd.f32 %v8742, %v9025
    %v9027 = vpop.f32.mrb[0].mxu0
    %9028 = vmatprep.mubr.bf16.mxu0 %v8874
    %9029 = vmatmul.mubr.bf16.gmra.mrb[0].mxu0 %v8732
    %v9030 = vpop.f32.mrb[0].mxu0
    %v9031 = vadd.f32 %v8742, %v9030
    %v9032 = vpop.f32.mrb[0].mxu0
    %v9033 = vpop.f32.mrb[0].mxu0
    %v9034 = vadd.f32 %v8742, %v9033
    %v9035 = vpop.f32.mrb[0].mxu0
    %9036 = vdwg.mxu0
    %9037 = vst.msk [vmem:[%s19] sm:$0xff] %vm2323, %v8911
    %9038 = vst.msk [vmem:[%s19 + $0x8] sm:$0xff] %vm2323, %v8914
    %9039 = vst.msk [vmem:[%s19 + $0x10] sm:$0xff] %vm2323, %v8919
    %9040 = vst.msk [vmem:[%s19 + $0x18] sm:$0xff] %vm2323, %v8922
    %9041 = vst.msk [vmem:[%s19 + $0x20] sm:$0xff] %vm2323, %v8927
    %9042 = vst.msk [vmem:[%s19 + $0x28] sm:$0xff] %vm2323, %v8930
    %9043 = vst.msk [vmem:[%s19 + $0x30] sm:$0xff] %vm2323, %v8935
    %9044 = vst.msk [vmem:[%s19 + $0x38] sm:$0xff] %vm2323, %v8938
    %9045 = vst.msk [vmem:[%s19 + $0x40] sm:$0xff] %vm2323, %v8943
    %9046 = vst.msk [vmem:[%s19 + $0x48] sm:$0xff] %vm2323, %v8946
    %9047 = vst.msk [vmem:[%s19 + $0x50] sm:$0xff] %vm2323, %v8951
    %9048 = vst.msk [vmem:[%s19 + $0x58] sm:$0xff] %vm2323, %v8954
    %9049 = vst.msk [vmem:[%s19 + $0x60] sm:$0xff] %vm2323, %v8959
    %9050 = vst.msk [vmem:[%s19 + $0x68] sm:$0xff] %vm2323, %v8962
    %9051 = vst.msk [vmem:[%s19 + $0x70] sm:$0xff] %vm2323, %v8967
    %9052 = vst.msk [vmem:[%s19 + $0x78] sm:$0xff] %vm2323, %v8970
    %9053 = vst.msk [vmem:[%s19 + $0x80] sm:$0xff] %vm2323, %v8975
    %9054 = vst.msk [vmem:[%s19 + $0x88] sm:$0xff] %vm2323, %v8978
    %9055 = vst.msk [vmem:[%s19 + $0x90] sm:$0xff] %vm2323, %v8983
    %9056 = vst.msk [vmem:[%s19 + $0x98] sm:$0xff] %vm2323, %v8986
    %9057 = vst.msk [vmem:[%s19 + $0xa0] sm:$0xff] %vm2323, %v8991
    %9058 = vst.msk [vmem:[%s19 + $0xa8] sm:$0xff] %vm2323, %v8994
    %9059 = vst.msk [vmem:[%s19 + $0xb0] sm:$0xff] %vm2323, %v8999
    %9060 = vst.msk [vmem:[%s19 + $0xb8] sm:$0xff] %vm2323, %v9002
    %9061 = vst.msk [vmem:[%s19 + $0xc0] sm:$0xff] %vm2323, %v9007
    %9062 = vst.msk [vmem:[%s19 + $0xc8] sm:$0xff] %vm2323, %v9010
    %9063 = vst.msk [vmem:[%s19 + $0xd0] sm:$0xff] %vm2323, %v9015
    %9064 = vst.msk [vmem:[%s19 + $0xd8] sm:$0xff] %vm2323, %v9018
    %9065 = vst.msk [vmem:[%s19 + $0xe0] sm:$0xff] %vm2323, %v9023
    %9066 = vst.msk [vmem:[%s19 + $0xe8] sm:$0xff] %vm2323, %v9026
    %9067 = vst.msk [vmem:[%s19 + $0xf0] sm:$0xff] %vm2323, %v9031
    %9068 = vst.msk [vmem:[%s19 + $0xf8] sm:$0xff] %vm2323, %v9034
    // Predicated region
    $region98: #{beta_vae1d_forward.1} parent=1 // pred_check
      _
    $region99: #{beta_vae1d_forward.1} parent=1 // pred_check_branch
      %9070 = sbr.rel (0) target = $region101
    $region100: #{beta_vae1d_forward.1} parent=1 // pred_region
      %s9072 = ssub.s32 32, 32
      %9073 = vsyncadd [#allocation5], %s9072
      %s9075 = sshll.u32 [#allocation15], 4
      %s9076 = int_to_ptr.vmem [resolvable:$true] %s9075
      %9078 = dma.vmem_to_hbm [thread:$0]  %s9076, 32, %s17, [#allocation5]
    $region101: #{beta_vae1d_forward.1} parent=1 // pred_fallthru
      _
    // Predicated region
    $region102: #{beta_vae1d_forward.1} parent=1 // pred_check
      _
    $region103: #{beta_vae1d_forward.1} parent=1 // pred_check_branch
      %9080 = sbr.rel (0) target = $region105
    $region104: #{beta_vae1d_forward.1} parent=1 // pred_region
      %s9082 = ssub.s32 32, 32
      %9083 = vsyncadd [#allocation17], %s9082
      %s9085 = sshll.u32 [#allocation16], 4
      %s9086 = int_to_ptr.vmem [resolvable:$true] %s9085
      %9088 = dma.vmem_to_hbm [thread:$0]  %s9086, 32, %s18, [#allocation17]
    $region105: #{beta_vae1d_forward.1} parent=1 // pred_fallthru
      _
    // Predicated region
    $region106: #{beta_vae1d_forward.1} parent=1 // pred_check
      _
    $region107: #{beta_vae1d_forward.1} parent=1 // pred_check_branch
      %9090 = sbr.rel (0) target = $region109
    $region108: #{beta_vae1d_forward.1} parent=1 // pred_region
      _
    $region109: #{beta_vae1d_forward.1} parent=1 // pred_fallthru
      _
    // Predicated region
    $region110: #{beta_vae1d_forward.1} parent=1 // pred_check
      _
    $region111: #{beta_vae1d_forward.1} parent=1 // pred_check_branch
      %9092 = sbr.rel (0) target = $region113
    $region112: #{beta_vae1d_forward.1} parent=1 // pred_region
      %9093 = dma.done [#allocation5], 32
    $region113: #{beta_vae1d_forward.1} parent=1 // pred_fallthru
      _
    // Predicated region
    $region114: #{beta_vae1d_forward.1} parent=1 // pred_check
      _
    $region115: #{beta_vae1d_forward.1} parent=1 // pred_check_branch
      %9095 = sbr.rel (0) target = $region117
    $region116: #{beta_vae1d_forward.1} parent=1 // pred_region
      %9096 = dma.done [#allocation17], 32
    $region117: #{beta_vae1d_forward.1} parent=1 // pred_fallthru
      _
    // Predicated region
    $region118: #{beta_vae1d_forward.1} parent=1 // pred_check
      _
    $region119: #{beta_vae1d_forward.1} parent=1 // pred_check_branch
      %9098 = sbr.rel (0) target = $region121
    $region120: #{beta_vae1d_forward.1} parent=1 // pred_region
      _
    $region121: #{beta_vae1d_forward.1} parent=1 // pred_fallthru
      _
    %9099 = vsyncpa [#allocation4], 1
    %9100 = vsyncpa [#allocation7], 1
    %9101 = vsyncpa [#allocation10], 1
    %9102 = vsyncpa [#allocation13], 1
    %9103 = vsyncpa [#allocation5], 1
    %9104 = vsyncpa [#allocation17], 1

</llo_original>
